<compile_context>
chip_gen: v7x
topology: tpu7x:2x2x1
jax: 0.10.0
libtpu: 0.0.40
codegen_flags: <defaults>
</compile_context>

<pallas_src>
import math
import functools

import jax
import jax.numpy as jnp
from jax.experimental import pallas as pl
from jax.experimental.pallas import tpu as pltpu


# ---------------------------------------------------------------------------
# Kernel
# ---------------------------------------------------------------------------
def _isab_kernel(x_ref, q0_ref, wx_ref, bx_ref, wo0_ref, bo0_ref,
                 wh_ref, bh_ref, wo1_ref, bo1_ref, o_ref,
                 *, num_heads, block_b):
    """One batch block (TB elements) per grid step, both MABs fused.

    x_ref  : (1, TB*N, dim_in)                 lane-contiguous X block
    q0_ref : (num_inds, dim_V)                 precomputed I @ wq0 + bq0
    wx_ref : (dim_in, 3*dim_V)  [wk0*s | wv0 | wq1]   (MXU dtype)
    wh_ref : (dim_V, 2*dim_V)   [wk1*s | wv1]         (MXU dtype)
    wo*    : (dim_V, dim_V)     fc_o weights          (MXU dtype)
    b*     : (1, C) f32 biases (bk* pre-scaled by 1/sqrt(dim_V))
    o_ref  : (1, TB, N*dim_V) if widened, else (1, TB*N, dim_V)
    """
    f32 = jnp.float32
    c = wx_ref.dtype                     # MXU operand dtype (bf16 or f32)

    TB = block_b
    rows, dim_in = x_ref.shape[1], x_ref.shape[2]
    N = rows // TB
    M, dim_V = q0_ref.shape
    dh = dim_V // num_heads

    x2 = x_ref[0]                         # (TB*N, dim_in)

    def mha(q, k3, v3, q_shared):
        """torch-MAB multi-head attention + residual.
        q: (Lq, dim_V) if q_shared (broadcast over batch) else (TB, Lq, dim_V);
        k3/v3: (TB, Lk, dim_V).  K already carries the 1/sqrt(dim_V) score
        scale.  Heads are static lane slices; each head runs one batched
        (single batch dim) MXU einsum pair.  Softmax stats stay f32."""
        Lq = q.shape[-2]
        outs = []
        for h in range(num_heads):
            lo = h * dh
            if q_shared:
                qh = jnp.broadcast_to(q[None, :, lo:lo + dh], (TB, Lq, dh))
            else:
                qh = q[:, :, lo:lo + dh]
            kh = k3[:, :, lo:lo + dh]
            vh = v3[:, :, lo:lo + dh]
            s = jnp.einsum('bqd,bkd->bqk', qh.astype(c), kh.astype(c),
                           preferred_element_type=f32)
            s = s - jnp.max(s, axis=-1, keepdims=True)
            p = jnp.exp(s)
            a = p * pl.reciprocal(jnp.sum(p, axis=-1, keepdims=True), approx=True)
            o = jnp.einsum('bqk,bkd->bqd', a.astype(c), vh.astype(c),
                           preferred_element_type=f32)
            outs.append(qh + o)                            # residual, f32
        return jnp.concatenate(outs, axis=-1)              # (TB, Lq, dim_V)

    # ---- fused projection over X: [K0*scale | V0 | Q1] ----------------------
    px = jnp.dot(x2.astype(c), wx_ref[...], preferred_element_type=f32) + bx_ref[...]
    k0 = px[:, :dim_V].reshape(TB, N, dim_V)
    v0 = px[:, dim_V:2 * dim_V].reshape(TB, N, dim_V)
    q1 = px[:, 2 * dim_V:].reshape(TB, N, dim_V)

    # ---- MAB0: H = MAB(I, X) -------------------------------------------------
    h2 = mha(q0_ref[...], k0, v0, q_shared=True).reshape(TB * M, dim_V)
    hset = h2 + jnp.maximum(
        jnp.dot(h2.astype(c), wo0_ref[...], preferred_element_type=f32)
        + bo0_ref[...], 0.0)

    # ---- fused projection over H: [K1*scale | V1] ----------------------------
    ph = jnp.dot(hset.astype(c), wh_ref[...], preferred_element_type=f32) + bh_ref[...]
    k1 = ph[:, :dim_V].reshape(TB, M, dim_V)
    v1 = ph[:, dim_V:].reshape(TB, M, dim_V)

    # ---- MAB1: out = MAB(X, H) ------------------------------------------------
    y2 = mha(q1, k1, v1, q_shared=False).reshape(TB * N, dim_V)
    y2 = y2 + jnp.maximum(
        jnp.dot(y2.astype(c), wo1_ref[...], preferred_element_type=f32)
        + bo1_ref[...], 0.0)

    if o_ref.shape[-1] == dim_V:
        # dim_V is already a lane-aligned width (or widening disabled).
        o_ref[0] = y2.astype(o_ref.dtype)
    else:
        # Widen rows to N*dim_V lanes so the output stores are wide/unmasked
        # (lane-dense out block is the biggest single measured lever).  Built
        # with a lane concat (guaranteed to lower) instead of a minor-dim-
        # changing reshape.
        y3 = y2.reshape(TB, N, dim_V)                      # leading-dim split
        wide = jnp.concatenate([y3[:, n, :] for n in range(N)], axis=-1)
        o_ref[0] = wide.astype(o_ref.dtype)


# ---------------------------------------------------------------------------
# Wrapper
# ---------------------------------------------------------------------------
def _pick_block_b(B, N, target_rows=512):
    """Largest divisor TB of B with TB*N <= target_rows rows per projection GEMM
    (v5e/v6e: 128 MiB VMEM, one TC -> just take the fattest block).  Prefer an
    even number of grid steps for v7x's two TensorCores, but never at the cost
    of more than halving the block."""
    divs = [d for d in range(1, B + 1) if B % d == 0]
    cand = [d for d in divs if d * N <= target_rows] or [1]
    tb = max(cand)
    steps = B // tb
    if steps < 2 or steps % 2 == 1:
        even = [d for d in cand if (B // d) >= 2 and (B // d) % 2 == 0 and 2 * d >= tb]
        if even:
            tb = max(even)
    return tb


def pack_isab_params(params, *, num_heads, mxu_dtype=jnp.bfloat16):
    """One-time parameter preprocessing (NOT per forward call):
      * Q0 = I @ wq0 + bq0 precomputed (input independent).
      * 1/sqrt(dim_V) score scale folded into fc_k (K only ever feeds scores).
      * Shared-LHS projection weights concatenated into wide GEMM matrices.
      * Matmul weights cast to the MXU operand dtype (bf16 by default on
        v6e/v7x); biases, Q0 and all accumulation stay f32."""
    I = params["I"]
    p0, p1 = params["mab0"], params["mab1"]
    dim_V = I.shape[1]
    assert dim_V % num_heads == 0
    scale = 1.0 / math.sqrt(dim_V)

    q0 = jnp.asarray(I @ p0["wq"] + p0["bq"], jnp.float32)            # (num_inds, dim_V)
    wx = jnp.concatenate([p0["wk"] * scale, p0["wv"], p1["wq"]], axis=1)
    bx = jnp.concatenate([p0["bk"] * scale, p0["bv"], p1["bq"]], axis=1)
    wh = jnp.concatenate([p1["wk"] * scale, p1["wv"]], axis=1)
    bh = jnp.concatenate([p1["bk"] * scale, p1["bv"]], axis=1)

    return dict(
        q0=q0,
        wx=wx.astype(mxu_dtype), bx=jnp.asarray(bx, jnp.float32),
        wo0=p0["wo"].astype(mxu_dtype), bo0=jnp.asarray(p0["bo"], jnp.float32),
        wh=wh.astype(mxu_dtype), bh=jnp.asarray(bh, jnp.float32),
        wo1=p1["wo"].astype(mxu_dtype), bo1=jnp.asarray(p1["bo"], jnp.float32),
    )


def isab_forward(x, packed, *, num_heads, block_b=None, target_rows=512,
                 vmem_limit_bytes=64 * 1024 * 1024):
    """x: (B, N, dim_in) f32; packed: output of pack_isab_params."""
    B, N, dim_in = x.shape
    M, dim_V = packed["q0"].shape
    assert dim_V % num_heads == 0

    TB = _pick_block_b(B, N, target_rows) if block_b is None else block_b
    assert B % TB == 0, "batch must be divisible by the batch block"
    G = B // TB

    # Lane-contiguous X blocks; free reshape outside the kernel.
    x3 = x.reshape(G, TB * N, dim_in)

    # Widen the output rows whenever dim_V itself is not lane-aligned (and the
    # set is small enough for the in-kernel lane concat to stay cheap).
    widen = (dim_V % 128 != 0) and N <= 32
    out_block = (1, TB, N * dim_V) if widen else (1, TB * N, dim_V)
    out_shape = (G,) + out_block[1:]

    def const2(a):
        return pl.BlockSpec(a.shape, lambda b: (0, 0))    # grid-resident block

    kernel = functools.partial(_isab_kernel, num_heads=num_heads, block_b=TB)

    out = pl.pallas_call(
        kernel,
        out_shape=jax.ShapeDtypeStruct(out_shape, jnp.float32),
        grid_spec=pltpu.PrefetchScalarGridSpec(
            num_scalar_prefetch=0,
            grid=(G,),
            in_specs=[
                pl.BlockSpec((1, TB * N, dim_in), lambda b: (b, 0, 0)),   # X block
                const2(packed["q0"]),
                const2(packed["wx"]), const2(packed["bx"]),
                const2(packed["wo0"]), const2(packed["bo0"]),
                const2(packed["wh"]), const2(packed["bh"]),
                const2(packed["wo1"]), const2(packed["bo1"]),
            ],
            out_specs=pl.BlockSpec(out_block, lambda b: (b, 0, 0)),
        ),
        compiler_params=pltpu.CompilerParams(
            dimension_semantics=("parallel",),
            vmem_limit_bytes=vmem_limit_bytes),
    )(x3, packed["q0"], packed["wx"], packed["bx"], packed["wo0"], packed["bo0"],
      packed["wh"], packed["bh"], packed["wo1"], packed["bo1"])

    return out.reshape(B, N, dim_V)


# ---------------------------------------------------------------------------
# Parameters & pure-JAX reference (PyTorch-faithful)
# ---------------------------------------------------------------------------
def _init_linear(key, fan_in, fan_out):
    """PyTorch-style uniform init; weight returned as (in, out)."""
    kw, kb = jax.random.split(key)
    bound = 1.0 / math.sqrt(fan_in)
    w = jax.random.uniform(kw, (fan_in, fan_out), jnp.float32, -bound, bound)
    b = jax.random.uniform(kb, (1, fan_out), jnp.float32, -bound, bound)
    return w, b


def _make_mab_params(key, dim_Q, dim_K, dim_V):
    kq, kk, kv, ko = jax.random.split(key, 4)
    wq, bq = _init_linear(kq, dim_Q, dim_V)
    wk, bk = _init_linear(kk, dim_K, dim_V)
    wv, bv = _init_linear(kv, dim_K, dim_V)
    wo, bo = _init_linear(ko, dim_V, dim_V)
    return dict(wq=wq, bq=bq, wk=wk, bk=bk, wv=wv, bv=bv, wo=wo, bo=bo)


def make_isab_params(key, dim_in, dim_out, num_inds):
    ki, k0, k1 = jax.random.split(key, 3)
    bound = math.sqrt(6.0 / (num_inds + dim_out))          # xavier_uniform
    I = jax.random.uniform(ki, (num_inds, dim_out), jnp.float32, -bound, bound)
    return dict(
        I=I,
        mab0=_make_mab_params(k0, dim_out, dim_in, dim_out),
        mab1=_make_mab_params(k1, dim_in, dim_out, dim_out),
    )


def _mab_reference(Qin, Kin, p, *, num_heads):
    dim_V = p["wq"].shape[1]
    Q = Qin @ p["wq"] + p["bq"]
    K = Kin @ p["wk"] + p["bk"]
    V = Kin @ p["wv"] + p["bv"]
    Qh = jnp.concatenate(jnp.split(Q, num_heads, axis=2), axis=0)
    Kh = jnp.concatenate(jnp.split(K, num_heads, axis=2), axis=0)
    Vh = jnp.concatenate(jnp.split(V, num_heads, axis=2), axis=0)
    A = jax.nn.softmax(
        jnp.einsum("bnd,bmd->bnm", Qh, Kh) / math.sqrt(dim_V), axis=-1)
    O = Qh + jnp.einsum("bnm,bmd->bnd", A, Vh)
    O = jnp.concatenate(jnp.split(O, num_heads, axis=0), axis=2)
    return O + jax.nn.relu(O @ p["wo"] + p["bo"])


def isab_reference(x, params, *, num_heads):
    B = x.shape[0]
    I = jnp.broadcast_to(params["I"][None], (B,) + params["I"].shape)
    H = _mab_reference(I, x, params["mab0"], num_heads=num_heads)
    return _mab_reference(x, H, params["mab1"], num_heads=num_heads)


# ---------------------------------------------------------------------------
# Demo / smoke test
# ---------------------------------------------------------------------------
if __name__ == "__main__":
    B, N, dim_in, dim_out, num_heads, num_inds = 8, 8, 16, 32, 4, 8

    key = jax.random.PRNGKey(0)
    kx, kp = jax.random.split(key)
    x = jax.random.normal(kx, (B, N, dim_in), jnp.float32)
    params = make_isab_params(kp, dim_in, dim_out, num_inds)
    ref = isab_reference(x, params, num_heads=num_heads)

    # Exact (f32 MXU) path: only the approx softmax reciprocal differs.
    packed_f32 = pack_isab_params(params, num_heads=num_heads, mxu_dtype=jnp.float32)
    out_f32 = jax.block_until_ready(isab_forward(x, packed_f32, num_heads=num_heads))
    assert out_f32.shape == (B, N, dim_out)
    err_f32 = float(jnp.max(jnp.abs(out_f32 - ref)))
    assert jnp.allclose(out_f32, ref, atol=5e-3, rtol=5e-3), \
        f"f32 mismatch vs JAX reference (max abs err {err_f32})"

    # bf16 MXU operands, f32 accumulation (fast path on v6e/v7x).
    packed_bf16 = pack_isab_params(params, num_heads=num_heads, mxu_dtype=jnp.bfloat16)
    out_bf16 = jax.block_until_ready(isab_forward(x, packed_bf16, num_heads=num_heads))
    err_bf16 = float(jnp.max(jnp.abs(out_bf16 - ref)))
    assert jnp.allclose(out_bf16, ref, atol=5e-2, rtol=5e-2), \
        f"bf16 mismatch vs JAX reference (max abs err {err_bf16})"

    print("KERNEL_OK")
</pallas_src>

<mosaic_0001>
module attributes {stable_mosaic.version = 11 : i64} {
  func.func @_isab_kernel(%arg0: i32, %arg1: memref<1x32x16xf32, #tpu.memory_space<vmem>>, %arg2: memref<8x32xf32, #tpu.memory_space<vmem>>, %arg3: memref<16x96xf32, #tpu.memory_space<vmem>>, %arg4: memref<1x96xf32, #tpu.memory_space<vmem>>, %arg5: memref<32x32xf32, #tpu.memory_space<vmem>>, %arg6: memref<1x32xf32, #tpu.memory_space<vmem>>, %arg7: memref<32x64xf32, #tpu.memory_space<vmem>>, %arg8: memref<1x64xf32, #tpu.memory_space<vmem>>, %arg9: memref<32x32xf32, #tpu.memory_space<vmem>>, %arg10: memref<1x32xf32, #tpu.memory_space<vmem>>, %arg11: memref<1x4x256xf32, #tpu.memory_space<vmem>>) attributes {dimension_semantics = [#tpu.dimension_semantics<parallel>], iteration_bounds = array<i64: 2>, scalar_prefetch = 0 : i64, scratch_operands = 0 : i64, tpu.core_type = #tpu.core_type<tc>, window_params = [{transform_indices = @transform_0, window_bounds = array<i64: 1, 32, 16>}, {pipeline_mode = #tpu.pipeline_mode<synchronous>, transform_indices = @transform_1, window_bounds = array<i64: 8, 32>}, {pipeline_mode = #tpu.pipeline_mode<synchronous>, transform_indices = @transform_2, window_bounds = array<i64: 16, 96>}, {pipeline_mode = #tpu.pipeline_mode<synchronous>, transform_indices = @transform_3, window_bounds = array<i64: 1, 96>}, {pipeline_mode = #tpu.pipeline_mode<synchronous>, transform_indices = @transform_4, window_bounds = array<i64: 32, 32>}, {pipeline_mode = #tpu.pipeline_mode<synchronous>, transform_indices = @transform_5, window_bounds = array<i64: 1, 32>}, {pipeline_mode = #tpu.pipeline_mode<synchronous>, transform_indices = @transform_6, window_bounds = array<i64: 32, 64>}, {pipeline_mode = #tpu.pipeline_mode<synchronous>, transform_indices = @transform_7, window_bounds = array<i64: 1, 64>}, {pipeline_mode = #tpu.pipeline_mode<synchronous>, transform_indices = @transform_8, window_bounds = array<i64: 32, 32>}, {pipeline_mode = #tpu.pipeline_mode<synchronous>, transform_indices = @transform_9, window_bounds = array<i64: 1, 32>}, {transform_indices = @transform_10, window_bounds = array<i64: 1, 4, 256>}]} {
    %c0 = arith.constant 0 : index
    %c0_0 = arith.constant 0 : index
    %c0_1 = arith.constant 0 : index
    %0 = vector.load %arg1[%c0, %c0_0, %c0_1] : memref<1x32x16xf32, #tpu.memory_space<vmem>>, vector<1x32x16xf32>
    %1 = vector.shape_cast %0 : vector<1x32x16xf32> to vector<32x16xf32>
    %c0_2 = arith.constant 0 : index
    %c0_3 = arith.constant 0 : index
    %2 = vector.load %arg3[%c0_2, %c0_3] : memref<16x96xf32, #tpu.memory_space<vmem>>, vector<16x96xf32>
    %cst = arith.constant dense<0.000000e+00> : vector<32x96xf32>
    %3 = tpu.matmul %1, %2, %cst {dimension_numbers = #tpu.dot_dimension_numbers<[1], [0], [0], [1], [0, 0, 1, 1], [], []>} : vector<32x16xf32>, vector<16x96xf32>, vector<32x96xf32> -> vector<32x96xf32>
    %c0_4 = arith.constant 0 : index
    %c0_5 = arith.constant 0 : index
    %4 = vector.load %arg4[%c0_4, %c0_5] : memref<1x96xf32, #tpu.memory_space<vmem>>, vector<1x96xf32>
    %5 = vector.broadcast %4 : vector<1x96xf32> to vector<32x96xf32>
    %6 = arith.addf %3, %5 : vector<32x96xf32>
    %7 = vector.extract_strided_slice %6 {offsets = [0, 0], sizes = [32, 32], strides = [1, 1]} : vector<32x96xf32> to vector<32x32xf32>
    %8 = vector.shape_cast %7 : vector<32x32xf32> to vector<4x8x32xf32>
    %9 = vector.extract_strided_slice %6 {offsets = [0, 32], sizes = [32, 32], strides = [1, 1]} : vector<32x96xf32> to vector<32x32xf32>
    %10 = vector.shape_cast %9 : vector<32x32xf32> to vector<4x8x32xf32>
    %11 = vector.extract_strided_slice %6 {offsets = [0, 64], sizes = [32, 32], strides = [1, 1]} : vector<32x96xf32> to vector<32x32xf32>
    %12 = vector.shape_cast %11 : vector<32x32xf32> to vector<4x8x32xf32>
    %c0_6 = arith.constant 0 : index
    %c0_7 = arith.constant 0 : index
    %13 = vector.load %arg2[%c0_6, %c0_7] : memref<8x32xf32, #tpu.memory_space<vmem>>, vector<8x32xf32>
    %14 = vector.extract_strided_slice %13 {offsets = [0, 0], sizes = [8, 8], strides = [1, 1]} : vector<8x32xf32> to vector<8x8xf32>
    %15 = vector.shape_cast %14 : vector<8x8xf32> to vector<1x8x8xf32>
    %16 = vector.shape_cast %15 : vector<1x8x8xf32> to vector<1x8x8xf32>
    %17 = vector.broadcast %16 : vector<1x8x8xf32> to vector<4x8x8xf32>
    %18 = vector.extract_strided_slice %8 {offsets = [0, 0, 0], sizes = [4, 8, 8], strides = [1, 1, 1]} : vector<4x8x32xf32> to vector<4x8x8xf32>
    %19 = vector.extract_strided_slice %10 {offsets = [0, 0, 0], sizes = [4, 8, 8], strides = [1, 1, 1]} : vector<4x8x32xf32> to vector<4x8x8xf32>
    "tpu.trace_start"() <{level = 10 : i32, message = "bqd,bkd->bqk"}> : () -> ()
    %cst_8 = arith.constant dense<0.000000e+00> : vector<4x8x8xf32>
    %20 = tpu.matmul %17, %18, %cst_8 {dimension_numbers = #tpu.dot_dimension_numbers<[2], [2], [1], [1], [0, 0, 0, 1, 1, 1], [0], [0]>} : vector<4x8x8xf32>, vector<4x8x8xf32>, vector<4x8x8xf32> -> vector<4x8x8xf32>
    "tpu.trace_stop"() : () -> ()
    %cst_9 = arith.constant dense<0xFF800000> : vector<4x8xf32>
    %21 = vector.multi_reduction <maximumf>, %20, %cst_9 [2] : vector<4x8x8xf32> to vector<4x8xf32>
    %22 = vector.shape_cast %21 : vector<4x8xf32> to vector<4x8x1xf32>
    %23 = vector.broadcast %22 : vector<4x8x1xf32> to vector<4x8x8xf32>
    %24 = arith.subf %20, %23 : vector<4x8x8xf32>
    %25 = math.exp %24 : vector<4x8x8xf32>
    %cst_10 = arith.constant dense<0.000000e+00> : vector<4x8xf32>
    %26 = vector.multi_reduction <add>, %25, %cst_10 [2] : vector<4x8x8xf32> to vector<4x8xf32>
    %27 = vector.shape_cast %26 : vector<4x8xf32> to vector<4x8x1xf32>
    %28 = tpu.reciprocal %27 {approx = true} : vector<4x8x1xf32> -> vector<4x8x1xf32>
    %29 = vector.broadcast %28 : vector<4x8x1xf32> to vector<4x8x8xf32>
    %30 = arith.mulf %25, %29 : vector<4x8x8xf32>
    "tpu.trace_start"() <{level = 10 : i32, message = "bqk,bkd->bqd"}> : () -> ()
    %cst_11 = arith.constant dense<0.000000e+00> : vector<4x8x8xf32>
    %31 = tpu.matmul %30, %19, %cst_11 {dimension_numbers = #tpu.dot_dimension_numbers<[2], [1], [1], [2], [0, 0, 0, 1, 1, 2], [0], [0]>} : vector<4x8x8xf32>, vector<4x8x8xf32>, vector<4x8x8xf32> -> vector<4x8x8xf32>
    "tpu.trace_stop"() : () -> ()
    %32 = arith.addf %17, %31 : vector<4x8x8xf32>
    %33 = vector.extract_strided_slice %13 {offsets = [0, 8], sizes = [8, 8], strides = [1, 1]} : vector<8x32xf32> to vector<8x8xf32>
    %34 = vector.shape_cast %33 : vector<8x8xf32> to vector<1x8x8xf32>
    %35 = vector.shape_cast %34 : vector<1x8x8xf32> to vector<1x8x8xf32>
    %36 = vector.broadcast %35 : vector<1x8x8xf32> to vector<4x8x8xf32>
    %37 = vector.extract_strided_slice %8 {offsets = [0, 0, 8], sizes = [4, 8, 8], strides = [1, 1, 1]} : vector<4x8x32xf32> to vector<4x8x8xf32>
    %38 = vector.extract_strided_slice %10 {offsets = [0, 0, 8], sizes = [4, 8, 8], strides = [1, 1, 1]} : vector<4x8x32xf32> to vector<4x8x8xf32>
    "tpu.trace_start"() <{level = 10 : i32, message = "bqd,bkd->bqk"}> : () -> ()
    %cst_12 = arith.constant dense<0.000000e+00> : vector<4x8x8xf32>
    %39 = tpu.matmul %36, %37, %cst_12 {dimension_numbers = #tpu.dot_dimension_numbers<[2], [2], [1], [1], [0, 0, 0, 1, 1, 1], [0], [0]>} : vector<4x8x8xf32>, vector<4x8x8xf32>, vector<4x8x8xf32> -> vector<4x8x8xf32>
    "tpu.trace_stop"() : () -> ()
    %cst_13 = arith.constant dense<0xFF800000> : vector<4x8xf32>
    %40 = vector.multi_reduction <maximumf>, %39, %cst_13 [2] : vector<4x8x8xf32> to vector<4x8xf32>
    %41 = vector.shape_cast %40 : vector<4x8xf32> to vector<4x8x1xf32>
    %42 = vector.broadcast %41 : vector<4x8x1xf32> to vector<4x8x8xf32>
    %43 = arith.subf %39, %42 : vector<4x8x8xf32>
    %44 = math.exp %43 : vector<4x8x8xf32>
    %cst_14 = arith.constant dense<0.000000e+00> : vector<4x8xf32>
    %45 = vector.multi_reduction <add>, %44, %cst_14 [2] : vector<4x8x8xf32> to vector<4x8xf32>
    %46 = vector.shape_cast %45 : vector<4x8xf32> to vector<4x8x1xf32>
    %47 = tpu.reciprocal %46 {approx = true} : vector<4x8x1xf32> -> vector<4x8x1xf32>
    %48 = vector.broadcast %47 : vector<4x8x1xf32> to vector<4x8x8xf32>
    %49 = arith.mulf %44, %48 : vector<4x8x8xf32>
    "tpu.trace_start"() <{level = 10 : i32, message = "bqk,bkd->bqd"}> : () -> ()
    %cst_15 = arith.constant dense<0.000000e+00> : vector<4x8x8xf32>
    %50 = tpu.matmul %49, %38, %cst_15 {dimension_numbers = #tpu.dot_dimension_numbers<[2], [1], [1], [2], [0, 0, 0, 1, 1, 2], [0], [0]>} : vector<4x8x8xf32>, vector<4x8x8xf32>, vector<4x8x8xf32> -> vector<4x8x8xf32>
    "tpu.trace_stop"() : () -> ()
    %51 = arith.addf %36, %50 : vector<4x8x8xf32>
    %52 = vector.extract_strided_slice %13 {offsets = [0, 16], sizes = [8, 8], strides = [1, 1]} : vector<8x32xf32> to vector<8x8xf32>
    %53 = vector.shape_cast %52 : vector<8x8xf32> to vector<1x8x8xf32>
    %54 = vector.shape_cast %53 : vector<1x8x8xf32> to vector<1x8x8xf32>
    %55 = vector.broadcast %54 : vector<1x8x8xf32> to vector<4x8x8xf32>
    %56 = vector.extract_strided_slice %8 {offsets = [0, 0, 16], sizes = [4, 8, 8], strides = [1, 1, 1]} : vector<4x8x32xf32> to vector<4x8x8xf32>
    %57 = vector.extract_strided_slice %10 {offsets = [0, 0, 16], sizes = [4, 8, 8], strides = [1, 1, 1]} : vector<4x8x32xf32> to vector<4x8x8xf32>
    "tpu.trace_start"() <{level = 10 : i32, message = "bqd,bkd->bqk"}> : () -> ()
    %cst_16 = arith.constant dense<0.000000e+00> : vector<4x8x8xf32>
    %58 = tpu.matmul %55, %56, %cst_16 {dimension_numbers = #tpu.dot_dimension_numbers<[2], [2], [1], [1], [0, 0, 0, 1, 1, 1], [0], [0]>} : vector<4x8x8xf32>, vector<4x8x8xf32>, vector<4x8x8xf32> -> vector<4x8x8xf32>
    "tpu.trace_stop"() : () -> ()
    %cst_17 = arith.constant dense<0xFF800000> : vector<4x8xf32>
    %59 = vector.multi_reduction <maximumf>, %58, %cst_17 [2] : vector<4x8x8xf32> to vector<4x8xf32>
    %60 = vector.shape_cast %59 : vector<4x8xf32> to vector<4x8x1xf32>
    %61 = vector.broadcast %60 : vector<4x8x1xf32> to vector<4x8x8xf32>
    %62 = arith.subf %58, %61 : vector<4x8x8xf32>
    %63 = math.exp %62 : vector<4x8x8xf32>
    %cst_18 = arith.constant dense<0.000000e+00> : vector<4x8xf32>
    %64 = vector.multi_reduction <add>, %63, %cst_18 [2] : vector<4x8x8xf32> to vector<4x8xf32>
    %65 = vector.shape_cast %64 : vector<4x8xf32> to vector<4x8x1xf32>
    %66 = tpu.reciprocal %65 {approx = true} : vector<4x8x1xf32> -> vector<4x8x1xf32>
    %67 = vector.broadcast %66 : vector<4x8x1xf32> to vector<4x8x8xf32>
    %68 = arith.mulf %63, %67 : vector<4x8x8xf32>
    "tpu.trace_start"() <{level = 10 : i32, message = "bqk,bkd->bqd"}> : () -> ()
    %cst_19 = arith.constant dense<0.000000e+00> : vector<4x8x8xf32>
    %69 = tpu.matmul %68, %57, %cst_19 {dimension_numbers = #tpu.dot_dimension_numbers<[2], [1], [1], [2], [0, 0, 0, 1, 1, 2], [0], [0]>} : vector<4x8x8xf32>, vector<4x8x8xf32>, vector<4x8x8xf32> -> vector<4x8x8xf32>
    "tpu.trace_stop"() : () -> ()
    %70 = arith.addf %55, %69 : vector<4x8x8xf32>
    %71 = vector.extract_strided_slice %13 {offsets = [0, 24], sizes = [8, 8], strides = [1, 1]} : vector<8x32xf32> to vector<8x8xf32>
    %72 = vector.shape_cast %71 : vector<8x8xf32> to vector<1x8x8xf32>
    %73 = vector.shape_cast %72 : vector<1x8x8xf32> to vector<1x8x8xf32>
    %74 = vector.broadcast %73 : vector<1x8x8xf32> to vector<4x8x8xf32>
    %75 = vector.extract_strided_slice %8 {offsets = [0, 0, 24], sizes = [4, 8, 8], strides = [1, 1, 1]} : vector<4x8x32xf32> to vector<4x8x8xf32>
    %76 = vector.extract_strided_slice %10 {offsets = [0, 0, 24], sizes = [4, 8, 8], strides = [1, 1, 1]} : vector<4x8x32xf32> to vector<4x8x8xf32>
    "tpu.trace_start"() <{level = 10 : i32, message = "bqd,bkd->bqk"}> : () -> ()
    %cst_20 = arith.constant dense<0.000000e+00> : vector<4x8x8xf32>
    %77 = tpu.matmul %74, %75, %cst_20 {dimension_numbers = #tpu.dot_dimension_numbers<[2], [2], [1], [1], [0, 0, 0, 1, 1, 1], [0], [0]>} : vector<4x8x8xf32>, vector<4x8x8xf32>, vector<4x8x8xf32> -> vector<4x8x8xf32>
    "tpu.trace_stop"() : () -> ()
    %cst_21 = arith.constant dense<0xFF800000> : vector<4x8xf32>
    %78 = vector.multi_reduction <maximumf>, %77, %cst_21 [2] : vector<4x8x8xf32> to vector<4x8xf32>
    %79 = vector.shape_cast %78 : vector<4x8xf32> to vector<4x8x1xf32>
    %80 = vector.broadcast %79 : vector<4x8x1xf32> to vector<4x8x8xf32>
    %81 = arith.subf %77, %80 : vector<4x8x8xf32>
    %82 = math.exp %81 : vector<4x8x8xf32>
    %cst_22 = arith.constant dense<0.000000e+00> : vector<4x8xf32>
    %83 = vector.multi_reduction <add>, %82, %cst_22 [2] : vector<4x8x8xf32> to vector<4x8xf32>
    %84 = vector.shape_cast %83 : vector<4x8xf32> to vector<4x8x1xf32>
    %85 = tpu.reciprocal %84 {approx = true} : vector<4x8x1xf32> -> vector<4x8x1xf32>
    %86 = vector.broadcast %85 : vector<4x8x1xf32> to vector<4x8x8xf32>
    %87 = arith.mulf %82, %86 : vector<4x8x8xf32>
    "tpu.trace_start"() <{level = 10 : i32, message = "bqk,bkd->bqd"}> : () -> ()
    %cst_23 = arith.constant dense<0.000000e+00> : vector<4x8x8xf32>
    %88 = tpu.matmul %87, %76, %cst_23 {dimension_numbers = #tpu.dot_dimension_numbers<[2], [1], [1], [2], [0, 0, 0, 1, 1, 2], [0], [0]>} : vector<4x8x8xf32>, vector<4x8x8xf32>, vector<4x8x8xf32> -> vector<4x8x8xf32>
    "tpu.trace_stop"() : () -> ()
    %89 = arith.addf %74, %88 : vector<4x8x8xf32>
    %90 = tpu.concatenate %32, %51, %70, %89 in 2 : vector<4x8x8xf32>, vector<4x8x8xf32>, vector<4x8x8xf32>, vector<4x8x8xf32> -> vector<4x8x32xf32>
    %91 = vector.shape_cast %90 : vector<4x8x32xf32> to vector<32x32xf32>
    %c0_24 = arith.constant 0 : index
    %c0_25 = arith.constant 0 : index
    %92 = vector.load %arg5[%c0_24, %c0_25] : memref<32x32xf32, #tpu.memory_space<vmem>>, vector<32x32xf32>
    %cst_26 = arith.constant dense<0.000000e+00> : vector<32x32xf32>
    %93 = tpu.matmul %91, %92, %cst_26 {dimension_numbers = #tpu.dot_dimension_numbers<[1], [0], [0], [1], [0, 0, 1, 1], [], []>} : vector<32x32xf32>, vector<32x32xf32>, vector<32x32xf32> -> vector<32x32xf32>
    %c0_27 = arith.constant 0 : index
    %c0_28 = arith.constant 0 : index
    %94 = vector.load %arg6[%c0_27, %c0_28] : memref<1x32xf32, #tpu.memory_space<vmem>>, vector<1x32xf32>
    %95 = vector.broadcast %94 : vector<1x32xf32> to vector<32x32xf32>
    %96 = arith.addf %93, %95 : vector<32x32xf32>
    %cst_29 = arith.constant 0.000000e+00 : f32
    %97 = vector.broadcast %cst_29 : f32 to vector<32x32xf32>
    %98 = arith.maximumf %96, %97 : vector<32x32xf32>
    %99 = arith.addf %91, %98 : vector<32x32xf32>
    %c0_30 = arith.constant 0 : index
    %c0_31 = arith.constant 0 : index
    %100 = vector.load %arg7[%c0_30, %c0_31] : memref<32x64xf32, #tpu.memory_space<vmem>>, vector<32x64xf32>
    %cst_32 = arith.constant dense<0.000000e+00> : vector<32x64xf32>
    %101 = tpu.matmul %99, %100, %cst_32 {dimension_numbers = #tpu.dot_dimension_numbers<[1], [0], [0], [1], [0, 0, 1, 1], [], []>} : vector<32x32xf32>, vector<32x64xf32>, vector<32x64xf32> -> vector<32x64xf32>
    %c0_33 = arith.constant 0 : index
    %c0_34 = arith.constant 0 : index
    %102 = vector.load %arg8[%c0_33, %c0_34] : memref<1x64xf32, #tpu.memory_space<vmem>>, vector<1x64xf32>
    %103 = vector.broadcast %102 : vector<1x64xf32> to vector<32x64xf32>
    %104 = arith.addf %101, %103 : vector<32x64xf32>
    %105 = vector.extract_strided_slice %104 {offsets = [0, 0], sizes = [32, 32], strides = [1, 1]} : vector<32x64xf32> to vector<32x32xf32>
    %106 = vector.shape_cast %105 : vector<32x32xf32> to vector<4x8x32xf32>
    %107 = vector.extract_strided_slice %104 {offsets = [0, 32], sizes = [32, 32], strides = [1, 1]} : vector<32x64xf32> to vector<32x32xf32>
    %108 = vector.shape_cast %107 : vector<32x32xf32> to vector<4x8x32xf32>
    %109 = vector.extract_strided_slice %12 {offsets = [0, 0, 0], sizes = [4, 8, 8], strides = [1, 1, 1]} : vector<4x8x32xf32> to vector<4x8x8xf32>
    %110 = vector.extract_strided_slice %106 {offsets = [0, 0, 0], sizes = [4, 8, 8], strides = [1, 1, 1]} : vector<4x8x32xf32> to vector<4x8x8xf32>
    %111 = vector.extract_strided_slice %108 {offsets = [0, 0, 0], sizes = [4, 8, 8], strides = [1, 1, 1]} : vector<4x8x32xf32> to vector<4x8x8xf32>
    "tpu.trace_start"() <{level = 10 : i32, message = "bqd,bkd->bqk"}> : () -> ()
    %cst_35 = arith.constant dense<0.000000e+00> : vector<4x8x8xf32>
    %112 = tpu.matmul %109, %110, %cst_35 {dimension_numbers = #tpu.dot_dimension_numbers<[2], [2], [1], [1], [0, 0, 0, 1, 1, 1], [0], [0]>} : vector<4x8x8xf32>, vector<4x8x8xf32>, vector<4x8x8xf32> -> vector<4x8x8xf32>
    "tpu.trace_stop"() : () -> ()
    %cst_36 = arith.constant dense<0xFF800000> : vector<4x8xf32>
    %113 = vector.multi_reduction <maximumf>, %112, %cst_36 [2] : vector<4x8x8xf32> to vector<4x8xf32>
    %114 = vector.shape_cast %113 : vector<4x8xf32> to vector<4x8x1xf32>
    %115 = vector.broadcast %114 : vector<4x8x1xf32> to vector<4x8x8xf32>
    %116 = arith.subf %112, %115 : vector<4x8x8xf32>
    %117 = math.exp %116 : vector<4x8x8xf32>
    %cst_37 = arith.constant dense<0.000000e+00> : vector<4x8xf32>
    %118 = vector.multi_reduction <add>, %117, %cst_37 [2] : vector<4x8x8xf32> to vector<4x8xf32>
    %119 = vector.shape_cast %118 : vector<4x8xf32> to vector<4x8x1xf32>
    %120 = tpu.reciprocal %119 {approx = true} : vector<4x8x1xf32> -> vector<4x8x1xf32>
    %121 = vector.broadcast %120 : vector<4x8x1xf32> to vector<4x8x8xf32>
    %122 = arith.mulf %117, %121 : vector<4x8x8xf32>
    "tpu.trace_start"() <{level = 10 : i32, message = "bqk,bkd->bqd"}> : () -> ()
    %cst_38 = arith.constant dense<0.000000e+00> : vector<4x8x8xf32>
    %123 = tpu.matmul %122, %111, %cst_38 {dimension_numbers = #tpu.dot_dimension_numbers<[2], [1], [1], [2], [0, 0, 0, 1, 1, 2], [0], [0]>} : vector<4x8x8xf32>, vector<4x8x8xf32>, vector<4x8x8xf32> -> vector<4x8x8xf32>
    "tpu.trace_stop"() : () -> ()
    %124 = arith.addf %109, %123 : vector<4x8x8xf32>
    %125 = vector.extract_strided_slice %12 {offsets = [0, 0, 8], sizes = [4, 8, 8], strides = [1, 1, 1]} : vector<4x8x32xf32> to vector<4x8x8xf32>
    %126 = vector.extract_strided_slice %106 {offsets = [0, 0, 8], sizes = [4, 8, 8], strides = [1, 1, 1]} : vector<4x8x32xf32> to vector<4x8x8xf32>
    %127 = vector.extract_strided_slice %108 {offsets = [0, 0, 8], sizes = [4, 8, 8], strides = [1, 1, 1]} : vector<4x8x32xf32> to vector<4x8x8xf32>
    "tpu.trace_start"() <{level = 10 : i32, message = "bqd,bkd->bqk"}> : () -> ()
    %cst_39 = arith.constant dense<0.000000e+00> : vector<4x8x8xf32>
    %128 = tpu.matmul %125, %126, %cst_39 {dimension_numbers = #tpu.dot_dimension_numbers<[2], [2], [1], [1], [0, 0, 0, 1, 1, 1], [0], [0]>} : vector<4x8x8xf32>, vector<4x8x8xf32>, vector<4x8x8xf32> -> vector<4x8x8xf32>
    "tpu.trace_stop"() : () -> ()
    %cst_40 = arith.constant dense<0xFF800000> : vector<4x8xf32>
    %129 = vector.multi_reduction <maximumf>, %128, %cst_40 [2] : vector<4x8x8xf32> to vector<4x8xf32>
    %130 = vector.shape_cast %129 : vector<4x8xf32> to vector<4x8x1xf32>
    %131 = vector.broadcast %130 : vector<4x8x1xf32> to vector<4x8x8xf32>
    %132 = arith.subf %128, %131 : vector<4x8x8xf32>
    %133 = math.exp %132 : vector<4x8x8xf32>
    %cst_41 = arith.constant dense<0.000000e+00> : vector<4x8xf32>
    %134 = vector.multi_reduction <add>, %133, %cst_41 [2] : vector<4x8x8xf32> to vector<4x8xf32>
    %135 = vector.shape_cast %134 : vector<4x8xf32> to vector<4x8x1xf32>
    %136 = tpu.reciprocal %135 {approx = true} : vector<4x8x1xf32> -> vector<4x8x1xf32>
    %137 = vector.broadcast %136 : vector<4x8x1xf32> to vector<4x8x8xf32>
    %138 = arith.mulf %133, %137 : vector<4x8x8xf32>
    "tpu.trace_start"() <{level = 10 : i32, message = "bqk,bkd->bqd"}> : () -> ()
    %cst_42 = arith.constant dense<0.000000e+00> : vector<4x8x8xf32>
    %139 = tpu.matmul %138, %127, %cst_42 {dimension_numbers = #tpu.dot_dimension_numbers<[2], [1], [1], [2], [0, 0, 0, 1, 1, 2], [0], [0]>} : vector<4x8x8xf32>, vector<4x8x8xf32>, vector<4x8x8xf32> -> vector<4x8x8xf32>
    "tpu.trace_stop"() : () -> ()
    %140 = arith.addf %125, %139 : vector<4x8x8xf32>
    %141 = vector.extract_strided_slice %12 {offsets = [0, 0, 16], sizes = [4, 8, 8], strides = [1, 1, 1]} : vector<4x8x32xf32> to vector<4x8x8xf32>
    %142 = vector.extract_strided_slice %106 {offsets = [0, 0, 16], sizes = [4, 8, 8], strides = [1, 1, 1]} : vector<4x8x32xf32> to vector<4x8x8xf32>
    %143 = vector.extract_strided_slice %108 {offsets = [0, 0, 16], sizes = [4, 8, 8], strides = [1, 1, 1]} : vector<4x8x32xf32> to vector<4x8x8xf32>
    "tpu.trace_start"() <{level = 10 : i32, message = "bqd,bkd->bqk"}> : () -> ()
    %cst_43 = arith.constant dense<0.000000e+00> : vector<4x8x8xf32>
    %144 = tpu.matmul %141, %142, %cst_43 {dimension_numbers = #tpu.dot_dimension_numbers<[2], [2], [1], [1], [0, 0, 0, 1, 1, 1], [0], [0]>} : vector<4x8x8xf32>, vector<4x8x8xf32>, vector<4x8x8xf32> -> vector<4x8x8xf32>
    "tpu.trace_stop"() : () -> ()
    %cst_44 = arith.constant dense<0xFF800000> : vector<4x8xf32>
    %145 = vector.multi_reduction <maximumf>, %144, %cst_44 [2] : vector<4x8x8xf32> to vector<4x8xf32>
    %146 = vector.shape_cast %145 : vector<4x8xf32> to vector<4x8x1xf32>
    %147 = vector.broadcast %146 : vector<4x8x1xf32> to vector<4x8x8xf32>
    %148 = arith.subf %144, %147 : vector<4x8x8xf32>
    %149 = math.exp %148 : vector<4x8x8xf32>
    %cst_45 = arith.constant dense<0.000000e+00> : vector<4x8xf32>
    %150 = vector.multi_reduction <add>, %149, %cst_45 [2] : vector<4x8x8xf32> to vector<4x8xf32>
    %151 = vector.shape_cast %150 : vector<4x8xf32> to vector<4x8x1xf32>
    %152 = tpu.reciprocal %151 {approx = true} : vector<4x8x1xf32> -> vector<4x8x1xf32>
    %153 = vector.broadcast %152 : vector<4x8x1xf32> to vector<4x8x8xf32>
    %154 = arith.mulf %149, %153 : vector<4x8x8xf32>
    "tpu.trace_start"() <{level = 10 : i32, message = "bqk,bkd->bqd"}> : () -> ()
    %cst_46 = arith.constant dense<0.000000e+00> : vector<4x8x8xf32>
    %155 = tpu.matmul %154, %143, %cst_46 {dimension_numbers = #tpu.dot_dimension_numbers<[2], [1], [1], [2], [0, 0, 0, 1, 1, 2], [0], [0]>} : vector<4x8x8xf32>, vector<4x8x8xf32>, vector<4x8x8xf32> -> vector<4x8x8xf32>
    "tpu.trace_stop"() : () -> ()
    %156 = arith.addf %141, %155 : vector<4x8x8xf32>
    %157 = vector.extract_strided_slice %12 {offsets = [0, 0, 24], sizes = [4, 8, 8], strides = [1, 1, 1]} : vector<4x8x32xf32> to vector<4x8x8xf32>
    %158 = vector.extract_strided_slice %106 {offsets = [0, 0, 24], sizes = [4, 8, 8], strides = [1, 1, 1]} : vector<4x8x32xf32> to vector<4x8x8xf32>
    %159 = vector.extract_strided_slice %108 {offsets = [0, 0, 24], sizes = [4, 8, 8], strides = [1, 1, 1]} : vector<4x8x32xf32> to vector<4x8x8xf32>
    "tpu.trace_start"() <{level = 10 : i32, message = "bqd,bkd->bqk"}> : () -> ()
    %cst_47 = arith.constant dense<0.000000e+00> : vector<4x8x8xf32>
    %160 = tpu.matmul %157, %158, %cst_47 {dimension_numbers = #tpu.dot_dimension_numbers<[2], [2], [1], [1], [0, 0, 0, 1, 1, 1], [0], [0]>} : vector<4x8x8xf32>, vector<4x8x8xf32>, vector<4x8x8xf32> -> vector<4x8x8xf32>
    "tpu.trace_stop"() : () -> ()
    %cst_48 = arith.constant dense<0xFF800000> : vector<4x8xf32>
    %161 = vector.multi_reduction <maximumf>, %160, %cst_48 [2] : vector<4x8x8xf32> to vector<4x8xf32>
    %162 = vector.shape_cast %161 : vector<4x8xf32> to vector<4x8x1xf32>
    %163 = vector.broadcast %162 : vector<4x8x1xf32> to vector<4x8x8xf32>
    %164 = arith.subf %160, %163 : vector<4x8x8xf32>
    %165 = math.exp %164 : vector<4x8x8xf32>
    %cst_49 = arith.constant dense<0.000000e+00> : vector<4x8xf32>
    %166 = vector.multi_reduction <add>, %165, %cst_49 [2] : vector<4x8x8xf32> to vector<4x8xf32>
    %167 = vector.shape_cast %166 : vector<4x8xf32> to vector<4x8x1xf32>
    %168 = tpu.reciprocal %167 {approx = true} : vector<4x8x1xf32> -> vector<4x8x1xf32>
    %169 = vector.broadcast %168 : vector<4x8x1xf32> to vector<4x8x8xf32>
    %170 = arith.mulf %165, %169 : vector<4x8x8xf32>
    "tpu.trace_start"() <{level = 10 : i32, message = "bqk,bkd->bqd"}> : () -> ()
    %cst_50 = arith.constant dense<0.000000e+00> : vector<4x8x8xf32>
    %171 = tpu.matmul %170, %159, %cst_50 {dimension_numbers = #tpu.dot_dimension_numbers<[2], [1], [1], [2], [0, 0, 0, 1, 1, 2], [0], [0]>} : vector<4x8x8xf32>, vector<4x8x8xf32>, vector<4x8x8xf32> -> vector<4x8x8xf32>
    "tpu.trace_stop"() : () -> ()
    %172 = arith.addf %157, %171 : vector<4x8x8xf32>
    %173 = tpu.concatenate %124, %140, %156, %172 in 2 : vector<4x8x8xf32>, vector<4x8x8xf32>, vector<4x8x8xf32>, vector<4x8x8xf32> -> vector<4x8x32xf32>
    %174 = vector.shape_cast %173 : vector<4x8x32xf32> to vector<32x32xf32>
    %c0_51 = arith.constant 0 : index
    %c0_52 = arith.constant 0 : index
    %175 = vector.load %arg9[%c0_51, %c0_52] : memref<32x32xf32, #tpu.memory_space<vmem>>, vector<32x32xf32>
    %cst_53 = arith.constant dense<0.000000e+00> : vector<32x32xf32>
    %176 = tpu.matmul %174, %175, %cst_53 {dimension_numbers = #tpu.dot_dimension_numbers<[1], [0], [0], [1], [0, 0, 1, 1], [], []>} : vector<32x32xf32>, vector<32x32xf32>, vector<32x32xf32> -> vector<32x32xf32>
    %c0_54 = arith.constant 0 : index
    %c0_55 = arith.constant 0 : index
    %177 = vector.load %arg10[%c0_54, %c0_55] : memref<1x32xf32, #tpu.memory_space<vmem>>, vector<1x32xf32>
    %178 = vector.broadcast %177 : vector<1x32xf32> to vector<32x32xf32>
    %179 = arith.addf %176, %178 : vector<32x32xf32>
    %cst_56 = arith.constant 0.000000e+00 : f32
    %180 = vector.broadcast %cst_56 : f32 to vector<32x32xf32>
    %181 = arith.maximumf %179, %180 : vector<32x32xf32>
    %182 = arith.addf %174, %181 : vector<32x32xf32>
    %183 = vector.shape_cast %182 : vector<32x32xf32> to vector<4x8x32xf32>
    %184 = vector.extract_strided_slice %183 {offsets = [0, 0, 0], sizes = [4, 1, 32], strides = [1, 1, 1]} : vector<4x8x32xf32> to vector<4x1x32xf32>
    %185 = vector.shape_cast %184 : vector<4x1x32xf32> to vector<4x32xf32>
    %186 = vector.extract_strided_slice %183 {offsets = [0, 1, 0], sizes = [4, 1, 32], strides = [1, 1, 1]} : vector<4x8x32xf32> to vector<4x1x32xf32>
    %187 = vector.shape_cast %186 : vector<4x1x32xf32> to vector<4x32xf32>
    %188 = vector.extract_strided_slice %183 {offsets = [0, 2, 0], sizes = [4, 1, 32], strides = [1, 1, 1]} : vector<4x8x32xf32> to vector<4x1x32xf32>
    %189 = vector.shape_cast %188 : vector<4x1x32xf32> to vector<4x32xf32>
    %190 = vector.extract_strided_slice %183 {offsets = [0, 3, 0], sizes = [4, 1, 32], strides = [1, 1, 1]} : vector<4x8x32xf32> to vector<4x1x32xf32>
    %191 = vector.shape_cast %190 : vector<4x1x32xf32> to vector<4x32xf32>
    %192 = vector.extract_strided_slice %183 {offsets = [0, 4, 0], sizes = [4, 1, 32], strides = [1, 1, 1]} : vector<4x8x32xf32> to vector<4x1x32xf32>
    %193 = vector.shape_cast %192 : vector<4x1x32xf32> to vector<4x32xf32>
    %194 = vector.extract_strided_slice %183 {offsets = [0, 5, 0], sizes = [4, 1, 32], strides = [1, 1, 1]} : vector<4x8x32xf32> to vector<4x1x32xf32>
    %195 = vector.shape_cast %194 : vector<4x1x32xf32> to vector<4x32xf32>
    %196 = vector.extract_strided_slice %183 {offsets = [0, 6, 0], sizes = [4, 1, 32], strides = [1, 1, 1]} : vector<4x8x32xf32> to vector<4x1x32xf32>
    %197 = vector.shape_cast %196 : vector<4x1x32xf32> to vector<4x32xf32>
    %198 = vector.extract_strided_slice %183 {offsets = [0, 7, 0], sizes = [4, 1, 32], strides = [1, 1, 1]} : vector<4x8x32xf32> to vector<4x1x32xf32>
    %199 = vector.shape_cast %198 : vector<4x1x32xf32> to vector<4x32xf32>
    %200 = tpu.concatenate %185, %187, %189, %191, %193, %195, %197, %199 in 1 : vector<4x32xf32>, vector<4x32xf32>, vector<4x32xf32>, vector<4x32xf32>, vector<4x32xf32>, vector<4x32xf32>, vector<4x32xf32>, vector<4x32xf32> -> vector<4x256xf32>
    %c0_57 = arith.constant 0 : index
    %c0_58 = arith.constant 0 : index
    %c0_59 = arith.constant 0 : index
    %201 = vector.load %arg11[%c0_57, %c0_58, %c0_59] : memref<1x4x256xf32, #tpu.memory_space<vmem>>, vector<1x4x256xf32>
    %202 = vector.shape_cast %201 : vector<1x4x256xf32> to vector<4x256xf32>
    %203 = vector.shape_cast %200 : vector<4x256xf32> to vector<1x4x256xf32>
    tpu.vector_store %arg11[%c0_57, %c0_58, %c0_59], %203 {strides = array<i32>} : memref<1x4x256xf32, #tpu.memory_space<vmem>>, vector<1x4x256xf32>,
    return
  }
  func.func @transform_0(%arg0: i32) -> (i32, i32, i32) {
    %c0_i32 = arith.constant 0 : i32
    %c0_i32_0 = arith.constant 0 : i32
    %c0_i32_1 = arith.constant 0 : i32
    return %arg0, %c0_i32, %c0_i32_0 : i32, i32, i32
  }
  func.func @transform_1(%arg0: i32) -> (i32, i32) {
    %c0_i32 = arith.constant 0 : i32
    %c0_i32_0 = arith.constant 0 : i32
    %c0_i32_1 = arith.constant 0 : i32
    return %c0_i32, %c0_i32_0 : i32, i32
  }
  func.func @transform_2(%arg0: i32) -> (i32, i32) {
    %c0_i32 = arith.constant 0 : i32
    %c0_i32_0 = arith.constant 0 : i32
    %c0_i32_1 = arith.constant 0 : i32
    return %c0_i32, %c0_i32_0 : i32, i32
  }
  func.func @transform_3(%arg0: i32) -> (i32, i32) {
    %c0_i32 = arith.constant 0 : i32
    %c0_i32_0 = arith.constant 0 : i32
    %c0_i32_1 = arith.constant 0 : i32
    return %c0_i32, %c0_i32_0 : i32, i32
  }
  func.func @transform_4(%arg0: i32) -> (i32, i32) {
    %c0_i32 = arith.constant 0 : i32
    %c0_i32_0 = arith.constant 0 : i32
    %c0_i32_1 = arith.constant 0 : i32
    return %c0_i32, %c0_i32_0 : i32, i32
  }
  func.func @transform_5(%arg0: i32) -> (i32, i32) {
    %c0_i32 = arith.constant 0 : i32
    %c0_i32_0 = arith.constant 0 : i32
    %c0_i32_1 = arith.constant 0 : i32
    return %c0_i32, %c0_i32_0 : i32, i32
  }
  func.func @transform_6(%arg0: i32) -> (i32, i32) {
    %c0_i32 = arith.constant 0 : i32
    %c0_i32_0 = arith.constant 0 : i32
    %c0_i32_1 = arith.constant 0 : i32
    return %c0_i32, %c0_i32_0 : i32, i32
  }
  func.func @transform_7(%arg0: i32) -> (i32, i32) {
    %c0_i32 = arith.constant 0 : i32
    %c0_i32_0 = arith.constant 0 : i32
    %c0_i32_1 = arith.constant 0 : i32
    return %c0_i32, %c0_i32_0 : i32, i32
  }
  func.func @transform_8(%arg0: i32) -> (i32, i32) {
    %c0_i32 = arith.constant 0 : i32
    %c0_i32_0 = arith.constant 0 : i32
    %c0_i32_1 = arith.constant 0 : i32
    return %c0_i32, %c0_i32_0 : i32, i32
  }
  func.func @transform_9(%arg0: i32) -> (i32, i32) {
    %c0_i32 = arith.constant 0 : i32
    %c0_i32_0 = arith.constant 0 : i32
    %c0_i32_1 = arith.constant 0 : i32
    return %c0_i32, %c0_i32_0 : i32, i32
  }
  func.func @transform_10(%arg0: i32) -> (i32, i32, i32) {
    %c0_i32 = arith.constant 0 : i32
    %c0_i32_0 = arith.constant 0 : i32
    %c0_i32_1 = arith.constant 0 : i32
    return %arg0, %c0_i32, %c0_i32_0 : i32, i32, i32
  }
}

</mosaic_0001>

<llo_original>
// kernel: tpu_custom_call.1
$region0: #{tpu_custom_call.1}
  #allocation0 [shape = 'u32[]', space=smem, size = 0x4, offset = 0x4, fixed_abs, tag = 'smem constant byte address 0x4 - core index']
  #allocation1 [shape = 'u32[144,128]{1,0:T(1,128)}', space=vmem, size = 0x12000, scoped, tag = 'internal scratch']
  %s0 = inlined_call_operand.hbm [shape: f32[2,32,16], index: 0, kind: input, shape index: {}]
  %s1 = inlined_call_operand.hbm [shape: f32[8,32], index: 1, kind: input, shape index: {}]
  %s2 = inlined_call_operand.hbm [shape: f32[16,96], index: 2, kind: input, shape index: {}]
  %s3 = inlined_call_operand.hbm [shape: f32[1,96], index: 3, kind: input, shape index: {}]
  %s4 = inlined_call_operand.hbm [shape: f32[32,32], index: 4, kind: input, shape index: {}]
  %s5 = inlined_call_operand.hbm [shape: f32[1,32], index: 5, kind: input, shape index: {}]
  %s6 = inlined_call_operand.hbm [shape: f32[32,64], index: 6, kind: input, shape index: {}]
  %s7 = inlined_call_operand.hbm [shape: f32[1,64], index: 7, kind: input, shape index: {}]
  %s8 = inlined_call_operand.hbm [shape: f32[32,32], index: 8, kind: input, shape index: {}]
  %s9 = inlined_call_operand.hbm [shape: f32[1,32], index: 9, kind: input, shape index: {}]
  %s10 = inlined_call_operand.hbm [shape: f32[2,4,256], index: 10, kind: output, shape index: {}]
  %s11 = sld [smem:[#allocation0]]
  $region113: #{tpu_custom_call.1} parent=0
    _
  %s13 = ssub.s32 1, %s11
  %s14 = scalar_select 0, %s13, %s11
  $region1: #{tpu_custom_call.1} parent=0
    #allocation2 [shape = 'u8[32768]{0}', space=vmem, size = 0x8000, scoped, tag = 'input window, operand 0']
    #allocation3 [shape = 's32[2]{0}', space=sflag, size = 0x8, scoped, tag = 'scoped memory for tpu_custom_call.1']
    #allocation4 [shape = 's32[2]{0}', space=sflag, size = 0x8, scoped, tag = 'scoped memory for tpu_custom_call.1']
    #allocation5 [shape = 'u8[4096]{0}', space=vmem, size = 0x1000, scoped, tag = 'input window, operand 1, single buffered']
    #allocation6 [shape = 's32[1]{0}', space=sflag, size = 0x4, scoped, tag = 'scoped memory for tpu_custom_call.1']
    #allocation7 [shape = 'u8[8192]{0}', space=vmem, size = 0x2000, scoped, tag = 'input window, operand 2, single buffered']
    #allocation8 [shape = 'u8[512]{0}', space=vmem, size = 0x400, scoped, tag = 'input window, operand 3, single buffered']
    #allocation9 [shape = 's32[1]{0}', space=sflag, size = 0x4, scoped, tag = 'scoped memory for tpu_custom_call.1']
    #allocation10 [shape = 'u8[16384]{0}', space=vmem, size = 0x4000, scoped, tag = 'input window, operand 4, single buffered']
    #allocation11 [shape = 'u8[512]{0}', space=vmem, size = 0x400, scoped, tag = 'input window, operand 5, single buffered']
    #allocation12 [shape = 's32[1]{0}', space=sflag, size = 0x4, scoped, tag = 'scoped memory for tpu_custom_call.1']
    #allocation13 [shape = 'u8[16384]{0}', space=vmem, size = 0x4000, scoped, tag = 'input window, operand 6, single buffered']
    #allocation14 [shape = 'u8[512]{0}', space=vmem, size = 0x400, scoped, tag = 'input window, operand 7, single buffered']
    #allocation15 [shape = 's32[1]{0}', space=sflag, size = 0x4, scoped, tag = 'scoped memory for tpu_custom_call.1']
    #allocation16 [shape = 'u8[16384]{0}', space=vmem, size = 0x4000, scoped, tag = 'input window, operand 8, single buffered']
    #allocation17 [shape = 'u8[512]{0}', space=vmem, size = 0x400, scoped, tag = 'input window, operand 9, single buffered']
    #allocation18 [shape = 's32[1]{0}', space=sflag, size = 0x4, scoped, tag = 'scoped memory for tpu_custom_call.1']
    #allocation19 [shape = 'u8[8192]{0}', space=vmem, size = 0x2000, scoped, tag = 'output window, operand 0']
    %15 = vsyncpa [#allocation3], 0
    %s16 = scalar_lea.sflag [#allocation3], 1
    %17 = vsyncpa %s16, 0
    %18 = vsyncpa [#allocation6], 0
    %19 = vsyncpa [#allocation9], 0
    %20 = vsyncpa [#allocation12], 0
    %21 = vsyncpa [#allocation15], 0
    %22 = vsyncpa [#allocation18], 0
    %23 = vsyncpa [#allocation4], 0
    %s24 = scalar_lea.sflag [#allocation4], 1
    %25 = vsyncpa %s24, 0
    loop: start=0, step=1, limit=4
    $region2: #{tpu_custom_call.1} parent=1 // loop_pre_header
      _
    $region3: #{tpu_custom_call.1} parent=1 // loop_header
      %s27 = sphi 0, %s31
      %p28 = scmp.ge.s32.totalorder %s27, 4
      %s37 = sphi 0, %s39
      %s40 = sphi 0, %s37
      %s41 = sphi 0, %s40
      %s57 = sphi 0, %s41
      %s61 = sphi 0, %s61
      %s63 = sphi 0, %s61
      %s64 = sphi 0, %s63
      %s78 = sphi 0, %s64
      %s82 = sphi 0, %s82
      %s84 = sphi 0, %s82
      %s85 = sphi 0, %s84
      %s99 = sphi 0, %s85
      %s103 = sphi 0, %s103
      %s105 = sphi 0, %s103
      %s106 = sphi 0, %s105
      %s120 = sphi 0, %s106
      %s124 = sphi 0, %s124
      %s126 = sphi 0, %s124
      %s127 = sphi 0, %s126
      %s141 = sphi 0, %s127
      %s145 = sphi 0, %s145
      %s147 = sphi 0, %s145
      %s148 = sphi 0, %s147
      %s162 = sphi 0, %s148
      %s166 = sphi 0, %s166
      %s168 = sphi 0, %s166
      %s169 = sphi 0, %s168
      %s183 = sphi 0, %s169
      %s187 = sphi 0, %s187
      %s189 = sphi 0, %s187
      %s190 = sphi 0, %s189
      %s204 = sphi 0, %s190
      %s208 = sphi 0, %s208
      %s210 = sphi 0, %s208
      %s211 = sphi 0, %s210
      %s225 = sphi 0, %s211
      %s229 = sphi 0, %s229
      %s231 = sphi 0, %s229
      %s232 = sphi 0, %s231
      %s246 = sphi 0, %s232
      %s252 = sphi 0, %s254
      %s255 = sphi 0, %s252
      %s256 = sphi 0, %s255
      %s272 = sphi 0, %s256
    $region4: #{tpu_custom_call.1} parent=1 // loop_header_branch
      %30 = sbr.rel (%p28) target = $region8
    $region5: #{tpu_custom_call.1} parent=1 // loop_body
      %s32 = ssub.s32 %s27, 1
      %s33 = ssub.s32 %s27, 2
      %s34 = sadd.s32 %s27, 1
      %s35 = ssub.s32 %s27, %s34
      %p36 = scmp.eq.s32.totalorder %s35, 0
      %s38 = sadd.s32 %s37, 1
      %s39 = scalar_select %p36, %s37, %s38
      %p42 = pneg %p36
      %p43 = scmp.eq.s32.totalorder %s27, 1
      %p44 = por %p42, %p43
      %p45 = scmp.ne.s32.totalorder %s37, %s40
      %p46 = scmp.eq.s32.totalorder %s27, 0
      %p47 = por %p45, %p46
      %p48 = scmp.ne.s32.totalorder %s37, %s40
      %p49 = scmp.eq.s32.totalorder %s32, 1
      %p50 = por %p48, %p49
      %p51 = scmp.ne.s32.totalorder %s40, %s41
      %p52 = scmp.eq.s32.totalorder %s32, 0
      %p53 = por %p51, %p52
      %p54 = scmp.ne.s32.totalorder %s40, %s41
      %p55 = scmp.eq.s32.totalorder %s33, 1
      %p56 = por %p54, %p55
      %p58 = scmp.ne.s32.totalorder %s41, %s57
      %p59 = scmp.eq.s32.totalorder %s33, 0
      %p60 = por %p58, %p59
      %s62 = sadd.s32 %s61, 1
      %p65 = scmp.eq.s32.totalorder %s27, 1
      %p66 = scmp.ne.s32.totalorder %s61, %s63
      %p67 = scmp.eq.s32.totalorder %s27, 0
      %p68 = por %p66, %p67
      %p69 = scmp.ne.s32.totalorder %s61, %s63
      %p70 = scmp.eq.s32.totalorder %s32, 1
      %p71 = por %p69, %p70
      %p72 = scmp.ne.s32.totalorder %s63, %s64
      %p73 = scmp.eq.s32.totalorder %s32, 0
      %p74 = por %p72, %p73
      %p75 = scmp.ne.s32.totalorder %s63, %s64
      %p76 = scmp.eq.s32.totalorder %s33, 1
      %p77 = por %p75, %p76
      %p79 = scmp.ne.s32.totalorder %s64, %s78
      %p80 = scmp.eq.s32.totalorder %s33, 0
      %p81 = por %p79, %p80
      %s83 = sadd.s32 %s82, 1
      %p86 = scmp.eq.s32.totalorder %s27, 1
      %p87 = scmp.ne.s32.totalorder %s82, %s84
      %p88 = scmp.eq.s32.totalorder %s27, 0
      %p89 = por %p87, %p88
      %p90 = scmp.ne.s32.totalorder %s82, %s84
      %p91 = scmp.eq.s32.totalorder %s32, 1
      %p92 = por %p90, %p91
      %p93 = scmp.ne.s32.totalorder %s84, %s85
      %p94 = scmp.eq.s32.totalorder %s32, 0
      %p95 = por %p93, %p94
      %p96 = scmp.ne.s32.totalorder %s84, %s85
      %p97 = scmp.eq.s32.totalorder %s33, 1
      %p98 = por %p96, %p97
      %p100 = scmp.ne.s32.totalorder %s85, %s99
      %p101 = scmp.eq.s32.totalorder %s33, 0
      %p102 = por %p100, %p101
      %s104 = sadd.s32 %s103, 1
      %p107 = scmp.eq.s32.totalorder %s27, 1
      %p108 = scmp.ne.s32.totalorder %s103, %s105
      %p109 = scmp.eq.s32.totalorder %s27, 0
      %p110 = por %p108, %p109
      %p111 = scmp.ne.s32.totalorder %s103, %s105
      %p112 = scmp.eq.s32.totalorder %s32, 1
      %p113 = por %p111, %p112
      %p114 = scmp.ne.s32.totalorder %s105, %s106
      %p115 = scmp.eq.s32.totalorder %s32, 0
      %p116 = por %p114, %p115
      %p117 = scmp.ne.s32.totalorder %s105, %s106
      %p118 = scmp.eq.s32.totalorder %s33, 1
      %p119 = por %p117, %p118
      %p121 = scmp.ne.s32.totalorder %s106, %s120
      %p122 = scmp.eq.s32.totalorder %s33, 0
      %p123 = por %p121, %p122
      %s125 = sadd.s32 %s124, 1
      %p128 = scmp.eq.s32.totalorder %s27, 1
      %p129 = scmp.ne.s32.totalorder %s124, %s126
      %p130 = scmp.eq.s32.totalorder %s27, 0
      %p131 = por %p129, %p130
      %p132 = scmp.ne.s32.totalorder %s124, %s126
      %p133 = scmp.eq.s32.totalorder %s32, 1
      %p134 = por %p132, %p133
      %p135 = scmp.ne.s32.totalorder %s126, %s127
      %p136 = scmp.eq.s32.totalorder %s32, 0
      %p137 = por %p135, %p136
      %p138 = scmp.ne.s32.totalorder %s126, %s127
      %p139 = scmp.eq.s32.totalorder %s33, 1
      %p140 = por %p138, %p139
      %p142 = scmp.ne.s32.totalorder %s127, %s141
      %p143 = scmp.eq.s32.totalorder %s33, 0
      %p144 = por %p142, %p143
      %s146 = sadd.s32 %s145, 1
      %p149 = scmp.eq.s32.totalorder %s27, 1
      %p150 = scmp.ne.s32.totalorder %s145, %s147
      %p151 = scmp.eq.s32.totalorder %s27, 0
      %p152 = por %p150, %p151
      %p153 = scmp.ne.s32.totalorder %s145, %s147
      %p154 = scmp.eq.s32.totalorder %s32, 1
      %p155 = por %p153, %p154
      %p156 = scmp.ne.s32.totalorder %s147, %s148
      %p157 = scmp.eq.s32.totalorder %s32, 0
      %p158 = por %p156, %p157
      %p159 = scmp.ne.s32.totalorder %s147, %s148
      %p160 = scmp.eq.s32.totalorder %s33, 1
      %p161 = por %p159, %p160
      %p163 = scmp.ne.s32.totalorder %s148, %s162
      %p164 = scmp.eq.s32.totalorder %s33, 0
      %p165 = por %p163, %p164
      %s167 = sadd.s32 %s166, 1
      %p170 = scmp.eq.s32.totalorder %s27, 1
      %p171 = scmp.ne.s32.totalorder %s166, %s168
      %p172 = scmp.eq.s32.totalorder %s27, 0
      %p173 = por %p171, %p172
      %p174 = scmp.ne.s32.totalorder %s166, %s168
      %p175 = scmp.eq.s32.totalorder %s32, 1
      %p176 = por %p174, %p175
      %p177 = scmp.ne.s32.totalorder %s168, %s169
      %p178 = scmp.eq.s32.totalorder %s32, 0
      %p179 = por %p177, %p178
      %p180 = scmp.ne.s32.totalorder %s168, %s169
      %p181 = scmp.eq.s32.totalorder %s33, 1
      %p182 = por %p180, %p181
      %p184 = scmp.ne.s32.totalorder %s169, %s183
      %p185 = scmp.eq.s32.totalorder %s33, 0
      %p186 = por %p184, %p185
      %s188 = sadd.s32 %s187, 1
      %p191 = scmp.eq.s32.totalorder %s27, 1
      %p192 = scmp.ne.s32.totalorder %s187, %s189
      %p193 = scmp.eq.s32.totalorder %s27, 0
      %p194 = por %p192, %p193
      %p195 = scmp.ne.s32.totalorder %s187, %s189
      %p196 = scmp.eq.s32.totalorder %s32, 1
      %p197 = por %p195, %p196
      %p198 = scmp.ne.s32.totalorder %s189, %s190
      %p199 = scmp.eq.s32.totalorder %s32, 0
      %p200 = por %p198, %p199
      %p201 = scmp.ne.s32.totalorder %s189, %s190
      %p202 = scmp.eq.s32.totalorder %s33, 1
      %p203 = por %p201, %p202
      %p205 = scmp.ne.s32.totalorder %s190, %s204
      %p206 = scmp.eq.s32.totalorder %s33, 0
      %p207 = por %p205, %p206
      %s209 = sadd.s32 %s208, 1
      %p212 = scmp.eq.s32.totalorder %s27, 1
      %p213 = scmp.ne.s32.totalorder %s208, %s210
      %p214 = scmp.eq.s32.totalorder %s27, 0
      %p215 = por %p213, %p214
      %p216 = scmp.ne.s32.totalorder %s208, %s210
      %p217 = scmp.eq.s32.totalorder %s32, 1
      %p218 = por %p216, %p217
      %p219 = scmp.ne.s32.totalorder %s210, %s211
      %p220 = scmp.eq.s32.totalorder %s32, 0
      %p221 = por %p219, %p220
      %p222 = scmp.ne.s32.totalorder %s210, %s211
      %p223 = scmp.eq.s32.totalorder %s33, 1
      %p224 = por %p222, %p223
      %p226 = scmp.ne.s32.totalorder %s211, %s225
      %p227 = scmp.eq.s32.totalorder %s33, 0
      %p228 = por %p226, %p227
      %s230 = sadd.s32 %s229, 1
      %p233 = scmp.eq.s32.totalorder %s27, 1
      %p234 = scmp.ne.s32.totalorder %s229, %s231
      %p235 = scmp.eq.s32.totalorder %s27, 0
      %p236 = por %p234, %p235
      %p237 = scmp.ne.s32.totalorder %s229, %s231
      %p238 = scmp.eq.s32.totalorder %s32, 1
      %p239 = por %p237, %p238
      %p240 = scmp.ne.s32.totalorder %s231, %s232
      %p241 = scmp.eq.s32.totalorder %s32, 0
      %p242 = por %p240, %p241
      %p243 = scmp.ne.s32.totalorder %s231, %s232
      %p244 = scmp.eq.s32.totalorder %s33, 1
      %p245 = por %p243, %p244
      %p247 = scmp.ne.s32.totalorder %s232, %s246
      %p248 = scmp.eq.s32.totalorder %s33, 0
      %p249 = por %p247, %p248
      %s250 = ssub.s32 %s27, %s34
      %p251 = scmp.eq.s32.totalorder %s250, 0
      %s253 = sadd.s32 %s252, 1
      %s254 = scalar_select %p251, %s252, %s253
      %p257 = pneg %p251
      %p258 = scmp.eq.s32.totalorder %s27, 1
      %p259 = por %p257, %p258
      %p260 = scmp.ne.s32.totalorder %s252, %s255
      %p261 = scmp.eq.s32.totalorder %s27, 0
      %p262 = por %p260, %p261
      %p263 = scmp.ne.s32.totalorder %s252, %s255
      %p264 = scmp.eq.s32.totalorder %s32, 1
      %p265 = por %p263, %p264
      %p266 = scmp.ne.s32.totalorder %s255, %s256
      %p267 = scmp.eq.s32.totalorder %s32, 0
      %p268 = por %p266, %p267
      %p269 = scmp.ne.s32.totalorder %s255, %s256
      %p270 = scmp.eq.s32.totalorder %s33, 1
      %p271 = por %p269, %p270
      %p273 = scmp.ne.s32.totalorder %s256, %s272
      %p274 = scmp.eq.s32.totalorder %s33, 0
      %p275 = por %p273, %p274
      %p276 = scmp.le.s32.totalorder 1, %s27
      %p277 = scmp.lt.s32.totalorder %s27, 3
      %p278 = pnand %p276, %p277
      %p279 = pneg %p278
      // Predicated region
      $region9: #{tpu_custom_call.1} parent=5 // pred_check
        _
      $region10: #{tpu_custom_call.1} parent=5 // pred_check_branch
        %281 = sbr.rel (%p278) target = $region12
      $region11: #{tpu_custom_call.1} parent=5 // pred_region
        %s282 = ssub.s32 %s27, 1
        // Predicated region
        $region13: #{tpu_custom_call.1} parent=11 // pred_check
          %p283 = pneg %p74
        $region14: #{tpu_custom_call.1} parent=11 // pred_check_branch
          %285 = sbr.rel (%p283) target = $region16
        $region15: #{tpu_custom_call.1} parent=11 // pred_region
          %s287 = ssub.s32 128, 128
          %288 = vsyncadd [#allocation6], %s287
          %s290 = sshll.u32 [#allocation5], 4
          %s291 = int_to_ptr.vmem [resolvable:$true] %s290
          %293 = dma.hbm_to_vmem [thread:$0]  %s1, 128, %s291, [#allocation6]
        $region16: #{tpu_custom_call.1} parent=11 // pred_fallthru
          _
        // Predicated region
        $region17: #{tpu_custom_call.1} parent=11 // pred_check
          %p294 = pneg %p95
        $region18: #{tpu_custom_call.1} parent=11 // pred_check_branch
          %296 = sbr.rel (%p294) target = $region20
        $region19: #{tpu_custom_call.1} parent=11 // pred_region
          %s298 = ssub.s32 256, 256
          %299 = vsyncadd [#allocation6], %s298
          %s300 = sshll.u32 [#allocation7], 4
          %s301 = int_to_ptr.vmem [resolvable:$true] %s300
          %306 = dma.hbm_to_vmem [thread:$0]  %s2, 256, %s301, [#allocation6], 128, 128, 8
        $region20: #{tpu_custom_call.1} parent=11 // pred_fallthru
          _
        // Predicated region
        $region21: #{tpu_custom_call.1} parent=11 // pred_check
          %p307 = pneg %p116
        $region22: #{tpu_custom_call.1} parent=11 // pred_check_branch
          %309 = sbr.rel (%p307) target = $region24
        $region23: #{tpu_custom_call.1} parent=11 // pred_region
          %s311 = ssub.s32 16, 16
          %312 = vsyncadd [#allocation9], %s311
          %s314 = sshll.u32 [#allocation8], 4
          %s315 = int_to_ptr.vmem [resolvable:$true] %s314
          %317 = dma.hbm_to_vmem [thread:$0]  %s3, 16, %s315, [#allocation9]
        $region24: #{tpu_custom_call.1} parent=11 // pred_fallthru
          _
        // Predicated region
        $region25: #{tpu_custom_call.1} parent=11 // pred_check
          %p318 = pneg %p137
        $region26: #{tpu_custom_call.1} parent=11 // pred_check_branch
          %320 = sbr.rel (%p318) target = $region28
        $region27: #{tpu_custom_call.1} parent=11 // pred_region
          %s322 = ssub.s32 512, 512
          %323 = vsyncadd [#allocation9], %s322
          %s324 = sshll.u32 [#allocation10], 4
          %s325 = int_to_ptr.vmem [resolvable:$true] %s324
          %330 = dma.hbm_to_vmem [thread:$0]  %s4, 512, %s325, [#allocation9], 128, 128, 8
        $region28: #{tpu_custom_call.1} parent=11 // pred_fallthru
          _
        // Predicated region
        $region29: #{tpu_custom_call.1} parent=11 // pred_check
          %p331 = pneg %p158
        $region30: #{tpu_custom_call.1} parent=11 // pred_check_branch
          %333 = sbr.rel (%p331) target = $region32
        $region31: #{tpu_custom_call.1} parent=11 // pred_region
          %s335 = ssub.s32 16, 16
          %336 = vsyncadd [#allocation12], %s335
          %s338 = sshll.u32 [#allocation11], 4
          %s339 = int_to_ptr.vmem [resolvable:$true] %s338
          %341 = dma.hbm_to_vmem [thread:$0]  %s5, 16, %s339, [#allocation12]
        $region32: #{tpu_custom_call.1} parent=11 // pred_fallthru
          _
        // Predicated region
        $region33: #{tpu_custom_call.1} parent=11 // pred_check
          %p342 = pneg %p179
        $region34: #{tpu_custom_call.1} parent=11 // pred_check_branch
          %344 = sbr.rel (%p342) target = $region36
        $region35: #{tpu_custom_call.1} parent=11 // pred_region
          %s346 = ssub.s32 512, 512
          %347 = vsyncadd [#allocation12], %s346
          %s348 = sshll.u32 [#allocation13], 4
          %s349 = int_to_ptr.vmem [resolvable:$true] %s348
          %354 = dma.hbm_to_vmem [thread:$0]  %s6, 512, %s349, [#allocation12], 128, 128, 8
        $region36: #{tpu_custom_call.1} parent=11 // pred_fallthru
          _
        // Predicated region
        $region37: #{tpu_custom_call.1} parent=11 // pred_check
          %p355 = pneg %p200
        $region38: #{tpu_custom_call.1} parent=11 // pred_check_branch
          %357 = sbr.rel (%p355) target = $region40
        $region39: #{tpu_custom_call.1} parent=11 // pred_region
          %s359 = ssub.s32 16, 16
          %360 = vsyncadd [#allocation15], %s359
          %s362 = sshll.u32 [#allocation14], 4
          %s363 = int_to_ptr.vmem [resolvable:$true] %s362
          %365 = dma.hbm_to_vmem [thread:$0]  %s7, 16, %s363, [#allocation15]
        $region40: #{tpu_custom_call.1} parent=11 // pred_fallthru
          _
        // Predicated region
        $region41: #{tpu_custom_call.1} parent=11 // pred_check
          %p366 = pneg %p221
        $region42: #{tpu_custom_call.1} parent=11 // pred_check_branch
          %368 = sbr.rel (%p366) target = $region44
        $region43: #{tpu_custom_call.1} parent=11 // pred_region
          %s370 = ssub.s32 512, 512
          %371 = vsyncadd [#allocation15], %s370
          %s372 = sshll.u32 [#allocation16], 4
          %s373 = int_to_ptr.vmem [resolvable:$true] %s372
          %378 = dma.hbm_to_vmem [thread:$0]  %s8, 512, %s373, [#allocation15], 128, 128, 8
        $region44: #{tpu_custom_call.1} parent=11 // pred_fallthru
          _
        // Predicated region
        $region45: #{tpu_custom_call.1} parent=11 // pred_check
          %p379 = pneg %p242
        $region46: #{tpu_custom_call.1} parent=11 // pred_check_branch
          %381 = sbr.rel (%p379) target = $region48
        $region47: #{tpu_custom_call.1} parent=11 // pred_region
          %s383 = ssub.s32 16, 16
          %384 = vsyncadd [#allocation18], %s383
          %s386 = sshll.u32 [#allocation17], 4
          %s387 = int_to_ptr.vmem [resolvable:$true] %s386
          %389 = dma.hbm_to_vmem [thread:$0]  %s9, 16, %s387, [#allocation18]
        $region48: #{tpu_custom_call.1} parent=11 // pred_fallthru
          _
      $region12: #{tpu_custom_call.1} parent=5 // pred_fallthru
        _
      %p390 = scmp.lt.s32.totalorder %s27, 2
      // Predicated region
      $region49: #{tpu_custom_call.1} parent=5 // pred_check
        %p391 = pneg %p390
      $region50: #{tpu_custom_call.1} parent=5 // pred_check_branch
        %393 = sbr.rel (%p391) target = $region52
      $region51: #{tpu_custom_call.1} parent=5 // pred_region
        // Predicated region
        $region53: #{tpu_custom_call.1} parent=51 // pred_check
          %p394 = pneg %p47
        $region54: #{tpu_custom_call.1} parent=51 // pred_check_branch
          %396 = sbr.rel (%p394) target = $region56
        $region55: #{tpu_custom_call.1} parent=51 // pred_region
          %s397 = sand.u32 %s37, 1
          %s398 = scalar_lea.sflag [#allocation3], %s397
          %s399 = sand.u32 %s37, 1
          %s400 = smul.addr %s399, 32
          %s401 = scalar_lea.vmem [#allocation2], %s400
          %s403 = ssub.s32 512, 512
          %404 = vsyncadd %s398, %s403
          %s405 = smul.addr %s27, 4
          %s406 = smul.addr %s405, 128
          %s407 = scalar_lea.hbm %s0, %s406
          %s408 = sshll.u32 %s401, 4
          %s409 = int_to_ptr.vmem [resolvable:$true] %s408
          %414 = dma.hbm_to_vmem [thread:$0]  %s407, 512, %s409, %s398, 128, 128, 8
        $region56: #{tpu_custom_call.1} parent=51 // pred_fallthru
          _
      $region52: #{tpu_custom_call.1} parent=5 // pred_fallthru
        _
      %p415 = scmp.le.s32.totalorder 1, %s27
      %p416 = scmp.lt.s32.totalorder %s27, 3
      %p417 = pnand %p415, %p416
      %p418 = pneg %p417
      // Predicated region
      $region57: #{tpu_custom_call.1} parent=5 // pred_check
        _
      $region58: #{tpu_custom_call.1} parent=5 // pred_check_branch
        %420 = sbr.rel (%p417) target = $region60
      $region59: #{tpu_custom_call.1} parent=5 // pred_region
        %s421 = ssub.s32 %s27, 1
        %s422 = sand.u32 %s40, 1
        %s423 = scalar_lea.sflag [#allocation3], %s422
        %s424 = sand.u32 %s40, 1
        %s425 = smul.addr %s424, 32
        %s426 = scalar_lea.vmem [#allocation2], %s425
        // Predicated region
        $region61: #{tpu_custom_call.1} parent=59 // pred_check
          %p427 = pneg %p53
        $region62: #{tpu_custom_call.1} parent=59 // pred_check_branch
          %429 = sbr.rel (%p427) target = $region64
        $region63: #{tpu_custom_call.1} parent=59 // pred_region
          %430 = dma.done %s423, 512
        $region64: #{tpu_custom_call.1} parent=59 // pred_fallthru
          _
        // Predicated region
        $region65: #{tpu_custom_call.1} parent=59 // pred_check
          %p431 = pneg %p74
        $region66: #{tpu_custom_call.1} parent=59 // pred_check_branch
          %433 = sbr.rel (%p431) target = $region68
        $region67: #{tpu_custom_call.1} parent=59 // pred_region
          %434 = dma.done [#allocation6], 128
        $region68: #{tpu_custom_call.1} parent=59 // pred_fallthru
          _
        // Predicated region
        $region69: #{tpu_custom_call.1} parent=59 // pred_check
          %p435 = pneg %p95
        $region70: #{tpu_custom_call.1} parent=59 // pred_check_branch
          %437 = sbr.rel (%p435) target = $region72
        $region71: #{tpu_custom_call.1} parent=59 // pred_region
          %438 = dma.done [#allocation6], 256
        $region72: #{tpu_custom_call.1} parent=59 // pred_fallthru
          _
        // Predicated region
        $region73: #{tpu_custom_call.1} parent=59 // pred_check
          %p439 = pneg %p116
        $region74: #{tpu_custom_call.1} parent=59 // pred_check_branch
          %441 = sbr.rel (%p439) target = $region76
        $region75: #{tpu_custom_call.1} parent=59 // pred_region
          %442 = dma.done [#allocation9], 16
        $region76: #{tpu_custom_call.1} parent=59 // pred_fallthru
          _
        // Predicated region
        $region77: #{tpu_custom_call.1} parent=59 // pred_check
          %p443 = pneg %p137
        $region78: #{tpu_custom_call.1} parent=59 // pred_check_branch
          %445 = sbr.rel (%p443) target = $region80
        $region79: #{tpu_custom_call.1} parent=59 // pred_region
          %446 = dma.done [#allocation9], 512
        $region80: #{tpu_custom_call.1} parent=59 // pred_fallthru
          _
        // Predicated region
        $region81: #{tpu_custom_call.1} parent=59 // pred_check
          %p447 = pneg %p158
        $region82: #{tpu_custom_call.1} parent=59 // pred_check_branch
          %449 = sbr.rel (%p447) target = $region84
        $region83: #{tpu_custom_call.1} parent=59 // pred_region
          %450 = dma.done [#allocation12], 16
        $region84: #{tpu_custom_call.1} parent=59 // pred_fallthru
          _
        // Predicated region
        $region85: #{tpu_custom_call.1} parent=59 // pred_check
          %p451 = pneg %p179
        $region86: #{tpu_custom_call.1} parent=59 // pred_check_branch
          %453 = sbr.rel (%p451) target = $region88
        $region87: #{tpu_custom_call.1} parent=59 // pred_region
          %454 = dma.done [#allocation12], 512
        $region88: #{tpu_custom_call.1} parent=59 // pred_fallthru
          _
        // Predicated region
        $region89: #{tpu_custom_call.1} parent=59 // pred_check
          %p455 = pneg %p200
        $region90: #{tpu_custom_call.1} parent=59 // pred_check_branch
          %457 = sbr.rel (%p455) target = $region92
        $region91: #{tpu_custom_call.1} parent=59 // pred_region
          %458 = dma.done [#allocation15], 16
        $region92: #{tpu_custom_call.1} parent=59 // pred_fallthru
          _
        // Predicated region
        $region93: #{tpu_custom_call.1} parent=59 // pred_check
          %p459 = pneg %p221
        $region94: #{tpu_custom_call.1} parent=59 // pred_check_branch
          %461 = sbr.rel (%p459) target = $region96
        $region95: #{tpu_custom_call.1} parent=59 // pred_region
          %462 = dma.done [#allocation15], 512
        $region96: #{tpu_custom_call.1} parent=59 // pred_fallthru
          _
        // Predicated region
        $region97: #{tpu_custom_call.1} parent=59 // pred_check
          %p463 = pneg %p242
        $region98: #{tpu_custom_call.1} parent=59 // pred_check_branch
          %465 = sbr.rel (%p463) target = $region100
        $region99: #{tpu_custom_call.1} parent=59 // pred_region
          %466 = dma.done [#allocation18], 16
        $region100: #{tpu_custom_call.1} parent=59 // pred_fallthru
          _
        %s467 = sand.u32 %s40, 1
        %s468 = scalar_lea.sflag [#allocation3], %s467
        %s469 = sand.u32 %s40, 1
        %s470 = smul.addr %s469, 32
        %s471 = scalar_lea.vmem [#allocation2], %s470
        %p472 = pneg %p53
        %p473 = pneg %p50
        %p474 = pneg %p74
        %p475 = pneg %p71
        %p476 = pneg %p95
        %p477 = pneg %p92
        %p478 = pneg %p116
        %p479 = pneg %p113
        %p480 = pneg %p137
        %p481 = pneg %p134
        %p482 = pneg %p158
        %p483 = pneg %p155
        %p484 = pneg %p179
        %p485 = pneg %p176
        %p486 = pneg %p200
        %p487 = pneg %p197
        %p488 = pneg %p221
        %p489 = pneg %p218
        %p490 = pneg %p242
        %p491 = pneg %p239
        %p492 = pneg %p268
        %p493 = pneg %p265
        %s494 = sand.u32 %s255, 1
        %s495 = scalar_lea.sflag [#allocation4], %s494
        %s496 = sand.u32 %s255, 1
        %s497 = smul.addr %s496, 8
        %s498 = scalar_lea.vmem [#allocation19], %s497
        %v499 = vld [vmem:[%s426] sm:$0xff]
        %v500 = vld [vmem:[%s426 + $0x8] sm:$0xff]
        %v501 = vld [vmem:[%s426 + $0x10] sm:$0xff]
        %v502 = vld [vmem:[%s426 + $0x18] sm:$0xff]
        %v503 = vld [vmem:[#allocation7] sm:$0xff]
        %v504 = vld [vmem:[#allocation7 + $0x8] sm:$0xff]
        %v505 = vld [vmem:[#allocation8] sm:$0x1]
        %v507 = vlaneseq
        %v508 = vshrl.u32 %v507, 7
        %v509 = vsub.s32 0, %v508
        %v510 = vrot.slane %v505, %v509
        %vm512 = vcmask 130048
        %v514 = vsel %vm512, %v499, 0
        %v517 = vsel %vm512, %v500, 0
        %v520 = vsel %vm512, %v501, 0
        %v523 = vsel %vm512, %v502, 0
        %525 = vmatprep.subr.mxu0 0.0
        %526 = vmatpush1.msra.mxu0 %v503
        %527 = vmatprep.subr.mxu0 0.0
        %528 = vmatpush1.msra.mxu0 %v504
        %529 = vmatprep.subr.mxu0 0.0
        %530 = vmatpush1.msra.mxu0 0.0
        %531 = vmatprep.subr.mxu0 0.0
        %532 = vmatpush1.msra.mxu0 0.0
        %533 = vmatprep.subr.mxu0 0.0
        %534 = vmatpush1.msra.mxu0 0.0
        %535 = vmatprep.subr.mxu0 0.0
        %536 = vmatpush1.msra.mxu0 0.0
        %537 = vmatprep.subr.mxu0 0.0
        %538 = vmatpush1.msra.mxu0 0.0
        %539 = vmatprep.subr.mxu0 0.0
        %540 = vmatpush1.msra.mxu0 0.0
        %541 = vmatprep.subr.mxu0 0.0
        %542 = vmatpush1.msra.mxu0 0.0
        %543 = vmatprep.subr.mxu0 0.0
        %544 = vmatpush1.msra.mxu0 0.0
        %545 = vmatprep.subr.mxu0 0.0
        %546 = vmatpush1.msra.mxu0 0.0
        %547 = vmatprep.subr.mxu0 0.0
        %548 = vmatpush1.msra.mxu0 0.0
        %549 = vmatprep.subr.mxu0 0.0
        %550 = vmatpush1.msra.mxu0 0.0
        %551 = vmatprep.subr.mxu0 0.0
        %552 = vmatpush1.msra.mxu0 0.0
        %553 = vmatprep.subr.mxu0 0.0
        %554 = vmatpush1.msra.mxu0 0.0
        %555 = vmatprep.subr.mxu0 0.0
        %556 = vmatpush1.msra.mxu0 0.0
        %557 = vmatprep.subr.mxu0 0.0
        %558 = vmatpush1.msra.mxu0 0.0
        %559 = vmatprep.subr.mxu0 0.0
        %560 = vmatpush1.msra.mxu0 0.0
        %561 = vmatprep.subr.mxu0 0.0
        %562 = vmatpush1.msra.mxu0 0.0
        %563 = vmatprep.subr.mxu0 0.0
        %564 = vmatpush1.msra.mxu0 0.0
        %565 = vmatprep.subr.mxu0 0.0
        %566 = vmatpush1.msra.mxu0 0.0
        %567 = vmatprep.subr.mxu0 0.0
        %568 = vmatpush1.msra.mxu0 0.0
        %569 = vmatprep.subr.mxu0 0.0
        %570 = vmatpush1.msra.mxu0 0.0
        %571 = vmatprep.subr.mxu0 0.0
        %572 = vmatpush1.msra.mxu0 0.0
        %573 = vmatprep.subr.mxu0 0.0
        %574 = vmatpush1.msra.mxu0 0.0
        %575 = vmatprep.subr.mxu0 0.0
        %576 = vmatpush1.msra.mxu0 0.0
        %577 = vmatprep.subr.mxu0 0.0
        %578 = vmatpush1.msra.mxu0 0.0
        %579 = vmatprep.subr.mxu0 0.0
        %580 = vmatpush1.msra.mxu0 0.0
        %581 = vmatprep.subr.mxu0 0.0
        %582 = vmatpush1.msra.mxu0 0.0
        %583 = vmatprep.subr.mxu0 0.0
        %584 = vmatpush1.msra.mxu0 0.0
        %585 = vmatprep.subr.mxu0 0.0
        %586 = vmatpush1.msra.mxu0 0.0
        %587 = vmatprep.subr.mxu0 0.0
        %588 = vmatpush1.msra.mxu0 0.0
        %589 = vmatprep.mubr.f32.mxu0 0.0
        %590 = vmatmul.mubr.f32.gmra.mrb[0].mxu0 %v514
        %v591 = vpop.f32.mrb[0].mxu0
        %v592 = vadd.f32 %v510, %v591
        %v593 = vpop.f32.mrb[0].mxu0
        %594 = vmatprep.mubr.f32.mxu0 0.0
        %595 = vmatmul.mubr.f32.gmra.mrb[0].mxu0 %v517
        %v596 = vpop.f32.mrb[0].mxu0
        %v597 = vadd.f32 %v510, %v596
        %v598 = vpop.f32.mrb[0].mxu0
        %599 = vmatprep.mubr.f32.mxu0 0.0
        %600 = vmatmul.mubr.f32.gmra.mrb[0].mxu0 %v520
        %v601 = vpop.f32.mrb[0].mxu0
        %v602 = vadd.f32 %v510, %v601
        %v603 = vpop.f32.mrb[0].mxu0
        %604 = vmatprep.mubr.f32.mxu0 0.0
        %605 = vmatmul.mubr.f32.gmra.mrb[0].mxu0 %v523
        %v606 = vpop.f32.mrb[0].mxu0
        %v607 = vadd.f32 %v510, %v606
        %v608 = vpop.f32.mrb[0].mxu0
        %609 = vdwg.mxu0
        %v610 = vld [vmem:[#allocation5] sm:$0xff]
        %vm611 = vcmask 64512
        %v613 = vsel %vm611, %v610, 0
        %v616 = vsel %vm611, %v592, 0
        %618 = vmatprep.subr.mxu0 0.0
        %619 = vmatpush1.xpose.msra.mxu0 %v616
        %620 = vmatprep.subr.mxu0 0.0
        %621 = vmatpush1.xpose.msra.mxu0 0.0
        %622 = vmatprep.subr.mxu0 0.0
        %623 = vmatpush1.xpose.msra.mxu0 0.0
        %624 = vmatprep.subr.mxu0 0.0
        %625 = vmatpush1.xpose.msra.mxu0 0.0
        %626 = vmatprep.subr.mxu0 0.0
        %627 = vmatpush1.xpose.msra.mxu0 0.0
        %628 = vmatprep.subr.mxu0 0.0
        %629 = vmatpush1.xpose.msra.mxu0 0.0
        %630 = vmatprep.subr.mxu0 0.0
        %631 = vmatpush1.xpose.msra.mxu0 0.0
        %632 = vmatprep.subr.mxu0 0.0
        %633 = vmatpush1.xpose.msra.mxu0 0.0
        %634 = vmatprep.subr.mxu0 0.0
        %635 = vmatpush1.xpose.msra.mxu0 0.0
        %636 = vmatprep.subr.mxu0 0.0
        %637 = vmatpush1.xpose.msra.mxu0 0.0
        %638 = vmatprep.subr.mxu0 0.0
        %639 = vmatpush1.xpose.msra.mxu0 0.0
        %640 = vmatprep.subr.mxu0 0.0
        %641 = vmatpush1.xpose.msra.mxu0 0.0
        %642 = vmatprep.subr.mxu0 0.0
        %643 = vmatpush1.xpose.msra.mxu0 0.0
        %644 = vmatprep.subr.mxu0 0.0
        %645 = vmatpush1.xpose.msra.mxu0 0.0
        %646 = vmatprep.subr.mxu0 0.0
        %647 = vmatpush1.xpose.msra.mxu0 0.0
        %648 = vmatprep.subr.mxu0 0.0
        %649 = vmatpush1.xpose.msra.mxu0 0.0
        %650 = vmatprep.subr.mxu0 0.0
        %651 = vmatpush1.xpose.msra.mxu0 0.0
        %652 = vmatprep.subr.mxu0 0.0
        %653 = vmatpush1.xpose.msra.mxu0 0.0
        %654 = vmatprep.subr.mxu0 0.0
        %655 = vmatpush1.xpose.msra.mxu0 0.0
        %656 = vmatprep.subr.mxu0 0.0
        %657 = vmatpush1.xpose.msra.mxu0 0.0
        %658 = vmatprep.subr.mxu0 0.0
        %659 = vmatpush1.xpose.msra.mxu0 0.0
        %660 = vmatprep.subr.mxu0 0.0
        %661 = vmatpush1.xpose.msra.mxu0 0.0
        %662 = vmatprep.subr.mxu0 0.0
        %663 = vmatpush1.xpose.msra.mxu0 0.0
        %664 = vmatprep.subr.mxu0 0.0
        %665 = vmatpush1.xpose.msra.mxu0 0.0
        %666 = vmatprep.subr.mxu0 0.0
        %667 = vmatpush1.xpose.msra.mxu0 0.0
        %668 = vmatprep.subr.mxu0 0.0
        %669 = vmatpush1.xpose.msra.mxu0 0.0
        %670 = vmatprep.subr.mxu0 0.0
        %671 = vmatpush1.xpose.msra.mxu0 0.0
        %672 = vmatprep.subr.mxu0 0.0
        %673 = vmatpush1.xpose.msra.mxu0 0.0
        %674 = vmatprep.subr.mxu0 0.0
        %675 = vmatpush1.xpose.msra.mxu0 0.0
        %676 = vmatprep.subr.mxu0 0.0
        %677 = vmatpush1.xpose.msra.mxu0 0.0
        %678 = vmatprep.subr.mxu0 0.0
        %679 = vmatpush1.xpose.msra.mxu0 0.0
        %680 = vmatprep.subr.mxu0 0.0
        %681 = vmatpush1.xpose.msra.mxu0 0.0
        %682 = vmatprep.mubr.f32.mxu0 0.0
        %683 = vmatmul.mubr.f32.gmra.mrb[0].mxu0 %v613
        %v684 = vpop.f32.mrb[0].mxu0
        %v685 = vadd.f32 0.0, %v684
        %v686 = vpop.f32.mrb[0].mxu0
        %687 = vdwg.mxu0
        %v689 = vsel %vm611, %v597, 0
        %691 = vmatprep.subr.mxu0 0.0
        %692 = vmatpush1.xpose.msra.mxu0 %v689
        %693 = vmatprep.subr.mxu0 0.0
        %694 = vmatpush1.xpose.msra.mxu0 0.0
        %695 = vmatprep.subr.mxu0 0.0
        %696 = vmatpush1.xpose.msra.mxu0 0.0
        %697 = vmatprep.subr.mxu0 0.0
        %698 = vmatpush1.xpose.msra.mxu0 0.0
        %699 = vmatprep.subr.mxu0 0.0
        %700 = vmatpush1.xpose.msra.mxu0 0.0
        %701 = vmatprep.subr.mxu0 0.0
        %702 = vmatpush1.xpose.msra.mxu0 0.0
        %703 = vmatprep.subr.mxu0 0.0
        %704 = vmatpush1.xpose.msra.mxu0 0.0
        %705 = vmatprep.subr.mxu0 0.0
        %706 = vmatpush1.xpose.msra.mxu0 0.0
        %707 = vmatprep.subr.mxu0 0.0
        %708 = vmatpush1.xpose.msra.mxu0 0.0
        %709 = vmatprep.subr.mxu0 0.0
        %710 = vmatpush1.xpose.msra.mxu0 0.0
        %711 = vmatprep.subr.mxu0 0.0
        %712 = vmatpush1.xpose.msra.mxu0 0.0
        %713 = vmatprep.subr.mxu0 0.0
        %714 = vmatpush1.xpose.msra.mxu0 0.0
        %715 = vmatprep.subr.mxu0 0.0
        %716 = vmatpush1.xpose.msra.mxu0 0.0
        %717 = vmatprep.subr.mxu0 0.0
        %718 = vmatpush1.xpose.msra.mxu0 0.0
        %719 = vmatprep.subr.mxu0 0.0
        %720 = vmatpush1.xpose.msra.mxu0 0.0
        %721 = vmatprep.subr.mxu0 0.0
        %722 = vmatpush1.xpose.msra.mxu0 0.0
        %723 = vmatprep.subr.mxu0 0.0
        %724 = vmatpush1.xpose.msra.mxu0 0.0
        %725 = vmatprep.subr.mxu0 0.0
        %726 = vmatpush1.xpose.msra.mxu0 0.0
        %727 = vmatprep.subr.mxu0 0.0
        %728 = vmatpush1.xpose.msra.mxu0 0.0
        %729 = vmatprep.subr.mxu0 0.0
        %730 = vmatpush1.xpose.msra.mxu0 0.0
        %731 = vmatprep.subr.mxu0 0.0
        %732 = vmatpush1.xpose.msra.mxu0 0.0
        %733 = vmatprep.subr.mxu0 0.0
        %734 = vmatpush1.xpose.msra.mxu0 0.0
        %735 = vmatprep.subr.mxu0 0.0
        %736 = vmatpush1.xpose.msra.mxu0 0.0
        %737 = vmatprep.subr.mxu0 0.0
        %738 = vmatpush1.xpose.msra.mxu0 0.0
        %739 = vmatprep.subr.mxu0 0.0
        %740 = vmatpush1.xpose.msra.mxu0 0.0
        %741 = vmatprep.subr.mxu0 0.0
        %742 = vmatpush1.xpose.msra.mxu0 0.0
        %743 = vmatprep.subr.mxu0 0.0
        %744 = vmatpush1.xpose.msra.mxu0 0.0
        %745 = vmatprep.subr.mxu0 0.0
        %746 = vmatpush1.xpose.msra.mxu0 0.0
        %747 = vmatprep.subr.mxu0 0.0
        %748 = vmatpush1.xpose.msra.mxu0 0.0
        %749 = vmatprep.subr.mxu0 0.0
        %750 = vmatpush1.xpose.msra.mxu0 0.0
        %751 = vmatprep.subr.mxu0 0.0
        %752 = vmatpush1.xpose.msra.mxu0 0.0
        %753 = vmatprep.subr.mxu0 0.0
        %754 = vmatpush1.xpose.msra.mxu0 0.0
        %755 = vmatprep.mubr.f32.mxu0 0.0
        %756 = vmatmul.mubr.f32.gmra.mrb[0].mxu0 %v613
        %v757 = vpop.f32.mrb[0].mxu0
        %v758 = vadd.f32 0.0, %v757
        %v759 = vpop.f32.mrb[0].mxu0
        %760 = vdwg.mxu0
        %v762 = vsel %vm611, %v602, 0
        %764 = vmatprep.subr.mxu0 0.0
        %765 = vmatpush1.xpose.msra.mxu0 %v762
        %766 = vmatprep.subr.mxu0 0.0
        %767 = vmatpush1.xpose.msra.mxu0 0.0
        %768 = vmatprep.subr.mxu0 0.0
        %769 = vmatpush1.xpose.msra.mxu0 0.0
        %770 = vmatprep.subr.mxu0 0.0
        %771 = vmatpush1.xpose.msra.mxu0 0.0
        %772 = vmatprep.subr.mxu0 0.0
        %773 = vmatpush1.xpose.msra.mxu0 0.0
        %774 = vmatprep.subr.mxu0 0.0
        %775 = vmatpush1.xpose.msra.mxu0 0.0
        %776 = vmatprep.subr.mxu0 0.0
        %777 = vmatpush1.xpose.msra.mxu0 0.0
        %778 = vmatprep.subr.mxu0 0.0
        %779 = vmatpush1.xpose.msra.mxu0 0.0
        %780 = vmatprep.subr.mxu0 0.0
        %781 = vmatpush1.xpose.msra.mxu0 0.0
        %782 = vmatprep.subr.mxu0 0.0
        %783 = vmatpush1.xpose.msra.mxu0 0.0
        %784 = vmatprep.subr.mxu0 0.0
        %785 = vmatpush1.xpose.msra.mxu0 0.0
        %786 = vmatprep.subr.mxu0 0.0
        %787 = vmatpush1.xpose.msra.mxu0 0.0
        %788 = vmatprep.subr.mxu0 0.0
        %789 = vmatpush1.xpose.msra.mxu0 0.0
        %790 = vmatprep.subr.mxu0 0.0
        %791 = vmatpush1.xpose.msra.mxu0 0.0
        %792 = vmatprep.subr.mxu0 0.0
        %793 = vmatpush1.xpose.msra.mxu0 0.0
        %794 = vmatprep.subr.mxu0 0.0
        %795 = vmatpush1.xpose.msra.mxu0 0.0
        %796 = vmatprep.subr.mxu0 0.0
        %797 = vmatpush1.xpose.msra.mxu0 0.0
        %798 = vmatprep.subr.mxu0 0.0
        %799 = vmatpush1.xpose.msra.mxu0 0.0
        %800 = vmatprep.subr.mxu0 0.0
        %801 = vmatpush1.xpose.msra.mxu0 0.0
        %802 = vmatprep.subr.mxu0 0.0
        %803 = vmatpush1.xpose.msra.mxu0 0.0
        %804 = vmatprep.subr.mxu0 0.0
        %805 = vmatpush1.xpose.msra.mxu0 0.0
        %806 = vmatprep.subr.mxu0 0.0
        %807 = vmatpush1.xpose.msra.mxu0 0.0
        %808 = vmatprep.subr.mxu0 0.0
        %809 = vmatpush1.xpose.msra.mxu0 0.0
        %810 = vmatprep.subr.mxu0 0.0
        %811 = vmatpush1.xpose.msra.mxu0 0.0
        %812 = vmatprep.subr.mxu0 0.0
        %813 = vmatpush1.xpose.msra.mxu0 0.0
        %814 = vmatprep.subr.mxu0 0.0
        %815 = vmatpush1.xpose.msra.mxu0 0.0
        %816 = vmatprep.subr.mxu0 0.0
        %817 = vmatpush1.xpose.msra.mxu0 0.0
        %818 = vmatprep.subr.mxu0 0.0
        %819 = vmatpush1.xpose.msra.mxu0 0.0
        %820 = vmatprep.subr.mxu0 0.0
        %821 = vmatpush1.xpose.msra.mxu0 0.0
        %822 = vmatprep.subr.mxu0 0.0
        %823 = vmatpush1.xpose.msra.mxu0 0.0
        %824 = vmatprep.subr.mxu0 0.0
        %825 = vmatpush1.xpose.msra.mxu0 0.0
        %826 = vmatprep.subr.mxu0 0.0
        %827 = vmatpush1.xpose.msra.mxu0 0.0
        %828 = vmatprep.mubr.f32.mxu0 0.0
        %829 = vmatmul.mubr.f32.gmra.mrb[0].mxu0 %v613
        %v830 = vpop.f32.mrb[0].mxu0
        %v831 = vadd.f32 0.0, %v830
        %v832 = vpop.f32.mrb[0].mxu0
        %833 = vdwg.mxu0
        %v835 = vsel %vm611, %v607, 0
        %837 = vmatprep.subr.mxu0 0.0
        %838 = vmatpush1.xpose.msra.mxu0 %v835
        %839 = vmatprep.subr.mxu0 0.0
        %840 = vmatpush1.xpose.msra.mxu0 0.0
        %841 = vmatprep.subr.mxu0 0.0
        %842 = vmatpush1.xpose.msra.mxu0 0.0
        %843 = vmatprep.subr.mxu0 0.0
        %844 = vmatpush1.xpose.msra.mxu0 0.0
        %845 = vmatprep.subr.mxu0 0.0
        %846 = vmatpush1.xpose.msra.mxu0 0.0
        %847 = vmatprep.subr.mxu0 0.0
        %848 = vmatpush1.xpose.msra.mxu0 0.0
        %849 = vmatprep.subr.mxu0 0.0
        %850 = vmatpush1.xpose.msra.mxu0 0.0
        %851 = vmatprep.subr.mxu0 0.0
        %852 = vmatpush1.xpose.msra.mxu0 0.0
        %853 = vmatprep.subr.mxu0 0.0
        %854 = vmatpush1.xpose.msra.mxu0 0.0
        %855 = vmatprep.subr.mxu0 0.0
        %856 = vmatpush1.xpose.msra.mxu0 0.0
        %857 = vmatprep.subr.mxu0 0.0
        %858 = vmatpush1.xpose.msra.mxu0 0.0
        %859 = vmatprep.subr.mxu0 0.0
        %860 = vmatpush1.xpose.msra.mxu0 0.0
        %861 = vmatprep.subr.mxu0 0.0
        %862 = vmatpush1.xpose.msra.mxu0 0.0
        %863 = vmatprep.subr.mxu0 0.0
        %864 = vmatpush1.xpose.msra.mxu0 0.0
        %865 = vmatprep.subr.mxu0 0.0
        %866 = vmatpush1.xpose.msra.mxu0 0.0
        %867 = vmatprep.subr.mxu0 0.0
        %868 = vmatpush1.xpose.msra.mxu0 0.0
        %869 = vmatprep.subr.mxu0 0.0
        %870 = vmatpush1.xpose.msra.mxu0 0.0
        %871 = vmatprep.subr.mxu0 0.0
        %872 = vmatpush1.xpose.msra.mxu0 0.0
        %873 = vmatprep.subr.mxu0 0.0
        %874 = vmatpush1.xpose.msra.mxu0 0.0
        %875 = vmatprep.subr.mxu0 0.0
        %876 = vmatpush1.xpose.msra.mxu0 0.0
        %877 = vmatprep.subr.mxu0 0.0
        %878 = vmatpush1.xpose.msra.mxu0 0.0
        %879 = vmatprep.subr.mxu0 0.0
        %880 = vmatpush1.xpose.msra.mxu0 0.0
        %881 = vmatprep.subr.mxu0 0.0
        %882 = vmatpush1.xpose.msra.mxu0 0.0
        %883 = vmatprep.subr.mxu0 0.0
        %884 = vmatpush1.xpose.msra.mxu0 0.0
        %885 = vmatprep.subr.mxu0 0.0
        %886 = vmatpush1.xpose.msra.mxu0 0.0
        %887 = vmatprep.subr.mxu0 0.0
        %888 = vmatpush1.xpose.msra.mxu0 0.0
        %889 = vmatprep.subr.mxu0 0.0
        %890 = vmatpush1.xpose.msra.mxu0 0.0
        %891 = vmatprep.subr.mxu0 0.0
        %892 = vmatpush1.xpose.msra.mxu0 0.0
        %893 = vmatprep.subr.mxu0 0.0
        %894 = vmatpush1.xpose.msra.mxu0 0.0
        %895 = vmatprep.subr.mxu0 0.0
        %896 = vmatpush1.xpose.msra.mxu0 0.0
        %897 = vmatprep.subr.mxu0 0.0
        %898 = vmatpush1.xpose.msra.mxu0 0.0
        %899 = vmatprep.subr.mxu0 0.0
        %900 = vmatpush1.xpose.msra.mxu0 0.0
        %901 = vmatprep.mubr.f32.mxu0 0.0
        %902 = vmatmul.mubr.f32.gmra.mrb[0].mxu0 %v613
        %v903 = vpop.f32.mrb[0].mxu0
        %v904 = vadd.f32 0.0, %v903
        %v905 = vpop.f32.mrb[0].mxu0
        %906 = vdwg.mxu0
        %v907 = vsel %vm611, %v685, -inf
        %908 = vmax.xlane.f32.xlu0 %v907
        %v909 = vpop.xlane.xlu0 %908
        %v910 = vsel %vm611, %v758, -inf
        %911 = vmax.xlane.f32.xlu0 %v910
        %v912 = vpop.xlane.xlu0 %911
        %v913 = vsel %vm611, %v831, -inf
        %914 = vmax.xlane.f32.xlu0 %v913
        %v915 = vpop.xlane.xlu0 %914
        %v916 = vsel %vm611, %v904, -inf
        %917 = vmax.xlane.f32.xlu0 %v916
        %v918 = vpop.xlane.xlu0 %917
        %v919 = vsub.f32 %v685, %v909
        %v920 = vsub.f32 %v758, %v912
        %v921 = vsub.f32 %v831, %v915
        %v922 = vsub.f32 %v904, %v918
        %v923 = vmul.f32 %v919, 1.442695
        %v924 = vpow.pop %v923
        %v925 = vmul.f32 %v920, 1.442695
        %v926 = vpow.pop %v925
        %v927 = vmul.f32 %v921, 1.442695
        %v928 = vpow.pop %v927
        %v929 = vmul.f32 %v922, 1.442695
        %v930 = vpow.pop %v929
        %v931 = vsel %vm611, %v924, 0.0
        %932 = vadd.xlane.f32.xlu0 %v931
        %v933 = vpop.xlane.xlu0 %932
        %v934 = vsel %vm611, %v926, 0.0
        %935 = vadd.xlane.f32.xlu0 %v934
        %v936 = vpop.xlane.xlu0 %935
        %v937 = vsel %vm611, %v928, 0.0
        %938 = vadd.xlane.f32.xlu0 %v937
        %v939 = vpop.xlane.xlu0 %938
        %v940 = vsel %vm611, %v930, 0.0
        %941 = vadd.xlane.f32.xlu0 %v940
        %v942 = vpop.xlane.xlu0 %941
        %v943 = vrcp.pop %v933
        %v944 = vrcp.pop %v936
        %v945 = vrcp.pop %v939
        %v946 = vrcp.pop %v942
        %v947 = vmul.f32 %v924, %v943
        %v948 = vmul.f32 %v926, %v944
        %v949 = vmul.f32 %v928, %v945
        %v950 = vmul.f32 %v930, %v946
        %951 = vrot.lane.b32.xlu0 %v592, 96
        %v952 = vpop.permute.xlu0 %951
        %v955 = vsel %vm611, %v947, 0
        %957 = vmatprep.subr.mxu0 0.0
        %958 = vmatpush1.msra.mxu0 %v952
        %959 = vmatprep.subr.mxu0 0.0
        %960 = vmatpush1.msra.mxu0 0.0
        %961 = vmatprep.subr.mxu0 0.0
        %962 = vmatpush1.msra.mxu0 0.0
        %963 = vmatprep.subr.mxu0 0.0
        %964 = vmatpush1.msra.mxu0 0.0
        %965 = vmatprep.subr.mxu0 0.0
        %966 = vmatpush1.msra.mxu0 0.0
        %967 = vmatprep.subr.mxu0 0.0
        %968 = vmatpush1.msra.mxu0 0.0
        %969 = vmatprep.subr.mxu0 0.0
        %970 = vmatpush1.msra.mxu0 0.0
        %971 = vmatprep.subr.mxu0 0.0
        %972 = vmatpush1.msra.mxu0 0.0
        %973 = vmatprep.subr.mxu0 0.0
        %974 = vmatpush1.msra.mxu0 0.0
        %975 = vmatprep.subr.mxu0 0.0
        %976 = vmatpush1.msra.mxu0 0.0
        %977 = vmatprep.subr.mxu0 0.0
        %978 = vmatpush1.msra.mxu0 0.0
        %979 = vmatprep.subr.mxu0 0.0
        %980 = vmatpush1.msra.mxu0 0.0
        %981 = vmatprep.subr.mxu0 0.0
        %982 = vmatpush1.msra.mxu0 0.0
        %983 = vmatprep.subr.mxu0 0.0
        %984 = vmatpush1.msra.mxu0 0.0
        %985 = vmatprep.subr.mxu0 0.0
        %986 = vmatpush1.msra.mxu0 0.0
        %987 = vmatprep.subr.mxu0 0.0
        %988 = vmatpush1.msra.mxu0 0.0
        %989 = vmatprep.subr.mxu0 0.0
        %990 = vmatpush1.msra.mxu0 0.0
        %991 = vmatprep.subr.mxu0 0.0
        %992 = vmatpush1.msra.mxu0 0.0
        %993 = vmatprep.subr.mxu0 0.0
        %994 = vmatpush1.msra.mxu0 0.0
        %995 = vmatprep.subr.mxu0 0.0
        %996 = vmatpush1.msra.mxu0 0.0
        %997 = vmatprep.subr.mxu0 0.0
        %998 = vmatpush1.msra.mxu0 0.0
        %999 = vmatprep.subr.mxu0 0.0
        %1000 = vmatpush1.msra.mxu0 0.0
        %1001 = vmatprep.subr.mxu0 0.0
        %1002 = vmatpush1.msra.mxu0 0.0
        %1003 = vmatprep.subr.mxu0 0.0
        %1004 = vmatpush1.msra.mxu0 0.0
        %1005 = vmatprep.subr.mxu0 0.0
        %1006 = vmatpush1.msra.mxu0 0.0
        %1007 = vmatprep.subr.mxu0 0.0
        %1008 = vmatpush1.msra.mxu0 0.0
        %1009 = vmatprep.subr.mxu0 0.0
        %1010 = vmatpush1.msra.mxu0 0.0
        %1011 = vmatprep.subr.mxu0 0.0
        %1012 = vmatpush1.msra.mxu0 0.0
        %1013 = vmatprep.subr.mxu0 0.0
        %1014 = vmatpush1.msra.mxu0 0.0
        %1015 = vmatprep.subr.mxu0 0.0
        %1016 = vmatpush1.msra.mxu0 0.0
        %1017 = vmatprep.subr.mxu0 0.0
        %1018 = vmatpush1.msra.mxu0 0.0
        %1019 = vmatprep.subr.mxu0 0.0
        %1020 = vmatpush1.msra.mxu0 0.0
        %1021 = vmatprep.mubr.f32.mxu0 0.0
        %1022 = vmatmul.mubr.f32.gmra.mrb[0].mxu0 %v955
        %v1023 = vpop.f32.mrb[0].mxu0
        %v1024 = vadd.f32 0.0, %v1023
        %v1025 = vpop.f32.mrb[0].mxu0
        %1026 = vdwg.mxu0
        %1027 = vrot.lane.b32.xlu0 %v597, 96
        %v1028 = vpop.permute.xlu0 %1027
        %v1031 = vsel %vm611, %v948, 0
        %1033 = vmatprep.subr.mxu0 0.0
        %1034 = vmatpush1.msra.mxu0 %v1028
        %1035 = vmatprep.subr.mxu0 0.0
        %1036 = vmatpush1.msra.mxu0 0.0
        %1037 = vmatprep.subr.mxu0 0.0
        %1038 = vmatpush1.msra.mxu0 0.0
        %1039 = vmatprep.subr.mxu0 0.0
        %1040 = vmatpush1.msra.mxu0 0.0
        %1041 = vmatprep.subr.mxu0 0.0
        %1042 = vmatpush1.msra.mxu0 0.0
        %1043 = vmatprep.subr.mxu0 0.0
        %1044 = vmatpush1.msra.mxu0 0.0
        %1045 = vmatprep.subr.mxu0 0.0
        %1046 = vmatpush1.msra.mxu0 0.0
        %1047 = vmatprep.subr.mxu0 0.0
        %1048 = vmatpush1.msra.mxu0 0.0
        %1049 = vmatprep.subr.mxu0 0.0
        %1050 = vmatpush1.msra.mxu0 0.0
        %1051 = vmatprep.subr.mxu0 0.0
        %1052 = vmatpush1.msra.mxu0 0.0
        %1053 = vmatprep.subr.mxu0 0.0
        %1054 = vmatpush1.msra.mxu0 0.0
        %1055 = vmatprep.subr.mxu0 0.0
        %1056 = vmatpush1.msra.mxu0 0.0
        %1057 = vmatprep.subr.mxu0 0.0
        %1058 = vmatpush1.msra.mxu0 0.0
        %1059 = vmatprep.subr.mxu0 0.0
        %1060 = vmatpush1.msra.mxu0 0.0
        %1061 = vmatprep.subr.mxu0 0.0
        %1062 = vmatpush1.msra.mxu0 0.0
        %1063 = vmatprep.subr.mxu0 0.0
        %1064 = vmatpush1.msra.mxu0 0.0
        %1065 = vmatprep.subr.mxu0 0.0
        %1066 = vmatpush1.msra.mxu0 0.0
        %1067 = vmatprep.subr.mxu0 0.0
        %1068 = vmatpush1.msra.mxu0 0.0
        %1069 = vmatprep.subr.mxu0 0.0
        %1070 = vmatpush1.msra.mxu0 0.0
        %1071 = vmatprep.subr.mxu0 0.0
        %1072 = vmatpush1.msra.mxu0 0.0
        %1073 = vmatprep.subr.mxu0 0.0
        %1074 = vmatpush1.msra.mxu0 0.0
        %1075 = vmatprep.subr.mxu0 0.0
        %1076 = vmatpush1.msra.mxu0 0.0
        %1077 = vmatprep.subr.mxu0 0.0
        %1078 = vmatpush1.msra.mxu0 0.0
        %1079 = vmatprep.subr.mxu0 0.0
        %1080 = vmatpush1.msra.mxu0 0.0
        %1081 = vmatprep.subr.mxu0 0.0
        %1082 = vmatpush1.msra.mxu0 0.0
        %1083 = vmatprep.subr.mxu0 0.0
        %1084 = vmatpush1.msra.mxu0 0.0
        %1085 = vmatprep.subr.mxu0 0.0
        %1086 = vmatpush1.msra.mxu0 0.0
        %1087 = vmatprep.subr.mxu0 0.0
        %1088 = vmatpush1.msra.mxu0 0.0
        %1089 = vmatprep.subr.mxu0 0.0
        %1090 = vmatpush1.msra.mxu0 0.0
        %1091 = vmatprep.subr.mxu0 0.0
        %1092 = vmatpush1.msra.mxu0 0.0
        %1093 = vmatprep.subr.mxu0 0.0
        %1094 = vmatpush1.msra.mxu0 0.0
        %1095 = vmatprep.subr.mxu0 0.0
        %1096 = vmatpush1.msra.mxu0 0.0
        %1097 = vmatprep.mubr.f32.mxu0 0.0
        %1098 = vmatmul.mubr.f32.gmra.mrb[0].mxu0 %v1031
        %v1099 = vpop.f32.mrb[0].mxu0
        %v1100 = vadd.f32 0.0, %v1099
        %v1101 = vpop.f32.mrb[0].mxu0
        %1102 = vdwg.mxu0
        %1103 = vrot.lane.b32.xlu0 %v602, 96
        %v1104 = vpop.permute.xlu0 %1103
        %v1107 = vsel %vm611, %v949, 0
        %1109 = vmatprep.subr.mxu0 0.0
        %1110 = vmatpush1.msra.mxu0 %v1104
        %1111 = vmatprep.subr.mxu0 0.0
        %1112 = vmatpush1.msra.mxu0 0.0
        %1113 = vmatprep.subr.mxu0 0.0
        %1114 = vmatpush1.msra.mxu0 0.0
        %1115 = vmatprep.subr.mxu0 0.0
        %1116 = vmatpush1.msra.mxu0 0.0
        %1117 = vmatprep.subr.mxu0 0.0
        %1118 = vmatpush1.msra.mxu0 0.0
        %1119 = vmatprep.subr.mxu0 0.0
        %1120 = vmatpush1.msra.mxu0 0.0
        %1121 = vmatprep.subr.mxu0 0.0
        %1122 = vmatpush1.msra.mxu0 0.0
        %1123 = vmatprep.subr.mxu0 0.0
        %1124 = vmatpush1.msra.mxu0 0.0
        %1125 = vmatprep.subr.mxu0 0.0
        %1126 = vmatpush1.msra.mxu0 0.0
        %1127 = vmatprep.subr.mxu0 0.0
        %1128 = vmatpush1.msra.mxu0 0.0
        %1129 = vmatprep.subr.mxu0 0.0
        %1130 = vmatpush1.msra.mxu0 0.0
        %1131 = vmatprep.subr.mxu0 0.0
        %1132 = vmatpush1.msra.mxu0 0.0
        %1133 = vmatprep.subr.mxu0 0.0
        %1134 = vmatpush1.msra.mxu0 0.0
        %1135 = vmatprep.subr.mxu0 0.0
        %1136 = vmatpush1.msra.mxu0 0.0
        %1137 = vmatprep.subr.mxu0 0.0
        %1138 = vmatpush1.msra.mxu0 0.0
        %1139 = vmatprep.subr.mxu0 0.0
        %1140 = vmatpush1.msra.mxu0 0.0
        %1141 = vmatprep.subr.mxu0 0.0
        %1142 = vmatpush1.msra.mxu0 0.0
        %1143 = vmatprep.subr.mxu0 0.0
        %1144 = vmatpush1.msra.mxu0 0.0
        %1145 = vmatprep.subr.mxu0 0.0
        %1146 = vmatpush1.msra.mxu0 0.0
        %1147 = vmatprep.subr.mxu0 0.0
        %1148 = vmatpush1.msra.mxu0 0.0
        %1149 = vmatprep.subr.mxu0 0.0
        %1150 = vmatpush1.msra.mxu0 0.0
        %1151 = vmatprep.subr.mxu0 0.0
        %1152 = vmatpush1.msra.mxu0 0.0
        %1153 = vmatprep.subr.mxu0 0.0
        %1154 = vmatpush1.msra.mxu0 0.0
        %1155 = vmatprep.subr.mxu0 0.0
        %1156 = vmatpush1.msra.mxu0 0.0
        %1157 = vmatprep.subr.mxu0 0.0
        %1158 = vmatpush1.msra.mxu0 0.0
        %1159 = vmatprep.subr.mxu0 0.0
        %1160 = vmatpush1.msra.mxu0 0.0
        %1161 = vmatprep.subr.mxu0 0.0
        %1162 = vmatpush1.msra.mxu0 0.0
        %1163 = vmatprep.subr.mxu0 0.0
        %1164 = vmatpush1.msra.mxu0 0.0
        %1165 = vmatprep.subr.mxu0 0.0
        %1166 = vmatpush1.msra.mxu0 0.0
        %1167 = vmatprep.subr.mxu0 0.0
        %1168 = vmatpush1.msra.mxu0 0.0
        %1169 = vmatprep.subr.mxu0 0.0
        %1170 = vmatpush1.msra.mxu0 0.0
        %1171 = vmatprep.subr.mxu0 0.0
        %1172 = vmatpush1.msra.mxu0 0.0
        %1173 = vmatprep.mubr.f32.mxu0 0.0
        %1174 = vmatmul.mubr.f32.gmra.mrb[0].mxu0 %v1107
        %v1175 = vpop.f32.mrb[0].mxu0
        %v1176 = vadd.f32 0.0, %v1175
        %v1177 = vpop.f32.mrb[0].mxu0
        %1178 = vdwg.mxu0
        %1179 = vrot.lane.b32.xlu0 %v607, 96
        %v1180 = vpop.permute.xlu0 %1179
        %v1183 = vsel %vm611, %v950, 0
        %1185 = vmatprep.subr.mxu0 0.0
        %1186 = vmatpush1.msra.mxu0 %v1180
        %1187 = vmatprep.subr.mxu0 0.0
        %1188 = vmatpush1.msra.mxu0 0.0
        %1189 = vmatprep.subr.mxu0 0.0
        %1190 = vmatpush1.msra.mxu0 0.0
        %1191 = vmatprep.subr.mxu0 0.0
        %1192 = vmatpush1.msra.mxu0 0.0
        %1193 = vmatprep.subr.mxu0 0.0
        %1194 = vmatpush1.msra.mxu0 0.0
        %1195 = vmatprep.subr.mxu0 0.0
        %1196 = vmatpush1.msra.mxu0 0.0
        %1197 = vmatprep.subr.mxu0 0.0
        %1198 = vmatpush1.msra.mxu0 0.0
        %1199 = vmatprep.subr.mxu0 0.0
        %1200 = vmatpush1.msra.mxu0 0.0
        %1201 = vmatprep.subr.mxu0 0.0
        %1202 = vmatpush1.msra.mxu0 0.0
        %1203 = vmatprep.subr.mxu0 0.0
        %1204 = vmatpush1.msra.mxu0 0.0
        %1205 = vmatprep.subr.mxu0 0.0
        %1206 = vmatpush1.msra.mxu0 0.0
        %1207 = vmatprep.subr.mxu0 0.0
        %1208 = vmatpush1.msra.mxu0 0.0
        %1209 = vmatprep.subr.mxu0 0.0
        %1210 = vmatpush1.msra.mxu0 0.0
        %1211 = vmatprep.subr.mxu0 0.0
        %1212 = vmatpush1.msra.mxu0 0.0
        %1213 = vmatprep.subr.mxu0 0.0
        %1214 = vmatpush1.msra.mxu0 0.0
        %1215 = vmatprep.subr.mxu0 0.0
        %1216 = vmatpush1.msra.mxu0 0.0
        %1217 = vmatprep.subr.mxu0 0.0
        %1218 = vmatpush1.msra.mxu0 0.0
        %1219 = vmatprep.subr.mxu0 0.0
        %1220 = vmatpush1.msra.mxu0 0.0
        %1221 = vmatprep.subr.mxu0 0.0
        %1222 = vmatpush1.msra.mxu0 0.0
        %1223 = vmatprep.subr.mxu0 0.0
        %1224 = vmatpush1.msra.mxu0 0.0
        %1225 = vmatprep.subr.mxu0 0.0
        %1226 = vmatpush1.msra.mxu0 0.0
        %1227 = vmatprep.subr.mxu0 0.0
        %1228 = vmatpush1.msra.mxu0 0.0
        %1229 = vmatprep.subr.mxu0 0.0
        %1230 = vmatpush1.msra.mxu0 0.0
        %1231 = vmatprep.subr.mxu0 0.0
        %1232 = vmatpush1.msra.mxu0 0.0
        %1233 = vmatprep.subr.mxu0 0.0
        %1234 = vmatpush1.msra.mxu0 0.0
        %1235 = vmatprep.subr.mxu0 0.0
        %1236 = vmatpush1.msra.mxu0 0.0
        %1237 = vmatprep.subr.mxu0 0.0
        %1238 = vmatpush1.msra.mxu0 0.0
        %1239 = vmatprep.subr.mxu0 0.0
        %1240 = vmatpush1.msra.mxu0 0.0
        %1241 = vmatprep.subr.mxu0 0.0
        %1242 = vmatpush1.msra.mxu0 0.0
        %1243 = vmatprep.subr.mxu0 0.0
        %1244 = vmatpush1.msra.mxu0 0.0
        %1245 = vmatprep.subr.mxu0 0.0
        %1246 = vmatpush1.msra.mxu0 0.0
        %1247 = vmatprep.subr.mxu0 0.0
        %1248 = vmatpush1.msra.mxu0 0.0
        %1249 = vmatprep.mubr.f32.mxu0 0.0
        %1250 = vmatmul.mubr.f32.gmra.mrb[0].mxu0 %v1183
        %v1251 = vpop.f32.mrb[0].mxu0
        %v1252 = vadd.f32 0.0, %v1251
        %v1253 = vpop.f32.mrb[0].mxu0
        %1254 = vdwg.mxu0
        %v1255 = vadd.f32 %v610, %v1024
        %v1256 = vadd.f32 %v610, %v1100
        %v1257 = vadd.f32 %v610, %v1176
        %v1258 = vadd.f32 %v610, %v1252
        %1259 = vrot.lane.b32.xlu0 %v610, 120
        %v1260 = vpop.permute.xlu0 %1259
        %1261 = vrot.lane.b32.xlu0 %v592, 120
        %v1262 = vpop.permute.xlu0 %1261
        %v1263 = vsel %vm611, %v1260, 0
        %v1265 = vsel %vm611, %v1262, 0
        %1267 = vmatprep.subr.mxu0 0.0
        %1268 = vmatpush1.xpose.msra.mxu0 %v1265
        %1269 = vmatprep.subr.mxu0 0.0
        %1270 = vmatpush1.xpose.msra.mxu0 0.0
        %1271 = vmatprep.subr.mxu0 0.0
        %1272 = vmatpush1.xpose.msra.mxu0 0.0
        %1273 = vmatprep.subr.mxu0 0.0
        %1274 = vmatpush1.xpose.msra.mxu0 0.0
        %1275 = vmatprep.subr.mxu0 0.0
        %1276 = vmatpush1.xpose.msra.mxu0 0.0
        %1277 = vmatprep.subr.mxu0 0.0
        %1278 = vmatpush1.xpose.msra.mxu0 0.0
        %1279 = vmatprep.subr.mxu0 0.0
        %1280 = vmatpush1.xpose.msra.mxu0 0.0
        %1281 = vmatprep.subr.mxu0 0.0
        %1282 = vmatpush1.xpose.msra.mxu0 0.0
        %1283 = vmatprep.subr.mxu0 0.0
        %1284 = vmatpush1.xpose.msra.mxu0 0.0
        %1285 = vmatprep.subr.mxu0 0.0
        %1286 = vmatpush1.xpose.msra.mxu0 0.0
        %1287 = vmatprep.subr.mxu0 0.0
        %1288 = vmatpush1.xpose.msra.mxu0 0.0
        %1289 = vmatprep.subr.mxu0 0.0
        %1290 = vmatpush1.xpose.msra.mxu0 0.0
        %1291 = vmatprep.subr.mxu0 0.0
        %1292 = vmatpush1.xpose.msra.mxu0 0.0
        %1293 = vmatprep.subr.mxu0 0.0
        %1294 = vmatpush1.xpose.msra.mxu0 0.0
        %1295 = vmatprep.subr.mxu0 0.0
        %1296 = vmatpush1.xpose.msra.mxu0 0.0
        %1297 = vmatprep.subr.mxu0 0.0
        %1298 = vmatpush1.xpose.msra.mxu0 0.0
        %1299 = vmatprep.subr.mxu0 0.0
        %1300 = vmatpush1.xpose.msra.mxu0 0.0
        %1301 = vmatprep.subr.mxu0 0.0
        %1302 = vmatpush1.xpose.msra.mxu0 0.0
        %1303 = vmatprep.subr.mxu0 0.0
        %1304 = vmatpush1.xpose.msra.mxu0 0.0
        %1305 = vmatprep.subr.mxu0 0.0
        %1306 = vmatpush1.xpose.msra.mxu0 0.0
        %1307 = vmatprep.subr.mxu0 0.0
        %1308 = vmatpush1.xpose.msra.mxu0 0.0
        %1309 = vmatprep.subr.mxu0 0.0
        %1310 = vmatpush1.xpose.msra.mxu0 0.0
        %1311 = vmatprep.subr.mxu0 0.0
        %1312 = vmatpush1.xpose.msra.mxu0 0.0
        %1313 = vmatprep.subr.mxu0 0.0
        %1314 = vmatpush1.xpose.msra.mxu0 0.0
        %1315 = vmatprep.subr.mxu0 0.0
        %1316 = vmatpush1.xpose.msra.mxu0 0.0
        %1317 = vmatprep.subr.mxu0 0.0
        %1318 = vmatpush1.xpose.msra.mxu0 0.0
        %1319 = vmatprep.subr.mxu0 0.0
        %1320 = vmatpush1.xpose.msra.mxu0 0.0
        %1321 = vmatprep.subr.mxu0 0.0
        %1322 = vmatpush1.xpose.msra.mxu0 0.0
        %1323 = vmatprep.subr.mxu0 0.0
        %1324 = vmatpush1.xpose.msra.mxu0 0.0
        %1325 = vmatprep.subr.mxu0 0.0
        %1326 = vmatpush1.xpose.msra.mxu0 0.0
        %1327 = vmatprep.subr.mxu0 0.0
        %1328 = vmatpush1.xpose.msra.mxu0 0.0
        %1329 = vmatprep.subr.mxu0 0.0
        %1330 = vmatpush1.xpose.msra.mxu0 0.0
        %1331 = vmatprep.mubr.f32.mxu0 0.0
        %1332 = vmatmul.mubr.f32.gmra.mrb[0].mxu0 %v1263
        %v1333 = vpop.f32.mrb[0].mxu0
        %v1334 = vadd.f32 0.0, %v1333
        %v1335 = vpop.f32.mrb[0].mxu0
        %1336 = vdwg.mxu0
        %1337 = vrot.lane.b32.xlu0 %v597, 120
        %v1338 = vpop.permute.xlu0 %1337
        %v1339 = vsel %vm611, %v1338, 0
        %1341 = vmatprep.subr.mxu0 0.0
        %1342 = vmatpush1.xpose.msra.mxu0 %v1339
        %1343 = vmatprep.subr.mxu0 0.0
        %1344 = vmatpush1.xpose.msra.mxu0 0.0
        %1345 = vmatprep.subr.mxu0 0.0
        %1346 = vmatpush1.xpose.msra.mxu0 0.0
        %1347 = vmatprep.subr.mxu0 0.0
        %1348 = vmatpush1.xpose.msra.mxu0 0.0
        %1349 = vmatprep.subr.mxu0 0.0
        %1350 = vmatpush1.xpose.msra.mxu0 0.0
        %1351 = vmatprep.subr.mxu0 0.0
        %1352 = vmatpush1.xpose.msra.mxu0 0.0
        %1353 = vmatprep.subr.mxu0 0.0
        %1354 = vmatpush1.xpose.msra.mxu0 0.0
        %1355 = vmatprep.subr.mxu0 0.0
        %1356 = vmatpush1.xpose.msra.mxu0 0.0
        %1357 = vmatprep.subr.mxu0 0.0
        %1358 = vmatpush1.xpose.msra.mxu0 0.0
        %1359 = vmatprep.subr.mxu0 0.0
        %1360 = vmatpush1.xpose.msra.mxu0 0.0
        %1361 = vmatprep.subr.mxu0 0.0
        %1362 = vmatpush1.xpose.msra.mxu0 0.0
        %1363 = vmatprep.subr.mxu0 0.0
        %1364 = vmatpush1.xpose.msra.mxu0 0.0
        %1365 = vmatprep.subr.mxu0 0.0
        %1366 = vmatpush1.xpose.msra.mxu0 0.0
        %1367 = vmatprep.subr.mxu0 0.0
        %1368 = vmatpush1.xpose.msra.mxu0 0.0
        %1369 = vmatprep.subr.mxu0 0.0
        %1370 = vmatpush1.xpose.msra.mxu0 0.0
        %1371 = vmatprep.subr.mxu0 0.0
        %1372 = vmatpush1.xpose.msra.mxu0 0.0
        %1373 = vmatprep.subr.mxu0 0.0
        %1374 = vmatpush1.xpose.msra.mxu0 0.0
        %1375 = vmatprep.subr.mxu0 0.0
        %1376 = vmatpush1.xpose.msra.mxu0 0.0
        %1377 = vmatprep.subr.mxu0 0.0
        %1378 = vmatpush1.xpose.msra.mxu0 0.0
        %1379 = vmatprep.subr.mxu0 0.0
        %1380 = vmatpush1.xpose.msra.mxu0 0.0
        %1381 = vmatprep.subr.mxu0 0.0
        %1382 = vmatpush1.xpose.msra.mxu0 0.0
        %1383 = vmatprep.subr.mxu0 0.0
        %1384 = vmatpush1.xpose.msra.mxu0 0.0
        %1385 = vmatprep.subr.mxu0 0.0
        %1386 = vmatpush1.xpose.msra.mxu0 0.0
        %1387 = vmatprep.subr.mxu0 0.0
        %1388 = vmatpush1.xpose.msra.mxu0 0.0
        %1389 = vmatprep.subr.mxu0 0.0
        %1390 = vmatpush1.xpose.msra.mxu0 0.0
        %1391 = vmatprep.subr.mxu0 0.0
        %1392 = vmatpush1.xpose.msra.mxu0 0.0
        %1393 = vmatprep.subr.mxu0 0.0
        %1394 = vmatpush1.xpose.msra.mxu0 0.0
        %1395 = vmatprep.subr.mxu0 0.0
        %1396 = vmatpush1.xpose.msra.mxu0 0.0
        %1397 = vmatprep.subr.mxu0 0.0
        %1398 = vmatpush1.xpose.msra.mxu0 0.0
        %1399 = vmatprep.subr.mxu0 0.0
        %1400 = vmatpush1.xpose.msra.mxu0 0.0
        %1401 = vmatprep.subr.mxu0 0.0
        %1402 = vmatpush1.xpose.msra.mxu0 0.0
        %1403 = vmatprep.subr.mxu0 0.0
        %1404 = vmatpush1.xpose.msra.mxu0 0.0
        %1405 = vmatprep.mubr.f32.mxu0 0.0
        %1406 = vmatmul.mubr.f32.gmra.mrb[0].mxu0 %v1263
        %v1407 = vpop.f32.mrb[0].mxu0
        %v1408 = vadd.f32 0.0, %v1407
        %v1409 = vpop.f32.mrb[0].mxu0
        %1410 = vdwg.mxu0
        %1411 = vrot.lane.b32.xlu0 %v602, 120
        %v1412 = vpop.permute.xlu0 %1411
        %v1413 = vsel %vm611, %v1412, 0
        %1415 = vmatprep.subr.mxu0 0.0
        %1416 = vmatpush1.xpose.msra.mxu0 %v1413
        %1417 = vmatprep.subr.mxu0 0.0
        %1418 = vmatpush1.xpose.msra.mxu0 0.0
        %1419 = vmatprep.subr.mxu0 0.0
        %1420 = vmatpush1.xpose.msra.mxu0 0.0
        %1421 = vmatprep.subr.mxu0 0.0
        %1422 = vmatpush1.xpose.msra.mxu0 0.0
        %1423 = vmatprep.subr.mxu0 0.0
        %1424 = vmatpush1.xpose.msra.mxu0 0.0
        %1425 = vmatprep.subr.mxu0 0.0
        %1426 = vmatpush1.xpose.msra.mxu0 0.0
        %1427 = vmatprep.subr.mxu0 0.0
        %1428 = vmatpush1.xpose.msra.mxu0 0.0
        %1429 = vmatprep.subr.mxu0 0.0
        %1430 = vmatpush1.xpose.msra.mxu0 0.0
        %1431 = vmatprep.subr.mxu0 0.0
        %1432 = vmatpush1.xpose.msra.mxu0 0.0
        %1433 = vmatprep.subr.mxu0 0.0
        %1434 = vmatpush1.xpose.msra.mxu0 0.0
        %1435 = vmatprep.subr.mxu0 0.0
        %1436 = vmatpush1.xpose.msra.mxu0 0.0
        %1437 = vmatprep.subr.mxu0 0.0
        %1438 = vmatpush1.xpose.msra.mxu0 0.0
        %1439 = vmatprep.subr.mxu0 0.0
        %1440 = vmatpush1.xpose.msra.mxu0 0.0
        %1441 = vmatprep.subr.mxu0 0.0
        %1442 = vmatpush1.xpose.msra.mxu0 0.0
        %1443 = vmatprep.subr.mxu0 0.0
        %1444 = vmatpush1.xpose.msra.mxu0 0.0
        %1445 = vmatprep.subr.mxu0 0.0
        %1446 = vmatpush1.xpose.msra.mxu0 0.0
        %1447 = vmatprep.subr.mxu0 0.0
        %1448 = vmatpush1.xpose.msra.mxu0 0.0
        %1449 = vmatprep.subr.mxu0 0.0
        %1450 = vmatpush1.xpose.msra.mxu0 0.0
        %1451 = vmatprep.subr.mxu0 0.0
        %1452 = vmatpush1.xpose.msra.mxu0 0.0
        %1453 = vmatprep.subr.mxu0 0.0
        %1454 = vmatpush1.xpose.msra.mxu0 0.0
        %1455 = vmatprep.subr.mxu0 0.0
        %1456 = vmatpush1.xpose.msra.mxu0 0.0
        %1457 = vmatprep.subr.mxu0 0.0
        %1458 = vmatpush1.xpose.msra.mxu0 0.0
        %1459 = vmatprep.subr.mxu0 0.0
        %1460 = vmatpush1.xpose.msra.mxu0 0.0
        %1461 = vmatprep.subr.mxu0 0.0
        %1462 = vmatpush1.xpose.msra.mxu0 0.0
        %1463 = vmatprep.subr.mxu0 0.0
        %1464 = vmatpush1.xpose.msra.mxu0 0.0
        %1465 = vmatprep.subr.mxu0 0.0
        %1466 = vmatpush1.xpose.msra.mxu0 0.0
        %1467 = vmatprep.subr.mxu0 0.0
        %1468 = vmatpush1.xpose.msra.mxu0 0.0
        %1469 = vmatprep.subr.mxu0 0.0
        %1470 = vmatpush1.xpose.msra.mxu0 0.0
        %1471 = vmatprep.subr.mxu0 0.0
        %1472 = vmatpush1.xpose.msra.mxu0 0.0
        %1473 = vmatprep.subr.mxu0 0.0
        %1474 = vmatpush1.xpose.msra.mxu0 0.0
        %1475 = vmatprep.subr.mxu0 0.0
        %1476 = vmatpush1.xpose.msra.mxu0 0.0
        %1477 = vmatprep.subr.mxu0 0.0
        %1478 = vmatpush1.xpose.msra.mxu0 0.0
        %1479 = vmatprep.mubr.f32.mxu0 0.0
        %1480 = vmatmul.mubr.f32.gmra.mrb[0].mxu0 %v1263
        %v1481 = vpop.f32.mrb[0].mxu0
        %v1482 = vadd.f32 0.0, %v1481
        %v1483 = vpop.f32.mrb[0].mxu0
        %1484 = vdwg.mxu0
        %1485 = vrot.lane.b32.xlu0 %v607, 120
        %v1486 = vpop.permute.xlu0 %1485
        %v1487 = vsel %vm611, %v1486, 0
        %1489 = vmatprep.subr.mxu0 0.0
        %1490 = vmatpush1.xpose.msra.mxu0 %v1487
        %1491 = vmatprep.subr.mxu0 0.0
        %1492 = vmatpush1.xpose.msra.mxu0 0.0
        %1493 = vmatprep.subr.mxu0 0.0
        %1494 = vmatpush1.xpose.msra.mxu0 0.0
        %1495 = vmatprep.subr.mxu0 0.0
        %1496 = vmatpush1.xpose.msra.mxu0 0.0
        %1497 = vmatprep.subr.mxu0 0.0
        %1498 = vmatpush1.xpose.msra.mxu0 0.0
        %1499 = vmatprep.subr.mxu0 0.0
        %1500 = vmatpush1.xpose.msra.mxu0 0.0
        %1501 = vmatprep.subr.mxu0 0.0
        %1502 = vmatpush1.xpose.msra.mxu0 0.0
        %1503 = vmatprep.subr.mxu0 0.0
        %1504 = vmatpush1.xpose.msra.mxu0 0.0
        %1505 = vmatprep.subr.mxu0 0.0
        %1506 = vmatpush1.xpose.msra.mxu0 0.0
        %1507 = vmatprep.subr.mxu0 0.0
        %1508 = vmatpush1.xpose.msra.mxu0 0.0
        %1509 = vmatprep.subr.mxu0 0.0
        %1510 = vmatpush1.xpose.msra.mxu0 0.0
        %1511 = vmatprep.subr.mxu0 0.0
        %1512 = vmatpush1.xpose.msra.mxu0 0.0
        %1513 = vmatprep.subr.mxu0 0.0
        %1514 = vmatpush1.xpose.msra.mxu0 0.0
        %1515 = vmatprep.subr.mxu0 0.0
        %1516 = vmatpush1.xpose.msra.mxu0 0.0
        %1517 = vmatprep.subr.mxu0 0.0
        %1518 = vmatpush1.xpose.msra.mxu0 0.0
        %1519 = vmatprep.subr.mxu0 0.0
        %1520 = vmatpush1.xpose.msra.mxu0 0.0
        %1521 = vmatprep.subr.mxu0 0.0
        %1522 = vmatpush1.xpose.msra.mxu0 0.0
        %1523 = vmatprep.subr.mxu0 0.0
        %1524 = vmatpush1.xpose.msra.mxu0 0.0
        %1525 = vmatprep.subr.mxu0 0.0
        %1526 = vmatpush1.xpose.msra.mxu0 0.0
        %1527 = vmatprep.subr.mxu0 0.0
        %1528 = vmatpush1.xpose.msra.mxu0 0.0
        %1529 = vmatprep.subr.mxu0 0.0
        %1530 = vmatpush1.xpose.msra.mxu0 0.0
        %1531 = vmatprep.subr.mxu0 0.0
        %1532 = vmatpush1.xpose.msra.mxu0 0.0
        %1533 = vmatprep.subr.mxu0 0.0
        %1534 = vmatpush1.xpose.msra.mxu0 0.0
        %1535 = vmatprep.subr.mxu0 0.0
        %1536 = vmatpush1.xpose.msra.mxu0 0.0
        %1537 = vmatprep.subr.mxu0 0.0
        %1538 = vmatpush1.xpose.msra.mxu0 0.0
        %1539 = vmatprep.subr.mxu0 0.0
        %1540 = vmatpush1.xpose.msra.mxu0 0.0
        %1541 = vmatprep.subr.mxu0 0.0
        %1542 = vmatpush1.xpose.msra.mxu0 0.0
        %1543 = vmatprep.subr.mxu0 0.0
        %1544 = vmatpush1.xpose.msra.mxu0 0.0
        %1545 = vmatprep.subr.mxu0 0.0
        %1546 = vmatpush1.xpose.msra.mxu0 0.0
        %1547 = vmatprep.subr.mxu0 0.0
        %1548 = vmatpush1.xpose.msra.mxu0 0.0
        %1549 = vmatprep.subr.mxu0 0.0
        %1550 = vmatpush1.xpose.msra.mxu0 0.0
        %1551 = vmatprep.subr.mxu0 0.0
        %1552 = vmatpush1.xpose.msra.mxu0 0.0
        %1553 = vmatprep.mubr.f32.mxu0 0.0
        %1554 = vmatmul.mubr.f32.gmra.mrb[0].mxu0 %v1263
        %v1555 = vpop.f32.mrb[0].mxu0
        %v1556 = vadd.f32 0.0, %v1555
        %v1557 = vpop.f32.mrb[0].mxu0
        %1558 = vdwg.mxu0
        %v1559 = vsel %vm611, %v1334, -inf
        %1560 = vmax.xlane.f32.xlu0 %v1559
        %v1561 = vpop.xlane.xlu0 %1560
        %v1562 = vsel %vm611, %v1408, -inf
        %1563 = vmax.xlane.f32.xlu0 %v1562
        %v1564 = vpop.xlane.xlu0 %1563
        %v1565 = vsel %vm611, %v1482, -inf
        %1566 = vmax.xlane.f32.xlu0 %v1565
        %v1567 = vpop.xlane.xlu0 %1566
        %v1568 = vsel %vm611, %v1556, -inf
        %1569 = vmax.xlane.f32.xlu0 %v1568
        %v1570 = vpop.xlane.xlu0 %1569
        %v1571 = vsub.f32 %v1334, %v1561
        %v1572 = vsub.f32 %v1408, %v1564
        %v1573 = vsub.f32 %v1482, %v1567
        %v1574 = vsub.f32 %v1556, %v1570
        %v1575 = vmul.f32 %v1571, 1.442695
        %v1576 = vpow.pop %v1575
        %v1577 = vmul.f32 %v1572, 1.442695
        %v1578 = vpow.pop %v1577
        %v1579 = vmul.f32 %v1573, 1.442695
        %v1580 = vpow.pop %v1579
        %v1581 = vmul.f32 %v1574, 1.442695
        %v1582 = vpow.pop %v1581
        %v1583 = vsel %vm611, %v1576, 0.0
        %1584 = vadd.xlane.f32.xlu0 %v1583
        %v1585 = vpop.xlane.xlu0 %1584
        %v1586 = vsel %vm611, %v1578, 0.0
        %1587 = vadd.xlane.f32.xlu0 %v1586
        %v1588 = vpop.xlane.xlu0 %1587
        %v1589 = vsel %vm611, %v1580, 0.0
        %1590 = vadd.xlane.f32.xlu0 %v1589
        %v1591 = vpop.xlane.xlu0 %1590
        %v1592 = vsel %vm611, %v1582, 0.0
        %1593 = vadd.xlane.f32.xlu0 %v1592
        %v1594 = vpop.xlane.xlu0 %1593
        %v1595 = vrcp.pop %v1585
        %v1596 = vrcp.pop %v1588
        %v1597 = vrcp.pop %v1591
        %v1598 = vrcp.pop %v1594
        %v1599 = vmul.f32 %v1576, %v1595
        %v1600 = vmul.f32 %v1578, %v1596
        %v1601 = vmul.f32 %v1580, %v1597
        %v1602 = vmul.f32 %v1582, %v1598
        %1603 = vrot.lane.b32.xlu0 %v592, 88
        %v1604 = vpop.permute.xlu0 %1603
        %v1607 = vsel %vm611, %v1599, 0
        %1609 = vmatprep.subr.mxu0 0.0
        %1610 = vmatpush1.msra.mxu0 %v1604
        %1611 = vmatprep.subr.mxu0 0.0
        %1612 = vmatpush1.msra.mxu0 0.0
        %1613 = vmatprep.subr.mxu0 0.0
        %1614 = vmatpush1.msra.mxu0 0.0
        %1615 = vmatprep.subr.mxu0 0.0
        %1616 = vmatpush1.msra.mxu0 0.0
        %1617 = vmatprep.subr.mxu0 0.0
        %1618 = vmatpush1.msra.mxu0 0.0
        %1619 = vmatprep.subr.mxu0 0.0
        %1620 = vmatpush1.msra.mxu0 0.0
        %1621 = vmatprep.subr.mxu0 0.0
        %1622 = vmatpush1.msra.mxu0 0.0
        %1623 = vmatprep.subr.mxu0 0.0
        %1624 = vmatpush1.msra.mxu0 0.0
        %1625 = vmatprep.subr.mxu0 0.0
        %1626 = vmatpush1.msra.mxu0 0.0
        %1627 = vmatprep.subr.mxu0 0.0
        %1628 = vmatpush1.msra.mxu0 0.0
        %1629 = vmatprep.subr.mxu0 0.0
        %1630 = vmatpush1.msra.mxu0 0.0
        %1631 = vmatprep.subr.mxu0 0.0
        %1632 = vmatpush1.msra.mxu0 0.0
        %1633 = vmatprep.subr.mxu0 0.0
        %1634 = vmatpush1.msra.mxu0 0.0
        %1635 = vmatprep.subr.mxu0 0.0
        %1636 = vmatpush1.msra.mxu0 0.0
        %1637 = vmatprep.subr.mxu0 0.0
        %1638 = vmatpush1.msra.mxu0 0.0
        %1639 = vmatprep.subr.mxu0 0.0
        %1640 = vmatpush1.msra.mxu0 0.0
        %1641 = vmatprep.subr.mxu0 0.0
        %1642 = vmatpush1.msra.mxu0 0.0
        %1643 = vmatprep.subr.mxu0 0.0
        %1644 = vmatpush1.msra.mxu0 0.0
        %1645 = vmatprep.subr.mxu0 0.0
        %1646 = vmatpush1.msra.mxu0 0.0
        %1647 = vmatprep.subr.mxu0 0.0
        %1648 = vmatpush1.msra.mxu0 0.0
        %1649 = vmatprep.subr.mxu0 0.0
        %1650 = vmatpush1.msra.mxu0 0.0
        %1651 = vmatprep.subr.mxu0 0.0
        %1652 = vmatpush1.msra.mxu0 0.0
        %1653 = vmatprep.subr.mxu0 0.0
        %1654 = vmatpush1.msra.mxu0 0.0
        %1655 = vmatprep.subr.mxu0 0.0
        %1656 = vmatpush1.msra.mxu0 0.0
        %1657 = vmatprep.subr.mxu0 0.0
        %1658 = vmatpush1.msra.mxu0 0.0
        %1659 = vmatprep.subr.mxu0 0.0
        %1660 = vmatpush1.msra.mxu0 0.0
        %1661 = vmatprep.subr.mxu0 0.0
        %1662 = vmatpush1.msra.mxu0 0.0
        %1663 = vmatprep.subr.mxu0 0.0
        %1664 = vmatpush1.msra.mxu0 0.0
        %1665 = vmatprep.subr.mxu0 0.0
        %1666 = vmatpush1.msra.mxu0 0.0
        %1667 = vmatprep.subr.mxu0 0.0
        %1668 = vmatpush1.msra.mxu0 0.0
        %1669 = vmatprep.subr.mxu0 0.0
        %1670 = vmatpush1.msra.mxu0 0.0
        %1671 = vmatprep.subr.mxu0 0.0
        %1672 = vmatpush1.msra.mxu0 0.0
        %1673 = vmatprep.mubr.f32.mxu0 0.0
        %1674 = vmatmul.mubr.f32.gmra.mrb[0].mxu0 %v1607
        %v1675 = vpop.f32.mrb[0].mxu0
        %v1676 = vadd.f32 0.0, %v1675
        %v1677 = vpop.f32.mrb[0].mxu0
        %1678 = vdwg.mxu0
        %1679 = vrot.lane.b32.xlu0 %v597, 88
        %v1680 = vpop.permute.xlu0 %1679
        %v1683 = vsel %vm611, %v1600, 0
        %1685 = vmatprep.subr.mxu0 0.0
        %1686 = vmatpush1.msra.mxu0 %v1680
        %1687 = vmatprep.subr.mxu0 0.0
        %1688 = vmatpush1.msra.mxu0 0.0
        %1689 = vmatprep.subr.mxu0 0.0
        %1690 = vmatpush1.msra.mxu0 0.0
        %1691 = vmatprep.subr.mxu0 0.0
        %1692 = vmatpush1.msra.mxu0 0.0
        %1693 = vmatprep.subr.mxu0 0.0
        %1694 = vmatpush1.msra.mxu0 0.0
        %1695 = vmatprep.subr.mxu0 0.0
        %1696 = vmatpush1.msra.mxu0 0.0
        %1697 = vmatprep.subr.mxu0 0.0
        %1698 = vmatpush1.msra.mxu0 0.0
        %1699 = vmatprep.subr.mxu0 0.0
        %1700 = vmatpush1.msra.mxu0 0.0
        %1701 = vmatprep.subr.mxu0 0.0
        %1702 = vmatpush1.msra.mxu0 0.0
        %1703 = vmatprep.subr.mxu0 0.0
        %1704 = vmatpush1.msra.mxu0 0.0
        %1705 = vmatprep.subr.mxu0 0.0
        %1706 = vmatpush1.msra.mxu0 0.0
        %1707 = vmatprep.subr.mxu0 0.0
        %1708 = vmatpush1.msra.mxu0 0.0
        %1709 = vmatprep.subr.mxu0 0.0
        %1710 = vmatpush1.msra.mxu0 0.0
        %1711 = vmatprep.subr.mxu0 0.0
        %1712 = vmatpush1.msra.mxu0 0.0
        %1713 = vmatprep.subr.mxu0 0.0
        %1714 = vmatpush1.msra.mxu0 0.0
        %1715 = vmatprep.subr.mxu0 0.0
        %1716 = vmatpush1.msra.mxu0 0.0
        %1717 = vmatprep.subr.mxu0 0.0
        %1718 = vmatpush1.msra.mxu0 0.0
        %1719 = vmatprep.subr.mxu0 0.0
        %1720 = vmatpush1.msra.mxu0 0.0
        %1721 = vmatprep.subr.mxu0 0.0
        %1722 = vmatpush1.msra.mxu0 0.0
        %1723 = vmatprep.subr.mxu0 0.0
        %1724 = vmatpush1.msra.mxu0 0.0
        %1725 = vmatprep.subr.mxu0 0.0
        %1726 = vmatpush1.msra.mxu0 0.0
        %1727 = vmatprep.subr.mxu0 0.0
        %1728 = vmatpush1.msra.mxu0 0.0
        %1729 = vmatprep.subr.mxu0 0.0
        %1730 = vmatpush1.msra.mxu0 0.0
        %1731 = vmatprep.subr.mxu0 0.0
        %1732 = vmatpush1.msra.mxu0 0.0
        %1733 = vmatprep.subr.mxu0 0.0
        %1734 = vmatpush1.msra.mxu0 0.0
        %1735 = vmatprep.subr.mxu0 0.0
        %1736 = vmatpush1.msra.mxu0 0.0
        %1737 = vmatprep.subr.mxu0 0.0
        %1738 = vmatpush1.msra.mxu0 0.0
        %1739 = vmatprep.subr.mxu0 0.0
        %1740 = vmatpush1.msra.mxu0 0.0
        %1741 = vmatprep.subr.mxu0 0.0
        %1742 = vmatpush1.msra.mxu0 0.0
        %1743 = vmatprep.subr.mxu0 0.0
        %1744 = vmatpush1.msra.mxu0 0.0
        %1745 = vmatprep.subr.mxu0 0.0
        %1746 = vmatpush1.msra.mxu0 0.0
        %1747 = vmatprep.subr.mxu0 0.0
        %1748 = vmatpush1.msra.mxu0 0.0
        %1749 = vmatprep.mubr.f32.mxu0 0.0
        %1750 = vmatmul.mubr.f32.gmra.mrb[0].mxu0 %v1683
        %v1751 = vpop.f32.mrb[0].mxu0
        %v1752 = vadd.f32 0.0, %v1751
        %v1753 = vpop.f32.mrb[0].mxu0
        %1754 = vdwg.mxu0
        %1755 = vrot.lane.b32.xlu0 %v602, 88
        %v1756 = vpop.permute.xlu0 %1755
        %v1759 = vsel %vm611, %v1601, 0
        %1761 = vmatprep.subr.mxu0 0.0
        %1762 = vmatpush1.msra.mxu0 %v1756
        %1763 = vmatprep.subr.mxu0 0.0
        %1764 = vmatpush1.msra.mxu0 0.0
        %1765 = vmatprep.subr.mxu0 0.0
        %1766 = vmatpush1.msra.mxu0 0.0
        %1767 = vmatprep.subr.mxu0 0.0
        %1768 = vmatpush1.msra.mxu0 0.0
        %1769 = vmatprep.subr.mxu0 0.0
        %1770 = vmatpush1.msra.mxu0 0.0
        %1771 = vmatprep.subr.mxu0 0.0
        %1772 = vmatpush1.msra.mxu0 0.0
        %1773 = vmatprep.subr.mxu0 0.0
        %1774 = vmatpush1.msra.mxu0 0.0
        %1775 = vmatprep.subr.mxu0 0.0
        %1776 = vmatpush1.msra.mxu0 0.0
        %1777 = vmatprep.subr.mxu0 0.0
        %1778 = vmatpush1.msra.mxu0 0.0
        %1779 = vmatprep.subr.mxu0 0.0
        %1780 = vmatpush1.msra.mxu0 0.0
        %1781 = vmatprep.subr.mxu0 0.0
        %1782 = vmatpush1.msra.mxu0 0.0
        %1783 = vmatprep.subr.mxu0 0.0
        %1784 = vmatpush1.msra.mxu0 0.0
        %1785 = vmatprep.subr.mxu0 0.0
        %1786 = vmatpush1.msra.mxu0 0.0
        %1787 = vmatprep.subr.mxu0 0.0
        %1788 = vmatpush1.msra.mxu0 0.0
        %1789 = vmatprep.subr.mxu0 0.0
        %1790 = vmatpush1.msra.mxu0 0.0
        %1791 = vmatprep.subr.mxu0 0.0
        %1792 = vmatpush1.msra.mxu0 0.0
        %1793 = vmatprep.subr.mxu0 0.0
        %1794 = vmatpush1.msra.mxu0 0.0
        %1795 = vmatprep.subr.mxu0 0.0
        %1796 = vmatpush1.msra.mxu0 0.0
        %1797 = vmatprep.subr.mxu0 0.0
        %1798 = vmatpush1.msra.mxu0 0.0
        %1799 = vmatprep.subr.mxu0 0.0
        %1800 = vmatpush1.msra.mxu0 0.0
        %1801 = vmatprep.subr.mxu0 0.0
        %1802 = vmatpush1.msra.mxu0 0.0
        %1803 = vmatprep.subr.mxu0 0.0
        %1804 = vmatpush1.msra.mxu0 0.0
        %1805 = vmatprep.subr.mxu0 0.0
        %1806 = vmatpush1.msra.mxu0 0.0
        %1807 = vmatprep.subr.mxu0 0.0
        %1808 = vmatpush1.msra.mxu0 0.0
        %1809 = vmatprep.subr.mxu0 0.0
        %1810 = vmatpush1.msra.mxu0 0.0
        %1811 = vmatprep.subr.mxu0 0.0
        %1812 = vmatpush1.msra.mxu0 0.0
        %1813 = vmatprep.subr.mxu0 0.0
        %1814 = vmatpush1.msra.mxu0 0.0
        %1815 = vmatprep.subr.mxu0 0.0
        %1816 = vmatpush1.msra.mxu0 0.0
        %1817 = vmatprep.subr.mxu0 0.0
        %1818 = vmatpush1.msra.mxu0 0.0
        %1819 = vmatprep.subr.mxu0 0.0
        %1820 = vmatpush1.msra.mxu0 0.0
        %1821 = vmatprep.subr.mxu0 0.0
        %1822 = vmatpush1.msra.mxu0 0.0
        %1823 = vmatprep.subr.mxu0 0.0
        %1824 = vmatpush1.msra.mxu0 0.0
        %1825 = vmatprep.mubr.f32.mxu0 0.0
        %1826 = vmatmul.mubr.f32.gmra.mrb[0].mxu0 %v1759
        %v1827 = vpop.f32.mrb[0].mxu0
        %v1828 = vadd.f32 0.0, %v1827
        %v1829 = vpop.f32.mrb[0].mxu0
        %1830 = vdwg.mxu0
        %1831 = vrot.lane.b32.xlu0 %v607, 88
        %v1832 = vpop.permute.xlu0 %1831
        %v1835 = vsel %vm611, %v1602, 0
        %1837 = vmatprep.subr.mxu0 0.0
        %1838 = vmatpush1.msra.mxu0 %v1832
        %1839 = vmatprep.subr.mxu0 0.0
        %1840 = vmatpush1.msra.mxu0 0.0
        %1841 = vmatprep.subr.mxu0 0.0
        %1842 = vmatpush1.msra.mxu0 0.0
        %1843 = vmatprep.subr.mxu0 0.0
        %1844 = vmatpush1.msra.mxu0 0.0
        %1845 = vmatprep.subr.mxu0 0.0
        %1846 = vmatpush1.msra.mxu0 0.0
        %1847 = vmatprep.subr.mxu0 0.0
        %1848 = vmatpush1.msra.mxu0 0.0
        %1849 = vmatprep.subr.mxu0 0.0
        %1850 = vmatpush1.msra.mxu0 0.0
        %1851 = vmatprep.subr.mxu0 0.0
        %1852 = vmatpush1.msra.mxu0 0.0
        %1853 = vmatprep.subr.mxu0 0.0
        %1854 = vmatpush1.msra.mxu0 0.0
        %1855 = vmatprep.subr.mxu0 0.0
        %1856 = vmatpush1.msra.mxu0 0.0
        %1857 = vmatprep.subr.mxu0 0.0
        %1858 = vmatpush1.msra.mxu0 0.0
        %1859 = vmatprep.subr.mxu0 0.0
        %1860 = vmatpush1.msra.mxu0 0.0
        %1861 = vmatprep.subr.mxu0 0.0
        %1862 = vmatpush1.msra.mxu0 0.0
        %1863 = vmatprep.subr.mxu0 0.0
        %1864 = vmatpush1.msra.mxu0 0.0
        %1865 = vmatprep.subr.mxu0 0.0
        %1866 = vmatpush1.msra.mxu0 0.0
        %1867 = vmatprep.subr.mxu0 0.0
        %1868 = vmatpush1.msra.mxu0 0.0
        %1869 = vmatprep.subr.mxu0 0.0
        %1870 = vmatpush1.msra.mxu0 0.0
        %1871 = vmatprep.subr.mxu0 0.0
        %1872 = vmatpush1.msra.mxu0 0.0
        %1873 = vmatprep.subr.mxu0 0.0
        %1874 = vmatpush1.msra.mxu0 0.0
        %1875 = vmatprep.subr.mxu0 0.0
        %1876 = vmatpush1.msra.mxu0 0.0
        %1877 = vmatprep.subr.mxu0 0.0
        %1878 = vmatpush1.msra.mxu0 0.0
        %1879 = vmatprep.subr.mxu0 0.0
        %1880 = vmatpush1.msra.mxu0 0.0
        %1881 = vmatprep.subr.mxu0 0.0
        %1882 = vmatpush1.msra.mxu0 0.0
        %1883 = vmatprep.subr.mxu0 0.0
        %1884 = vmatpush1.msra.mxu0 0.0
        %1885 = vmatprep.subr.mxu0 0.0
        %1886 = vmatpush1.msra.mxu0 0.0
        %1887 = vmatprep.subr.mxu0 0.0
        %1888 = vmatpush1.msra.mxu0 0.0
        %1889 = vmatprep.subr.mxu0 0.0
        %1890 = vmatpush1.msra.mxu0 0.0
        %1891 = vmatprep.subr.mxu0 0.0
        %1892 = vmatpush1.msra.mxu0 0.0
        %1893 = vmatprep.subr.mxu0 0.0
        %1894 = vmatpush1.msra.mxu0 0.0
        %1895 = vmatprep.subr.mxu0 0.0
        %1896 = vmatpush1.msra.mxu0 0.0
        %1897 = vmatprep.subr.mxu0 0.0
        %1898 = vmatpush1.msra.mxu0 0.0
        %1899 = vmatprep.subr.mxu0 0.0
        %1900 = vmatpush1.msra.mxu0 0.0
        %1901 = vmatprep.mubr.f32.mxu0 0.0
        %1902 = vmatmul.mubr.f32.gmra.mrb[0].mxu0 %v1835
        %v1903 = vpop.f32.mrb[0].mxu0
        %v1904 = vadd.f32 0.0, %v1903
        %v1905 = vpop.f32.mrb[0].mxu0
        %1906 = vdwg.mxu0
        %1911 = vrot.lane.b32.xlu0 %v1676, 8
        %v1912 = vpop.permute.xlu0 %1911
        %1913 = vrot.lane.b32.xlu0 %v1752, 8
        %v1914 = vpop.permute.xlu0 %1913
        %1915 = vrot.lane.b32.xlu0 %v1828, 8
        %v1916 = vpop.permute.xlu0 %1915
        %1917 = vrot.lane.b32.xlu0 %v1904, 8
        %v1918 = vpop.permute.xlu0 %1917
        %v1923 = vadd.f32 %v610, %v1912
        %v1924 = vadd.f32 %v610, %v1914
        %v1925 = vadd.f32 %v610, %v1916
        %v1926 = vadd.f32 %v610, %v1918
        %1927 = vrot.lane.b32.xlu0 %v610, 112
        %v1928 = vpop.permute.xlu0 %1927
        %1929 = vrot.lane.b32.xlu0 %v592, 112
        %v1930 = vpop.permute.xlu0 %1929
        %v1931 = vsel %vm611, %v1928, 0
        %v1933 = vsel %vm611, %v1930, 0
        %1935 = vmatprep.subr.mxu0 0.0
        %1936 = vmatpush1.xpose.msra.mxu0 %v1933
        %1937 = vmatprep.subr.mxu0 0.0
        %1938 = vmatpush1.xpose.msra.mxu0 0.0
        %1939 = vmatprep.subr.mxu0 0.0
        %1940 = vmatpush1.xpose.msra.mxu0 0.0
        %1941 = vmatprep.subr.mxu0 0.0
        %1942 = vmatpush1.xpose.msra.mxu0 0.0
        %1943 = vmatprep.subr.mxu0 0.0
        %1944 = vmatpush1.xpose.msra.mxu0 0.0
        %1945 = vmatprep.subr.mxu0 0.0
        %1946 = vmatpush1.xpose.msra.mxu0 0.0
        %1947 = vmatprep.subr.mxu0 0.0
        %1948 = vmatpush1.xpose.msra.mxu0 0.0
        %1949 = vmatprep.subr.mxu0 0.0
        %1950 = vmatpush1.xpose.msra.mxu0 0.0
        %1951 = vmatprep.subr.mxu0 0.0
        %1952 = vmatpush1.xpose.msra.mxu0 0.0
        %1953 = vmatprep.subr.mxu0 0.0
        %1954 = vmatpush1.xpose.msra.mxu0 0.0
        %1955 = vmatprep.subr.mxu0 0.0
        %1956 = vmatpush1.xpose.msra.mxu0 0.0
        %1957 = vmatprep.subr.mxu0 0.0
        %1958 = vmatpush1.xpose.msra.mxu0 0.0
        %1959 = vmatprep.subr.mxu0 0.0
        %1960 = vmatpush1.xpose.msra.mxu0 0.0
        %1961 = vmatprep.subr.mxu0 0.0
        %1962 = vmatpush1.xpose.msra.mxu0 0.0
        %1963 = vmatprep.subr.mxu0 0.0
        %1964 = vmatpush1.xpose.msra.mxu0 0.0
        %1965 = vmatprep.subr.mxu0 0.0
        %1966 = vmatpush1.xpose.msra.mxu0 0.0
        %1967 = vmatprep.subr.mxu0 0.0
        %1968 = vmatpush1.xpose.msra.mxu0 0.0
        %1969 = vmatprep.subr.mxu0 0.0
        %1970 = vmatpush1.xpose.msra.mxu0 0.0
        %1971 = vmatprep.subr.mxu0 0.0
        %1972 = vmatpush1.xpose.msra.mxu0 0.0
        %1973 = vmatprep.subr.mxu0 0.0
        %1974 = vmatpush1.xpose.msra.mxu0 0.0
        %1975 = vmatprep.subr.mxu0 0.0
        %1976 = vmatpush1.xpose.msra.mxu0 0.0
        %1977 = vmatprep.subr.mxu0 0.0
        %1978 = vmatpush1.xpose.msra.mxu0 0.0
        %1979 = vmatprep.subr.mxu0 0.0
        %1980 = vmatpush1.xpose.msra.mxu0 0.0
        %1981 = vmatprep.subr.mxu0 0.0
        %1982 = vmatpush1.xpose.msra.mxu0 0.0
        %1983 = vmatprep.subr.mxu0 0.0
        %1984 = vmatpush1.xpose.msra.mxu0 0.0
        %1985 = vmatprep.subr.mxu0 0.0
        %1986 = vmatpush1.xpose.msra.mxu0 0.0
        %1987 = vmatprep.subr.mxu0 0.0
        %1988 = vmatpush1.xpose.msra.mxu0 0.0
        %1989 = vmatprep.subr.mxu0 0.0
        %1990 = vmatpush1.xpose.msra.mxu0 0.0
        %1991 = vmatprep.subr.mxu0 0.0
        %1992 = vmatpush1.xpose.msra.mxu0 0.0
        %1993 = vmatprep.subr.mxu0 0.0
        %1994 = vmatpush1.xpose.msra.mxu0 0.0
        %1995 = vmatprep.subr.mxu0 0.0
        %1996 = vmatpush1.xpose.msra.mxu0 0.0
        %1997 = vmatprep.subr.mxu0 0.0
        %1998 = vmatpush1.xpose.msra.mxu0 0.0
        %1999 = vmatprep.mubr.f32.mxu0 0.0
        %2000 = vmatmul.mubr.f32.gmra.mrb[0].mxu0 %v1931
        %v2001 = vpop.f32.mrb[0].mxu0
        %v2002 = vadd.f32 0.0, %v2001
        %v2003 = vpop.f32.mrb[0].mxu0
        %2004 = vdwg.mxu0
        %2005 = vrot.lane.b32.xlu0 %v597, 112
        %v2006 = vpop.permute.xlu0 %2005
        %v2007 = vsel %vm611, %v2006, 0
        %2009 = vmatprep.subr.mxu0 0.0
        %2010 = vmatpush1.xpose.msra.mxu0 %v2007
        %2011 = vmatprep.subr.mxu0 0.0
        %2012 = vmatpush1.xpose.msra.mxu0 0.0
        %2013 = vmatprep.subr.mxu0 0.0
        %2014 = vmatpush1.xpose.msra.mxu0 0.0
        %2015 = vmatprep.subr.mxu0 0.0
        %2016 = vmatpush1.xpose.msra.mxu0 0.0
        %2017 = vmatprep.subr.mxu0 0.0
        %2018 = vmatpush1.xpose.msra.mxu0 0.0
        %2019 = vmatprep.subr.mxu0 0.0
        %2020 = vmatpush1.xpose.msra.mxu0 0.0
        %2021 = vmatprep.subr.mxu0 0.0
        %2022 = vmatpush1.xpose.msra.mxu0 0.0
        %2023 = vmatprep.subr.mxu0 0.0
        %2024 = vmatpush1.xpose.msra.mxu0 0.0
        %2025 = vmatprep.subr.mxu0 0.0
        %2026 = vmatpush1.xpose.msra.mxu0 0.0
        %2027 = vmatprep.subr.mxu0 0.0
        %2028 = vmatpush1.xpose.msra.mxu0 0.0
        %2029 = vmatprep.subr.mxu0 0.0
        %2030 = vmatpush1.xpose.msra.mxu0 0.0
        %2031 = vmatprep.subr.mxu0 0.0
        %2032 = vmatpush1.xpose.msra.mxu0 0.0
        %2033 = vmatprep.subr.mxu0 0.0
        %2034 = vmatpush1.xpose.msra.mxu0 0.0
        %2035 = vmatprep.subr.mxu0 0.0
        %2036 = vmatpush1.xpose.msra.mxu0 0.0
        %2037 = vmatprep.subr.mxu0 0.0
        %2038 = vmatpush1.xpose.msra.mxu0 0.0
        %2039 = vmatprep.subr.mxu0 0.0
        %2040 = vmatpush1.xpose.msra.mxu0 0.0
        %2041 = vmatprep.subr.mxu0 0.0
        %2042 = vmatpush1.xpose.msra.mxu0 0.0
        %2043 = vmatprep.subr.mxu0 0.0
        %2044 = vmatpush1.xpose.msra.mxu0 0.0
        %2045 = vmatprep.subr.mxu0 0.0
        %2046 = vmatpush1.xpose.msra.mxu0 0.0
        %2047 = vmatprep.subr.mxu0 0.0
        %2048 = vmatpush1.xpose.msra.mxu0 0.0
        %2049 = vmatprep.subr.mxu0 0.0
        %2050 = vmatpush1.xpose.msra.mxu0 0.0
        %2051 = vmatprep.subr.mxu0 0.0
        %2052 = vmatpush1.xpose.msra.mxu0 0.0
        %2053 = vmatprep.subr.mxu0 0.0
        %2054 = vmatpush1.xpose.msra.mxu0 0.0
        %2055 = vmatprep.subr.mxu0 0.0
        %2056 = vmatpush1.xpose.msra.mxu0 0.0
        %2057 = vmatprep.subr.mxu0 0.0
        %2058 = vmatpush1.xpose.msra.mxu0 0.0
        %2059 = vmatprep.subr.mxu0 0.0
        %2060 = vmatpush1.xpose.msra.mxu0 0.0
        %2061 = vmatprep.subr.mxu0 0.0
        %2062 = vmatpush1.xpose.msra.mxu0 0.0
        %2063 = vmatprep.subr.mxu0 0.0
        %2064 = vmatpush1.xpose.msra.mxu0 0.0
        %2065 = vmatprep.subr.mxu0 0.0
        %2066 = vmatpush1.xpose.msra.mxu0 0.0
        %2067 = vmatprep.subr.mxu0 0.0
        %2068 = vmatpush1.xpose.msra.mxu0 0.0
        %2069 = vmatprep.subr.mxu0 0.0
        %2070 = vmatpush1.xpose.msra.mxu0 0.0
        %2071 = vmatprep.subr.mxu0 0.0
        %2072 = vmatpush1.xpose.msra.mxu0 0.0
        %2073 = vmatprep.mubr.f32.mxu0 0.0
        %2074 = vmatmul.mubr.f32.gmra.mrb[0].mxu0 %v1931
        %v2075 = vpop.f32.mrb[0].mxu0
        %v2076 = vadd.f32 0.0, %v2075
        %v2077 = vpop.f32.mrb[0].mxu0
        %2078 = vdwg.mxu0
        %2079 = vrot.lane.b32.xlu0 %v602, 112
        %v2080 = vpop.permute.xlu0 %2079
        %v2081 = vsel %vm611, %v2080, 0
        %2083 = vmatprep.subr.mxu0 0.0
        %2084 = vmatpush1.xpose.msra.mxu0 %v2081
        %2085 = vmatprep.subr.mxu0 0.0
        %2086 = vmatpush1.xpose.msra.mxu0 0.0
        %2087 = vmatprep.subr.mxu0 0.0
        %2088 = vmatpush1.xpose.msra.mxu0 0.0
        %2089 = vmatprep.subr.mxu0 0.0
        %2090 = vmatpush1.xpose.msra.mxu0 0.0
        %2091 = vmatprep.subr.mxu0 0.0
        %2092 = vmatpush1.xpose.msra.mxu0 0.0
        %2093 = vmatprep.subr.mxu0 0.0
        %2094 = vmatpush1.xpose.msra.mxu0 0.0
        %2095 = vmatprep.subr.mxu0 0.0
        %2096 = vmatpush1.xpose.msra.mxu0 0.0
        %2097 = vmatprep.subr.mxu0 0.0
        %2098 = vmatpush1.xpose.msra.mxu0 0.0
        %2099 = vmatprep.subr.mxu0 0.0
        %2100 = vmatpush1.xpose.msra.mxu0 0.0
        %2101 = vmatprep.subr.mxu0 0.0
        %2102 = vmatpush1.xpose.msra.mxu0 0.0
        %2103 = vmatprep.subr.mxu0 0.0
        %2104 = vmatpush1.xpose.msra.mxu0 0.0
        %2105 = vmatprep.subr.mxu0 0.0
        %2106 = vmatpush1.xpose.msra.mxu0 0.0
        %2107 = vmatprep.subr.mxu0 0.0
        %2108 = vmatpush1.xpose.msra.mxu0 0.0
        %2109 = vmatprep.subr.mxu0 0.0
        %2110 = vmatpush1.xpose.msra.mxu0 0.0
        %2111 = vmatprep.subr.mxu0 0.0
        %2112 = vmatpush1.xpose.msra.mxu0 0.0
        %2113 = vmatprep.subr.mxu0 0.0
        %2114 = vmatpush1.xpose.msra.mxu0 0.0
        %2115 = vmatprep.subr.mxu0 0.0
        %2116 = vmatpush1.xpose.msra.mxu0 0.0
        %2117 = vmatprep.subr.mxu0 0.0
        %2118 = vmatpush1.xpose.msra.mxu0 0.0
        %2119 = vmatprep.subr.mxu0 0.0
        %2120 = vmatpush1.xpose.msra.mxu0 0.0
        %2121 = vmatprep.subr.mxu0 0.0
        %2122 = vmatpush1.xpose.msra.mxu0 0.0
        %2123 = vmatprep.subr.mxu0 0.0
        %2124 = vmatpush1.xpose.msra.mxu0 0.0
        %2125 = vmatprep.subr.mxu0 0.0
        %2126 = vmatpush1.xpose.msra.mxu0 0.0
        %2127 = vmatprep.subr.mxu0 0.0
        %2128 = vmatpush1.xpose.msra.mxu0 0.0
        %2129 = vmatprep.subr.mxu0 0.0
        %2130 = vmatpush1.xpose.msra.mxu0 0.0
        %2131 = vmatprep.subr.mxu0 0.0
        %2132 = vmatpush1.xpose.msra.mxu0 0.0
        %2133 = vmatprep.subr.mxu0 0.0
        %2134 = vmatpush1.xpose.msra.mxu0 0.0
        %2135 = vmatprep.subr.mxu0 0.0
        %2136 = vmatpush1.xpose.msra.mxu0 0.0
        %2137 = vmatprep.subr.mxu0 0.0
        %2138 = vmatpush1.xpose.msra.mxu0 0.0
        %2139 = vmatprep.subr.mxu0 0.0
        %2140 = vmatpush1.xpose.msra.mxu0 0.0
        %2141 = vmatprep.subr.mxu0 0.0
        %2142 = vmatpush1.xpose.msra.mxu0 0.0
        %2143 = vmatprep.subr.mxu0 0.0
        %2144 = vmatpush1.xpose.msra.mxu0 0.0
        %2145 = vmatprep.subr.mxu0 0.0
        %2146 = vmatpush1.xpose.msra.mxu0 0.0
        %2147 = vmatprep.mubr.f32.mxu0 0.0
        %2148 = vmatmul.mubr.f32.gmra.mrb[0].mxu0 %v1931
        %v2149 = vpop.f32.mrb[0].mxu0
        %v2150 = vadd.f32 0.0, %v2149
        %v2151 = vpop.f32.mrb[0].mxu0
        %2152 = vdwg.mxu0
        %2153 = vrot.lane.b32.xlu0 %v607, 112
        %v2154 = vpop.permute.xlu0 %2153
        %v2155 = vsel %vm611, %v2154, 0
        %2157 = vmatprep.subr.mxu0 0.0
        %2158 = vmatpush1.xpose.msra.mxu0 %v2155
        %2159 = vmatprep.subr.mxu0 0.0
        %2160 = vmatpush1.xpose.msra.mxu0 0.0
        %2161 = vmatprep.subr.mxu0 0.0
        %2162 = vmatpush1.xpose.msra.mxu0 0.0
        %2163 = vmatprep.subr.mxu0 0.0
        %2164 = vmatpush1.xpose.msra.mxu0 0.0
        %2165 = vmatprep.subr.mxu0 0.0
        %2166 = vmatpush1.xpose.msra.mxu0 0.0
        %2167 = vmatprep.subr.mxu0 0.0
        %2168 = vmatpush1.xpose.msra.mxu0 0.0
        %2169 = vmatprep.subr.mxu0 0.0
        %2170 = vmatpush1.xpose.msra.mxu0 0.0
        %2171 = vmatprep.subr.mxu0 0.0
        %2172 = vmatpush1.xpose.msra.mxu0 0.0
        %2173 = vmatprep.subr.mxu0 0.0
        %2174 = vmatpush1.xpose.msra.mxu0 0.0
        %2175 = vmatprep.subr.mxu0 0.0
        %2176 = vmatpush1.xpose.msra.mxu0 0.0
        %2177 = vmatprep.subr.mxu0 0.0
        %2178 = vmatpush1.xpose.msra.mxu0 0.0
        %2179 = vmatprep.subr.mxu0 0.0
        %2180 = vmatpush1.xpose.msra.mxu0 0.0
        %2181 = vmatprep.subr.mxu0 0.0
        %2182 = vmatpush1.xpose.msra.mxu0 0.0
        %2183 = vmatprep.subr.mxu0 0.0
        %2184 = vmatpush1.xpose.msra.mxu0 0.0
        %2185 = vmatprep.subr.mxu0 0.0
        %2186 = vmatpush1.xpose.msra.mxu0 0.0
        %2187 = vmatprep.subr.mxu0 0.0
        %2188 = vmatpush1.xpose.msra.mxu0 0.0
        %2189 = vmatprep.subr.mxu0 0.0
        %2190 = vmatpush1.xpose.msra.mxu0 0.0
        %2191 = vmatprep.subr.mxu0 0.0
        %2192 = vmatpush1.xpose.msra.mxu0 0.0
        %2193 = vmatprep.subr.mxu0 0.0
        %2194 = vmatpush1.xpose.msra.mxu0 0.0
        %2195 = vmatprep.subr.mxu0 0.0
        %2196 = vmatpush1.xpose.msra.mxu0 0.0
        %2197 = vmatprep.subr.mxu0 0.0
        %2198 = vmatpush1.xpose.msra.mxu0 0.0
        %2199 = vmatprep.subr.mxu0 0.0
        %2200 = vmatpush1.xpose.msra.mxu0 0.0
        %2201 = vmatprep.subr.mxu0 0.0
        %2202 = vmatpush1.xpose.msra.mxu0 0.0
        %2203 = vmatprep.subr.mxu0 0.0
        %2204 = vmatpush1.xpose.msra.mxu0 0.0
        %2205 = vmatprep.subr.mxu0 0.0
        %2206 = vmatpush1.xpose.msra.mxu0 0.0
        %2207 = vmatprep.subr.mxu0 0.0
        %2208 = vmatpush1.xpose.msra.mxu0 0.0
        %2209 = vmatprep.subr.mxu0 0.0
        %2210 = vmatpush1.xpose.msra.mxu0 0.0
        %2211 = vmatprep.subr.mxu0 0.0
        %2212 = vmatpush1.xpose.msra.mxu0 0.0
        %2213 = vmatprep.subr.mxu0 0.0
        %2214 = vmatpush1.xpose.msra.mxu0 0.0
        %2215 = vmatprep.subr.mxu0 0.0
        %2216 = vmatpush1.xpose.msra.mxu0 0.0
        %2217 = vmatprep.subr.mxu0 0.0
        %2218 = vmatpush1.xpose.msra.mxu0 0.0
        %2219 = vmatprep.subr.mxu0 0.0
        %2220 = vmatpush1.xpose.msra.mxu0 0.0
        %2221 = vmatprep.mubr.f32.mxu0 0.0
        %2222 = vmatmul.mubr.f32.gmra.mrb[0].mxu0 %v1931
        %v2223 = vpop.f32.mrb[0].mxu0
        %v2224 = vadd.f32 0.0, %v2223
        %v2225 = vpop.f32.mrb[0].mxu0
        %2226 = vdwg.mxu0
        %v2227 = vsel %vm611, %v2002, -inf
        %2228 = vmax.xlane.f32.xlu0 %v2227
        %v2229 = vpop.xlane.xlu0 %2228
        %v2230 = vsel %vm611, %v2076, -inf
        %2231 = vmax.xlane.f32.xlu0 %v2230
        %v2232 = vpop.xlane.xlu0 %2231
        %v2233 = vsel %vm611, %v2150, -inf
        %2234 = vmax.xlane.f32.xlu0 %v2233
        %v2235 = vpop.xlane.xlu0 %2234
        %v2236 = vsel %vm611, %v2224, -inf
        %2237 = vmax.xlane.f32.xlu0 %v2236
        %v2238 = vpop.xlane.xlu0 %2237
        %v2239 = vsub.f32 %v2002, %v2229
        %v2240 = vsub.f32 %v2076, %v2232
        %v2241 = vsub.f32 %v2150, %v2235
        %v2242 = vsub.f32 %v2224, %v2238
        %v2243 = vmul.f32 %v2239, 1.442695
        %v2244 = vpow.pop %v2243
        %v2245 = vmul.f32 %v2240, 1.442695
        %v2246 = vpow.pop %v2245
        %v2247 = vmul.f32 %v2241, 1.442695
        %v2248 = vpow.pop %v2247
        %v2249 = vmul.f32 %v2242, 1.442695
        %v2250 = vpow.pop %v2249
        %v2251 = vsel %vm611, %v2244, 0.0
        %2252 = vadd.xlane.f32.xlu0 %v2251
        %v2253 = vpop.xlane.xlu0 %2252
        %v2254 = vsel %vm611, %v2246, 0.0
        %2255 = vadd.xlane.f32.xlu0 %v2254
        %v2256 = vpop.xlane.xlu0 %2255
        %v2257 = vsel %vm611, %v2248, 0.0
        %2258 = vadd.xlane.f32.xlu0 %v2257
        %v2259 = vpop.xlane.xlu0 %2258
        %v2260 = vsel %vm611, %v2250, 0.0
        %2261 = vadd.xlane.f32.xlu0 %v2260
        %v2262 = vpop.xlane.xlu0 %2261
        %v2263 = vrcp.pop %v2253
        %v2264 = vrcp.pop %v2256
        %v2265 = vrcp.pop %v2259
        %v2266 = vrcp.pop %v2262
        %v2267 = vmul.f32 %v2244, %v2263
        %v2268 = vmul.f32 %v2246, %v2264
        %v2269 = vmul.f32 %v2248, %v2265
        %v2270 = vmul.f32 %v2250, %v2266
        %2271 = vrot.lane.b32.xlu0 %v592, 80
        %v2272 = vpop.permute.xlu0 %2271
        %v2275 = vsel %vm611, %v2267, 0
        %2277 = vmatprep.subr.mxu0 0.0
        %2278 = vmatpush1.msra.mxu0 %v2272
        %2279 = vmatprep.subr.mxu0 0.0
        %2280 = vmatpush1.msra.mxu0 0.0
        %2281 = vmatprep.subr.mxu0 0.0
        %2282 = vmatpush1.msra.mxu0 0.0
        %2283 = vmatprep.subr.mxu0 0.0
        %2284 = vmatpush1.msra.mxu0 0.0
        %2285 = vmatprep.subr.mxu0 0.0
        %2286 = vmatpush1.msra.mxu0 0.0
        %2287 = vmatprep.subr.mxu0 0.0
        %2288 = vmatpush1.msra.mxu0 0.0
        %2289 = vmatprep.subr.mxu0 0.0
        %2290 = vmatpush1.msra.mxu0 0.0
        %2291 = vmatprep.subr.mxu0 0.0
        %2292 = vmatpush1.msra.mxu0 0.0
        %2293 = vmatprep.subr.mxu0 0.0
        %2294 = vmatpush1.msra.mxu0 0.0
        %2295 = vmatprep.subr.mxu0 0.0
        %2296 = vmatpush1.msra.mxu0 0.0
        %2297 = vmatprep.subr.mxu0 0.0
        %2298 = vmatpush1.msra.mxu0 0.0
        %2299 = vmatprep.subr.mxu0 0.0
        %2300 = vmatpush1.msra.mxu0 0.0
        %2301 = vmatprep.subr.mxu0 0.0
        %2302 = vmatpush1.msra.mxu0 0.0
        %2303 = vmatprep.subr.mxu0 0.0
        %2304 = vmatpush1.msra.mxu0 0.0
        %2305 = vmatprep.subr.mxu0 0.0
        %2306 = vmatpush1.msra.mxu0 0.0
        %2307 = vmatprep.subr.mxu0 0.0
        %2308 = vmatpush1.msra.mxu0 0.0
        %2309 = vmatprep.subr.mxu0 0.0
        %2310 = vmatpush1.msra.mxu0 0.0
        %2311 = vmatprep.subr.mxu0 0.0
        %2312 = vmatpush1.msra.mxu0 0.0
        %2313 = vmatprep.subr.mxu0 0.0
        %2314 = vmatpush1.msra.mxu0 0.0
        %2315 = vmatprep.subr.mxu0 0.0
        %2316 = vmatpush1.msra.mxu0 0.0
        %2317 = vmatprep.subr.mxu0 0.0
        %2318 = vmatpush1.msra.mxu0 0.0
        %2319 = vmatprep.subr.mxu0 0.0
        %2320 = vmatpush1.msra.mxu0 0.0
        %2321 = vmatprep.subr.mxu0 0.0
        %2322 = vmatpush1.msra.mxu0 0.0
        %2323 = vmatprep.subr.mxu0 0.0
        %2324 = vmatpush1.msra.mxu0 0.0
        %2325 = vmatprep.subr.mxu0 0.0
        %2326 = vmatpush1.msra.mxu0 0.0
        %2327 = vmatprep.subr.mxu0 0.0
        %2328 = vmatpush1.msra.mxu0 0.0
        %2329 = vmatprep.subr.mxu0 0.0
        %2330 = vmatpush1.msra.mxu0 0.0
        %2331 = vmatprep.subr.mxu0 0.0
        %2332 = vmatpush1.msra.mxu0 0.0
        %2333 = vmatprep.subr.mxu0 0.0
        %2334 = vmatpush1.msra.mxu0 0.0
        %2335 = vmatprep.subr.mxu0 0.0
        %2336 = vmatpush1.msra.mxu0 0.0
        %2337 = vmatprep.subr.mxu0 0.0
        %2338 = vmatpush1.msra.mxu0 0.0
        %2339 = vmatprep.subr.mxu0 0.0
        %2340 = vmatpush1.msra.mxu0 0.0
        %2341 = vmatprep.mubr.f32.mxu0 0.0
        %2342 = vmatmul.mubr.f32.gmra.mrb[0].mxu0 %v2275
        %v2343 = vpop.f32.mrb[0].mxu0
        %v2344 = vadd.f32 0.0, %v2343
        %v2345 = vpop.f32.mrb[0].mxu0
        %2346 = vdwg.mxu0
        %2347 = vrot.lane.b32.xlu0 %v597, 80
        %v2348 = vpop.permute.xlu0 %2347
        %v2351 = vsel %vm611, %v2268, 0
        %2353 = vmatprep.subr.mxu0 0.0
        %2354 = vmatpush1.msra.mxu0 %v2348
        %2355 = vmatprep.subr.mxu0 0.0
        %2356 = vmatpush1.msra.mxu0 0.0
        %2357 = vmatprep.subr.mxu0 0.0
        %2358 = vmatpush1.msra.mxu0 0.0
        %2359 = vmatprep.subr.mxu0 0.0
        %2360 = vmatpush1.msra.mxu0 0.0
        %2361 = vmatprep.subr.mxu0 0.0
        %2362 = vmatpush1.msra.mxu0 0.0
        %2363 = vmatprep.subr.mxu0 0.0
        %2364 = vmatpush1.msra.mxu0 0.0
        %2365 = vmatprep.subr.mxu0 0.0
        %2366 = vmatpush1.msra.mxu0 0.0
        %2367 = vmatprep.subr.mxu0 0.0
        %2368 = vmatpush1.msra.mxu0 0.0
        %2369 = vmatprep.subr.mxu0 0.0
        %2370 = vmatpush1.msra.mxu0 0.0
        %2371 = vmatprep.subr.mxu0 0.0
        %2372 = vmatpush1.msra.mxu0 0.0
        %2373 = vmatprep.subr.mxu0 0.0
        %2374 = vmatpush1.msra.mxu0 0.0
        %2375 = vmatprep.subr.mxu0 0.0
        %2376 = vmatpush1.msra.mxu0 0.0
        %2377 = vmatprep.subr.mxu0 0.0
        %2378 = vmatpush1.msra.mxu0 0.0
        %2379 = vmatprep.subr.mxu0 0.0
        %2380 = vmatpush1.msra.mxu0 0.0
        %2381 = vmatprep.subr.mxu0 0.0
        %2382 = vmatpush1.msra.mxu0 0.0
        %2383 = vmatprep.subr.mxu0 0.0
        %2384 = vmatpush1.msra.mxu0 0.0
        %2385 = vmatprep.subr.mxu0 0.0
        %2386 = vmatpush1.msra.mxu0 0.0
        %2387 = vmatprep.subr.mxu0 0.0
        %2388 = vmatpush1.msra.mxu0 0.0
        %2389 = vmatprep.subr.mxu0 0.0
        %2390 = vmatpush1.msra.mxu0 0.0
        %2391 = vmatprep.subr.mxu0 0.0
        %2392 = vmatpush1.msra.mxu0 0.0
        %2393 = vmatprep.subr.mxu0 0.0
        %2394 = vmatpush1.msra.mxu0 0.0
        %2395 = vmatprep.subr.mxu0 0.0
        %2396 = vmatpush1.msra.mxu0 0.0
        %2397 = vmatprep.subr.mxu0 0.0
        %2398 = vmatpush1.msra.mxu0 0.0
        %2399 = vmatprep.subr.mxu0 0.0
        %2400 = vmatpush1.msra.mxu0 0.0
        %2401 = vmatprep.subr.mxu0 0.0
        %2402 = vmatpush1.msra.mxu0 0.0
        %2403 = vmatprep.subr.mxu0 0.0
        %2404 = vmatpush1.msra.mxu0 0.0
        %2405 = vmatprep.subr.mxu0 0.0
        %2406 = vmatpush1.msra.mxu0 0.0
        %2407 = vmatprep.subr.mxu0 0.0
        %2408 = vmatpush1.msra.mxu0 0.0
        %2409 = vmatprep.subr.mxu0 0.0
        %2410 = vmatpush1.msra.mxu0 0.0
        %2411 = vmatprep.subr.mxu0 0.0
        %2412 = vmatpush1.msra.mxu0 0.0
        %2413 = vmatprep.subr.mxu0 0.0
        %2414 = vmatpush1.msra.mxu0 0.0
        %2415 = vmatprep.subr.mxu0 0.0
        %2416 = vmatpush1.msra.mxu0 0.0
        %2417 = vmatprep.mubr.f32.mxu0 0.0
        %2418 = vmatmul.mubr.f32.gmra.mrb[0].mxu0 %v2351
        %v2419 = vpop.f32.mrb[0].mxu0
        %v2420 = vadd.f32 0.0, %v2419
        %v2421 = vpop.f32.mrb[0].mxu0
        %2422 = vdwg.mxu0
        %2423 = vrot.lane.b32.xlu0 %v602, 80
        %v2424 = vpop.permute.xlu0 %2423
        %v2427 = vsel %vm611, %v2269, 0
        %2429 = vmatprep.subr.mxu0 0.0
        %2430 = vmatpush1.msra.mxu0 %v2424
        %2431 = vmatprep.subr.mxu0 0.0
        %2432 = vmatpush1.msra.mxu0 0.0
        %2433 = vmatprep.subr.mxu0 0.0
        %2434 = vmatpush1.msra.mxu0 0.0
        %2435 = vmatprep.subr.mxu0 0.0
        %2436 = vmatpush1.msra.mxu0 0.0
        %2437 = vmatprep.subr.mxu0 0.0
        %2438 = vmatpush1.msra.mxu0 0.0
        %2439 = vmatprep.subr.mxu0 0.0
        %2440 = vmatpush1.msra.mxu0 0.0
        %2441 = vmatprep.subr.mxu0 0.0
        %2442 = vmatpush1.msra.mxu0 0.0
        %2443 = vmatprep.subr.mxu0 0.0
        %2444 = vmatpush1.msra.mxu0 0.0
        %2445 = vmatprep.subr.mxu0 0.0
        %2446 = vmatpush1.msra.mxu0 0.0
        %2447 = vmatprep.subr.mxu0 0.0
        %2448 = vmatpush1.msra.mxu0 0.0
        %2449 = vmatprep.subr.mxu0 0.0
        %2450 = vmatpush1.msra.mxu0 0.0
        %2451 = vmatprep.subr.mxu0 0.0
        %2452 = vmatpush1.msra.mxu0 0.0
        %2453 = vmatprep.subr.mxu0 0.0
        %2454 = vmatpush1.msra.mxu0 0.0
        %2455 = vmatprep.subr.mxu0 0.0
        %2456 = vmatpush1.msra.mxu0 0.0
        %2457 = vmatprep.subr.mxu0 0.0
        %2458 = vmatpush1.msra.mxu0 0.0
        %2459 = vmatprep.subr.mxu0 0.0
        %2460 = vmatpush1.msra.mxu0 0.0
        %2461 = vmatprep.subr.mxu0 0.0
        %2462 = vmatpush1.msra.mxu0 0.0
        %2463 = vmatprep.subr.mxu0 0.0
        %2464 = vmatpush1.msra.mxu0 0.0
        %2465 = vmatprep.subr.mxu0 0.0
        %2466 = vmatpush1.msra.mxu0 0.0
        %2467 = vmatprep.subr.mxu0 0.0
        %2468 = vmatpush1.msra.mxu0 0.0
        %2469 = vmatprep.subr.mxu0 0.0
        %2470 = vmatpush1.msra.mxu0 0.0
        %2471 = vmatprep.subr.mxu0 0.0
        %2472 = vmatpush1.msra.mxu0 0.0
        %2473 = vmatprep.subr.mxu0 0.0
        %2474 = vmatpush1.msra.mxu0 0.0
        %2475 = vmatprep.subr.mxu0 0.0
        %2476 = vmatpush1.msra.mxu0 0.0
        %2477 = vmatprep.subr.mxu0 0.0
        %2478 = vmatpush1.msra.mxu0 0.0
        %2479 = vmatprep.subr.mxu0 0.0
        %2480 = vmatpush1.msra.mxu0 0.0
        %2481 = vmatprep.subr.mxu0 0.0
        %2482 = vmatpush1.msra.mxu0 0.0
        %2483 = vmatprep.subr.mxu0 0.0
        %2484 = vmatpush1.msra.mxu0 0.0
        %2485 = vmatprep.subr.mxu0 0.0
        %2486 = vmatpush1.msra.mxu0 0.0
        %2487 = vmatprep.subr.mxu0 0.0
        %2488 = vmatpush1.msra.mxu0 0.0
        %2489 = vmatprep.subr.mxu0 0.0
        %2490 = vmatpush1.msra.mxu0 0.0
        %2491 = vmatprep.subr.mxu0 0.0
        %2492 = vmatpush1.msra.mxu0 0.0
        %2493 = vmatprep.mubr.f32.mxu0 0.0
        %2494 = vmatmul.mubr.f32.gmra.mrb[0].mxu0 %v2427
        %v2495 = vpop.f32.mrb[0].mxu0
        %v2496 = vadd.f32 0.0, %v2495
        %v2497 = vpop.f32.mrb[0].mxu0
        %2498 = vdwg.mxu0
        %2499 = vrot.lane.b32.xlu0 %v607, 80
        %v2500 = vpop.permute.xlu0 %2499
        %v2503 = vsel %vm611, %v2270, 0
        %2505 = vmatprep.subr.mxu0 0.0
        %2506 = vmatpush1.msra.mxu0 %v2500
        %2507 = vmatprep.subr.mxu0 0.0
        %2508 = vmatpush1.msra.mxu0 0.0
        %2509 = vmatprep.subr.mxu0 0.0
        %2510 = vmatpush1.msra.mxu0 0.0
        %2511 = vmatprep.subr.mxu0 0.0
        %2512 = vmatpush1.msra.mxu0 0.0
        %2513 = vmatprep.subr.mxu0 0.0
        %2514 = vmatpush1.msra.mxu0 0.0
        %2515 = vmatprep.subr.mxu0 0.0
        %2516 = vmatpush1.msra.mxu0 0.0
        %2517 = vmatprep.subr.mxu0 0.0
        %2518 = vmatpush1.msra.mxu0 0.0
        %2519 = vmatprep.subr.mxu0 0.0
        %2520 = vmatpush1.msra.mxu0 0.0
        %2521 = vmatprep.subr.mxu0 0.0
        %2522 = vmatpush1.msra.mxu0 0.0
        %2523 = vmatprep.subr.mxu0 0.0
        %2524 = vmatpush1.msra.mxu0 0.0
        %2525 = vmatprep.subr.mxu0 0.0
        %2526 = vmatpush1.msra.mxu0 0.0
        %2527 = vmatprep.subr.mxu0 0.0
        %2528 = vmatpush1.msra.mxu0 0.0
        %2529 = vmatprep.subr.mxu0 0.0
        %2530 = vmatpush1.msra.mxu0 0.0
        %2531 = vmatprep.subr.mxu0 0.0
        %2532 = vmatpush1.msra.mxu0 0.0
        %2533 = vmatprep.subr.mxu0 0.0
        %2534 = vmatpush1.msra.mxu0 0.0
        %2535 = vmatprep.subr.mxu0 0.0
        %2536 = vmatpush1.msra.mxu0 0.0
        %2537 = vmatprep.subr.mxu0 0.0
        %2538 = vmatpush1.msra.mxu0 0.0
        %2539 = vmatprep.subr.mxu0 0.0
        %2540 = vmatpush1.msra.mxu0 0.0
        %2541 = vmatprep.subr.mxu0 0.0
        %2542 = vmatpush1.msra.mxu0 0.0
        %2543 = vmatprep.subr.mxu0 0.0
        %2544 = vmatpush1.msra.mxu0 0.0
        %2545 = vmatprep.subr.mxu0 0.0
        %2546 = vmatpush1.msra.mxu0 0.0
        %2547 = vmatprep.subr.mxu0 0.0
        %2548 = vmatpush1.msra.mxu0 0.0
        %2549 = vmatprep.subr.mxu0 0.0
        %2550 = vmatpush1.msra.mxu0 0.0
        %2551 = vmatprep.subr.mxu0 0.0
        %2552 = vmatpush1.msra.mxu0 0.0
        %2553 = vmatprep.subr.mxu0 0.0
        %2554 = vmatpush1.msra.mxu0 0.0
        %2555 = vmatprep.subr.mxu0 0.0
        %2556 = vmatpush1.msra.mxu0 0.0
        %2557 = vmatprep.subr.mxu0 0.0
        %2558 = vmatpush1.msra.mxu0 0.0
        %2559 = vmatprep.subr.mxu0 0.0
        %2560 = vmatpush1.msra.mxu0 0.0
        %2561 = vmatprep.subr.mxu0 0.0
        %2562 = vmatpush1.msra.mxu0 0.0
        %2563 = vmatprep.subr.mxu0 0.0
        %2564 = vmatpush1.msra.mxu0 0.0
        %2565 = vmatprep.subr.mxu0 0.0
        %2566 = vmatpush1.msra.mxu0 0.0
        %2567 = vmatprep.subr.mxu0 0.0
        %2568 = vmatpush1.msra.mxu0 0.0
        %2569 = vmatprep.mubr.f32.mxu0 0.0
        %2570 = vmatmul.mubr.f32.gmra.mrb[0].mxu0 %v2503
        %v2571 = vpop.f32.mrb[0].mxu0
        %v2572 = vadd.f32 0.0, %v2571
        %v2573 = vpop.f32.mrb[0].mxu0
        %2574 = vdwg.mxu0
        %2579 = vrot.lane.b32.xlu0 %v2344, 16
        %v2580 = vpop.permute.xlu0 %2579
        %2581 = vrot.lane.b32.xlu0 %v2420, 16
        %v2582 = vpop.permute.xlu0 %2581
        %2583 = vrot.lane.b32.xlu0 %v2496, 16
        %v2584 = vpop.permute.xlu0 %2583
        %2585 = vrot.lane.b32.xlu0 %v2572, 16
        %v2586 = vpop.permute.xlu0 %2585
        %v2591 = vadd.f32 %v610, %v2580
        %v2592 = vadd.f32 %v610, %v2582
        %v2593 = vadd.f32 %v610, %v2584
        %v2594 = vadd.f32 %v610, %v2586
        %2595 = vrot.lane.b32.xlu0 %v610, 104
        %v2596 = vpop.permute.xlu0 %2595
        %2597 = vrot.lane.b32.xlu0 %v592, 104
        %v2598 = vpop.permute.xlu0 %2597
        %v2599 = vsel %vm611, %v2596, 0
        %v2601 = vsel %vm611, %v2598, 0
        %2603 = vmatprep.subr.mxu0 0.0
        %2604 = vmatpush1.xpose.msra.mxu0 %v2601
        %2605 = vmatprep.subr.mxu0 0.0
        %2606 = vmatpush1.xpose.msra.mxu0 0.0
        %2607 = vmatprep.subr.mxu0 0.0
        %2608 = vmatpush1.xpose.msra.mxu0 0.0
        %2609 = vmatprep.subr.mxu0 0.0
        %2610 = vmatpush1.xpose.msra.mxu0 0.0
        %2611 = vmatprep.subr.mxu0 0.0
        %2612 = vmatpush1.xpose.msra.mxu0 0.0
        %2613 = vmatprep.subr.mxu0 0.0
        %2614 = vmatpush1.xpose.msra.mxu0 0.0
        %2615 = vmatprep.subr.mxu0 0.0
        %2616 = vmatpush1.xpose.msra.mxu0 0.0
        %2617 = vmatprep.subr.mxu0 0.0
        %2618 = vmatpush1.xpose.msra.mxu0 0.0
        %2619 = vmatprep.subr.mxu0 0.0
        %2620 = vmatpush1.xpose.msra.mxu0 0.0
        %2621 = vmatprep.subr.mxu0 0.0
        %2622 = vmatpush1.xpose.msra.mxu0 0.0
        %2623 = vmatprep.subr.mxu0 0.0
        %2624 = vmatpush1.xpose.msra.mxu0 0.0
        %2625 = vmatprep.subr.mxu0 0.0
        %2626 = vmatpush1.xpose.msra.mxu0 0.0
        %2627 = vmatprep.subr.mxu0 0.0
        %2628 = vmatpush1.xpose.msra.mxu0 0.0
        %2629 = vmatprep.subr.mxu0 0.0
        %2630 = vmatpush1.xpose.msra.mxu0 0.0
        %2631 = vmatprep.subr.mxu0 0.0
        %2632 = vmatpush1.xpose.msra.mxu0 0.0
        %2633 = vmatprep.subr.mxu0 0.0
        %2634 = vmatpush1.xpose.msra.mxu0 0.0
        %2635 = vmatprep.subr.mxu0 0.0
        %2636 = vmatpush1.xpose.msra.mxu0 0.0
        %2637 = vmatprep.subr.mxu0 0.0
        %2638 = vmatpush1.xpose.msra.mxu0 0.0
        %2639 = vmatprep.subr.mxu0 0.0
        %2640 = vmatpush1.xpose.msra.mxu0 0.0
        %2641 = vmatprep.subr.mxu0 0.0
        %2642 = vmatpush1.xpose.msra.mxu0 0.0
        %2643 = vmatprep.subr.mxu0 0.0
        %2644 = vmatpush1.xpose.msra.mxu0 0.0
        %2645 = vmatprep.subr.mxu0 0.0
        %2646 = vmatpush1.xpose.msra.mxu0 0.0
        %2647 = vmatprep.subr.mxu0 0.0
        %2648 = vmatpush1.xpose.msra.mxu0 0.0
        %2649 = vmatprep.subr.mxu0 0.0
        %2650 = vmatpush1.xpose.msra.mxu0 0.0
        %2651 = vmatprep.subr.mxu0 0.0
        %2652 = vmatpush1.xpose.msra.mxu0 0.0
        %2653 = vmatprep.subr.mxu0 0.0
        %2654 = vmatpush1.xpose.msra.mxu0 0.0
        %2655 = vmatprep.subr.mxu0 0.0
        %2656 = vmatpush1.xpose.msra.mxu0 0.0
        %2657 = vmatprep.subr.mxu0 0.0
        %2658 = vmatpush1.xpose.msra.mxu0 0.0
        %2659 = vmatprep.subr.mxu0 0.0
        %2660 = vmatpush1.xpose.msra.mxu0 0.0
        %2661 = vmatprep.subr.mxu0 0.0
        %2662 = vmatpush1.xpose.msra.mxu0 0.0
        %2663 = vmatprep.subr.mxu0 0.0
        %2664 = vmatpush1.xpose.msra.mxu0 0.0
        %2665 = vmatprep.subr.mxu0 0.0
        %2666 = vmatpush1.xpose.msra.mxu0 0.0
        %2667 = vmatprep.mubr.f32.mxu0 0.0
        %2668 = vmatmul.mubr.f32.gmra.mrb[0].mxu0 %v2599
        %v2669 = vpop.f32.mrb[0].mxu0
        %v2670 = vadd.f32 0.0, %v2669
        %v2671 = vpop.f32.mrb[0].mxu0
        %2672 = vdwg.mxu0
        %2673 = vrot.lane.b32.xlu0 %v597, 104
        %v2674 = vpop.permute.xlu0 %2673
        %v2675 = vsel %vm611, %v2674, 0
        %2677 = vmatprep.subr.mxu0 0.0
        %2678 = vmatpush1.xpose.msra.mxu0 %v2675
        %2679 = vmatprep.subr.mxu0 0.0
        %2680 = vmatpush1.xpose.msra.mxu0 0.0
        %2681 = vmatprep.subr.mxu0 0.0
        %2682 = vmatpush1.xpose.msra.mxu0 0.0
        %2683 = vmatprep.subr.mxu0 0.0
        %2684 = vmatpush1.xpose.msra.mxu0 0.0
        %2685 = vmatprep.subr.mxu0 0.0
        %2686 = vmatpush1.xpose.msra.mxu0 0.0
        %2687 = vmatprep.subr.mxu0 0.0
        %2688 = vmatpush1.xpose.msra.mxu0 0.0
        %2689 = vmatprep.subr.mxu0 0.0
        %2690 = vmatpush1.xpose.msra.mxu0 0.0
        %2691 = vmatprep.subr.mxu0 0.0
        %2692 = vmatpush1.xpose.msra.mxu0 0.0
        %2693 = vmatprep.subr.mxu0 0.0
        %2694 = vmatpush1.xpose.msra.mxu0 0.0
        %2695 = vmatprep.subr.mxu0 0.0
        %2696 = vmatpush1.xpose.msra.mxu0 0.0
        %2697 = vmatprep.subr.mxu0 0.0
        %2698 = vmatpush1.xpose.msra.mxu0 0.0
        %2699 = vmatprep.subr.mxu0 0.0
        %2700 = vmatpush1.xpose.msra.mxu0 0.0
        %2701 = vmatprep.subr.mxu0 0.0
        %2702 = vmatpush1.xpose.msra.mxu0 0.0
        %2703 = vmatprep.subr.mxu0 0.0
        %2704 = vmatpush1.xpose.msra.mxu0 0.0
        %2705 = vmatprep.subr.mxu0 0.0
        %2706 = vmatpush1.xpose.msra.mxu0 0.0
        %2707 = vmatprep.subr.mxu0 0.0
        %2708 = vmatpush1.xpose.msra.mxu0 0.0
        %2709 = vmatprep.subr.mxu0 0.0
        %2710 = vmatpush1.xpose.msra.mxu0 0.0
        %2711 = vmatprep.subr.mxu0 0.0
        %2712 = vmatpush1.xpose.msra.mxu0 0.0
        %2713 = vmatprep.subr.mxu0 0.0
        %2714 = vmatpush1.xpose.msra.mxu0 0.0
        %2715 = vmatprep.subr.mxu0 0.0
        %2716 = vmatpush1.xpose.msra.mxu0 0.0
        %2717 = vmatprep.subr.mxu0 0.0
        %2718 = vmatpush1.xpose.msra.mxu0 0.0
        %2719 = vmatprep.subr.mxu0 0.0
        %2720 = vmatpush1.xpose.msra.mxu0 0.0
        %2721 = vmatprep.subr.mxu0 0.0
        %2722 = vmatpush1.xpose.msra.mxu0 0.0
        %2723 = vmatprep.subr.mxu0 0.0
        %2724 = vmatpush1.xpose.msra.mxu0 0.0
        %2725 = vmatprep.subr.mxu0 0.0
        %2726 = vmatpush1.xpose.msra.mxu0 0.0
        %2727 = vmatprep.subr.mxu0 0.0
        %2728 = vmatpush1.xpose.msra.mxu0 0.0
        %2729 = vmatprep.subr.mxu0 0.0
        %2730 = vmatpush1.xpose.msra.mxu0 0.0
        %2731 = vmatprep.subr.mxu0 0.0
        %2732 = vmatpush1.xpose.msra.mxu0 0.0
        %2733 = vmatprep.subr.mxu0 0.0
        %2734 = vmatpush1.xpose.msra.mxu0 0.0
        %2735 = vmatprep.subr.mxu0 0.0
        %2736 = vmatpush1.xpose.msra.mxu0 0.0
        %2737 = vmatprep.subr.mxu0 0.0
        %2738 = vmatpush1.xpose.msra.mxu0 0.0
        %2739 = vmatprep.subr.mxu0 0.0
        %2740 = vmatpush1.xpose.msra.mxu0 0.0
        %2741 = vmatprep.mubr.f32.mxu0 0.0
        %2742 = vmatmul.mubr.f32.gmra.mrb[0].mxu0 %v2599
        %v2743 = vpop.f32.mrb[0].mxu0
        %v2744 = vadd.f32 0.0, %v2743
        %v2745 = vpop.f32.mrb[0].mxu0
        %2746 = vdwg.mxu0
        %2747 = vrot.lane.b32.xlu0 %v602, 104
        %v2748 = vpop.permute.xlu0 %2747
        %v2749 = vsel %vm611, %v2748, 0
        %2751 = vmatprep.subr.mxu0 0.0
        %2752 = vmatpush1.xpose.msra.mxu0 %v2749
        %2753 = vmatprep.subr.mxu0 0.0
        %2754 = vmatpush1.xpose.msra.mxu0 0.0
        %2755 = vmatprep.subr.mxu0 0.0
        %2756 = vmatpush1.xpose.msra.mxu0 0.0
        %2757 = vmatprep.subr.mxu0 0.0
        %2758 = vmatpush1.xpose.msra.mxu0 0.0
        %2759 = vmatprep.subr.mxu0 0.0
        %2760 = vmatpush1.xpose.msra.mxu0 0.0
        %2761 = vmatprep.subr.mxu0 0.0
        %2762 = vmatpush1.xpose.msra.mxu0 0.0
        %2763 = vmatprep.subr.mxu0 0.0
        %2764 = vmatpush1.xpose.msra.mxu0 0.0
        %2765 = vmatprep.subr.mxu0 0.0
        %2766 = vmatpush1.xpose.msra.mxu0 0.0
        %2767 = vmatprep.subr.mxu0 0.0
        %2768 = vmatpush1.xpose.msra.mxu0 0.0
        %2769 = vmatprep.subr.mxu0 0.0
        %2770 = vmatpush1.xpose.msra.mxu0 0.0
        %2771 = vmatprep.subr.mxu0 0.0
        %2772 = vmatpush1.xpose.msra.mxu0 0.0
        %2773 = vmatprep.subr.mxu0 0.0
        %2774 = vmatpush1.xpose.msra.mxu0 0.0
        %2775 = vmatprep.subr.mxu0 0.0
        %2776 = vmatpush1.xpose.msra.mxu0 0.0
        %2777 = vmatprep.subr.mxu0 0.0
        %2778 = vmatpush1.xpose.msra.mxu0 0.0
        %2779 = vmatprep.subr.mxu0 0.0
        %2780 = vmatpush1.xpose.msra.mxu0 0.0
        %2781 = vmatprep.subr.mxu0 0.0
        %2782 = vmatpush1.xpose.msra.mxu0 0.0
        %2783 = vmatprep.subr.mxu0 0.0
        %2784 = vmatpush1.xpose.msra.mxu0 0.0
        %2785 = vmatprep.subr.mxu0 0.0
        %2786 = vmatpush1.xpose.msra.mxu0 0.0
        %2787 = vmatprep.subr.mxu0 0.0
        %2788 = vmatpush1.xpose.msra.mxu0 0.0
        %2789 = vmatprep.subr.mxu0 0.0
        %2790 = vmatpush1.xpose.msra.mxu0 0.0
        %2791 = vmatprep.subr.mxu0 0.0
        %2792 = vmatpush1.xpose.msra.mxu0 0.0
        %2793 = vmatprep.subr.mxu0 0.0
        %2794 = vmatpush1.xpose.msra.mxu0 0.0
        %2795 = vmatprep.subr.mxu0 0.0
        %2796 = vmatpush1.xpose.msra.mxu0 0.0
        %2797 = vmatprep.subr.mxu0 0.0
        %2798 = vmatpush1.xpose.msra.mxu0 0.0
        %2799 = vmatprep.subr.mxu0 0.0
        %2800 = vmatpush1.xpose.msra.mxu0 0.0
        %2801 = vmatprep.subr.mxu0 0.0
        %2802 = vmatpush1.xpose.msra.mxu0 0.0
        %2803 = vmatprep.subr.mxu0 0.0
        %2804 = vmatpush1.xpose.msra.mxu0 0.0
        %2805 = vmatprep.subr.mxu0 0.0
        %2806 = vmatpush1.xpose.msra.mxu0 0.0
        %2807 = vmatprep.subr.mxu0 0.0
        %2808 = vmatpush1.xpose.msra.mxu0 0.0
        %2809 = vmatprep.subr.mxu0 0.0
        %2810 = vmatpush1.xpose.msra.mxu0 0.0
        %2811 = vmatprep.subr.mxu0 0.0
        %2812 = vmatpush1.xpose.msra.mxu0 0.0
        %2813 = vmatprep.subr.mxu0 0.0
        %2814 = vmatpush1.xpose.msra.mxu0 0.0
        %2815 = vmatprep.mubr.f32.mxu0 0.0
        %2816 = vmatmul.mubr.f32.gmra.mrb[0].mxu0 %v2599
        %v2817 = vpop.f32.mrb[0].mxu0
        %v2818 = vadd.f32 0.0, %v2817
        %v2819 = vpop.f32.mrb[0].mxu0
        %2820 = vdwg.mxu0
        %2821 = vrot.lane.b32.xlu0 %v607, 104
        %v2822 = vpop.permute.xlu0 %2821
        %v2823 = vsel %vm611, %v2822, 0
        %2825 = vmatprep.subr.mxu0 0.0
        %2826 = vmatpush1.xpose.msra.mxu0 %v2823
        %2827 = vmatprep.subr.mxu0 0.0
        %2828 = vmatpush1.xpose.msra.mxu0 0.0
        %2829 = vmatprep.subr.mxu0 0.0
        %2830 = vmatpush1.xpose.msra.mxu0 0.0
        %2831 = vmatprep.subr.mxu0 0.0
        %2832 = vmatpush1.xpose.msra.mxu0 0.0
        %2833 = vmatprep.subr.mxu0 0.0
        %2834 = vmatpush1.xpose.msra.mxu0 0.0
        %2835 = vmatprep.subr.mxu0 0.0
        %2836 = vmatpush1.xpose.msra.mxu0 0.0
        %2837 = vmatprep.subr.mxu0 0.0
        %2838 = vmatpush1.xpose.msra.mxu0 0.0
        %2839 = vmatprep.subr.mxu0 0.0
        %2840 = vmatpush1.xpose.msra.mxu0 0.0
        %2841 = vmatprep.subr.mxu0 0.0
        %2842 = vmatpush1.xpose.msra.mxu0 0.0
        %2843 = vmatprep.subr.mxu0 0.0
        %2844 = vmatpush1.xpose.msra.mxu0 0.0
        %2845 = vmatprep.subr.mxu0 0.0
        %2846 = vmatpush1.xpose.msra.mxu0 0.0
        %2847 = vmatprep.subr.mxu0 0.0
        %2848 = vmatpush1.xpose.msra.mxu0 0.0
        %2849 = vmatprep.subr.mxu0 0.0
        %2850 = vmatpush1.xpose.msra.mxu0 0.0
        %2851 = vmatprep.subr.mxu0 0.0
        %2852 = vmatpush1.xpose.msra.mxu0 0.0
        %2853 = vmatprep.subr.mxu0 0.0
        %2854 = vmatpush1.xpose.msra.mxu0 0.0
        %2855 = vmatprep.subr.mxu0 0.0
        %2856 = vmatpush1.xpose.msra.mxu0 0.0
        %2857 = vmatprep.subr.mxu0 0.0
        %2858 = vmatpush1.xpose.msra.mxu0 0.0
        %2859 = vmatprep.subr.mxu0 0.0
        %2860 = vmatpush1.xpose.msra.mxu0 0.0
        %2861 = vmatprep.subr.mxu0 0.0
        %2862 = vmatpush1.xpose.msra.mxu0 0.0
        %2863 = vmatprep.subr.mxu0 0.0
        %2864 = vmatpush1.xpose.msra.mxu0 0.0
        %2865 = vmatprep.subr.mxu0 0.0
        %2866 = vmatpush1.xpose.msra.mxu0 0.0
        %2867 = vmatprep.subr.mxu0 0.0
        %2868 = vmatpush1.xpose.msra.mxu0 0.0
        %2869 = vmatprep.subr.mxu0 0.0
        %2870 = vmatpush1.xpose.msra.mxu0 0.0
        %2871 = vmatprep.subr.mxu0 0.0
        %2872 = vmatpush1.xpose.msra.mxu0 0.0
        %2873 = vmatprep.subr.mxu0 0.0
        %2874 = vmatpush1.xpose.msra.mxu0 0.0
        %2875 = vmatprep.subr.mxu0 0.0
        %2876 = vmatpush1.xpose.msra.mxu0 0.0
        %2877 = vmatprep.subr.mxu0 0.0
        %2878 = vmatpush1.xpose.msra.mxu0 0.0
        %2879 = vmatprep.subr.mxu0 0.0
        %2880 = vmatpush1.xpose.msra.mxu0 0.0
        %2881 = vmatprep.subr.mxu0 0.0
        %2882 = vmatpush1.xpose.msra.mxu0 0.0
        %2883 = vmatprep.subr.mxu0 0.0
        %2884 = vmatpush1.xpose.msra.mxu0 0.0
        %2885 = vmatprep.subr.mxu0 0.0
        %2886 = vmatpush1.xpose.msra.mxu0 0.0
        %2887 = vmatprep.subr.mxu0 0.0
        %2888 = vmatpush1.xpose.msra.mxu0 0.0
        %2889 = vmatprep.mubr.f32.mxu0 0.0
        %2890 = vmatmul.mubr.f32.gmra.mrb[0].mxu0 %v2599
        %v2891 = vpop.f32.mrb[0].mxu0
        %v2892 = vadd.f32 0.0, %v2891
        %v2893 = vpop.f32.mrb[0].mxu0
        %2894 = vdwg.mxu0
        %v2895 = vsel %vm611, %v2670, -inf
        %2896 = vmax.xlane.f32.xlu0 %v2895
        %v2897 = vpop.xlane.xlu0 %2896
        %v2898 = vsel %vm611, %v2744, -inf
        %2899 = vmax.xlane.f32.xlu0 %v2898
        %v2900 = vpop.xlane.xlu0 %2899
        %v2901 = vsel %vm611, %v2818, -inf
        %2902 = vmax.xlane.f32.xlu0 %v2901
        %v2903 = vpop.xlane.xlu0 %2902
        %v2904 = vsel %vm611, %v2892, -inf
        %2905 = vmax.xlane.f32.xlu0 %v2904
        %v2906 = vpop.xlane.xlu0 %2905
        %v2907 = vsub.f32 %v2670, %v2897
        %v2908 = vsub.f32 %v2744, %v2900
        %v2909 = vsub.f32 %v2818, %v2903
        %v2910 = vsub.f32 %v2892, %v2906
        %v2911 = vmul.f32 %v2907, 1.442695
        %v2912 = vpow.pop %v2911
        %v2913 = vmul.f32 %v2908, 1.442695
        %v2914 = vpow.pop %v2913
        %v2915 = vmul.f32 %v2909, 1.442695
        %v2916 = vpow.pop %v2915
        %v2917 = vmul.f32 %v2910, 1.442695
        %v2918 = vpow.pop %v2917
        %v2919 = vsel %vm611, %v2912, 0.0
        %2920 = vadd.xlane.f32.xlu0 %v2919
        %v2921 = vpop.xlane.xlu0 %2920
        %v2922 = vsel %vm611, %v2914, 0.0
        %2923 = vadd.xlane.f32.xlu0 %v2922
        %v2924 = vpop.xlane.xlu0 %2923
        %v2925 = vsel %vm611, %v2916, 0.0
        %2926 = vadd.xlane.f32.xlu0 %v2925
        %v2927 = vpop.xlane.xlu0 %2926
        %v2928 = vsel %vm611, %v2918, 0.0
        %2929 = vadd.xlane.f32.xlu0 %v2928
        %v2930 = vpop.xlane.xlu0 %2929
        %v2931 = vrcp.pop %v2921
        %v2932 = vrcp.pop %v2924
        %v2933 = vrcp.pop %v2927
        %v2934 = vrcp.pop %v2930
        %v2935 = vmul.f32 %v2912, %v2931
        %v2936 = vmul.f32 %v2914, %v2932
        %v2937 = vmul.f32 %v2916, %v2933
        %v2938 = vmul.f32 %v2918, %v2934
        %2939 = vrot.lane.b32.xlu0 %v592, 72
        %v2940 = vpop.permute.xlu0 %2939
        %v2943 = vsel %vm611, %v2935, 0
        %2945 = vmatprep.subr.mxu0 0.0
        %2946 = vmatpush1.msra.mxu0 %v2940
        %2947 = vmatprep.subr.mxu0 0.0
        %2948 = vmatpush1.msra.mxu0 0.0
        %2949 = vmatprep.subr.mxu0 0.0
        %2950 = vmatpush1.msra.mxu0 0.0
        %2951 = vmatprep.subr.mxu0 0.0
        %2952 = vmatpush1.msra.mxu0 0.0
        %2953 = vmatprep.subr.mxu0 0.0
        %2954 = vmatpush1.msra.mxu0 0.0
        %2955 = vmatprep.subr.mxu0 0.0
        %2956 = vmatpush1.msra.mxu0 0.0
        %2957 = vmatprep.subr.mxu0 0.0
        %2958 = vmatpush1.msra.mxu0 0.0
        %2959 = vmatprep.subr.mxu0 0.0
        %2960 = vmatpush1.msra.mxu0 0.0
        %2961 = vmatprep.subr.mxu0 0.0
        %2962 = vmatpush1.msra.mxu0 0.0
        %2963 = vmatprep.subr.mxu0 0.0
        %2964 = vmatpush1.msra.mxu0 0.0
        %2965 = vmatprep.subr.mxu0 0.0
        %2966 = vmatpush1.msra.mxu0 0.0
        %2967 = vmatprep.subr.mxu0 0.0
        %2968 = vmatpush1.msra.mxu0 0.0
        %2969 = vmatprep.subr.mxu0 0.0
        %2970 = vmatpush1.msra.mxu0 0.0
        %2971 = vmatprep.subr.mxu0 0.0
        %2972 = vmatpush1.msra.mxu0 0.0
        %2973 = vmatprep.subr.mxu0 0.0
        %2974 = vmatpush1.msra.mxu0 0.0
        %2975 = vmatprep.subr.mxu0 0.0
        %2976 = vmatpush1.msra.mxu0 0.0
        %2977 = vmatprep.subr.mxu0 0.0
        %2978 = vmatpush1.msra.mxu0 0.0
        %2979 = vmatprep.subr.mxu0 0.0
        %2980 = vmatpush1.msra.mxu0 0.0
        %2981 = vmatprep.subr.mxu0 0.0
        %2982 = vmatpush1.msra.mxu0 0.0
        %2983 = vmatprep.subr.mxu0 0.0
        %2984 = vmatpush1.msra.mxu0 0.0
        %2985 = vmatprep.subr.mxu0 0.0
        %2986 = vmatpush1.msra.mxu0 0.0
        %2987 = vmatprep.subr.mxu0 0.0
        %2988 = vmatpush1.msra.mxu0 0.0
        %2989 = vmatprep.subr.mxu0 0.0
        %2990 = vmatpush1.msra.mxu0 0.0
        %2991 = vmatprep.subr.mxu0 0.0
        %2992 = vmatpush1.msra.mxu0 0.0
        %2993 = vmatprep.subr.mxu0 0.0
        %2994 = vmatpush1.msra.mxu0 0.0
        %2995 = vmatprep.subr.mxu0 0.0
        %2996 = vmatpush1.msra.mxu0 0.0
        %2997 = vmatprep.subr.mxu0 0.0
        %2998 = vmatpush1.msra.mxu0 0.0
        %2999 = vmatprep.subr.mxu0 0.0
        %3000 = vmatpush1.msra.mxu0 0.0
        %3001 = vmatprep.subr.mxu0 0.0
        %3002 = vmatpush1.msra.mxu0 0.0
        %3003 = vmatprep.subr.mxu0 0.0
        %3004 = vmatpush1.msra.mxu0 0.0
        %3005 = vmatprep.subr.mxu0 0.0
        %3006 = vmatpush1.msra.mxu0 0.0
        %3007 = vmatprep.subr.mxu0 0.0
        %3008 = vmatpush1.msra.mxu0 0.0
        %3009 = vmatprep.mubr.f32.mxu0 0.0
        %3010 = vmatmul.mubr.f32.gmra.mrb[0].mxu0 %v2943
        %v3011 = vpop.f32.mrb[0].mxu0
        %v3012 = vadd.f32 0.0, %v3011
        %v3013 = vpop.f32.mrb[0].mxu0
        %3014 = vdwg.mxu0
        %3015 = vrot.lane.b32.xlu0 %v597, 72
        %v3016 = vpop.permute.xlu0 %3015
        %v3019 = vsel %vm611, %v2936, 0
        %3021 = vmatprep.subr.mxu0 0.0
        %3022 = vmatpush1.msra.mxu0 %v3016
        %3023 = vmatprep.subr.mxu0 0.0
        %3024 = vmatpush1.msra.mxu0 0.0
        %3025 = vmatprep.subr.mxu0 0.0
        %3026 = vmatpush1.msra.mxu0 0.0
        %3027 = vmatprep.subr.mxu0 0.0
        %3028 = vmatpush1.msra.mxu0 0.0
        %3029 = vmatprep.subr.mxu0 0.0
        %3030 = vmatpush1.msra.mxu0 0.0
        %3031 = vmatprep.subr.mxu0 0.0
        %3032 = vmatpush1.msra.mxu0 0.0
        %3033 = vmatprep.subr.mxu0 0.0
        %3034 = vmatpush1.msra.mxu0 0.0
        %3035 = vmatprep.subr.mxu0 0.0
        %3036 = vmatpush1.msra.mxu0 0.0
        %3037 = vmatprep.subr.mxu0 0.0
        %3038 = vmatpush1.msra.mxu0 0.0
        %3039 = vmatprep.subr.mxu0 0.0
        %3040 = vmatpush1.msra.mxu0 0.0
        %3041 = vmatprep.subr.mxu0 0.0
        %3042 = vmatpush1.msra.mxu0 0.0
        %3043 = vmatprep.subr.mxu0 0.0
        %3044 = vmatpush1.msra.mxu0 0.0
        %3045 = vmatprep.subr.mxu0 0.0
        %3046 = vmatpush1.msra.mxu0 0.0
        %3047 = vmatprep.subr.mxu0 0.0
        %3048 = vmatpush1.msra.mxu0 0.0
        %3049 = vmatprep.subr.mxu0 0.0
        %3050 = vmatpush1.msra.mxu0 0.0
        %3051 = vmatprep.subr.mxu0 0.0
        %3052 = vmatpush1.msra.mxu0 0.0
        %3053 = vmatprep.subr.mxu0 0.0
        %3054 = vmatpush1.msra.mxu0 0.0
        %3055 = vmatprep.subr.mxu0 0.0
        %3056 = vmatpush1.msra.mxu0 0.0
        %3057 = vmatprep.subr.mxu0 0.0
        %3058 = vmatpush1.msra.mxu0 0.0
        %3059 = vmatprep.subr.mxu0 0.0
        %3060 = vmatpush1.msra.mxu0 0.0
        %3061 = vmatprep.subr.mxu0 0.0
        %3062 = vmatpush1.msra.mxu0 0.0
        %3063 = vmatprep.subr.mxu0 0.0
        %3064 = vmatpush1.msra.mxu0 0.0
        %3065 = vmatprep.subr.mxu0 0.0
        %3066 = vmatpush1.msra.mxu0 0.0
        %3067 = vmatprep.subr.mxu0 0.0
        %3068 = vmatpush1.msra.mxu0 0.0
        %3069 = vmatprep.subr.mxu0 0.0
        %3070 = vmatpush1.msra.mxu0 0.0
        %3071 = vmatprep.subr.mxu0 0.0
        %3072 = vmatpush1.msra.mxu0 0.0
        %3073 = vmatprep.subr.mxu0 0.0
        %3074 = vmatpush1.msra.mxu0 0.0
        %3075 = vmatprep.subr.mxu0 0.0
        %3076 = vmatpush1.msra.mxu0 0.0
        %3077 = vmatprep.subr.mxu0 0.0
        %3078 = vmatpush1.msra.mxu0 0.0
        %3079 = vmatprep.subr.mxu0 0.0
        %3080 = vmatpush1.msra.mxu0 0.0
        %3081 = vmatprep.subr.mxu0 0.0
        %3082 = vmatpush1.msra.mxu0 0.0
        %3083 = vmatprep.subr.mxu0 0.0
        %3084 = vmatpush1.msra.mxu0 0.0
        %3085 = vmatprep.mubr.f32.mxu0 0.0
        %3086 = vmatmul.mubr.f32.gmra.mrb[0].mxu0 %v3019
        %v3087 = vpop.f32.mrb[0].mxu0
        %v3088 = vadd.f32 0.0, %v3087
        %v3089 = vpop.f32.mrb[0].mxu0
        %3090 = vdwg.mxu0
        %3091 = vrot.lane.b32.xlu0 %v602, 72
        %v3092 = vpop.permute.xlu0 %3091
        %v3095 = vsel %vm611, %v2937, 0
        %3097 = vmatprep.subr.mxu0 0.0
        %3098 = vmatpush1.msra.mxu0 %v3092
        %3099 = vmatprep.subr.mxu0 0.0
        %3100 = vmatpush1.msra.mxu0 0.0
        %3101 = vmatprep.subr.mxu0 0.0
        %3102 = vmatpush1.msra.mxu0 0.0
        %3103 = vmatprep.subr.mxu0 0.0
        %3104 = vmatpush1.msra.mxu0 0.0
        %3105 = vmatprep.subr.mxu0 0.0
        %3106 = vmatpush1.msra.mxu0 0.0
        %3107 = vmatprep.subr.mxu0 0.0
        %3108 = vmatpush1.msra.mxu0 0.0
        %3109 = vmatprep.subr.mxu0 0.0
        %3110 = vmatpush1.msra.mxu0 0.0
        %3111 = vmatprep.subr.mxu0 0.0
        %3112 = vmatpush1.msra.mxu0 0.0
        %3113 = vmatprep.subr.mxu0 0.0
        %3114 = vmatpush1.msra.mxu0 0.0
        %3115 = vmatprep.subr.mxu0 0.0
        %3116 = vmatpush1.msra.mxu0 0.0
        %3117 = vmatprep.subr.mxu0 0.0
        %3118 = vmatpush1.msra.mxu0 0.0
        %3119 = vmatprep.subr.mxu0 0.0
        %3120 = vmatpush1.msra.mxu0 0.0
        %3121 = vmatprep.subr.mxu0 0.0
        %3122 = vmatpush1.msra.mxu0 0.0
        %3123 = vmatprep.subr.mxu0 0.0
        %3124 = vmatpush1.msra.mxu0 0.0
        %3125 = vmatprep.subr.mxu0 0.0
        %3126 = vmatpush1.msra.mxu0 0.0
        %3127 = vmatprep.subr.mxu0 0.0
        %3128 = vmatpush1.msra.mxu0 0.0
        %3129 = vmatprep.subr.mxu0 0.0
        %3130 = vmatpush1.msra.mxu0 0.0
        %3131 = vmatprep.subr.mxu0 0.0
        %3132 = vmatpush1.msra.mxu0 0.0
        %3133 = vmatprep.subr.mxu0 0.0
        %3134 = vmatpush1.msra.mxu0 0.0
        %3135 = vmatprep.subr.mxu0 0.0
        %3136 = vmatpush1.msra.mxu0 0.0
        %3137 = vmatprep.subr.mxu0 0.0
        %3138 = vmatpush1.msra.mxu0 0.0
        %3139 = vmatprep.subr.mxu0 0.0
        %3140 = vmatpush1.msra.mxu0 0.0
        %3141 = vmatprep.subr.mxu0 0.0
        %3142 = vmatpush1.msra.mxu0 0.0
        %3143 = vmatprep.subr.mxu0 0.0
        %3144 = vmatpush1.msra.mxu0 0.0
        %3145 = vmatprep.subr.mxu0 0.0
        %3146 = vmatpush1.msra.mxu0 0.0
        %3147 = vmatprep.subr.mxu0 0.0
        %3148 = vmatpush1.msra.mxu0 0.0
        %3149 = vmatprep.subr.mxu0 0.0
        %3150 = vmatpush1.msra.mxu0 0.0
        %3151 = vmatprep.subr.mxu0 0.0
        %3152 = vmatpush1.msra.mxu0 0.0
        %3153 = vmatprep.subr.mxu0 0.0
        %3154 = vmatpush1.msra.mxu0 0.0
        %3155 = vmatprep.subr.mxu0 0.0
        %3156 = vmatpush1.msra.mxu0 0.0
        %3157 = vmatprep.subr.mxu0 0.0
        %3158 = vmatpush1.msra.mxu0 0.0
        %3159 = vmatprep.subr.mxu0 0.0
        %3160 = vmatpush1.msra.mxu0 0.0
        %3161 = vmatprep.mubr.f32.mxu0 0.0
        %3162 = vmatmul.mubr.f32.gmra.mrb[0].mxu0 %v3095
        %v3163 = vpop.f32.mrb[0].mxu0
        %v3164 = vadd.f32 0.0, %v3163
        %v3165 = vpop.f32.mrb[0].mxu0
        %3166 = vdwg.mxu0
        %3167 = vrot.lane.b32.xlu0 %v607, 72
        %v3168 = vpop.permute.xlu0 %3167
        %v3171 = vsel %vm611, %v2938, 0
        %3173 = vmatprep.subr.mxu0 0.0
        %3174 = vmatpush1.msra.mxu0 %v3168
        %3175 = vmatprep.subr.mxu0 0.0
        %3176 = vmatpush1.msra.mxu0 0.0
        %3177 = vmatprep.subr.mxu0 0.0
        %3178 = vmatpush1.msra.mxu0 0.0
        %3179 = vmatprep.subr.mxu0 0.0
        %3180 = vmatpush1.msra.mxu0 0.0
        %3181 = vmatprep.subr.mxu0 0.0
        %3182 = vmatpush1.msra.mxu0 0.0
        %3183 = vmatprep.subr.mxu0 0.0
        %3184 = vmatpush1.msra.mxu0 0.0
        %3185 = vmatprep.subr.mxu0 0.0
        %3186 = vmatpush1.msra.mxu0 0.0
        %3187 = vmatprep.subr.mxu0 0.0
        %3188 = vmatpush1.msra.mxu0 0.0
        %3189 = vmatprep.subr.mxu0 0.0
        %3190 = vmatpush1.msra.mxu0 0.0
        %3191 = vmatprep.subr.mxu0 0.0
        %3192 = vmatpush1.msra.mxu0 0.0
        %3193 = vmatprep.subr.mxu0 0.0
        %3194 = vmatpush1.msra.mxu0 0.0
        %3195 = vmatprep.subr.mxu0 0.0
        %3196 = vmatpush1.msra.mxu0 0.0
        %3197 = vmatprep.subr.mxu0 0.0
        %3198 = vmatpush1.msra.mxu0 0.0
        %3199 = vmatprep.subr.mxu0 0.0
        %3200 = vmatpush1.msra.mxu0 0.0
        %3201 = vmatprep.subr.mxu0 0.0
        %3202 = vmatpush1.msra.mxu0 0.0
        %3203 = vmatprep.subr.mxu0 0.0
        %3204 = vmatpush1.msra.mxu0 0.0
        %3205 = vmatprep.subr.mxu0 0.0
        %3206 = vmatpush1.msra.mxu0 0.0
        %3207 = vmatprep.subr.mxu0 0.0
        %3208 = vmatpush1.msra.mxu0 0.0
        %3209 = vmatprep.subr.mxu0 0.0
        %3210 = vmatpush1.msra.mxu0 0.0
        %3211 = vmatprep.subr.mxu0 0.0
        %3212 = vmatpush1.msra.mxu0 0.0
        %3213 = vmatprep.subr.mxu0 0.0
        %3214 = vmatpush1.msra.mxu0 0.0
        %3215 = vmatprep.subr.mxu0 0.0
        %3216 = vmatpush1.msra.mxu0 0.0
        %3217 = vmatprep.subr.mxu0 0.0
        %3218 = vmatpush1.msra.mxu0 0.0
        %3219 = vmatprep.subr.mxu0 0.0
        %3220 = vmatpush1.msra.mxu0 0.0
        %3221 = vmatprep.subr.mxu0 0.0
        %3222 = vmatpush1.msra.mxu0 0.0
        %3223 = vmatprep.subr.mxu0 0.0
        %3224 = vmatpush1.msra.mxu0 0.0
        %3225 = vmatprep.subr.mxu0 0.0
        %3226 = vmatpush1.msra.mxu0 0.0
        %3227 = vmatprep.subr.mxu0 0.0
        %3228 = vmatpush1.msra.mxu0 0.0
        %3229 = vmatprep.subr.mxu0 0.0
        %3230 = vmatpush1.msra.mxu0 0.0
        %3231 = vmatprep.subr.mxu0 0.0
        %3232 = vmatpush1.msra.mxu0 0.0
        %3233 = vmatprep.subr.mxu0 0.0
        %3234 = vmatpush1.msra.mxu0 0.0
        %3235 = vmatprep.subr.mxu0 0.0
        %3236 = vmatpush1.msra.mxu0 0.0
        %3237 = vmatprep.mubr.f32.mxu0 0.0
        %3238 = vmatmul.mubr.f32.gmra.mrb[0].mxu0 %v3171
        %v3239 = vpop.f32.mrb[0].mxu0
        %v3240 = vadd.f32 0.0, %v3239
        %v3241 = vpop.f32.mrb[0].mxu0
        %3242 = vdwg.mxu0
        %3247 = vrot.lane.b32.xlu0 %v3012, 24
        %v3248 = vpop.permute.xlu0 %3247
        %3249 = vrot.lane.b32.xlu0 %v3088, 24
        %v3250 = vpop.permute.xlu0 %3249
        %3251 = vrot.lane.b32.xlu0 %v3164, 24
        %v3252 = vpop.permute.xlu0 %3251
        %3253 = vrot.lane.b32.xlu0 %v3240, 24
        %v3254 = vpop.permute.xlu0 %3253
        %v3259 = vadd.f32 %v610, %v3248
        %v3260 = vadd.f32 %v610, %v3250
        %v3261 = vadd.f32 %v610, %v3252
        %v3262 = vadd.f32 %v610, %v3254
        %v3263 = vsel %vm611, %v1255, %v1923
        %v3264 = vsel %vm611, %v1256, %v1924
        %v3265 = vsel %vm611, %v1257, %v1925
        %v3266 = vsel %vm611, %v1258, %v1926
        %v3267 = vsel %vm512, %v3263, %v2591
        %v3268 = vsel %vm512, %v3264, %v2592
        %v3269 = vsel %vm512, %v3265, %v2593
        %v3270 = vsel %vm512, %v3266, %v2594
        %vm3271 = vcmask 195584
        %v3272 = vsel %vm3271, %v3267, %v3259
        %v3273 = vsel %vm3271, %v3268, %v3260
        %v3274 = vsel %vm3271, %v3269, %v3261
        %v3275 = vsel %vm3271, %v3270, %v3262
        %v3276 = vld [vmem:[#allocation10] sm:$0xff]
        %v3277 = vld [vmem:[#allocation10 + $0x8] sm:$0xff]
        %v3278 = vld [vmem:[#allocation10 + $0x10] sm:$0xff]
        %v3279 = vld [vmem:[#allocation10 + $0x18] sm:$0xff]
        %v3280 = vld [vmem:[#allocation11] sm:$0x1]
        %v3282 = vlaneseq
        %v3283 = vshrl.u32 %v3282, 7
        %v3284 = vsub.s32 0, %v3283
        %v3285 = vrot.slane %v3280, %v3284
        %vm3287 = vcmask 261120
        %v3289 = vsel %vm3287, %v3272, 0
        %v3292 = vsel %vm3287, %v3273, 0
        %v3295 = vsel %vm3287, %v3274, 0
        %v3298 = vsel %vm3287, %v3275, 0
        %3300 = vmatprep.subr.mxu0 0.0
        %3301 = vmatpush1.msra.mxu0 %v3276
        %3302 = vmatprep.subr.mxu0 0.0
        %3303 = vmatpush1.msra.mxu0 %v3277
        %3304 = vmatprep.subr.mxu0 0.0
        %3305 = vmatpush1.msra.mxu0 %v3278
        %3306 = vmatprep.subr.mxu0 0.0
        %3307 = vmatpush1.msra.mxu0 %v3279
        %3308 = vmatprep.subr.mxu0 0.0
        %3309 = vmatpush1.msra.mxu0 0.0
        %3310 = vmatprep.subr.mxu0 0.0
        %3311 = vmatpush1.msra.mxu0 0.0
        %3312 = vmatprep.subr.mxu0 0.0
        %3313 = vmatpush1.msra.mxu0 0.0
        %3314 = vmatprep.subr.mxu0 0.0
        %3315 = vmatpush1.msra.mxu0 0.0
        %3316 = vmatprep.subr.mxu0 0.0
        %3317 = vmatpush1.msra.mxu0 0.0
        %3318 = vmatprep.subr.mxu0 0.0
        %3319 = vmatpush1.msra.mxu0 0.0
        %3320 = vmatprep.subr.mxu0 0.0
        %3321 = vmatpush1.msra.mxu0 0.0
        %3322 = vmatprep.subr.mxu0 0.0
        %3323 = vmatpush1.msra.mxu0 0.0
        %3324 = vmatprep.subr.mxu0 0.0
        %3325 = vmatpush1.msra.mxu0 0.0
        %3326 = vmatprep.subr.mxu0 0.0
        %3327 = vmatpush1.msra.mxu0 0.0
        %3328 = vmatprep.subr.mxu0 0.0
        %3329 = vmatpush1.msra.mxu0 0.0
        %3330 = vmatprep.subr.mxu0 0.0
        %3331 = vmatpush1.msra.mxu0 0.0
        %3332 = vmatprep.subr.mxu0 0.0
        %3333 = vmatpush1.msra.mxu0 0.0
        %3334 = vmatprep.subr.mxu0 0.0
        %3335 = vmatpush1.msra.mxu0 0.0
        %3336 = vmatprep.subr.mxu0 0.0
        %3337 = vmatpush1.msra.mxu0 0.0
        %3338 = vmatprep.subr.mxu0 0.0
        %3339 = vmatpush1.msra.mxu0 0.0
        %3340 = vmatprep.subr.mxu0 0.0
        %3341 = vmatpush1.msra.mxu0 0.0
        %3342 = vmatprep.subr.mxu0 0.0
        %3343 = vmatpush1.msra.mxu0 0.0
        %3344 = vmatprep.subr.mxu0 0.0
        %3345 = vmatpush1.msra.mxu0 0.0
        %3346 = vmatprep.subr.mxu0 0.0
        %3347 = vmatpush1.msra.mxu0 0.0
        %3348 = vmatprep.subr.mxu0 0.0
        %3349 = vmatpush1.msra.mxu0 0.0
        %3350 = vmatprep.subr.mxu0 0.0
        %3351 = vmatpush1.msra.mxu0 0.0
        %3352 = vmatprep.subr.mxu0 0.0
        %3353 = vmatpush1.msra.mxu0 0.0
        %3354 = vmatprep.subr.mxu0 0.0
        %3355 = vmatpush1.msra.mxu0 0.0
        %3356 = vmatprep.subr.mxu0 0.0
        %3357 = vmatpush1.msra.mxu0 0.0
        %3358 = vmatprep.subr.mxu0 0.0
        %3359 = vmatpush1.msra.mxu0 0.0
        %3360 = vmatprep.subr.mxu0 0.0
        %3361 = vmatpush1.msra.mxu0 0.0
        %3362 = vmatprep.subr.mxu0 0.0
        %3363 = vmatpush1.msra.mxu0 0.0
        %3364 = vmatprep.mubr.f32.mxu0 0.0
        %3365 = vmatmul.mubr.f32.gmra.mrb[0].mxu0 %v3289
        %v3366 = vpop.f32.mrb[0].mxu0
        %v3367 = vadd.f32 %v3285, %v3366
        %v3368 = vpop.f32.mrb[0].mxu0
        %3369 = vmatprep.mubr.f32.mxu0 0.0
        %3370 = vmatmul.mubr.f32.gmra.mrb[0].mxu0 %v3292
        %v3371 = vpop.f32.mrb[0].mxu0
        %v3372 = vadd.f32 %v3285, %v3371
        %v3373 = vpop.f32.mrb[0].mxu0
        %3374 = vmatprep.mubr.f32.mxu0 0.0
        %3375 = vmatmul.mubr.f32.gmra.mrb[0].mxu0 %v3295
        %v3376 = vpop.f32.mrb[0].mxu0
        %v3377 = vadd.f32 %v3285, %v3376
        %v3378 = vpop.f32.mrb[0].mxu0
        %3379 = vmatprep.mubr.f32.mxu0 0.0
        %3380 = vmatmul.mubr.f32.gmra.mrb[0].mxu0 %v3298
        %v3381 = vpop.f32.mrb[0].mxu0
        %v3382 = vadd.f32 %v3285, %v3381
        %v3383 = vpop.f32.mrb[0].mxu0
        %3384 = vdwg.mxu0
        %v3385 = vmax.f32 %v3367, 0.0
        %v3386 = vmax.f32 %v3372, 0.0
        %v3387 = vmax.f32 %v3377, 0.0
        %v3388 = vmax.f32 %v3382, 0.0
        %v3389 = vadd.f32 %v3272, %v3385
        %v3390 = vadd.f32 %v3273, %v3386
        %v3391 = vadd.f32 %v3274, %v3387
        %v3392 = vadd.f32 %v3275, %v3388
        %v3393 = vld [vmem:[#allocation13] sm:$0xff]
        %v3394 = vld [vmem:[#allocation13 + $0x8] sm:$0xff]
        %v3395 = vld [vmem:[#allocation13 + $0x10] sm:$0xff]
        %v3396 = vld [vmem:[#allocation13 + $0x18] sm:$0xff]
        %v3397 = vld [vmem:[#allocation14] sm:$0x1]
        %v3399 = vlaneseq
        %v3400 = vshrl.u32 %v3399, 7
        %v3401 = vsub.s32 0, %v3400
        %v3402 = vrot.slane %v3397, %v3401
        %v3405 = vsel %vm3287, %v3389, 0
        %v3408 = vsel %vm3287, %v3390, 0
        %v3411 = vsel %vm3287, %v3391, 0
        %v3414 = vsel %vm3287, %v3392, 0
        %3416 = vmatprep.subr.mxu0 0.0
        %3417 = vmatpush1.msra.mxu0 %v3393
        %3418 = vmatprep.subr.mxu0 0.0
        %3419 = vmatpush1.msra.mxu0 %v3394
        %3420 = vmatprep.subr.mxu0 0.0
        %3421 = vmatpush1.msra.mxu0 %v3395
        %3422 = vmatprep.subr.mxu0 0.0
        %3423 = vmatpush1.msra.mxu0 %v3396
        %3424 = vmatprep.subr.mxu0 0.0
        %3425 = vmatpush1.msra.mxu0 0.0
        %3426 = vmatprep.subr.mxu0 0.0
        %3427 = vmatpush1.msra.mxu0 0.0
        %3428 = vmatprep.subr.mxu0 0.0
        %3429 = vmatpush1.msra.mxu0 0.0
        %3430 = vmatprep.subr.mxu0 0.0
        %3431 = vmatpush1.msra.mxu0 0.0
        %3432 = vmatprep.subr.mxu0 0.0
        %3433 = vmatpush1.msra.mxu0 0.0
        %3434 = vmatprep.subr.mxu0 0.0
        %3435 = vmatpush1.msra.mxu0 0.0
        %3436 = vmatprep.subr.mxu0 0.0
        %3437 = vmatpush1.msra.mxu0 0.0
        %3438 = vmatprep.subr.mxu0 0.0
        %3439 = vmatpush1.msra.mxu0 0.0
        %3440 = vmatprep.subr.mxu0 0.0
        %3441 = vmatpush1.msra.mxu0 0.0
        %3442 = vmatprep.subr.mxu0 0.0
        %3443 = vmatpush1.msra.mxu0 0.0
        %3444 = vmatprep.subr.mxu0 0.0
        %3445 = vmatpush1.msra.mxu0 0.0
        %3446 = vmatprep.subr.mxu0 0.0
        %3447 = vmatpush1.msra.mxu0 0.0
        %3448 = vmatprep.subr.mxu0 0.0
        %3449 = vmatpush1.msra.mxu0 0.0
        %3450 = vmatprep.subr.mxu0 0.0
        %3451 = vmatpush1.msra.mxu0 0.0
        %3452 = vmatprep.subr.mxu0 0.0
        %3453 = vmatpush1.msra.mxu0 0.0
        %3454 = vmatprep.subr.mxu0 0.0
        %3455 = vmatpush1.msra.mxu0 0.0
        %3456 = vmatprep.subr.mxu0 0.0
        %3457 = vmatpush1.msra.mxu0 0.0
        %3458 = vmatprep.subr.mxu0 0.0
        %3459 = vmatpush1.msra.mxu0 0.0
        %3460 = vmatprep.subr.mxu0 0.0
        %3461 = vmatpush1.msra.mxu0 0.0
        %3462 = vmatprep.subr.mxu0 0.0
        %3463 = vmatpush1.msra.mxu0 0.0
        %3464 = vmatprep.subr.mxu0 0.0
        %3465 = vmatpush1.msra.mxu0 0.0
        %3466 = vmatprep.subr.mxu0 0.0
        %3467 = vmatpush1.msra.mxu0 0.0
        %3468 = vmatprep.subr.mxu0 0.0
        %3469 = vmatpush1.msra.mxu0 0.0
        %3470 = vmatprep.subr.mxu0 0.0
        %3471 = vmatpush1.msra.mxu0 0.0
        %3472 = vmatprep.subr.mxu0 0.0
        %3473 = vmatpush1.msra.mxu0 0.0
        %3474 = vmatprep.subr.mxu0 0.0
        %3475 = vmatpush1.msra.mxu0 0.0
        %3476 = vmatprep.subr.mxu0 0.0
        %3477 = vmatpush1.msra.mxu0 0.0
        %3478 = vmatprep.subr.mxu0 0.0
        %3479 = vmatpush1.msra.mxu0 0.0
        %3480 = vmatprep.mubr.f32.mxu0 0.0
        %3481 = vmatmul.mubr.f32.gmra.mrb[0].mxu0 %v3405
        %v3482 = vpop.f32.mrb[0].mxu0
        %v3483 = vadd.f32 %v3402, %v3482
        %v3484 = vpop.f32.mrb[0].mxu0
        %3485 = vmatprep.mubr.f32.mxu0 0.0
        %3486 = vmatmul.mubr.f32.gmra.mrb[0].mxu0 %v3408
        %v3487 = vpop.f32.mrb[0].mxu0
        %v3488 = vadd.f32 %v3402, %v3487
        %v3489 = vpop.f32.mrb[0].mxu0
        %3490 = vmatprep.mubr.f32.mxu0 0.0
        %3491 = vmatmul.mubr.f32.gmra.mrb[0].mxu0 %v3411
        %v3492 = vpop.f32.mrb[0].mxu0
        %v3493 = vadd.f32 %v3402, %v3492
        %v3494 = vpop.f32.mrb[0].mxu0
        %3495 = vmatprep.mubr.f32.mxu0 0.0
        %3496 = vmatmul.mubr.f32.gmra.mrb[0].mxu0 %v3414
        %v3497 = vpop.f32.mrb[0].mxu0
        %v3498 = vadd.f32 %v3402, %v3497
        %v3499 = vpop.f32.mrb[0].mxu0
        %3500 = vdwg.mxu0
        %3501 = vrot.lane.b32.xlu0 %v592, 64
        %v3502 = vpop.permute.xlu0 %3501
        %v3503 = vsel %vm611, %v3502, 0
        %v3506 = vsel %vm611, %v3483, 0
        %3508 = vmatprep.subr.mxu0 0.0
        %3509 = vmatpush1.xpose.msra.mxu0 %v3506
        %3510 = vmatprep.subr.mxu0 0.0
        %3511 = vmatpush1.xpose.msra.mxu0 0.0
        %3512 = vmatprep.subr.mxu0 0.0
        %3513 = vmatpush1.xpose.msra.mxu0 0.0
        %3514 = vmatprep.subr.mxu0 0.0
        %3515 = vmatpush1.xpose.msra.mxu0 0.0
        %3516 = vmatprep.subr.mxu0 0.0
        %3517 = vmatpush1.xpose.msra.mxu0 0.0
        %3518 = vmatprep.subr.mxu0 0.0
        %3519 = vmatpush1.xpose.msra.mxu0 0.0
        %3520 = vmatprep.subr.mxu0 0.0
        %3521 = vmatpush1.xpose.msra.mxu0 0.0
        %3522 = vmatprep.subr.mxu0 0.0
        %3523 = vmatpush1.xpose.msra.mxu0 0.0
        %3524 = vmatprep.subr.mxu0 0.0
        %3525 = vmatpush1.xpose.msra.mxu0 0.0
        %3526 = vmatprep.subr.mxu0 0.0
        %3527 = vmatpush1.xpose.msra.mxu0 0.0
        %3528 = vmatprep.subr.mxu0 0.0
        %3529 = vmatpush1.xpose.msra.mxu0 0.0
        %3530 = vmatprep.subr.mxu0 0.0
        %3531 = vmatpush1.xpose.msra.mxu0 0.0
        %3532 = vmatprep.subr.mxu0 0.0
        %3533 = vmatpush1.xpose.msra.mxu0 0.0
        %3534 = vmatprep.subr.mxu0 0.0
        %3535 = vmatpush1.xpose.msra.mxu0 0.0
        %3536 = vmatprep.subr.mxu0 0.0
        %3537 = vmatpush1.xpose.msra.mxu0 0.0
        %3538 = vmatprep.subr.mxu0 0.0
        %3539 = vmatpush1.xpose.msra.mxu0 0.0
        %3540 = vmatprep.subr.mxu0 0.0
        %3541 = vmatpush1.xpose.msra.mxu0 0.0
        %3542 = vmatprep.subr.mxu0 0.0
        %3543 = vmatpush1.xpose.msra.mxu0 0.0
        %3544 = vmatprep.subr.mxu0 0.0
        %3545 = vmatpush1.xpose.msra.mxu0 0.0
        %3546 = vmatprep.subr.mxu0 0.0
        %3547 = vmatpush1.xpose.msra.mxu0 0.0
        %3548 = vmatprep.subr.mxu0 0.0
        %3549 = vmatpush1.xpose.msra.mxu0 0.0
        %3550 = vmatprep.subr.mxu0 0.0
        %3551 = vmatpush1.xpose.msra.mxu0 0.0
        %3552 = vmatprep.subr.mxu0 0.0
        %3553 = vmatpush1.xpose.msra.mxu0 0.0
        %3554 = vmatprep.subr.mxu0 0.0
        %3555 = vmatpush1.xpose.msra.mxu0 0.0
        %3556 = vmatprep.subr.mxu0 0.0
        %3557 = vmatpush1.xpose.msra.mxu0 0.0
        %3558 = vmatprep.subr.mxu0 0.0
        %3559 = vmatpush1.xpose.msra.mxu0 0.0
        %3560 = vmatprep.subr.mxu0 0.0
        %3561 = vmatpush1.xpose.msra.mxu0 0.0
        %3562 = vmatprep.subr.mxu0 0.0
        %3563 = vmatpush1.xpose.msra.mxu0 0.0
        %3564 = vmatprep.subr.mxu0 0.0
        %3565 = vmatpush1.xpose.msra.mxu0 0.0
        %3566 = vmatprep.subr.mxu0 0.0
        %3567 = vmatpush1.xpose.msra.mxu0 0.0
        %3568 = vmatprep.subr.mxu0 0.0
        %3569 = vmatpush1.xpose.msra.mxu0 0.0
        %3570 = vmatprep.subr.mxu0 0.0
        %3571 = vmatpush1.xpose.msra.mxu0 0.0
        %3572 = vmatprep.mubr.f32.mxu0 0.0
        %3573 = vmatmul.mubr.f32.gmra.mrb[0].mxu0 %v3503
        %v3574 = vpop.f32.mrb[0].mxu0
        %v3575 = vadd.f32 0.0, %v3574
        %v3576 = vpop.f32.mrb[0].mxu0
        %3577 = vdwg.mxu0
        %3578 = vrot.lane.b32.xlu0 %v597, 64
        %v3579 = vpop.permute.xlu0 %3578
        %v3580 = vsel %vm611, %v3579, 0
        %v3583 = vsel %vm611, %v3488, 0
        %3585 = vmatprep.subr.mxu0 0.0
        %3586 = vmatpush1.xpose.msra.mxu0 %v3583
        %3587 = vmatprep.subr.mxu0 0.0
        %3588 = vmatpush1.xpose.msra.mxu0 0.0
        %3589 = vmatprep.subr.mxu0 0.0
        %3590 = vmatpush1.xpose.msra.mxu0 0.0
        %3591 = vmatprep.subr.mxu0 0.0
        %3592 = vmatpush1.xpose.msra.mxu0 0.0
        %3593 = vmatprep.subr.mxu0 0.0
        %3594 = vmatpush1.xpose.msra.mxu0 0.0
        %3595 = vmatprep.subr.mxu0 0.0
        %3596 = vmatpush1.xpose.msra.mxu0 0.0
        %3597 = vmatprep.subr.mxu0 0.0
        %3598 = vmatpush1.xpose.msra.mxu0 0.0
        %3599 = vmatprep.subr.mxu0 0.0
        %3600 = vmatpush1.xpose.msra.mxu0 0.0
        %3601 = vmatprep.subr.mxu0 0.0
        %3602 = vmatpush1.xpose.msra.mxu0 0.0
        %3603 = vmatprep.subr.mxu0 0.0
        %3604 = vmatpush1.xpose.msra.mxu0 0.0
        %3605 = vmatprep.subr.mxu0 0.0
        %3606 = vmatpush1.xpose.msra.mxu0 0.0
        %3607 = vmatprep.subr.mxu0 0.0
        %3608 = vmatpush1.xpose.msra.mxu0 0.0
        %3609 = vmatprep.subr.mxu0 0.0
        %3610 = vmatpush1.xpose.msra.mxu0 0.0
        %3611 = vmatprep.subr.mxu0 0.0
        %3612 = vmatpush1.xpose.msra.mxu0 0.0
        %3613 = vmatprep.subr.mxu0 0.0
        %3614 = vmatpush1.xpose.msra.mxu0 0.0
        %3615 = vmatprep.subr.mxu0 0.0
        %3616 = vmatpush1.xpose.msra.mxu0 0.0
        %3617 = vmatprep.subr.mxu0 0.0
        %3618 = vmatpush1.xpose.msra.mxu0 0.0
        %3619 = vmatprep.subr.mxu0 0.0
        %3620 = vmatpush1.xpose.msra.mxu0 0.0
        %3621 = vmatprep.subr.mxu0 0.0
        %3622 = vmatpush1.xpose.msra.mxu0 0.0
        %3623 = vmatprep.subr.mxu0 0.0
        %3624 = vmatpush1.xpose.msra.mxu0 0.0
        %3625 = vmatprep.subr.mxu0 0.0
        %3626 = vmatpush1.xpose.msra.mxu0 0.0
        %3627 = vmatprep.subr.mxu0 0.0
        %3628 = vmatpush1.xpose.msra.mxu0 0.0
        %3629 = vmatprep.subr.mxu0 0.0
        %3630 = vmatpush1.xpose.msra.mxu0 0.0
        %3631 = vmatprep.subr.mxu0 0.0
        %3632 = vmatpush1.xpose.msra.mxu0 0.0
        %3633 = vmatprep.subr.mxu0 0.0
        %3634 = vmatpush1.xpose.msra.mxu0 0.0
        %3635 = vmatprep.subr.mxu0 0.0
        %3636 = vmatpush1.xpose.msra.mxu0 0.0
        %3637 = vmatprep.subr.mxu0 0.0
        %3638 = vmatpush1.xpose.msra.mxu0 0.0
        %3639 = vmatprep.subr.mxu0 0.0
        %3640 = vmatpush1.xpose.msra.mxu0 0.0
        %3641 = vmatprep.subr.mxu0 0.0
        %3642 = vmatpush1.xpose.msra.mxu0 0.0
        %3643 = vmatprep.subr.mxu0 0.0
        %3644 = vmatpush1.xpose.msra.mxu0 0.0
        %3645 = vmatprep.subr.mxu0 0.0
        %3646 = vmatpush1.xpose.msra.mxu0 0.0
        %3647 = vmatprep.subr.mxu0 0.0
        %3648 = vmatpush1.xpose.msra.mxu0 0.0
        %3649 = vmatprep.mubr.f32.mxu0 0.0
        %3650 = vmatmul.mubr.f32.gmra.mrb[0].mxu0 %v3580
        %v3651 = vpop.f32.mrb[0].mxu0
        %v3652 = vadd.f32 0.0, %v3651
        %v3653 = vpop.f32.mrb[0].mxu0
        %3654 = vdwg.mxu0
        %3655 = vrot.lane.b32.xlu0 %v602, 64
        %v3656 = vpop.permute.xlu0 %3655
        %v3657 = vsel %vm611, %v3656, 0
        %v3660 = vsel %vm611, %v3493, 0
        %3662 = vmatprep.subr.mxu0 0.0
        %3663 = vmatpush1.xpose.msra.mxu0 %v3660
        %3664 = vmatprep.subr.mxu0 0.0
        %3665 = vmatpush1.xpose.msra.mxu0 0.0
        %3666 = vmatprep.subr.mxu0 0.0
        %3667 = vmatpush1.xpose.msra.mxu0 0.0
        %3668 = vmatprep.subr.mxu0 0.0
        %3669 = vmatpush1.xpose.msra.mxu0 0.0
        %3670 = vmatprep.subr.mxu0 0.0
        %3671 = vmatpush1.xpose.msra.mxu0 0.0
        %3672 = vmatprep.subr.mxu0 0.0
        %3673 = vmatpush1.xpose.msra.mxu0 0.0
        %3674 = vmatprep.subr.mxu0 0.0
        %3675 = vmatpush1.xpose.msra.mxu0 0.0
        %3676 = vmatprep.subr.mxu0 0.0
        %3677 = vmatpush1.xpose.msra.mxu0 0.0
        %3678 = vmatprep.subr.mxu0 0.0
        %3679 = vmatpush1.xpose.msra.mxu0 0.0
        %3680 = vmatprep.subr.mxu0 0.0
        %3681 = vmatpush1.xpose.msra.mxu0 0.0
        %3682 = vmatprep.subr.mxu0 0.0
        %3683 = vmatpush1.xpose.msra.mxu0 0.0
        %3684 = vmatprep.subr.mxu0 0.0
        %3685 = vmatpush1.xpose.msra.mxu0 0.0
        %3686 = vmatprep.subr.mxu0 0.0
        %3687 = vmatpush1.xpose.msra.mxu0 0.0
        %3688 = vmatprep.subr.mxu0 0.0
        %3689 = vmatpush1.xpose.msra.mxu0 0.0
        %3690 = vmatprep.subr.mxu0 0.0
        %3691 = vmatpush1.xpose.msra.mxu0 0.0
        %3692 = vmatprep.subr.mxu0 0.0
        %3693 = vmatpush1.xpose.msra.mxu0 0.0
        %3694 = vmatprep.subr.mxu0 0.0
        %3695 = vmatpush1.xpose.msra.mxu0 0.0
        %3696 = vmatprep.subr.mxu0 0.0
        %3697 = vmatpush1.xpose.msra.mxu0 0.0
        %3698 = vmatprep.subr.mxu0 0.0
        %3699 = vmatpush1.xpose.msra.mxu0 0.0
        %3700 = vmatprep.subr.mxu0 0.0
        %3701 = vmatpush1.xpose.msra.mxu0 0.0
        %3702 = vmatprep.subr.mxu0 0.0
        %3703 = vmatpush1.xpose.msra.mxu0 0.0
        %3704 = vmatprep.subr.mxu0 0.0
        %3705 = vmatpush1.xpose.msra.mxu0 0.0
        %3706 = vmatprep.subr.mxu0 0.0
        %3707 = vmatpush1.xpose.msra.mxu0 0.0
        %3708 = vmatprep.subr.mxu0 0.0
        %3709 = vmatpush1.xpose.msra.mxu0 0.0
        %3710 = vmatprep.subr.mxu0 0.0
        %3711 = vmatpush1.xpose.msra.mxu0 0.0
        %3712 = vmatprep.subr.mxu0 0.0
        %3713 = vmatpush1.xpose.msra.mxu0 0.0
        %3714 = vmatprep.subr.mxu0 0.0
        %3715 = vmatpush1.xpose.msra.mxu0 0.0
        %3716 = vmatprep.subr.mxu0 0.0
        %3717 = vmatpush1.xpose.msra.mxu0 0.0
        %3718 = vmatprep.subr.mxu0 0.0
        %3719 = vmatpush1.xpose.msra.mxu0 0.0
        %3720 = vmatprep.subr.mxu0 0.0
        %3721 = vmatpush1.xpose.msra.mxu0 0.0
        %3722 = vmatprep.subr.mxu0 0.0
        %3723 = vmatpush1.xpose.msra.mxu0 0.0
        %3724 = vmatprep.subr.mxu0 0.0
        %3725 = vmatpush1.xpose.msra.mxu0 0.0
        %3726 = vmatprep.mubr.f32.mxu0 0.0
        %3727 = vmatmul.mubr.f32.gmra.mrb[0].mxu0 %v3657
        %v3728 = vpop.f32.mrb[0].mxu0
        %v3729 = vadd.f32 0.0, %v3728
        %v3730 = vpop.f32.mrb[0].mxu0
        %3731 = vdwg.mxu0
        %3732 = vrot.lane.b32.xlu0 %v607, 64
        %v3733 = vpop.permute.xlu0 %3732
        %v3734 = vsel %vm611, %v3733, 0
        %v3737 = vsel %vm611, %v3498, 0
        %3739 = vmatprep.subr.mxu0 0.0
        %3740 = vmatpush1.xpose.msra.mxu0 %v3737
        %3741 = vmatprep.subr.mxu0 0.0
        %3742 = vmatpush1.xpose.msra.mxu0 0.0
        %3743 = vmatprep.subr.mxu0 0.0
        %3744 = vmatpush1.xpose.msra.mxu0 0.0
        %3745 = vmatprep.subr.mxu0 0.0
        %3746 = vmatpush1.xpose.msra.mxu0 0.0
        %3747 = vmatprep.subr.mxu0 0.0
        %3748 = vmatpush1.xpose.msra.mxu0 0.0
        %3749 = vmatprep.subr.mxu0 0.0
        %3750 = vmatpush1.xpose.msra.mxu0 0.0
        %3751 = vmatprep.subr.mxu0 0.0
        %3752 = vmatpush1.xpose.msra.mxu0 0.0
        %3753 = vmatprep.subr.mxu0 0.0
        %3754 = vmatpush1.xpose.msra.mxu0 0.0
        %3755 = vmatprep.subr.mxu0 0.0
        %3756 = vmatpush1.xpose.msra.mxu0 0.0
        %3757 = vmatprep.subr.mxu0 0.0
        %3758 = vmatpush1.xpose.msra.mxu0 0.0
        %3759 = vmatprep.subr.mxu0 0.0
        %3760 = vmatpush1.xpose.msra.mxu0 0.0
        %3761 = vmatprep.subr.mxu0 0.0
        %3762 = vmatpush1.xpose.msra.mxu0 0.0
        %3763 = vmatprep.subr.mxu0 0.0
        %3764 = vmatpush1.xpose.msra.mxu0 0.0
        %3765 = vmatprep.subr.mxu0 0.0
        %3766 = vmatpush1.xpose.msra.mxu0 0.0
        %3767 = vmatprep.subr.mxu0 0.0
        %3768 = vmatpush1.xpose.msra.mxu0 0.0
        %3769 = vmatprep.subr.mxu0 0.0
        %3770 = vmatpush1.xpose.msra.mxu0 0.0
        %3771 = vmatprep.subr.mxu0 0.0
        %3772 = vmatpush1.xpose.msra.mxu0 0.0
        %3773 = vmatprep.subr.mxu0 0.0
        %3774 = vmatpush1.xpose.msra.mxu0 0.0
        %3775 = vmatprep.subr.mxu0 0.0
        %3776 = vmatpush1.xpose.msra.mxu0 0.0
        %3777 = vmatprep.subr.mxu0 0.0
        %3778 = vmatpush1.xpose.msra.mxu0 0.0
        %3779 = vmatprep.subr.mxu0 0.0
        %3780 = vmatpush1.xpose.msra.mxu0 0.0
        %3781 = vmatprep.subr.mxu0 0.0
        %3782 = vmatpush1.xpose.msra.mxu0 0.0
        %3783 = vmatprep.subr.mxu0 0.0
        %3784 = vmatpush1.xpose.msra.mxu0 0.0
        %3785 = vmatprep.subr.mxu0 0.0
        %3786 = vmatpush1.xpose.msra.mxu0 0.0
        %3787 = vmatprep.subr.mxu0 0.0
        %3788 = vmatpush1.xpose.msra.mxu0 0.0
        %3789 = vmatprep.subr.mxu0 0.0
        %3790 = vmatpush1.xpose.msra.mxu0 0.0
        %3791 = vmatprep.subr.mxu0 0.0
        %3792 = vmatpush1.xpose.msra.mxu0 0.0
        %3793 = vmatprep.subr.mxu0 0.0
        %3794 = vmatpush1.xpose.msra.mxu0 0.0
        %3795 = vmatprep.subr.mxu0 0.0
        %3796 = vmatpush1.xpose.msra.mxu0 0.0
        %3797 = vmatprep.subr.mxu0 0.0
        %3798 = vmatpush1.xpose.msra.mxu0 0.0
        %3799 = vmatprep.subr.mxu0 0.0
        %3800 = vmatpush1.xpose.msra.mxu0 0.0
        %3801 = vmatprep.subr.mxu0 0.0
        %3802 = vmatpush1.xpose.msra.mxu0 0.0
        %3803 = vmatprep.mubr.f32.mxu0 0.0
        %3804 = vmatmul.mubr.f32.gmra.mrb[0].mxu0 %v3734
        %v3805 = vpop.f32.mrb[0].mxu0
        %v3806 = vadd.f32 0.0, %v3805
        %v3807 = vpop.f32.mrb[0].mxu0
        %3808 = vdwg.mxu0
        %v3809 = vsel %vm611, %v3575, -inf
        %3810 = vmax.xlane.f32.xlu0 %v3809
        %v3811 = vpop.xlane.xlu0 %3810
        %v3812 = vsel %vm611, %v3652, -inf
        %3813 = vmax.xlane.f32.xlu0 %v3812
        %v3814 = vpop.xlane.xlu0 %3813
        %v3815 = vsel %vm611, %v3729, -inf
        %3816 = vmax.xlane.f32.xlu0 %v3815
        %v3817 = vpop.xlane.xlu0 %3816
        %v3818 = vsel %vm611, %v3806, -inf
        %3819 = vmax.xlane.f32.xlu0 %v3818
        %v3820 = vpop.xlane.xlu0 %3819
        %v3821 = vsub.f32 %v3575, %v3811
        %v3822 = vsub.f32 %v3652, %v3814
        %v3823 = vsub.f32 %v3729, %v3817
        %v3824 = vsub.f32 %v3806, %v3820
        %v3825 = vmul.f32 %v3821, 1.442695
        %v3826 = vpow.pop %v3825
        %v3827 = vmul.f32 %v3822, 1.442695
        %v3828 = vpow.pop %v3827
        %v3829 = vmul.f32 %v3823, 1.442695
        %v3830 = vpow.pop %v3829
        %v3831 = vmul.f32 %v3824, 1.442695
        %v3832 = vpow.pop %v3831
        %v3833 = vsel %vm611, %v3826, 0.0
        %3834 = vadd.xlane.f32.xlu0 %v3833
        %v3835 = vpop.xlane.xlu0 %3834
        %v3836 = vsel %vm611, %v3828, 0.0
        %3837 = vadd.xlane.f32.xlu0 %v3836
        %v3838 = vpop.xlane.xlu0 %3837
        %v3839 = vsel %vm611, %v3830, 0.0
        %3840 = vadd.xlane.f32.xlu0 %v3839
        %v3841 = vpop.xlane.xlu0 %3840
        %v3842 = vsel %vm611, %v3832, 0.0
        %3843 = vadd.xlane.f32.xlu0 %v3842
        %v3844 = vpop.xlane.xlu0 %3843
        %v3845 = vrcp.pop %v3835
        %v3846 = vrcp.pop %v3838
        %v3847 = vrcp.pop %v3841
        %v3848 = vrcp.pop %v3844
        %v3849 = vmul.f32 %v3826, %v3845
        %v3850 = vmul.f32 %v3828, %v3846
        %v3851 = vmul.f32 %v3830, %v3847
        %v3852 = vmul.f32 %v3832, %v3848
        %3853 = vrot.lane.b32.xlu0 %v3483, 96
        %v3854 = vpop.permute.xlu0 %3853
        %v3857 = vsel %vm611, %v3849, 0
        %3859 = vmatprep.subr.mxu0 0.0
        %3860 = vmatpush1.msra.mxu0 %v3854
        %3861 = vmatprep.subr.mxu0 0.0
        %3862 = vmatpush1.msra.mxu0 0.0
        %3863 = vmatprep.subr.mxu0 0.0
        %3864 = vmatpush1.msra.mxu0 0.0
        %3865 = vmatprep.subr.mxu0 0.0
        %3866 = vmatpush1.msra.mxu0 0.0
        %3867 = vmatprep.subr.mxu0 0.0
        %3868 = vmatpush1.msra.mxu0 0.0
        %3869 = vmatprep.subr.mxu0 0.0
        %3870 = vmatpush1.msra.mxu0 0.0
        %3871 = vmatprep.subr.mxu0 0.0
        %3872 = vmatpush1.msra.mxu0 0.0
        %3873 = vmatprep.subr.mxu0 0.0
        %3874 = vmatpush1.msra.mxu0 0.0
        %3875 = vmatprep.subr.mxu0 0.0
        %3876 = vmatpush1.msra.mxu0 0.0
        %3877 = vmatprep.subr.mxu0 0.0
        %3878 = vmatpush1.msra.mxu0 0.0
        %3879 = vmatprep.subr.mxu0 0.0
        %3880 = vmatpush1.msra.mxu0 0.0
        %3881 = vmatprep.subr.mxu0 0.0
        %3882 = vmatpush1.msra.mxu0 0.0
        %3883 = vmatprep.subr.mxu0 0.0
        %3884 = vmatpush1.msra.mxu0 0.0
        %3885 = vmatprep.subr.mxu0 0.0
        %3886 = vmatpush1.msra.mxu0 0.0
        %3887 = vmatprep.subr.mxu0 0.0
        %3888 = vmatpush1.msra.mxu0 0.0
        %3889 = vmatprep.subr.mxu0 0.0
        %3890 = vmatpush1.msra.mxu0 0.0
        %3891 = vmatprep.subr.mxu0 0.0
        %3892 = vmatpush1.msra.mxu0 0.0
        %3893 = vmatprep.subr.mxu0 0.0
        %3894 = vmatpush1.msra.mxu0 0.0
        %3895 = vmatprep.subr.mxu0 0.0
        %3896 = vmatpush1.msra.mxu0 0.0
        %3897 = vmatprep.subr.mxu0 0.0
        %3898 = vmatpush1.msra.mxu0 0.0
        %3899 = vmatprep.subr.mxu0 0.0
        %3900 = vmatpush1.msra.mxu0 0.0
        %3901 = vmatprep.subr.mxu0 0.0
        %3902 = vmatpush1.msra.mxu0 0.0
        %3903 = vmatprep.subr.mxu0 0.0
        %3904 = vmatpush1.msra.mxu0 0.0
        %3905 = vmatprep.subr.mxu0 0.0
        %3906 = vmatpush1.msra.mxu0 0.0
        %3907 = vmatprep.subr.mxu0 0.0
        %3908 = vmatpush1.msra.mxu0 0.0
        %3909 = vmatprep.subr.mxu0 0.0
        %3910 = vmatpush1.msra.mxu0 0.0
        %3911 = vmatprep.subr.mxu0 0.0
        %3912 = vmatpush1.msra.mxu0 0.0
        %3913 = vmatprep.subr.mxu0 0.0
        %3914 = vmatpush1.msra.mxu0 0.0
        %3915 = vmatprep.subr.mxu0 0.0
        %3916 = vmatpush1.msra.mxu0 0.0
        %3917 = vmatprep.subr.mxu0 0.0
        %3918 = vmatpush1.msra.mxu0 0.0
        %3919 = vmatprep.subr.mxu0 0.0
        %3920 = vmatpush1.msra.mxu0 0.0
        %3921 = vmatprep.subr.mxu0 0.0
        %3922 = vmatpush1.msra.mxu0 0.0
        %3923 = vmatprep.mubr.f32.mxu0 0.0
        %3924 = vmatmul.mubr.f32.gmra.mrb[0].mxu0 %v3857
        %v3925 = vpop.f32.mrb[0].mxu0
        %v3926 = vadd.f32 0.0, %v3925
        %v3927 = vpop.f32.mrb[0].mxu0
        %3928 = vdwg.mxu0
        %3929 = vrot.lane.b32.xlu0 %v3488, 96
        %v3930 = vpop.permute.xlu0 %3929
        %v3933 = vsel %vm611, %v3850, 0
        %3935 = vmatprep.subr.mxu0 0.0
        %3936 = vmatpush1.msra.mxu0 %v3930
        %3937 = vmatprep.subr.mxu0 0.0
        %3938 = vmatpush1.msra.mxu0 0.0
        %3939 = vmatprep.subr.mxu0 0.0
        %3940 = vmatpush1.msra.mxu0 0.0
        %3941 = vmatprep.subr.mxu0 0.0
        %3942 = vmatpush1.msra.mxu0 0.0
        %3943 = vmatprep.subr.mxu0 0.0
        %3944 = vmatpush1.msra.mxu0 0.0
        %3945 = vmatprep.subr.mxu0 0.0
        %3946 = vmatpush1.msra.mxu0 0.0
        %3947 = vmatprep.subr.mxu0 0.0
        %3948 = vmatpush1.msra.mxu0 0.0
        %3949 = vmatprep.subr.mxu0 0.0
        %3950 = vmatpush1.msra.mxu0 0.0
        %3951 = vmatprep.subr.mxu0 0.0
        %3952 = vmatpush1.msra.mxu0 0.0
        %3953 = vmatprep.subr.mxu0 0.0
        %3954 = vmatpush1.msra.mxu0 0.0
        %3955 = vmatprep.subr.mxu0 0.0
        %3956 = vmatpush1.msra.mxu0 0.0
        %3957 = vmatprep.subr.mxu0 0.0
        %3958 = vmatpush1.msra.mxu0 0.0
        %3959 = vmatprep.subr.mxu0 0.0
        %3960 = vmatpush1.msra.mxu0 0.0
        %3961 = vmatprep.subr.mxu0 0.0
        %3962 = vmatpush1.msra.mxu0 0.0
        %3963 = vmatprep.subr.mxu0 0.0
        %3964 = vmatpush1.msra.mxu0 0.0
        %3965 = vmatprep.subr.mxu0 0.0
        %3966 = vmatpush1.msra.mxu0 0.0
        %3967 = vmatprep.subr.mxu0 0.0
        %3968 = vmatpush1.msra.mxu0 0.0
        %3969 = vmatprep.subr.mxu0 0.0
        %3970 = vmatpush1.msra.mxu0 0.0
        %3971 = vmatprep.subr.mxu0 0.0
        %3972 = vmatpush1.msra.mxu0 0.0
        %3973 = vmatprep.subr.mxu0 0.0
        %3974 = vmatpush1.msra.mxu0 0.0
        %3975 = vmatprep.subr.mxu0 0.0
        %3976 = vmatpush1.msra.mxu0 0.0
        %3977 = vmatprep.subr.mxu0 0.0
        %3978 = vmatpush1.msra.mxu0 0.0
        %3979 = vmatprep.subr.mxu0 0.0
        %3980 = vmatpush1.msra.mxu0 0.0
        %3981 = vmatprep.subr.mxu0 0.0
        %3982 = vmatpush1.msra.mxu0 0.0
        %3983 = vmatprep.subr.mxu0 0.0
        %3984 = vmatpush1.msra.mxu0 0.0
        %3985 = vmatprep.subr.mxu0 0.0
        %3986 = vmatpush1.msra.mxu0 0.0
        %3987 = vmatprep.subr.mxu0 0.0
        %3988 = vmatpush1.msra.mxu0 0.0
        %3989 = vmatprep.subr.mxu0 0.0
        %3990 = vmatpush1.msra.mxu0 0.0
        %3991 = vmatprep.subr.mxu0 0.0
        %3992 = vmatpush1.msra.mxu0 0.0
        %3993 = vmatprep.subr.mxu0 0.0
        %3994 = vmatpush1.msra.mxu0 0.0
        %3995 = vmatprep.subr.mxu0 0.0
        %3996 = vmatpush1.msra.mxu0 0.0
        %3997 = vmatprep.subr.mxu0 0.0
        %3998 = vmatpush1.msra.mxu0 0.0
        %3999 = vmatprep.mubr.f32.mxu0 0.0
        %4000 = vmatmul.mubr.f32.gmra.mrb[0].mxu0 %v3933
        %v4001 = vpop.f32.mrb[0].mxu0
        %v4002 = vadd.f32 0.0, %v4001
        %v4003 = vpop.f32.mrb[0].mxu0
        %4004 = vdwg.mxu0
        %4005 = vrot.lane.b32.xlu0 %v3493, 96
        %v4006 = vpop.permute.xlu0 %4005
        %v4009 = vsel %vm611, %v3851, 0
        %4011 = vmatprep.subr.mxu0 0.0
        %4012 = vmatpush1.msra.mxu0 %v4006
        %4013 = vmatprep.subr.mxu0 0.0
        %4014 = vmatpush1.msra.mxu0 0.0
        %4015 = vmatprep.subr.mxu0 0.0
        %4016 = vmatpush1.msra.mxu0 0.0
        %4017 = vmatprep.subr.mxu0 0.0
        %4018 = vmatpush1.msra.mxu0 0.0
        %4019 = vmatprep.subr.mxu0 0.0
        %4020 = vmatpush1.msra.mxu0 0.0
        %4021 = vmatprep.subr.mxu0 0.0
        %4022 = vmatpush1.msra.mxu0 0.0
        %4023 = vmatprep.subr.mxu0 0.0
        %4024 = vmatpush1.msra.mxu0 0.0
        %4025 = vmatprep.subr.mxu0 0.0
        %4026 = vmatpush1.msra.mxu0 0.0
        %4027 = vmatprep.subr.mxu0 0.0
        %4028 = vmatpush1.msra.mxu0 0.0
        %4029 = vmatprep.subr.mxu0 0.0
        %4030 = vmatpush1.msra.mxu0 0.0
        %4031 = vmatprep.subr.mxu0 0.0
        %4032 = vmatpush1.msra.mxu0 0.0
        %4033 = vmatprep.subr.mxu0 0.0
        %4034 = vmatpush1.msra.mxu0 0.0
        %4035 = vmatprep.subr.mxu0 0.0
        %4036 = vmatpush1.msra.mxu0 0.0
        %4037 = vmatprep.subr.mxu0 0.0
        %4038 = vmatpush1.msra.mxu0 0.0
        %4039 = vmatprep.subr.mxu0 0.0
        %4040 = vmatpush1.msra.mxu0 0.0
        %4041 = vmatprep.subr.mxu0 0.0
        %4042 = vmatpush1.msra.mxu0 0.0
        %4043 = vmatprep.subr.mxu0 0.0
        %4044 = vmatpush1.msra.mxu0 0.0
        %4045 = vmatprep.subr.mxu0 0.0
        %4046 = vmatpush1.msra.mxu0 0.0
        %4047 = vmatprep.subr.mxu0 0.0
        %4048 = vmatpush1.msra.mxu0 0.0
        %4049 = vmatprep.subr.mxu0 0.0
        %4050 = vmatpush1.msra.mxu0 0.0
        %4051 = vmatprep.subr.mxu0 0.0
        %4052 = vmatpush1.msra.mxu0 0.0
        %4053 = vmatprep.subr.mxu0 0.0
        %4054 = vmatpush1.msra.mxu0 0.0
        %4055 = vmatprep.subr.mxu0 0.0
        %4056 = vmatpush1.msra.mxu0 0.0
        %4057 = vmatprep.subr.mxu0 0.0
        %4058 = vmatpush1.msra.mxu0 0.0
        %4059 = vmatprep.subr.mxu0 0.0
        %4060 = vmatpush1.msra.mxu0 0.0
        %4061 = vmatprep.subr.mxu0 0.0
        %4062 = vmatpush1.msra.mxu0 0.0
        %4063 = vmatprep.subr.mxu0 0.0
        %4064 = vmatpush1.msra.mxu0 0.0
        %4065 = vmatprep.subr.mxu0 0.0
        %4066 = vmatpush1.msra.mxu0 0.0
        %4067 = vmatprep.subr.mxu0 0.0
        %4068 = vmatpush1.msra.mxu0 0.0
        %4069 = vmatprep.subr.mxu0 0.0
        %4070 = vmatpush1.msra.mxu0 0.0
        %4071 = vmatprep.subr.mxu0 0.0
        %4072 = vmatpush1.msra.mxu0 0.0
        %4073 = vmatprep.subr.mxu0 0.0
        %4074 = vmatpush1.msra.mxu0 0.0
        %4075 = vmatprep.mubr.f32.mxu0 0.0
        %4076 = vmatmul.mubr.f32.gmra.mrb[0].mxu0 %v4009
        %v4077 = vpop.f32.mrb[0].mxu0
        %v4078 = vadd.f32 0.0, %v4077
        %v4079 = vpop.f32.mrb[0].mxu0
        %4080 = vdwg.mxu0
        %4081 = vrot.lane.b32.xlu0 %v3498, 96
        %v4082 = vpop.permute.xlu0 %4081
        %v4085 = vsel %vm611, %v3852, 0
        %4087 = vmatprep.subr.mxu0 0.0
        %4088 = vmatpush1.msra.mxu0 %v4082
        %4089 = vmatprep.subr.mxu0 0.0
        %4090 = vmatpush1.msra.mxu0 0.0
        %4091 = vmatprep.subr.mxu0 0.0
        %4092 = vmatpush1.msra.mxu0 0.0
        %4093 = vmatprep.subr.mxu0 0.0
        %4094 = vmatpush1.msra.mxu0 0.0
        %4095 = vmatprep.subr.mxu0 0.0
        %4096 = vmatpush1.msra.mxu0 0.0
        %4097 = vmatprep.subr.mxu0 0.0
        %4098 = vmatpush1.msra.mxu0 0.0
        %4099 = vmatprep.subr.mxu0 0.0
        %4100 = vmatpush1.msra.mxu0 0.0
        %4101 = vmatprep.subr.mxu0 0.0
        %4102 = vmatpush1.msra.mxu0 0.0
        %4103 = vmatprep.subr.mxu0 0.0
        %4104 = vmatpush1.msra.mxu0 0.0
        %4105 = vmatprep.subr.mxu0 0.0
        %4106 = vmatpush1.msra.mxu0 0.0
        %4107 = vmatprep.subr.mxu0 0.0
        %4108 = vmatpush1.msra.mxu0 0.0
        %4109 = vmatprep.subr.mxu0 0.0
        %4110 = vmatpush1.msra.mxu0 0.0
        %4111 = vmatprep.subr.mxu0 0.0
        %4112 = vmatpush1.msra.mxu0 0.0
        %4113 = vmatprep.subr.mxu0 0.0
        %4114 = vmatpush1.msra.mxu0 0.0
        %4115 = vmatprep.subr.mxu0 0.0
        %4116 = vmatpush1.msra.mxu0 0.0
        %4117 = vmatprep.subr.mxu0 0.0
        %4118 = vmatpush1.msra.mxu0 0.0
        %4119 = vmatprep.subr.mxu0 0.0
        %4120 = vmatpush1.msra.mxu0 0.0
        %4121 = vmatprep.subr.mxu0 0.0
        %4122 = vmatpush1.msra.mxu0 0.0
        %4123 = vmatprep.subr.mxu0 0.0
        %4124 = vmatpush1.msra.mxu0 0.0
        %4125 = vmatprep.subr.mxu0 0.0
        %4126 = vmatpush1.msra.mxu0 0.0
        %4127 = vmatprep.subr.mxu0 0.0
        %4128 = vmatpush1.msra.mxu0 0.0
        %4129 = vmatprep.subr.mxu0 0.0
        %4130 = vmatpush1.msra.mxu0 0.0
        %4131 = vmatprep.subr.mxu0 0.0
        %4132 = vmatpush1.msra.mxu0 0.0
        %4133 = vmatprep.subr.mxu0 0.0
        %4134 = vmatpush1.msra.mxu0 0.0
        %4135 = vmatprep.subr.mxu0 0.0
        %4136 = vmatpush1.msra.mxu0 0.0
        %4137 = vmatprep.subr.mxu0 0.0
        %4138 = vmatpush1.msra.mxu0 0.0
        %4139 = vmatprep.subr.mxu0 0.0
        %4140 = vmatpush1.msra.mxu0 0.0
        %4141 = vmatprep.subr.mxu0 0.0
        %4142 = vmatpush1.msra.mxu0 0.0
        %4143 = vmatprep.subr.mxu0 0.0
        %4144 = vmatpush1.msra.mxu0 0.0
        %4145 = vmatprep.subr.mxu0 0.0
        %4146 = vmatpush1.msra.mxu0 0.0
        %4147 = vmatprep.subr.mxu0 0.0
        %4148 = vmatpush1.msra.mxu0 0.0
        %4149 = vmatprep.subr.mxu0 0.0
        %4150 = vmatpush1.msra.mxu0 0.0
        %4151 = vmatprep.mubr.f32.mxu0 0.0
        %4152 = vmatmul.mubr.f32.gmra.mrb[0].mxu0 %v4085
        %v4153 = vpop.f32.mrb[0].mxu0
        %v4154 = vadd.f32 0.0, %v4153
        %v4155 = vpop.f32.mrb[0].mxu0
        %4156 = vdwg.mxu0
        %4161 = vrot.lane.b32.xlu0 %v3926, 64
        %v4162 = vpop.permute.xlu0 %4161
        %4163 = vrot.lane.b32.xlu0 %v4002, 64
        %v4164 = vpop.permute.xlu0 %4163
        %4165 = vrot.lane.b32.xlu0 %v4078, 64
        %v4166 = vpop.permute.xlu0 %4165
        %4167 = vrot.lane.b32.xlu0 %v4154, 64
        %v4168 = vpop.permute.xlu0 %4167
        %v4173 = vadd.f32 %v592, %v4162
        %v4174 = vadd.f32 %v597, %v4164
        %v4175 = vadd.f32 %v602, %v4166
        %v4176 = vadd.f32 %v607, %v4168
        %4177 = vrot.lane.b32.xlu0 %v592, 56
        %v4178 = vpop.permute.xlu0 %4177
        %4179 = vrot.lane.b32.xlu0 %v3483, 120
        %v4180 = vpop.permute.xlu0 %4179
        %v4181 = vsel %vm611, %v4178, 0
        %v4183 = vsel %vm611, %v4180, 0
        %4185 = vmatprep.subr.mxu0 0.0
        %4186 = vmatpush1.xpose.msra.mxu0 %v4183
        %4187 = vmatprep.subr.mxu0 0.0
        %4188 = vmatpush1.xpose.msra.mxu0 0.0
        %4189 = vmatprep.subr.mxu0 0.0
        %4190 = vmatpush1.xpose.msra.mxu0 0.0
        %4191 = vmatprep.subr.mxu0 0.0
        %4192 = vmatpush1.xpose.msra.mxu0 0.0
        %4193 = vmatprep.subr.mxu0 0.0
        %4194 = vmatpush1.xpose.msra.mxu0 0.0
        %4195 = vmatprep.subr.mxu0 0.0
        %4196 = vmatpush1.xpose.msra.mxu0 0.0
        %4197 = vmatprep.subr.mxu0 0.0
        %4198 = vmatpush1.xpose.msra.mxu0 0.0
        %4199 = vmatprep.subr.mxu0 0.0
        %4200 = vmatpush1.xpose.msra.mxu0 0.0
        %4201 = vmatprep.subr.mxu0 0.0
        %4202 = vmatpush1.xpose.msra.mxu0 0.0
        %4203 = vmatprep.subr.mxu0 0.0
        %4204 = vmatpush1.xpose.msra.mxu0 0.0
        %4205 = vmatprep.subr.mxu0 0.0
        %4206 = vmatpush1.xpose.msra.mxu0 0.0
        %4207 = vmatprep.subr.mxu0 0.0
        %4208 = vmatpush1.xpose.msra.mxu0 0.0
        %4209 = vmatprep.subr.mxu0 0.0
        %4210 = vmatpush1.xpose.msra.mxu0 0.0
        %4211 = vmatprep.subr.mxu0 0.0
        %4212 = vmatpush1.xpose.msra.mxu0 0.0
        %4213 = vmatprep.subr.mxu0 0.0
        %4214 = vmatpush1.xpose.msra.mxu0 0.0
        %4215 = vmatprep.subr.mxu0 0.0
        %4216 = vmatpush1.xpose.msra.mxu0 0.0
        %4217 = vmatprep.subr.mxu0 0.0
        %4218 = vmatpush1.xpose.msra.mxu0 0.0
        %4219 = vmatprep.subr.mxu0 0.0
        %4220 = vmatpush1.xpose.msra.mxu0 0.0
        %4221 = vmatprep.subr.mxu0 0.0
        %4222 = vmatpush1.xpose.msra.mxu0 0.0
        %4223 = vmatprep.subr.mxu0 0.0
        %4224 = vmatpush1.xpose.msra.mxu0 0.0
        %4225 = vmatprep.subr.mxu0 0.0
        %4226 = vmatpush1.xpose.msra.mxu0 0.0
        %4227 = vmatprep.subr.mxu0 0.0
        %4228 = vmatpush1.xpose.msra.mxu0 0.0
        %4229 = vmatprep.subr.mxu0 0.0
        %4230 = vmatpush1.xpose.msra.mxu0 0.0
        %4231 = vmatprep.subr.mxu0 0.0
        %4232 = vmatpush1.xpose.msra.mxu0 0.0
        %4233 = vmatprep.subr.mxu0 0.0
        %4234 = vmatpush1.xpose.msra.mxu0 0.0
        %4235 = vmatprep.subr.mxu0 0.0
        %4236 = vmatpush1.xpose.msra.mxu0 0.0
        %4237 = vmatprep.subr.mxu0 0.0
        %4238 = vmatpush1.xpose.msra.mxu0 0.0
        %4239 = vmatprep.subr.mxu0 0.0
        %4240 = vmatpush1.xpose.msra.mxu0 0.0
        %4241 = vmatprep.subr.mxu0 0.0
        %4242 = vmatpush1.xpose.msra.mxu0 0.0
        %4243 = vmatprep.subr.mxu0 0.0
        %4244 = vmatpush1.xpose.msra.mxu0 0.0
        %4245 = vmatprep.subr.mxu0 0.0
        %4246 = vmatpush1.xpose.msra.mxu0 0.0
        %4247 = vmatprep.subr.mxu0 0.0
        %4248 = vmatpush1.xpose.msra.mxu0 0.0
        %4249 = vmatprep.mubr.f32.mxu0 0.0
        %4250 = vmatmul.mubr.f32.gmra.mrb[0].mxu0 %v4181
        %v4251 = vpop.f32.mrb[0].mxu0
        %v4252 = vadd.f32 0.0, %v4251
        %v4253 = vpop.f32.mrb[0].mxu0
        %4254 = vdwg.mxu0
        %4255 = vrot.lane.b32.xlu0 %v597, 56
        %v4256 = vpop.permute.xlu0 %4255
        %4257 = vrot.lane.b32.xlu0 %v3488, 120
        %v4258 = vpop.permute.xlu0 %4257
        %v4259 = vsel %vm611, %v4256, 0
        %v4261 = vsel %vm611, %v4258, 0
        %4263 = vmatprep.subr.mxu0 0.0
        %4264 = vmatpush1.xpose.msra.mxu0 %v4261
        %4265 = vmatprep.subr.mxu0 0.0
        %4266 = vmatpush1.xpose.msra.mxu0 0.0
        %4267 = vmatprep.subr.mxu0 0.0
        %4268 = vmatpush1.xpose.msra.mxu0 0.0
        %4269 = vmatprep.subr.mxu0 0.0
        %4270 = vmatpush1.xpose.msra.mxu0 0.0
        %4271 = vmatprep.subr.mxu0 0.0
        %4272 = vmatpush1.xpose.msra.mxu0 0.0
        %4273 = vmatprep.subr.mxu0 0.0
        %4274 = vmatpush1.xpose.msra.mxu0 0.0
        %4275 = vmatprep.subr.mxu0 0.0
        %4276 = vmatpush1.xpose.msra.mxu0 0.0
        %4277 = vmatprep.subr.mxu0 0.0
        %4278 = vmatpush1.xpose.msra.mxu0 0.0
        %4279 = vmatprep.subr.mxu0 0.0
        %4280 = vmatpush1.xpose.msra.mxu0 0.0
        %4281 = vmatprep.subr.mxu0 0.0
        %4282 = vmatpush1.xpose.msra.mxu0 0.0
        %4283 = vmatprep.subr.mxu0 0.0
        %4284 = vmatpush1.xpose.msra.mxu0 0.0
        %4285 = vmatprep.subr.mxu0 0.0
        %4286 = vmatpush1.xpose.msra.mxu0 0.0
        %4287 = vmatprep.subr.mxu0 0.0
        %4288 = vmatpush1.xpose.msra.mxu0 0.0
        %4289 = vmatprep.subr.mxu0 0.0
        %4290 = vmatpush1.xpose.msra.mxu0 0.0
        %4291 = vmatprep.subr.mxu0 0.0
        %4292 = vmatpush1.xpose.msra.mxu0 0.0
        %4293 = vmatprep.subr.mxu0 0.0
        %4294 = vmatpush1.xpose.msra.mxu0 0.0
        %4295 = vmatprep.subr.mxu0 0.0
        %4296 = vmatpush1.xpose.msra.mxu0 0.0
        %4297 = vmatprep.subr.mxu0 0.0
        %4298 = vmatpush1.xpose.msra.mxu0 0.0
        %4299 = vmatprep.subr.mxu0 0.0
        %4300 = vmatpush1.xpose.msra.mxu0 0.0
        %4301 = vmatprep.subr.mxu0 0.0
        %4302 = vmatpush1.xpose.msra.mxu0 0.0
        %4303 = vmatprep.subr.mxu0 0.0
        %4304 = vmatpush1.xpose.msra.mxu0 0.0
        %4305 = vmatprep.subr.mxu0 0.0
        %4306 = vmatpush1.xpose.msra.mxu0 0.0
        %4307 = vmatprep.subr.mxu0 0.0
        %4308 = vmatpush1.xpose.msra.mxu0 0.0
        %4309 = vmatprep.subr.mxu0 0.0
        %4310 = vmatpush1.xpose.msra.mxu0 0.0
        %4311 = vmatprep.subr.mxu0 0.0
        %4312 = vmatpush1.xpose.msra.mxu0 0.0
        %4313 = vmatprep.subr.mxu0 0.0
        %4314 = vmatpush1.xpose.msra.mxu0 0.0
        %4315 = vmatprep.subr.mxu0 0.0
        %4316 = vmatpush1.xpose.msra.mxu0 0.0
        %4317 = vmatprep.subr.mxu0 0.0
        %4318 = vmatpush1.xpose.msra.mxu0 0.0
        %4319 = vmatprep.subr.mxu0 0.0
        %4320 = vmatpush1.xpose.msra.mxu0 0.0
        %4321 = vmatprep.subr.mxu0 0.0
        %4322 = vmatpush1.xpose.msra.mxu0 0.0
        %4323 = vmatprep.subr.mxu0 0.0
        %4324 = vmatpush1.xpose.msra.mxu0 0.0
        %4325 = vmatprep.subr.mxu0 0.0
        %4326 = vmatpush1.xpose.msra.mxu0 0.0
        %4327 = vmatprep.mubr.f32.mxu0 0.0
        %4328 = vmatmul.mubr.f32.gmra.mrb[0].mxu0 %v4259
        %v4329 = vpop.f32.mrb[0].mxu0
        %v4330 = vadd.f32 0.0, %v4329
        %v4331 = vpop.f32.mrb[0].mxu0
        %4332 = vdwg.mxu0
        %4333 = vrot.lane.b32.xlu0 %v602, 56
        %v4334 = vpop.permute.xlu0 %4333
        %4335 = vrot.lane.b32.xlu0 %v3493, 120
        %v4336 = vpop.permute.xlu0 %4335
        %v4337 = vsel %vm611, %v4334, 0
        %v4339 = vsel %vm611, %v4336, 0
        %4341 = vmatprep.subr.mxu0 0.0
        %4342 = vmatpush1.xpose.msra.mxu0 %v4339
        %4343 = vmatprep.subr.mxu0 0.0
        %4344 = vmatpush1.xpose.msra.mxu0 0.0
        %4345 = vmatprep.subr.mxu0 0.0
        %4346 = vmatpush1.xpose.msra.mxu0 0.0
        %4347 = vmatprep.subr.mxu0 0.0
        %4348 = vmatpush1.xpose.msra.mxu0 0.0
        %4349 = vmatprep.subr.mxu0 0.0
        %4350 = vmatpush1.xpose.msra.mxu0 0.0
        %4351 = vmatprep.subr.mxu0 0.0
        %4352 = vmatpush1.xpose.msra.mxu0 0.0
        %4353 = vmatprep.subr.mxu0 0.0
        %4354 = vmatpush1.xpose.msra.mxu0 0.0
        %4355 = vmatprep.subr.mxu0 0.0
        %4356 = vmatpush1.xpose.msra.mxu0 0.0
        %4357 = vmatprep.subr.mxu0 0.0
        %4358 = vmatpush1.xpose.msra.mxu0 0.0
        %4359 = vmatprep.subr.mxu0 0.0
        %4360 = vmatpush1.xpose.msra.mxu0 0.0
        %4361 = vmatprep.subr.mxu0 0.0
        %4362 = vmatpush1.xpose.msra.mxu0 0.0
        %4363 = vmatprep.subr.mxu0 0.0
        %4364 = vmatpush1.xpose.msra.mxu0 0.0
        %4365 = vmatprep.subr.mxu0 0.0
        %4366 = vmatpush1.xpose.msra.mxu0 0.0
        %4367 = vmatprep.subr.mxu0 0.0
        %4368 = vmatpush1.xpose.msra.mxu0 0.0
        %4369 = vmatprep.subr.mxu0 0.0
        %4370 = vmatpush1.xpose.msra.mxu0 0.0
        %4371 = vmatprep.subr.mxu0 0.0
        %4372 = vmatpush1.xpose.msra.mxu0 0.0
        %4373 = vmatprep.subr.mxu0 0.0
        %4374 = vmatpush1.xpose.msra.mxu0 0.0
        %4375 = vmatprep.subr.mxu0 0.0
        %4376 = vmatpush1.xpose.msra.mxu0 0.0
        %4377 = vmatprep.subr.mxu0 0.0
        %4378 = vmatpush1.xpose.msra.mxu0 0.0
        %4379 = vmatprep.subr.mxu0 0.0
        %4380 = vmatpush1.xpose.msra.mxu0 0.0
        %4381 = vmatprep.subr.mxu0 0.0
        %4382 = vmatpush1.xpose.msra.mxu0 0.0
        %4383 = vmatprep.subr.mxu0 0.0
        %4384 = vmatpush1.xpose.msra.mxu0 0.0
        %4385 = vmatprep.subr.mxu0 0.0
        %4386 = vmatpush1.xpose.msra.mxu0 0.0
        %4387 = vmatprep.subr.mxu0 0.0
        %4388 = vmatpush1.xpose.msra.mxu0 0.0
        %4389 = vmatprep.subr.mxu0 0.0
        %4390 = vmatpush1.xpose.msra.mxu0 0.0
        %4391 = vmatprep.subr.mxu0 0.0
        %4392 = vmatpush1.xpose.msra.mxu0 0.0
        %4393 = vmatprep.subr.mxu0 0.0
        %4394 = vmatpush1.xpose.msra.mxu0 0.0
        %4395 = vmatprep.subr.mxu0 0.0
        %4396 = vmatpush1.xpose.msra.mxu0 0.0
        %4397 = vmatprep.subr.mxu0 0.0
        %4398 = vmatpush1.xpose.msra.mxu0 0.0
        %4399 = vmatprep.subr.mxu0 0.0
        %4400 = vmatpush1.xpose.msra.mxu0 0.0
        %4401 = vmatprep.subr.mxu0 0.0
        %4402 = vmatpush1.xpose.msra.mxu0 0.0
        %4403 = vmatprep.subr.mxu0 0.0
        %4404 = vmatpush1.xpose.msra.mxu0 0.0
        %4405 = vmatprep.mubr.f32.mxu0 0.0
        %4406 = vmatmul.mubr.f32.gmra.mrb[0].mxu0 %v4337
        %v4407 = vpop.f32.mrb[0].mxu0
        %v4408 = vadd.f32 0.0, %v4407
        %v4409 = vpop.f32.mrb[0].mxu0
        %4410 = vdwg.mxu0
        %4411 = vrot.lane.b32.xlu0 %v607, 56
        %v4412 = vpop.permute.xlu0 %4411
        %4413 = vrot.lane.b32.xlu0 %v3498, 120
        %v4414 = vpop.permute.xlu0 %4413
        %v4415 = vsel %vm611, %v4412, 0
        %v4417 = vsel %vm611, %v4414, 0
        %4419 = vmatprep.subr.mxu0 0.0
        %4420 = vmatpush1.xpose.msra.mxu0 %v4417
        %4421 = vmatprep.subr.mxu0 0.0
        %4422 = vmatpush1.xpose.msra.mxu0 0.0
        %4423 = vmatprep.subr.mxu0 0.0
        %4424 = vmatpush1.xpose.msra.mxu0 0.0
        %4425 = vmatprep.subr.mxu0 0.0
        %4426 = vmatpush1.xpose.msra.mxu0 0.0
        %4427 = vmatprep.subr.mxu0 0.0
        %4428 = vmatpush1.xpose.msra.mxu0 0.0
        %4429 = vmatprep.subr.mxu0 0.0
        %4430 = vmatpush1.xpose.msra.mxu0 0.0
        %4431 = vmatprep.subr.mxu0 0.0
        %4432 = vmatpush1.xpose.msra.mxu0 0.0
        %4433 = vmatprep.subr.mxu0 0.0
        %4434 = vmatpush1.xpose.msra.mxu0 0.0
        %4435 = vmatprep.subr.mxu0 0.0
        %4436 = vmatpush1.xpose.msra.mxu0 0.0
        %4437 = vmatprep.subr.mxu0 0.0
        %4438 = vmatpush1.xpose.msra.mxu0 0.0
        %4439 = vmatprep.subr.mxu0 0.0
        %4440 = vmatpush1.xpose.msra.mxu0 0.0
        %4441 = vmatprep.subr.mxu0 0.0
        %4442 = vmatpush1.xpose.msra.mxu0 0.0
        %4443 = vmatprep.subr.mxu0 0.0
        %4444 = vmatpush1.xpose.msra.mxu0 0.0
        %4445 = vmatprep.subr.mxu0 0.0
        %4446 = vmatpush1.xpose.msra.mxu0 0.0
        %4447 = vmatprep.subr.mxu0 0.0
        %4448 = vmatpush1.xpose.msra.mxu0 0.0
        %4449 = vmatprep.subr.mxu0 0.0
        %4450 = vmatpush1.xpose.msra.mxu0 0.0
        %4451 = vmatprep.subr.mxu0 0.0
        %4452 = vmatpush1.xpose.msra.mxu0 0.0
        %4453 = vmatprep.subr.mxu0 0.0
        %4454 = vmatpush1.xpose.msra.mxu0 0.0
        %4455 = vmatprep.subr.mxu0 0.0
        %4456 = vmatpush1.xpose.msra.mxu0 0.0
        %4457 = vmatprep.subr.mxu0 0.0
        %4458 = vmatpush1.xpose.msra.mxu0 0.0
        %4459 = vmatprep.subr.mxu0 0.0
        %4460 = vmatpush1.xpose.msra.mxu0 0.0
        %4461 = vmatprep.subr.mxu0 0.0
        %4462 = vmatpush1.xpose.msra.mxu0 0.0
        %4463 = vmatprep.subr.mxu0 0.0
        %4464 = vmatpush1.xpose.msra.mxu0 0.0
        %4465 = vmatprep.subr.mxu0 0.0
        %4466 = vmatpush1.xpose.msra.mxu0 0.0
        %4467 = vmatprep.subr.mxu0 0.0
        %4468 = vmatpush1.xpose.msra.mxu0 0.0
        %4469 = vmatprep.subr.mxu0 0.0
        %4470 = vmatpush1.xpose.msra.mxu0 0.0
        %4471 = vmatprep.subr.mxu0 0.0
        %4472 = vmatpush1.xpose.msra.mxu0 0.0
        %4473 = vmatprep.subr.mxu0 0.0
        %4474 = vmatpush1.xpose.msra.mxu0 0.0
        %4475 = vmatprep.subr.mxu0 0.0
        %4476 = vmatpush1.xpose.msra.mxu0 0.0
        %4477 = vmatprep.subr.mxu0 0.0
        %4478 = vmatpush1.xpose.msra.mxu0 0.0
        %4479 = vmatprep.subr.mxu0 0.0
        %4480 = vmatpush1.xpose.msra.mxu0 0.0
        %4481 = vmatprep.subr.mxu0 0.0
        %4482 = vmatpush1.xpose.msra.mxu0 0.0
        %4483 = vmatprep.mubr.f32.mxu0 0.0
        %4484 = vmatmul.mubr.f32.gmra.mrb[0].mxu0 %v4415
        %v4485 = vpop.f32.mrb[0].mxu0
        %v4486 = vadd.f32 0.0, %v4485
        %v4487 = vpop.f32.mrb[0].mxu0
        %4488 = vdwg.mxu0
        %v4489 = vsel %vm611, %v4252, -inf
        %4490 = vmax.xlane.f32.xlu0 %v4489
        %v4491 = vpop.xlane.xlu0 %4490
        %v4492 = vsel %vm611, %v4330, -inf
        %4493 = vmax.xlane.f32.xlu0 %v4492
        %v4494 = vpop.xlane.xlu0 %4493
        %v4495 = vsel %vm611, %v4408, -inf
        %4496 = vmax.xlane.f32.xlu0 %v4495
        %v4497 = vpop.xlane.xlu0 %4496
        %v4498 = vsel %vm611, %v4486, -inf
        %4499 = vmax.xlane.f32.xlu0 %v4498
        %v4500 = vpop.xlane.xlu0 %4499
        %v4501 = vsub.f32 %v4252, %v4491
        %v4502 = vsub.f32 %v4330, %v4494
        %v4503 = vsub.f32 %v4408, %v4497
        %v4504 = vsub.f32 %v4486, %v4500
        %v4505 = vmul.f32 %v4501, 1.442695
        %v4506 = vpow.pop %v4505
        %v4507 = vmul.f32 %v4502, 1.442695
        %v4508 = vpow.pop %v4507
        %v4509 = vmul.f32 %v4503, 1.442695
        %v4510 = vpow.pop %v4509
        %v4511 = vmul.f32 %v4504, 1.442695
        %v4512 = vpow.pop %v4511
        %v4513 = vsel %vm611, %v4506, 0.0
        %4514 = vadd.xlane.f32.xlu0 %v4513
        %v4515 = vpop.xlane.xlu0 %4514
        %v4516 = vsel %vm611, %v4508, 0.0
        %4517 = vadd.xlane.f32.xlu0 %v4516
        %v4518 = vpop.xlane.xlu0 %4517
        %v4519 = vsel %vm611, %v4510, 0.0
        %4520 = vadd.xlane.f32.xlu0 %v4519
        %v4521 = vpop.xlane.xlu0 %4520
        %v4522 = vsel %vm611, %v4512, 0.0
        %4523 = vadd.xlane.f32.xlu0 %v4522
        %v4524 = vpop.xlane.xlu0 %4523
        %v4525 = vrcp.pop %v4515
        %v4526 = vrcp.pop %v4518
        %v4527 = vrcp.pop %v4521
        %v4528 = vrcp.pop %v4524
        %v4529 = vmul.f32 %v4506, %v4525
        %v4530 = vmul.f32 %v4508, %v4526
        %v4531 = vmul.f32 %v4510, %v4527
        %v4532 = vmul.f32 %v4512, %v4528
        %4533 = vrot.lane.b32.xlu0 %v3483, 88
        %v4534 = vpop.permute.xlu0 %4533
        %v4537 = vsel %vm611, %v4529, 0
        %4539 = vmatprep.subr.mxu0 0.0
        %4540 = vmatpush1.msra.mxu0 %v4534
        %4541 = vmatprep.subr.mxu0 0.0
        %4542 = vmatpush1.msra.mxu0 0.0
        %4543 = vmatprep.subr.mxu0 0.0
        %4544 = vmatpush1.msra.mxu0 0.0
        %4545 = vmatprep.subr.mxu0 0.0
        %4546 = vmatpush1.msra.mxu0 0.0
        %4547 = vmatprep.subr.mxu0 0.0
        %4548 = vmatpush1.msra.mxu0 0.0
        %4549 = vmatprep.subr.mxu0 0.0
        %4550 = vmatpush1.msra.mxu0 0.0
        %4551 = vmatprep.subr.mxu0 0.0
        %4552 = vmatpush1.msra.mxu0 0.0
        %4553 = vmatprep.subr.mxu0 0.0
        %4554 = vmatpush1.msra.mxu0 0.0
        %4555 = vmatprep.subr.mxu0 0.0
        %4556 = vmatpush1.msra.mxu0 0.0
        %4557 = vmatprep.subr.mxu0 0.0
        %4558 = vmatpush1.msra.mxu0 0.0
        %4559 = vmatprep.subr.mxu0 0.0
        %4560 = vmatpush1.msra.mxu0 0.0
        %4561 = vmatprep.subr.mxu0 0.0
        %4562 = vmatpush1.msra.mxu0 0.0
        %4563 = vmatprep.subr.mxu0 0.0
        %4564 = vmatpush1.msra.mxu0 0.0
        %4565 = vmatprep.subr.mxu0 0.0
        %4566 = vmatpush1.msra.mxu0 0.0
        %4567 = vmatprep.subr.mxu0 0.0
        %4568 = vmatpush1.msra.mxu0 0.0
        %4569 = vmatprep.subr.mxu0 0.0
        %4570 = vmatpush1.msra.mxu0 0.0
        %4571 = vmatprep.subr.mxu0 0.0
        %4572 = vmatpush1.msra.mxu0 0.0
        %4573 = vmatprep.subr.mxu0 0.0
        %4574 = vmatpush1.msra.mxu0 0.0
        %4575 = vmatprep.subr.mxu0 0.0
        %4576 = vmatpush1.msra.mxu0 0.0
        %4577 = vmatprep.subr.mxu0 0.0
        %4578 = vmatpush1.msra.mxu0 0.0
        %4579 = vmatprep.subr.mxu0 0.0
        %4580 = vmatpush1.msra.mxu0 0.0
        %4581 = vmatprep.subr.mxu0 0.0
        %4582 = vmatpush1.msra.mxu0 0.0
        %4583 = vmatprep.subr.mxu0 0.0
        %4584 = vmatpush1.msra.mxu0 0.0
        %4585 = vmatprep.subr.mxu0 0.0
        %4586 = vmatpush1.msra.mxu0 0.0
        %4587 = vmatprep.subr.mxu0 0.0
        %4588 = vmatpush1.msra.mxu0 0.0
        %4589 = vmatprep.subr.mxu0 0.0
        %4590 = vmatpush1.msra.mxu0 0.0
        %4591 = vmatprep.subr.mxu0 0.0
        %4592 = vmatpush1.msra.mxu0 0.0
        %4593 = vmatprep.subr.mxu0 0.0
        %4594 = vmatpush1.msra.mxu0 0.0
        %4595 = vmatprep.subr.mxu0 0.0
        %4596 = vmatpush1.msra.mxu0 0.0
        %4597 = vmatprep.subr.mxu0 0.0
        %4598 = vmatpush1.msra.mxu0 0.0
        %4599 = vmatprep.subr.mxu0 0.0
        %4600 = vmatpush1.msra.mxu0 0.0
        %4601 = vmatprep.subr.mxu0 0.0
        %4602 = vmatpush1.msra.mxu0 0.0
        %4603 = vmatprep.mubr.f32.mxu0 0.0
        %4604 = vmatmul.mubr.f32.gmra.mrb[0].mxu0 %v4537
        %v4605 = vpop.f32.mrb[0].mxu0
        %v4606 = vadd.f32 0.0, %v4605
        %v4607 = vpop.f32.mrb[0].mxu0
        %4608 = vdwg.mxu0
        %4609 = vrot.lane.b32.xlu0 %v3488, 88
        %v4610 = vpop.permute.xlu0 %4609
        %v4613 = vsel %vm611, %v4530, 0
        %4615 = vmatprep.subr.mxu0 0.0
        %4616 = vmatpush1.msra.mxu0 %v4610
        %4617 = vmatprep.subr.mxu0 0.0
        %4618 = vmatpush1.msra.mxu0 0.0
        %4619 = vmatprep.subr.mxu0 0.0
        %4620 = vmatpush1.msra.mxu0 0.0
        %4621 = vmatprep.subr.mxu0 0.0
        %4622 = vmatpush1.msra.mxu0 0.0
        %4623 = vmatprep.subr.mxu0 0.0
        %4624 = vmatpush1.msra.mxu0 0.0
        %4625 = vmatprep.subr.mxu0 0.0
        %4626 = vmatpush1.msra.mxu0 0.0
        %4627 = vmatprep.subr.mxu0 0.0
        %4628 = vmatpush1.msra.mxu0 0.0
        %4629 = vmatprep.subr.mxu0 0.0
        %4630 = vmatpush1.msra.mxu0 0.0
        %4631 = vmatprep.subr.mxu0 0.0
        %4632 = vmatpush1.msra.mxu0 0.0
        %4633 = vmatprep.subr.mxu0 0.0
        %4634 = vmatpush1.msra.mxu0 0.0
        %4635 = vmatprep.subr.mxu0 0.0
        %4636 = vmatpush1.msra.mxu0 0.0
        %4637 = vmatprep.subr.mxu0 0.0
        %4638 = vmatpush1.msra.mxu0 0.0
        %4639 = vmatprep.subr.mxu0 0.0
        %4640 = vmatpush1.msra.mxu0 0.0
        %4641 = vmatprep.subr.mxu0 0.0
        %4642 = vmatpush1.msra.mxu0 0.0
        %4643 = vmatprep.subr.mxu0 0.0
        %4644 = vmatpush1.msra.mxu0 0.0
        %4645 = vmatprep.subr.mxu0 0.0
        %4646 = vmatpush1.msra.mxu0 0.0
        %4647 = vmatprep.subr.mxu0 0.0
        %4648 = vmatpush1.msra.mxu0 0.0
        %4649 = vmatprep.subr.mxu0 0.0
        %4650 = vmatpush1.msra.mxu0 0.0
        %4651 = vmatprep.subr.mxu0 0.0
        %4652 = vmatpush1.msra.mxu0 0.0
        %4653 = vmatprep.subr.mxu0 0.0
        %4654 = vmatpush1.msra.mxu0 0.0
        %4655 = vmatprep.subr.mxu0 0.0
        %4656 = vmatpush1.msra.mxu0 0.0
        %4657 = vmatprep.subr.mxu0 0.0
        %4658 = vmatpush1.msra.mxu0 0.0
        %4659 = vmatprep.subr.mxu0 0.0
        %4660 = vmatpush1.msra.mxu0 0.0
        %4661 = vmatprep.subr.mxu0 0.0
        %4662 = vmatpush1.msra.mxu0 0.0
        %4663 = vmatprep.subr.mxu0 0.0
        %4664 = vmatpush1.msra.mxu0 0.0
        %4665 = vmatprep.subr.mxu0 0.0
        %4666 = vmatpush1.msra.mxu0 0.0
        %4667 = vmatprep.subr.mxu0 0.0
        %4668 = vmatpush1.msra.mxu0 0.0
        %4669 = vmatprep.subr.mxu0 0.0
        %4670 = vmatpush1.msra.mxu0 0.0
        %4671 = vmatprep.subr.mxu0 0.0
        %4672 = vmatpush1.msra.mxu0 0.0
        %4673 = vmatprep.subr.mxu0 0.0
        %4674 = vmatpush1.msra.mxu0 0.0
        %4675 = vmatprep.subr.mxu0 0.0
        %4676 = vmatpush1.msra.mxu0 0.0
        %4677 = vmatprep.subr.mxu0 0.0
        %4678 = vmatpush1.msra.mxu0 0.0
        %4679 = vmatprep.mubr.f32.mxu0 0.0
        %4680 = vmatmul.mubr.f32.gmra.mrb[0].mxu0 %v4613
        %v4681 = vpop.f32.mrb[0].mxu0
        %v4682 = vadd.f32 0.0, %v4681
        %v4683 = vpop.f32.mrb[0].mxu0
        %4684 = vdwg.mxu0
        %4685 = vrot.lane.b32.xlu0 %v3493, 88
        %v4686 = vpop.permute.xlu0 %4685
        %v4689 = vsel %vm611, %v4531, 0
        %4691 = vmatprep.subr.mxu0 0.0
        %4692 = vmatpush1.msra.mxu0 %v4686
        %4693 = vmatprep.subr.mxu0 0.0
        %4694 = vmatpush1.msra.mxu0 0.0
        %4695 = vmatprep.subr.mxu0 0.0
        %4696 = vmatpush1.msra.mxu0 0.0
        %4697 = vmatprep.subr.mxu0 0.0
        %4698 = vmatpush1.msra.mxu0 0.0
        %4699 = vmatprep.subr.mxu0 0.0
        %4700 = vmatpush1.msra.mxu0 0.0
        %4701 = vmatprep.subr.mxu0 0.0
        %4702 = vmatpush1.msra.mxu0 0.0
        %4703 = vmatprep.subr.mxu0 0.0
        %4704 = vmatpush1.msra.mxu0 0.0
        %4705 = vmatprep.subr.mxu0 0.0
        %4706 = vmatpush1.msra.mxu0 0.0
        %4707 = vmatprep.subr.mxu0 0.0
        %4708 = vmatpush1.msra.mxu0 0.0
        %4709 = vmatprep.subr.mxu0 0.0
        %4710 = vmatpush1.msra.mxu0 0.0
        %4711 = vmatprep.subr.mxu0 0.0
        %4712 = vmatpush1.msra.mxu0 0.0
        %4713 = vmatprep.subr.mxu0 0.0
        %4714 = vmatpush1.msra.mxu0 0.0
        %4715 = vmatprep.subr.mxu0 0.0
        %4716 = vmatpush1.msra.mxu0 0.0
        %4717 = vmatprep.subr.mxu0 0.0
        %4718 = vmatpush1.msra.mxu0 0.0
        %4719 = vmatprep.subr.mxu0 0.0
        %4720 = vmatpush1.msra.mxu0 0.0
        %4721 = vmatprep.subr.mxu0 0.0
        %4722 = vmatpush1.msra.mxu0 0.0
        %4723 = vmatprep.subr.mxu0 0.0
        %4724 = vmatpush1.msra.mxu0 0.0
        %4725 = vmatprep.subr.mxu0 0.0
        %4726 = vmatpush1.msra.mxu0 0.0
        %4727 = vmatprep.subr.mxu0 0.0
        %4728 = vmatpush1.msra.mxu0 0.0
        %4729 = vmatprep.subr.mxu0 0.0
        %4730 = vmatpush1.msra.mxu0 0.0
        %4731 = vmatprep.subr.mxu0 0.0
        %4732 = vmatpush1.msra.mxu0 0.0
        %4733 = vmatprep.subr.mxu0 0.0
        %4734 = vmatpush1.msra.mxu0 0.0
        %4735 = vmatprep.subr.mxu0 0.0
        %4736 = vmatpush1.msra.mxu0 0.0
        %4737 = vmatprep.subr.mxu0 0.0
        %4738 = vmatpush1.msra.mxu0 0.0
        %4739 = vmatprep.subr.mxu0 0.0
        %4740 = vmatpush1.msra.mxu0 0.0
        %4741 = vmatprep.subr.mxu0 0.0
        %4742 = vmatpush1.msra.mxu0 0.0
        %4743 = vmatprep.subr.mxu0 0.0
        %4744 = vmatpush1.msra.mxu0 0.0
        %4745 = vmatprep.subr.mxu0 0.0
        %4746 = vmatpush1.msra.mxu0 0.0
        %4747 = vmatprep.subr.mxu0 0.0
        %4748 = vmatpush1.msra.mxu0 0.0
        %4749 = vmatprep.subr.mxu0 0.0
        %4750 = vmatpush1.msra.mxu0 0.0
        %4751 = vmatprep.subr.mxu0 0.0
        %4752 = vmatpush1.msra.mxu0 0.0
        %4753 = vmatprep.subr.mxu0 0.0
        %4754 = vmatpush1.msra.mxu0 0.0
        %4755 = vmatprep.mubr.f32.mxu0 0.0
        %4756 = vmatmul.mubr.f32.gmra.mrb[0].mxu0 %v4689
        %v4757 = vpop.f32.mrb[0].mxu0
        %v4758 = vadd.f32 0.0, %v4757
        %v4759 = vpop.f32.mrb[0].mxu0
        %4760 = vdwg.mxu0
        %4761 = vrot.lane.b32.xlu0 %v3498, 88
        %v4762 = vpop.permute.xlu0 %4761
        %v4765 = vsel %vm611, %v4532, 0
        %4767 = vmatprep.subr.mxu0 0.0
        %4768 = vmatpush1.msra.mxu0 %v4762
        %4769 = vmatprep.subr.mxu0 0.0
        %4770 = vmatpush1.msra.mxu0 0.0
        %4771 = vmatprep.subr.mxu0 0.0
        %4772 = vmatpush1.msra.mxu0 0.0
        %4773 = vmatprep.subr.mxu0 0.0
        %4774 = vmatpush1.msra.mxu0 0.0
        %4775 = vmatprep.subr.mxu0 0.0
        %4776 = vmatpush1.msra.mxu0 0.0
        %4777 = vmatprep.subr.mxu0 0.0
        %4778 = vmatpush1.msra.mxu0 0.0
        %4779 = vmatprep.subr.mxu0 0.0
        %4780 = vmatpush1.msra.mxu0 0.0
        %4781 = vmatprep.subr.mxu0 0.0
        %4782 = vmatpush1.msra.mxu0 0.0
        %4783 = vmatprep.subr.mxu0 0.0
        %4784 = vmatpush1.msra.mxu0 0.0
        %4785 = vmatprep.subr.mxu0 0.0
        %4786 = vmatpush1.msra.mxu0 0.0
        %4787 = vmatprep.subr.mxu0 0.0
        %4788 = vmatpush1.msra.mxu0 0.0
        %4789 = vmatprep.subr.mxu0 0.0
        %4790 = vmatpush1.msra.mxu0 0.0
        %4791 = vmatprep.subr.mxu0 0.0
        %4792 = vmatpush1.msra.mxu0 0.0
        %4793 = vmatprep.subr.mxu0 0.0
        %4794 = vmatpush1.msra.mxu0 0.0
        %4795 = vmatprep.subr.mxu0 0.0
        %4796 = vmatpush1.msra.mxu0 0.0
        %4797 = vmatprep.subr.mxu0 0.0
        %4798 = vmatpush1.msra.mxu0 0.0
        %4799 = vmatprep.subr.mxu0 0.0
        %4800 = vmatpush1.msra.mxu0 0.0
        %4801 = vmatprep.subr.mxu0 0.0
        %4802 = vmatpush1.msra.mxu0 0.0
        %4803 = vmatprep.subr.mxu0 0.0
        %4804 = vmatpush1.msra.mxu0 0.0
        %4805 = vmatprep.subr.mxu0 0.0
        %4806 = vmatpush1.msra.mxu0 0.0
        %4807 = vmatprep.subr.mxu0 0.0
        %4808 = vmatpush1.msra.mxu0 0.0
        %4809 = vmatprep.subr.mxu0 0.0
        %4810 = vmatpush1.msra.mxu0 0.0
        %4811 = vmatprep.subr.mxu0 0.0
        %4812 = vmatpush1.msra.mxu0 0.0
        %4813 = vmatprep.subr.mxu0 0.0
        %4814 = vmatpush1.msra.mxu0 0.0
        %4815 = vmatprep.subr.mxu0 0.0
        %4816 = vmatpush1.msra.mxu0 0.0
        %4817 = vmatprep.subr.mxu0 0.0
        %4818 = vmatpush1.msra.mxu0 0.0
        %4819 = vmatprep.subr.mxu0 0.0
        %4820 = vmatpush1.msra.mxu0 0.0
        %4821 = vmatprep.subr.mxu0 0.0
        %4822 = vmatpush1.msra.mxu0 0.0
        %4823 = vmatprep.subr.mxu0 0.0
        %4824 = vmatpush1.msra.mxu0 0.0
        %4825 = vmatprep.subr.mxu0 0.0
        %4826 = vmatpush1.msra.mxu0 0.0
        %4827 = vmatprep.subr.mxu0 0.0
        %4828 = vmatpush1.msra.mxu0 0.0
        %4829 = vmatprep.subr.mxu0 0.0
        %4830 = vmatpush1.msra.mxu0 0.0
        %4831 = vmatprep.mubr.f32.mxu0 0.0
        %4832 = vmatmul.mubr.f32.gmra.mrb[0].mxu0 %v4765
        %v4833 = vpop.f32.mrb[0].mxu0
        %v4834 = vadd.f32 0.0, %v4833
        %v4835 = vpop.f32.mrb[0].mxu0
        %4836 = vdwg.mxu0
        %4841 = vrot.lane.b32.xlu0 %v4606, 72
        %v4842 = vpop.permute.xlu0 %4841
        %4843 = vrot.lane.b32.xlu0 %v4682, 72
        %v4844 = vpop.permute.xlu0 %4843
        %4845 = vrot.lane.b32.xlu0 %v4758, 72
        %v4846 = vpop.permute.xlu0 %4845
        %4847 = vrot.lane.b32.xlu0 %v4834, 72
        %v4848 = vpop.permute.xlu0 %4847
        %v4853 = vadd.f32 %v592, %v4842
        %v4854 = vadd.f32 %v597, %v4844
        %v4855 = vadd.f32 %v602, %v4846
        %v4856 = vadd.f32 %v607, %v4848
        %4857 = vrot.lane.b32.xlu0 %v592, 48
        %v4858 = vpop.permute.xlu0 %4857
        %4859 = vrot.lane.b32.xlu0 %v3483, 112
        %v4860 = vpop.permute.xlu0 %4859
        %v4861 = vsel %vm611, %v4858, 0
        %v4863 = vsel %vm611, %v4860, 0
        %4865 = vmatprep.subr.mxu0 0.0
        %4866 = vmatpush1.xpose.msra.mxu0 %v4863
        %4867 = vmatprep.subr.mxu0 0.0
        %4868 = vmatpush1.xpose.msra.mxu0 0.0
        %4869 = vmatprep.subr.mxu0 0.0
        %4870 = vmatpush1.xpose.msra.mxu0 0.0
        %4871 = vmatprep.subr.mxu0 0.0
        %4872 = vmatpush1.xpose.msra.mxu0 0.0
        %4873 = vmatprep.subr.mxu0 0.0
        %4874 = vmatpush1.xpose.msra.mxu0 0.0
        %4875 = vmatprep.subr.mxu0 0.0
        %4876 = vmatpush1.xpose.msra.mxu0 0.0
        %4877 = vmatprep.subr.mxu0 0.0
        %4878 = vmatpush1.xpose.msra.mxu0 0.0
        %4879 = vmatprep.subr.mxu0 0.0
        %4880 = vmatpush1.xpose.msra.mxu0 0.0
        %4881 = vmatprep.subr.mxu0 0.0
        %4882 = vmatpush1.xpose.msra.mxu0 0.0
        %4883 = vmatprep.subr.mxu0 0.0
        %4884 = vmatpush1.xpose.msra.mxu0 0.0
        %4885 = vmatprep.subr.mxu0 0.0
        %4886 = vmatpush1.xpose.msra.mxu0 0.0
        %4887 = vmatprep.subr.mxu0 0.0
        %4888 = vmatpush1.xpose.msra.mxu0 0.0
        %4889 = vmatprep.subr.mxu0 0.0
        %4890 = vmatpush1.xpose.msra.mxu0 0.0
        %4891 = vmatprep.subr.mxu0 0.0
        %4892 = vmatpush1.xpose.msra.mxu0 0.0
        %4893 = vmatprep.subr.mxu0 0.0
        %4894 = vmatpush1.xpose.msra.mxu0 0.0
        %4895 = vmatprep.subr.mxu0 0.0
        %4896 = vmatpush1.xpose.msra.mxu0 0.0
        %4897 = vmatprep.subr.mxu0 0.0
        %4898 = vmatpush1.xpose.msra.mxu0 0.0
        %4899 = vmatprep.subr.mxu0 0.0
        %4900 = vmatpush1.xpose.msra.mxu0 0.0
        %4901 = vmatprep.subr.mxu0 0.0
        %4902 = vmatpush1.xpose.msra.mxu0 0.0
        %4903 = vmatprep.subr.mxu0 0.0
        %4904 = vmatpush1.xpose.msra.mxu0 0.0
        %4905 = vmatprep.subr.mxu0 0.0
        %4906 = vmatpush1.xpose.msra.mxu0 0.0
        %4907 = vmatprep.subr.mxu0 0.0
        %4908 = vmatpush1.xpose.msra.mxu0 0.0
        %4909 = vmatprep.subr.mxu0 0.0
        %4910 = vmatpush1.xpose.msra.mxu0 0.0
        %4911 = vmatprep.subr.mxu0 0.0
        %4912 = vmatpush1.xpose.msra.mxu0 0.0
        %4913 = vmatprep.subr.mxu0 0.0
        %4914 = vmatpush1.xpose.msra.mxu0 0.0
        %4915 = vmatprep.subr.mxu0 0.0
        %4916 = vmatpush1.xpose.msra.mxu0 0.0
        %4917 = vmatprep.subr.mxu0 0.0
        %4918 = vmatpush1.xpose.msra.mxu0 0.0
        %4919 = vmatprep.subr.mxu0 0.0
        %4920 = vmatpush1.xpose.msra.mxu0 0.0
        %4921 = vmatprep.subr.mxu0 0.0
        %4922 = vmatpush1.xpose.msra.mxu0 0.0
        %4923 = vmatprep.subr.mxu0 0.0
        %4924 = vmatpush1.xpose.msra.mxu0 0.0
        %4925 = vmatprep.subr.mxu0 0.0
        %4926 = vmatpush1.xpose.msra.mxu0 0.0
        %4927 = vmatprep.subr.mxu0 0.0
        %4928 = vmatpush1.xpose.msra.mxu0 0.0
        %4929 = vmatprep.mubr.f32.mxu0 0.0
        %4930 = vmatmul.mubr.f32.gmra.mrb[0].mxu0 %v4861
        %v4931 = vpop.f32.mrb[0].mxu0
        %v4932 = vadd.f32 0.0, %v4931
        %v4933 = vpop.f32.mrb[0].mxu0
        %4934 = vdwg.mxu0
        %4935 = vrot.lane.b32.xlu0 %v597, 48
        %v4936 = vpop.permute.xlu0 %4935
        %4937 = vrot.lane.b32.xlu0 %v3488, 112
        %v4938 = vpop.permute.xlu0 %4937
        %v4939 = vsel %vm611, %v4936, 0
        %v4941 = vsel %vm611, %v4938, 0
        %4943 = vmatprep.subr.mxu0 0.0
        %4944 = vmatpush1.xpose.msra.mxu0 %v4941
        %4945 = vmatprep.subr.mxu0 0.0
        %4946 = vmatpush1.xpose.msra.mxu0 0.0
        %4947 = vmatprep.subr.mxu0 0.0
        %4948 = vmatpush1.xpose.msra.mxu0 0.0
        %4949 = vmatprep.subr.mxu0 0.0
        %4950 = vmatpush1.xpose.msra.mxu0 0.0
        %4951 = vmatprep.subr.mxu0 0.0
        %4952 = vmatpush1.xpose.msra.mxu0 0.0
        %4953 = vmatprep.subr.mxu0 0.0
        %4954 = vmatpush1.xpose.msra.mxu0 0.0
        %4955 = vmatprep.subr.mxu0 0.0
        %4956 = vmatpush1.xpose.msra.mxu0 0.0
        %4957 = vmatprep.subr.mxu0 0.0
        %4958 = vmatpush1.xpose.msra.mxu0 0.0
        %4959 = vmatprep.subr.mxu0 0.0
        %4960 = vmatpush1.xpose.msra.mxu0 0.0
        %4961 = vmatprep.subr.mxu0 0.0
        %4962 = vmatpush1.xpose.msra.mxu0 0.0
        %4963 = vmatprep.subr.mxu0 0.0
        %4964 = vmatpush1.xpose.msra.mxu0 0.0
        %4965 = vmatprep.subr.mxu0 0.0
        %4966 = vmatpush1.xpose.msra.mxu0 0.0
        %4967 = vmatprep.subr.mxu0 0.0
        %4968 = vmatpush1.xpose.msra.mxu0 0.0
        %4969 = vmatprep.subr.mxu0 0.0
        %4970 = vmatpush1.xpose.msra.mxu0 0.0
        %4971 = vmatprep.subr.mxu0 0.0
        %4972 = vmatpush1.xpose.msra.mxu0 0.0
        %4973 = vmatprep.subr.mxu0 0.0
        %4974 = vmatpush1.xpose.msra.mxu0 0.0
        %4975 = vmatprep.subr.mxu0 0.0
        %4976 = vmatpush1.xpose.msra.mxu0 0.0
        %4977 = vmatprep.subr.mxu0 0.0
        %4978 = vmatpush1.xpose.msra.mxu0 0.0
        %4979 = vmatprep.subr.mxu0 0.0
        %4980 = vmatpush1.xpose.msra.mxu0 0.0
        %4981 = vmatprep.subr.mxu0 0.0
        %4982 = vmatpush1.xpose.msra.mxu0 0.0
        %4983 = vmatprep.subr.mxu0 0.0
        %4984 = vmatpush1.xpose.msra.mxu0 0.0
        %4985 = vmatprep.subr.mxu0 0.0
        %4986 = vmatpush1.xpose.msra.mxu0 0.0
        %4987 = vmatprep.subr.mxu0 0.0
        %4988 = vmatpush1.xpose.msra.mxu0 0.0
        %4989 = vmatprep.subr.mxu0 0.0
        %4990 = vmatpush1.xpose.msra.mxu0 0.0
        %4991 = vmatprep.subr.mxu0 0.0
        %4992 = vmatpush1.xpose.msra.mxu0 0.0
        %4993 = vmatprep.subr.mxu0 0.0
        %4994 = vmatpush1.xpose.msra.mxu0 0.0
        %4995 = vmatprep.subr.mxu0 0.0
        %4996 = vmatpush1.xpose.msra.mxu0 0.0
        %4997 = vmatprep.subr.mxu0 0.0
        %4998 = vmatpush1.xpose.msra.mxu0 0.0
        %4999 = vmatprep.subr.mxu0 0.0
        %5000 = vmatpush1.xpose.msra.mxu0 0.0
        %5001 = vmatprep.subr.mxu0 0.0
        %5002 = vmatpush1.xpose.msra.mxu0 0.0
        %5003 = vmatprep.subr.mxu0 0.0
        %5004 = vmatpush1.xpose.msra.mxu0 0.0
        %5005 = vmatprep.subr.mxu0 0.0
        %5006 = vmatpush1.xpose.msra.mxu0 0.0
        %5007 = vmatprep.mubr.f32.mxu0 0.0
        %5008 = vmatmul.mubr.f32.gmra.mrb[0].mxu0 %v4939
        %v5009 = vpop.f32.mrb[0].mxu0
        %v5010 = vadd.f32 0.0, %v5009
        %v5011 = vpop.f32.mrb[0].mxu0
        %5012 = vdwg.mxu0
        %5013 = vrot.lane.b32.xlu0 %v602, 48
        %v5014 = vpop.permute.xlu0 %5013
        %5015 = vrot.lane.b32.xlu0 %v3493, 112
        %v5016 = vpop.permute.xlu0 %5015
        %v5017 = vsel %vm611, %v5014, 0
        %v5019 = vsel %vm611, %v5016, 0
        %5021 = vmatprep.subr.mxu0 0.0
        %5022 = vmatpush1.xpose.msra.mxu0 %v5019
        %5023 = vmatprep.subr.mxu0 0.0
        %5024 = vmatpush1.xpose.msra.mxu0 0.0
        %5025 = vmatprep.subr.mxu0 0.0
        %5026 = vmatpush1.xpose.msra.mxu0 0.0
        %5027 = vmatprep.subr.mxu0 0.0
        %5028 = vmatpush1.xpose.msra.mxu0 0.0
        %5029 = vmatprep.subr.mxu0 0.0
        %5030 = vmatpush1.xpose.msra.mxu0 0.0
        %5031 = vmatprep.subr.mxu0 0.0
        %5032 = vmatpush1.xpose.msra.mxu0 0.0
        %5033 = vmatprep.subr.mxu0 0.0
        %5034 = vmatpush1.xpose.msra.mxu0 0.0
        %5035 = vmatprep.subr.mxu0 0.0
        %5036 = vmatpush1.xpose.msra.mxu0 0.0
        %5037 = vmatprep.subr.mxu0 0.0
        %5038 = vmatpush1.xpose.msra.mxu0 0.0
        %5039 = vmatprep.subr.mxu0 0.0
        %5040 = vmatpush1.xpose.msra.mxu0 0.0
        %5041 = vmatprep.subr.mxu0 0.0
        %5042 = vmatpush1.xpose.msra.mxu0 0.0
        %5043 = vmatprep.subr.mxu0 0.0
        %5044 = vmatpush1.xpose.msra.mxu0 0.0
        %5045 = vmatprep.subr.mxu0 0.0
        %5046 = vmatpush1.xpose.msra.mxu0 0.0
        %5047 = vmatprep.subr.mxu0 0.0
        %5048 = vmatpush1.xpose.msra.mxu0 0.0
        %5049 = vmatprep.subr.mxu0 0.0
        %5050 = vmatpush1.xpose.msra.mxu0 0.0
        %5051 = vmatprep.subr.mxu0 0.0
        %5052 = vmatpush1.xpose.msra.mxu0 0.0
        %5053 = vmatprep.subr.mxu0 0.0
        %5054 = vmatpush1.xpose.msra.mxu0 0.0
        %5055 = vmatprep.subr.mxu0 0.0
        %5056 = vmatpush1.xpose.msra.mxu0 0.0
        %5057 = vmatprep.subr.mxu0 0.0
        %5058 = vmatpush1.xpose.msra.mxu0 0.0
        %5059 = vmatprep.subr.mxu0 0.0
        %5060 = vmatpush1.xpose.msra.mxu0 0.0
        %5061 = vmatprep.subr.mxu0 0.0
        %5062 = vmatpush1.xpose.msra.mxu0 0.0
        %5063 = vmatprep.subr.mxu0 0.0
        %5064 = vmatpush1.xpose.msra.mxu0 0.0
        %5065 = vmatprep.subr.mxu0 0.0
        %5066 = vmatpush1.xpose.msra.mxu0 0.0
        %5067 = vmatprep.subr.mxu0 0.0
        %5068 = vmatpush1.xpose.msra.mxu0 0.0
        %5069 = vmatprep.subr.mxu0 0.0
        %5070 = vmatpush1.xpose.msra.mxu0 0.0
        %5071 = vmatprep.subr.mxu0 0.0
        %5072 = vmatpush1.xpose.msra.mxu0 0.0
        %5073 = vmatprep.subr.mxu0 0.0
        %5074 = vmatpush1.xpose.msra.mxu0 0.0
        %5075 = vmatprep.subr.mxu0 0.0
        %5076 = vmatpush1.xpose.msra.mxu0 0.0
        %5077 = vmatprep.subr.mxu0 0.0
        %5078 = vmatpush1.xpose.msra.mxu0 0.0
        %5079 = vmatprep.subr.mxu0 0.0
        %5080 = vmatpush1.xpose.msra.mxu0 0.0
        %5081 = vmatprep.subr.mxu0 0.0
        %5082 = vmatpush1.xpose.msra.mxu0 0.0
        %5083 = vmatprep.subr.mxu0 0.0
        %5084 = vmatpush1.xpose.msra.mxu0 0.0
        %5085 = vmatprep.mubr.f32.mxu0 0.0
        %5086 = vmatmul.mubr.f32.gmra.mrb[0].mxu0 %v5017
        %v5087 = vpop.f32.mrb[0].mxu0
        %v5088 = vadd.f32 0.0, %v5087
        %v5089 = vpop.f32.mrb[0].mxu0
        %5090 = vdwg.mxu0
        %5091 = vrot.lane.b32.xlu0 %v607, 48
        %v5092 = vpop.permute.xlu0 %5091
        %5093 = vrot.lane.b32.xlu0 %v3498, 112
        %v5094 = vpop.permute.xlu0 %5093
        %v5095 = vsel %vm611, %v5092, 0
        %v5097 = vsel %vm611, %v5094, 0
        %5099 = vmatprep.subr.mxu0 0.0
        %5100 = vmatpush1.xpose.msra.mxu0 %v5097
        %5101 = vmatprep.subr.mxu0 0.0
        %5102 = vmatpush1.xpose.msra.mxu0 0.0
        %5103 = vmatprep.subr.mxu0 0.0
        %5104 = vmatpush1.xpose.msra.mxu0 0.0
        %5105 = vmatprep.subr.mxu0 0.0
        %5106 = vmatpush1.xpose.msra.mxu0 0.0
        %5107 = vmatprep.subr.mxu0 0.0
        %5108 = vmatpush1.xpose.msra.mxu0 0.0
        %5109 = vmatprep.subr.mxu0 0.0
        %5110 = vmatpush1.xpose.msra.mxu0 0.0
        %5111 = vmatprep.subr.mxu0 0.0
        %5112 = vmatpush1.xpose.msra.mxu0 0.0
        %5113 = vmatprep.subr.mxu0 0.0
        %5114 = vmatpush1.xpose.msra.mxu0 0.0
        %5115 = vmatprep.subr.mxu0 0.0
        %5116 = vmatpush1.xpose.msra.mxu0 0.0
        %5117 = vmatprep.subr.mxu0 0.0
        %5118 = vmatpush1.xpose.msra.mxu0 0.0
        %5119 = vmatprep.subr.mxu0 0.0
        %5120 = vmatpush1.xpose.msra.mxu0 0.0
        %5121 = vmatprep.subr.mxu0 0.0
        %5122 = vmatpush1.xpose.msra.mxu0 0.0
        %5123 = vmatprep.subr.mxu0 0.0
        %5124 = vmatpush1.xpose.msra.mxu0 0.0
        %5125 = vmatprep.subr.mxu0 0.0
        %5126 = vmatpush1.xpose.msra.mxu0 0.0
        %5127 = vmatprep.subr.mxu0 0.0
        %5128 = vmatpush1.xpose.msra.mxu0 0.0
        %5129 = vmatprep.subr.mxu0 0.0
        %5130 = vmatpush1.xpose.msra.mxu0 0.0
        %5131 = vmatprep.subr.mxu0 0.0
        %5132 = vmatpush1.xpose.msra.mxu0 0.0
        %5133 = vmatprep.subr.mxu0 0.0
        %5134 = vmatpush1.xpose.msra.mxu0 0.0
        %5135 = vmatprep.subr.mxu0 0.0
        %5136 = vmatpush1.xpose.msra.mxu0 0.0
        %5137 = vmatprep.subr.mxu0 0.0
        %5138 = vmatpush1.xpose.msra.mxu0 0.0
        %5139 = vmatprep.subr.mxu0 0.0
        %5140 = vmatpush1.xpose.msra.mxu0 0.0
        %5141 = vmatprep.subr.mxu0 0.0
        %5142 = vmatpush1.xpose.msra.mxu0 0.0
        %5143 = vmatprep.subr.mxu0 0.0
        %5144 = vmatpush1.xpose.msra.mxu0 0.0
        %5145 = vmatprep.subr.mxu0 0.0
        %5146 = vmatpush1.xpose.msra.mxu0 0.0
        %5147 = vmatprep.subr.mxu0 0.0
        %5148 = vmatpush1.xpose.msra.mxu0 0.0
        %5149 = vmatprep.subr.mxu0 0.0
        %5150 = vmatpush1.xpose.msra.mxu0 0.0
        %5151 = vmatprep.subr.mxu0 0.0
        %5152 = vmatpush1.xpose.msra.mxu0 0.0
        %5153 = vmatprep.subr.mxu0 0.0
        %5154 = vmatpush1.xpose.msra.mxu0 0.0
        %5155 = vmatprep.subr.mxu0 0.0
        %5156 = vmatpush1.xpose.msra.mxu0 0.0
        %5157 = vmatprep.subr.mxu0 0.0
        %5158 = vmatpush1.xpose.msra.mxu0 0.0
        %5159 = vmatprep.subr.mxu0 0.0
        %5160 = vmatpush1.xpose.msra.mxu0 0.0
        %5161 = vmatprep.subr.mxu0 0.0
        %5162 = vmatpush1.xpose.msra.mxu0 0.0
        %5163 = vmatprep.mubr.f32.mxu0 0.0
        %5164 = vmatmul.mubr.f32.gmra.mrb[0].mxu0 %v5095
        %v5165 = vpop.f32.mrb[0].mxu0
        %v5166 = vadd.f32 0.0, %v5165
        %v5167 = vpop.f32.mrb[0].mxu0
        %5168 = vdwg.mxu0
        %v5169 = vsel %vm611, %v4932, -inf
        %5170 = vmax.xlane.f32.xlu0 %v5169
        %v5171 = vpop.xlane.xlu0 %5170
        %v5172 = vsel %vm611, %v5010, -inf
        %5173 = vmax.xlane.f32.xlu0 %v5172
        %v5174 = vpop.xlane.xlu0 %5173
        %v5175 = vsel %vm611, %v5088, -inf
        %5176 = vmax.xlane.f32.xlu0 %v5175
        %v5177 = vpop.xlane.xlu0 %5176
        %v5178 = vsel %vm611, %v5166, -inf
        %5179 = vmax.xlane.f32.xlu0 %v5178
        %v5180 = vpop.xlane.xlu0 %5179
        %v5181 = vsub.f32 %v4932, %v5171
        %v5182 = vsub.f32 %v5010, %v5174
        %v5183 = vsub.f32 %v5088, %v5177
        %v5184 = vsub.f32 %v5166, %v5180
        %v5185 = vmul.f32 %v5181, 1.442695
        %v5186 = vpow.pop %v5185
        %v5187 = vmul.f32 %v5182, 1.442695
        %v5188 = vpow.pop %v5187
        %v5189 = vmul.f32 %v5183, 1.442695
        %v5190 = vpow.pop %v5189
        %v5191 = vmul.f32 %v5184, 1.442695
        %v5192 = vpow.pop %v5191
        %v5193 = vsel %vm611, %v5186, 0.0
        %5194 = vadd.xlane.f32.xlu0 %v5193
        %v5195 = vpop.xlane.xlu0 %5194
        %v5196 = vsel %vm611, %v5188, 0.0
        %5197 = vadd.xlane.f32.xlu0 %v5196
        %v5198 = vpop.xlane.xlu0 %5197
        %v5199 = vsel %vm611, %v5190, 0.0
        %5200 = vadd.xlane.f32.xlu0 %v5199
        %v5201 = vpop.xlane.xlu0 %5200
        %v5202 = vsel %vm611, %v5192, 0.0
        %5203 = vadd.xlane.f32.xlu0 %v5202
        %v5204 = vpop.xlane.xlu0 %5203
        %v5205 = vrcp.pop %v5195
        %v5206 = vrcp.pop %v5198
        %v5207 = vrcp.pop %v5201
        %v5208 = vrcp.pop %v5204
        %v5209 = vmul.f32 %v5186, %v5205
        %v5210 = vmul.f32 %v5188, %v5206
        %v5211 = vmul.f32 %v5190, %v5207
        %v5212 = vmul.f32 %v5192, %v5208
        %5213 = vrot.lane.b32.xlu0 %v3483, 80
        %v5214 = vpop.permute.xlu0 %5213
        %v5217 = vsel %vm611, %v5209, 0
        %5219 = vmatprep.subr.mxu0 0.0
        %5220 = vmatpush1.msra.mxu0 %v5214
        %5221 = vmatprep.subr.mxu0 0.0
        %5222 = vmatpush1.msra.mxu0 0.0
        %5223 = vmatprep.subr.mxu0 0.0
        %5224 = vmatpush1.msra.mxu0 0.0
        %5225 = vmatprep.subr.mxu0 0.0
        %5226 = vmatpush1.msra.mxu0 0.0
        %5227 = vmatprep.subr.mxu0 0.0
        %5228 = vmatpush1.msra.mxu0 0.0
        %5229 = vmatprep.subr.mxu0 0.0
        %5230 = vmatpush1.msra.mxu0 0.0
        %5231 = vmatprep.subr.mxu0 0.0
        %5232 = vmatpush1.msra.mxu0 0.0
        %5233 = vmatprep.subr.mxu0 0.0
        %5234 = vmatpush1.msra.mxu0 0.0
        %5235 = vmatprep.subr.mxu0 0.0
        %5236 = vmatpush1.msra.mxu0 0.0
        %5237 = vmatprep.subr.mxu0 0.0
        %5238 = vmatpush1.msra.mxu0 0.0
        %5239 = vmatprep.subr.mxu0 0.0
        %5240 = vmatpush1.msra.mxu0 0.0
        %5241 = vmatprep.subr.mxu0 0.0
        %5242 = vmatpush1.msra.mxu0 0.0
        %5243 = vmatprep.subr.mxu0 0.0
        %5244 = vmatpush1.msra.mxu0 0.0
        %5245 = vmatprep.subr.mxu0 0.0
        %5246 = vmatpush1.msra.mxu0 0.0
        %5247 = vmatprep.subr.mxu0 0.0
        %5248 = vmatpush1.msra.mxu0 0.0
        %5249 = vmatprep.subr.mxu0 0.0
        %5250 = vmatpush1.msra.mxu0 0.0
        %5251 = vmatprep.subr.mxu0 0.0
        %5252 = vmatpush1.msra.mxu0 0.0
        %5253 = vmatprep.subr.mxu0 0.0
        %5254 = vmatpush1.msra.mxu0 0.0
        %5255 = vmatprep.subr.mxu0 0.0
        %5256 = vmatpush1.msra.mxu0 0.0
        %5257 = vmatprep.subr.mxu0 0.0
        %5258 = vmatpush1.msra.mxu0 0.0
        %5259 = vmatprep.subr.mxu0 0.0
        %5260 = vmatpush1.msra.mxu0 0.0
        %5261 = vmatprep.subr.mxu0 0.0
        %5262 = vmatpush1.msra.mxu0 0.0
        %5263 = vmatprep.subr.mxu0 0.0
        %5264 = vmatpush1.msra.mxu0 0.0
        %5265 = vmatprep.subr.mxu0 0.0
        %5266 = vmatpush1.msra.mxu0 0.0
        %5267 = vmatprep.subr.mxu0 0.0
        %5268 = vmatpush1.msra.mxu0 0.0
        %5269 = vmatprep.subr.mxu0 0.0
        %5270 = vmatpush1.msra.mxu0 0.0
        %5271 = vmatprep.subr.mxu0 0.0
        %5272 = vmatpush1.msra.mxu0 0.0
        %5273 = vmatprep.subr.mxu0 0.0
        %5274 = vmatpush1.msra.mxu0 0.0
        %5275 = vmatprep.subr.mxu0 0.0
        %5276 = vmatpush1.msra.mxu0 0.0
        %5277 = vmatprep.subr.mxu0 0.0
        %5278 = vmatpush1.msra.mxu0 0.0
        %5279 = vmatprep.subr.mxu0 0.0
        %5280 = vmatpush1.msra.mxu0 0.0
        %5281 = vmatprep.subr.mxu0 0.0
        %5282 = vmatpush1.msra.mxu0 0.0
        %5283 = vmatprep.mubr.f32.mxu0 0.0
        %5284 = vmatmul.mubr.f32.gmra.mrb[0].mxu0 %v5217
        %v5285 = vpop.f32.mrb[0].mxu0
        %v5286 = vadd.f32 0.0, %v5285
        %v5287 = vpop.f32.mrb[0].mxu0
        %5288 = vdwg.mxu0
        %5289 = vrot.lane.b32.xlu0 %v3488, 80
        %v5290 = vpop.permute.xlu0 %5289
        %v5293 = vsel %vm611, %v5210, 0
        %5295 = vmatprep.subr.mxu0 0.0
        %5296 = vmatpush1.msra.mxu0 %v5290
        %5297 = vmatprep.subr.mxu0 0.0
        %5298 = vmatpush1.msra.mxu0 0.0
        %5299 = vmatprep.subr.mxu0 0.0
        %5300 = vmatpush1.msra.mxu0 0.0
        %5301 = vmatprep.subr.mxu0 0.0
        %5302 = vmatpush1.msra.mxu0 0.0
        %5303 = vmatprep.subr.mxu0 0.0
        %5304 = vmatpush1.msra.mxu0 0.0
        %5305 = vmatprep.subr.mxu0 0.0
        %5306 = vmatpush1.msra.mxu0 0.0
        %5307 = vmatprep.subr.mxu0 0.0
        %5308 = vmatpush1.msra.mxu0 0.0
        %5309 = vmatprep.subr.mxu0 0.0
        %5310 = vmatpush1.msra.mxu0 0.0
        %5311 = vmatprep.subr.mxu0 0.0
        %5312 = vmatpush1.msra.mxu0 0.0
        %5313 = vmatprep.subr.mxu0 0.0
        %5314 = vmatpush1.msra.mxu0 0.0
        %5315 = vmatprep.subr.mxu0 0.0
        %5316 = vmatpush1.msra.mxu0 0.0
        %5317 = vmatprep.subr.mxu0 0.0
        %5318 = vmatpush1.msra.mxu0 0.0
        %5319 = vmatprep.subr.mxu0 0.0
        %5320 = vmatpush1.msra.mxu0 0.0
        %5321 = vmatprep.subr.mxu0 0.0
        %5322 = vmatpush1.msra.mxu0 0.0
        %5323 = vmatprep.subr.mxu0 0.0
        %5324 = vmatpush1.msra.mxu0 0.0
        %5325 = vmatprep.subr.mxu0 0.0
        %5326 = vmatpush1.msra.mxu0 0.0
        %5327 = vmatprep.subr.mxu0 0.0
        %5328 = vmatpush1.msra.mxu0 0.0
        %5329 = vmatprep.subr.mxu0 0.0
        %5330 = vmatpush1.msra.mxu0 0.0
        %5331 = vmatprep.subr.mxu0 0.0
        %5332 = vmatpush1.msra.mxu0 0.0
        %5333 = vmatprep.subr.mxu0 0.0
        %5334 = vmatpush1.msra.mxu0 0.0
        %5335 = vmatprep.subr.mxu0 0.0
        %5336 = vmatpush1.msra.mxu0 0.0
        %5337 = vmatprep.subr.mxu0 0.0
        %5338 = vmatpush1.msra.mxu0 0.0
        %5339 = vmatprep.subr.mxu0 0.0
        %5340 = vmatpush1.msra.mxu0 0.0
        %5341 = vmatprep.subr.mxu0 0.0
        %5342 = vmatpush1.msra.mxu0 0.0
        %5343 = vmatprep.subr.mxu0 0.0
        %5344 = vmatpush1.msra.mxu0 0.0
        %5345 = vmatprep.subr.mxu0 0.0
        %5346 = vmatpush1.msra.mxu0 0.0
        %5347 = vmatprep.subr.mxu0 0.0
        %5348 = vmatpush1.msra.mxu0 0.0
        %5349 = vmatprep.subr.mxu0 0.0
        %5350 = vmatpush1.msra.mxu0 0.0
        %5351 = vmatprep.subr.mxu0 0.0
        %5352 = vmatpush1.msra.mxu0 0.0
        %5353 = vmatprep.subr.mxu0 0.0
        %5354 = vmatpush1.msra.mxu0 0.0
        %5355 = vmatprep.subr.mxu0 0.0
        %5356 = vmatpush1.msra.mxu0 0.0
        %5357 = vmatprep.subr.mxu0 0.0
        %5358 = vmatpush1.msra.mxu0 0.0
        %5359 = vmatprep.mubr.f32.mxu0 0.0
        %5360 = vmatmul.mubr.f32.gmra.mrb[0].mxu0 %v5293
        %v5361 = vpop.f32.mrb[0].mxu0
        %v5362 = vadd.f32 0.0, %v5361
        %v5363 = vpop.f32.mrb[0].mxu0
        %5364 = vdwg.mxu0
        %5365 = vrot.lane.b32.xlu0 %v3493, 80
        %v5366 = vpop.permute.xlu0 %5365
        %v5369 = vsel %vm611, %v5211, 0
        %5371 = vmatprep.subr.mxu0 0.0
        %5372 = vmatpush1.msra.mxu0 %v5366
        %5373 = vmatprep.subr.mxu0 0.0
        %5374 = vmatpush1.msra.mxu0 0.0
        %5375 = vmatprep.subr.mxu0 0.0
        %5376 = vmatpush1.msra.mxu0 0.0
        %5377 = vmatprep.subr.mxu0 0.0
        %5378 = vmatpush1.msra.mxu0 0.0
        %5379 = vmatprep.subr.mxu0 0.0
        %5380 = vmatpush1.msra.mxu0 0.0
        %5381 = vmatprep.subr.mxu0 0.0
        %5382 = vmatpush1.msra.mxu0 0.0
        %5383 = vmatprep.subr.mxu0 0.0
        %5384 = vmatpush1.msra.mxu0 0.0
        %5385 = vmatprep.subr.mxu0 0.0
        %5386 = vmatpush1.msra.mxu0 0.0
        %5387 = vmatprep.subr.mxu0 0.0
        %5388 = vmatpush1.msra.mxu0 0.0
        %5389 = vmatprep.subr.mxu0 0.0
        %5390 = vmatpush1.msra.mxu0 0.0
        %5391 = vmatprep.subr.mxu0 0.0
        %5392 = vmatpush1.msra.mxu0 0.0
        %5393 = vmatprep.subr.mxu0 0.0
        %5394 = vmatpush1.msra.mxu0 0.0
        %5395 = vmatprep.subr.mxu0 0.0
        %5396 = vmatpush1.msra.mxu0 0.0
        %5397 = vmatprep.subr.mxu0 0.0
        %5398 = vmatpush1.msra.mxu0 0.0
        %5399 = vmatprep.subr.mxu0 0.0
        %5400 = vmatpush1.msra.mxu0 0.0
        %5401 = vmatprep.subr.mxu0 0.0
        %5402 = vmatpush1.msra.mxu0 0.0
        %5403 = vmatprep.subr.mxu0 0.0
        %5404 = vmatpush1.msra.mxu0 0.0
        %5405 = vmatprep.subr.mxu0 0.0
        %5406 = vmatpush1.msra.mxu0 0.0
        %5407 = vmatprep.subr.mxu0 0.0
        %5408 = vmatpush1.msra.mxu0 0.0
        %5409 = vmatprep.subr.mxu0 0.0
        %5410 = vmatpush1.msra.mxu0 0.0
        %5411 = vmatprep.subr.mxu0 0.0
        %5412 = vmatpush1.msra.mxu0 0.0
        %5413 = vmatprep.subr.mxu0 0.0
        %5414 = vmatpush1.msra.mxu0 0.0
        %5415 = vmatprep.subr.mxu0 0.0
        %5416 = vmatpush1.msra.mxu0 0.0
        %5417 = vmatprep.subr.mxu0 0.0
        %5418 = vmatpush1.msra.mxu0 0.0
        %5419 = vmatprep.subr.mxu0 0.0
        %5420 = vmatpush1.msra.mxu0 0.0
        %5421 = vmatprep.subr.mxu0 0.0
        %5422 = vmatpush1.msra.mxu0 0.0
        %5423 = vmatprep.subr.mxu0 0.0
        %5424 = vmatpush1.msra.mxu0 0.0
        %5425 = vmatprep.subr.mxu0 0.0
        %5426 = vmatpush1.msra.mxu0 0.0
        %5427 = vmatprep.subr.mxu0 0.0
        %5428 = vmatpush1.msra.mxu0 0.0
        %5429 = vmatprep.subr.mxu0 0.0
        %5430 = vmatpush1.msra.mxu0 0.0
        %5431 = vmatprep.subr.mxu0 0.0
        %5432 = vmatpush1.msra.mxu0 0.0
        %5433 = vmatprep.subr.mxu0 0.0
        %5434 = vmatpush1.msra.mxu0 0.0
        %5435 = vmatprep.mubr.f32.mxu0 0.0
        %5436 = vmatmul.mubr.f32.gmra.mrb[0].mxu0 %v5369
        %v5437 = vpop.f32.mrb[0].mxu0
        %v5438 = vadd.f32 0.0, %v5437
        %v5439 = vpop.f32.mrb[0].mxu0
        %5440 = vdwg.mxu0
        %5441 = vrot.lane.b32.xlu0 %v3498, 80
        %v5442 = vpop.permute.xlu0 %5441
        %v5445 = vsel %vm611, %v5212, 0
        %5447 = vmatprep.subr.mxu0 0.0
        %5448 = vmatpush1.msra.mxu0 %v5442
        %5449 = vmatprep.subr.mxu0 0.0
        %5450 = vmatpush1.msra.mxu0 0.0
        %5451 = vmatprep.subr.mxu0 0.0
        %5452 = vmatpush1.msra.mxu0 0.0
        %5453 = vmatprep.subr.mxu0 0.0
        %5454 = vmatpush1.msra.mxu0 0.0
        %5455 = vmatprep.subr.mxu0 0.0
        %5456 = vmatpush1.msra.mxu0 0.0
        %5457 = vmatprep.subr.mxu0 0.0
        %5458 = vmatpush1.msra.mxu0 0.0
        %5459 = vmatprep.subr.mxu0 0.0
        %5460 = vmatpush1.msra.mxu0 0.0
        %5461 = vmatprep.subr.mxu0 0.0
        %5462 = vmatpush1.msra.mxu0 0.0
        %5463 = vmatprep.subr.mxu0 0.0
        %5464 = vmatpush1.msra.mxu0 0.0
        %5465 = vmatprep.subr.mxu0 0.0
        %5466 = vmatpush1.msra.mxu0 0.0
        %5467 = vmatprep.subr.mxu0 0.0
        %5468 = vmatpush1.msra.mxu0 0.0
        %5469 = vmatprep.subr.mxu0 0.0
        %5470 = vmatpush1.msra.mxu0 0.0
        %5471 = vmatprep.subr.mxu0 0.0
        %5472 = vmatpush1.msra.mxu0 0.0
        %5473 = vmatprep.subr.mxu0 0.0
        %5474 = vmatpush1.msra.mxu0 0.0
        %5475 = vmatprep.subr.mxu0 0.0
        %5476 = vmatpush1.msra.mxu0 0.0
        %5477 = vmatprep.subr.mxu0 0.0
        %5478 = vmatpush1.msra.mxu0 0.0
        %5479 = vmatprep.subr.mxu0 0.0
        %5480 = vmatpush1.msra.mxu0 0.0
        %5481 = vmatprep.subr.mxu0 0.0
        %5482 = vmatpush1.msra.mxu0 0.0
        %5483 = vmatprep.subr.mxu0 0.0
        %5484 = vmatpush1.msra.mxu0 0.0
        %5485 = vmatprep.subr.mxu0 0.0
        %5486 = vmatpush1.msra.mxu0 0.0
        %5487 = vmatprep.subr.mxu0 0.0
        %5488 = vmatpush1.msra.mxu0 0.0
        %5489 = vmatprep.subr.mxu0 0.0
        %5490 = vmatpush1.msra.mxu0 0.0
        %5491 = vmatprep.subr.mxu0 0.0
        %5492 = vmatpush1.msra.mxu0 0.0
        %5493 = vmatprep.subr.mxu0 0.0
        %5494 = vmatpush1.msra.mxu0 0.0
        %5495 = vmatprep.subr.mxu0 0.0
        %5496 = vmatpush1.msra.mxu0 0.0
        %5497 = vmatprep.subr.mxu0 0.0
        %5498 = vmatpush1.msra.mxu0 0.0
        %5499 = vmatprep.subr.mxu0 0.0
        %5500 = vmatpush1.msra.mxu0 0.0
        %5501 = vmatprep.subr.mxu0 0.0
        %5502 = vmatpush1.msra.mxu0 0.0
        %5503 = vmatprep.subr.mxu0 0.0
        %5504 = vmatpush1.msra.mxu0 0.0
        %5505 = vmatprep.subr.mxu0 0.0
        %5506 = vmatpush1.msra.mxu0 0.0
        %5507 = vmatprep.subr.mxu0 0.0
        %5508 = vmatpush1.msra.mxu0 0.0
        %5509 = vmatprep.subr.mxu0 0.0
        %5510 = vmatpush1.msra.mxu0 0.0
        %5511 = vmatprep.mubr.f32.mxu0 0.0
        %5512 = vmatmul.mubr.f32.gmra.mrb[0].mxu0 %v5445
        %v5513 = vpop.f32.mrb[0].mxu0
        %v5514 = vadd.f32 0.0, %v5513
        %v5515 = vpop.f32.mrb[0].mxu0
        %5516 = vdwg.mxu0
        %5521 = vrot.lane.b32.xlu0 %v5286, 80
        %v5522 = vpop.permute.xlu0 %5521
        %5523 = vrot.lane.b32.xlu0 %v5362, 80
        %v5524 = vpop.permute.xlu0 %5523
        %5525 = vrot.lane.b32.xlu0 %v5438, 80
        %v5526 = vpop.permute.xlu0 %5525
        %5527 = vrot.lane.b32.xlu0 %v5514, 80
        %v5528 = vpop.permute.xlu0 %5527
        %v5533 = vadd.f32 %v592, %v5522
        %v5534 = vadd.f32 %v597, %v5524
        %v5535 = vadd.f32 %v602, %v5526
        %v5536 = vadd.f32 %v607, %v5528
        %5537 = vrot.lane.b32.xlu0 %v592, 40
        %v5538 = vpop.permute.xlu0 %5537
        %5539 = vrot.lane.b32.xlu0 %v3483, 104
        %v5540 = vpop.permute.xlu0 %5539
        %v5541 = vsel %vm611, %v5538, 0
        %v5543 = vsel %vm611, %v5540, 0
        %5545 = vmatprep.subr.mxu0 0.0
        %5546 = vmatpush1.xpose.msra.mxu0 %v5543
        %5547 = vmatprep.subr.mxu0 0.0
        %5548 = vmatpush1.xpose.msra.mxu0 0.0
        %5549 = vmatprep.subr.mxu0 0.0
        %5550 = vmatpush1.xpose.msra.mxu0 0.0
        %5551 = vmatprep.subr.mxu0 0.0
        %5552 = vmatpush1.xpose.msra.mxu0 0.0
        %5553 = vmatprep.subr.mxu0 0.0
        %5554 = vmatpush1.xpose.msra.mxu0 0.0
        %5555 = vmatprep.subr.mxu0 0.0
        %5556 = vmatpush1.xpose.msra.mxu0 0.0
        %5557 = vmatprep.subr.mxu0 0.0
        %5558 = vmatpush1.xpose.msra.mxu0 0.0
        %5559 = vmatprep.subr.mxu0 0.0
        %5560 = vmatpush1.xpose.msra.mxu0 0.0
        %5561 = vmatprep.subr.mxu0 0.0
        %5562 = vmatpush1.xpose.msra.mxu0 0.0
        %5563 = vmatprep.subr.mxu0 0.0
        %5564 = vmatpush1.xpose.msra.mxu0 0.0
        %5565 = vmatprep.subr.mxu0 0.0
        %5566 = vmatpush1.xpose.msra.mxu0 0.0
        %5567 = vmatprep.subr.mxu0 0.0
        %5568 = vmatpush1.xpose.msra.mxu0 0.0
        %5569 = vmatprep.subr.mxu0 0.0
        %5570 = vmatpush1.xpose.msra.mxu0 0.0
        %5571 = vmatprep.subr.mxu0 0.0
        %5572 = vmatpush1.xpose.msra.mxu0 0.0
        %5573 = vmatprep.subr.mxu0 0.0
        %5574 = vmatpush1.xpose.msra.mxu0 0.0
        %5575 = vmatprep.subr.mxu0 0.0
        %5576 = vmatpush1.xpose.msra.mxu0 0.0
        %5577 = vmatprep.subr.mxu0 0.0
        %5578 = vmatpush1.xpose.msra.mxu0 0.0
        %5579 = vmatprep.subr.mxu0 0.0
        %5580 = vmatpush1.xpose.msra.mxu0 0.0
        %5581 = vmatprep.subr.mxu0 0.0
        %5582 = vmatpush1.xpose.msra.mxu0 0.0
        %5583 = vmatprep.subr.mxu0 0.0
        %5584 = vmatpush1.xpose.msra.mxu0 0.0
        %5585 = vmatprep.subr.mxu0 0.0
        %5586 = vmatpush1.xpose.msra.mxu0 0.0
        %5587 = vmatprep.subr.mxu0 0.0
        %5588 = vmatpush1.xpose.msra.mxu0 0.0
        %5589 = vmatprep.subr.mxu0 0.0
        %5590 = vmatpush1.xpose.msra.mxu0 0.0
        %5591 = vmatprep.subr.mxu0 0.0
        %5592 = vmatpush1.xpose.msra.mxu0 0.0
        %5593 = vmatprep.subr.mxu0 0.0
        %5594 = vmatpush1.xpose.msra.mxu0 0.0
        %5595 = vmatprep.subr.mxu0 0.0
        %5596 = vmatpush1.xpose.msra.mxu0 0.0
        %5597 = vmatprep.subr.mxu0 0.0
        %5598 = vmatpush1.xpose.msra.mxu0 0.0
        %5599 = vmatprep.subr.mxu0 0.0
        %5600 = vmatpush1.xpose.msra.mxu0 0.0
        %5601 = vmatprep.subr.mxu0 0.0
        %5602 = vmatpush1.xpose.msra.mxu0 0.0
        %5603 = vmatprep.subr.mxu0 0.0
        %5604 = vmatpush1.xpose.msra.mxu0 0.0
        %5605 = vmatprep.subr.mxu0 0.0
        %5606 = vmatpush1.xpose.msra.mxu0 0.0
        %5607 = vmatprep.subr.mxu0 0.0
        %5608 = vmatpush1.xpose.msra.mxu0 0.0
        %5609 = vmatprep.mubr.f32.mxu0 0.0
        %5610 = vmatmul.mubr.f32.gmra.mrb[0].mxu0 %v5541
        %v5611 = vpop.f32.mrb[0].mxu0
        %v5612 = vadd.f32 0.0, %v5611
        %v5613 = vpop.f32.mrb[0].mxu0
        %5614 = vdwg.mxu0
        %5615 = vrot.lane.b32.xlu0 %v597, 40
        %v5616 = vpop.permute.xlu0 %5615
        %5617 = vrot.lane.b32.xlu0 %v3488, 104
        %v5618 = vpop.permute.xlu0 %5617
        %v5619 = vsel %vm611, %v5616, 0
        %v5621 = vsel %vm611, %v5618, 0
        %5623 = vmatprep.subr.mxu0 0.0
        %5624 = vmatpush1.xpose.msra.mxu0 %v5621
        %5625 = vmatprep.subr.mxu0 0.0
        %5626 = vmatpush1.xpose.msra.mxu0 0.0
        %5627 = vmatprep.subr.mxu0 0.0
        %5628 = vmatpush1.xpose.msra.mxu0 0.0
        %5629 = vmatprep.subr.mxu0 0.0
        %5630 = vmatpush1.xpose.msra.mxu0 0.0
        %5631 = vmatprep.subr.mxu0 0.0
        %5632 = vmatpush1.xpose.msra.mxu0 0.0
        %5633 = vmatprep.subr.mxu0 0.0
        %5634 = vmatpush1.xpose.msra.mxu0 0.0
        %5635 = vmatprep.subr.mxu0 0.0
        %5636 = vmatpush1.xpose.msra.mxu0 0.0
        %5637 = vmatprep.subr.mxu0 0.0
        %5638 = vmatpush1.xpose.msra.mxu0 0.0
        %5639 = vmatprep.subr.mxu0 0.0
        %5640 = vmatpush1.xpose.msra.mxu0 0.0
        %5641 = vmatprep.subr.mxu0 0.0
        %5642 = vmatpush1.xpose.msra.mxu0 0.0
        %5643 = vmatprep.subr.mxu0 0.0
        %5644 = vmatpush1.xpose.msra.mxu0 0.0
        %5645 = vmatprep.subr.mxu0 0.0
        %5646 = vmatpush1.xpose.msra.mxu0 0.0
        %5647 = vmatprep.subr.mxu0 0.0
        %5648 = vmatpush1.xpose.msra.mxu0 0.0
        %5649 = vmatprep.subr.mxu0 0.0
        %5650 = vmatpush1.xpose.msra.mxu0 0.0
        %5651 = vmatprep.subr.mxu0 0.0
        %5652 = vmatpush1.xpose.msra.mxu0 0.0
        %5653 = vmatprep.subr.mxu0 0.0
        %5654 = vmatpush1.xpose.msra.mxu0 0.0
        %5655 = vmatprep.subr.mxu0 0.0
        %5656 = vmatpush1.xpose.msra.mxu0 0.0
        %5657 = vmatprep.subr.mxu0 0.0
        %5658 = vmatpush1.xpose.msra.mxu0 0.0
        %5659 = vmatprep.subr.mxu0 0.0
        %5660 = vmatpush1.xpose.msra.mxu0 0.0
        %5661 = vmatprep.subr.mxu0 0.0
        %5662 = vmatpush1.xpose.msra.mxu0 0.0
        %5663 = vmatprep.subr.mxu0 0.0
        %5664 = vmatpush1.xpose.msra.mxu0 0.0
        %5665 = vmatprep.subr.mxu0 0.0
        %5666 = vmatpush1.xpose.msra.mxu0 0.0
        %5667 = vmatprep.subr.mxu0 0.0
        %5668 = vmatpush1.xpose.msra.mxu0 0.0
        %5669 = vmatprep.subr.mxu0 0.0
        %5670 = vmatpush1.xpose.msra.mxu0 0.0
        %5671 = vmatprep.subr.mxu0 0.0
        %5672 = vmatpush1.xpose.msra.mxu0 0.0
        %5673 = vmatprep.subr.mxu0 0.0
        %5674 = vmatpush1.xpose.msra.mxu0 0.0
        %5675 = vmatprep.subr.mxu0 0.0
        %5676 = vmatpush1.xpose.msra.mxu0 0.0
        %5677 = vmatprep.subr.mxu0 0.0
        %5678 = vmatpush1.xpose.msra.mxu0 0.0
        %5679 = vmatprep.subr.mxu0 0.0
        %5680 = vmatpush1.xpose.msra.mxu0 0.0
        %5681 = vmatprep.subr.mxu0 0.0
        %5682 = vmatpush1.xpose.msra.mxu0 0.0
        %5683 = vmatprep.subr.mxu0 0.0
        %5684 = vmatpush1.xpose.msra.mxu0 0.0
        %5685 = vmatprep.subr.mxu0 0.0
        %5686 = vmatpush1.xpose.msra.mxu0 0.0
        %5687 = vmatprep.mubr.f32.mxu0 0.0
        %5688 = vmatmul.mubr.f32.gmra.mrb[0].mxu0 %v5619
        %v5689 = vpop.f32.mrb[0].mxu0
        %v5690 = vadd.f32 0.0, %v5689
        %v5691 = vpop.f32.mrb[0].mxu0
        %5692 = vdwg.mxu0
        %5693 = vrot.lane.b32.xlu0 %v602, 40
        %v5694 = vpop.permute.xlu0 %5693
        %5695 = vrot.lane.b32.xlu0 %v3493, 104
        %v5696 = vpop.permute.xlu0 %5695
        %v5697 = vsel %vm611, %v5694, 0
        %v5699 = vsel %vm611, %v5696, 0
        %5701 = vmatprep.subr.mxu0 0.0
        %5702 = vmatpush1.xpose.msra.mxu0 %v5699
        %5703 = vmatprep.subr.mxu0 0.0
        %5704 = vmatpush1.xpose.msra.mxu0 0.0
        %5705 = vmatprep.subr.mxu0 0.0
        %5706 = vmatpush1.xpose.msra.mxu0 0.0
        %5707 = vmatprep.subr.mxu0 0.0
        %5708 = vmatpush1.xpose.msra.mxu0 0.0
        %5709 = vmatprep.subr.mxu0 0.0
        %5710 = vmatpush1.xpose.msra.mxu0 0.0
        %5711 = vmatprep.subr.mxu0 0.0
        %5712 = vmatpush1.xpose.msra.mxu0 0.0
        %5713 = vmatprep.subr.mxu0 0.0
        %5714 = vmatpush1.xpose.msra.mxu0 0.0
        %5715 = vmatprep.subr.mxu0 0.0
        %5716 = vmatpush1.xpose.msra.mxu0 0.0
        %5717 = vmatprep.subr.mxu0 0.0
        %5718 = vmatpush1.xpose.msra.mxu0 0.0
        %5719 = vmatprep.subr.mxu0 0.0
        %5720 = vmatpush1.xpose.msra.mxu0 0.0
        %5721 = vmatprep.subr.mxu0 0.0
        %5722 = vmatpush1.xpose.msra.mxu0 0.0
        %5723 = vmatprep.subr.mxu0 0.0
        %5724 = vmatpush1.xpose.msra.mxu0 0.0
        %5725 = vmatprep.subr.mxu0 0.0
        %5726 = vmatpush1.xpose.msra.mxu0 0.0
        %5727 = vmatprep.subr.mxu0 0.0
        %5728 = vmatpush1.xpose.msra.mxu0 0.0
        %5729 = vmatprep.subr.mxu0 0.0
        %5730 = vmatpush1.xpose.msra.mxu0 0.0
        %5731 = vmatprep.subr.mxu0 0.0
        %5732 = vmatpush1.xpose.msra.mxu0 0.0
        %5733 = vmatprep.subr.mxu0 0.0
        %5734 = vmatpush1.xpose.msra.mxu0 0.0
        %5735 = vmatprep.subr.mxu0 0.0
        %5736 = vmatpush1.xpose.msra.mxu0 0.0
        %5737 = vmatprep.subr.mxu0 0.0
        %5738 = vmatpush1.xpose.msra.mxu0 0.0
        %5739 = vmatprep.subr.mxu0 0.0
        %5740 = vmatpush1.xpose.msra.mxu0 0.0
        %5741 = vmatprep.subr.mxu0 0.0
        %5742 = vmatpush1.xpose.msra.mxu0 0.0
        %5743 = vmatprep.subr.mxu0 0.0
        %5744 = vmatpush1.xpose.msra.mxu0 0.0
        %5745 = vmatprep.subr.mxu0 0.0
        %5746 = vmatpush1.xpose.msra.mxu0 0.0
        %5747 = vmatprep.subr.mxu0 0.0
        %5748 = vmatpush1.xpose.msra.mxu0 0.0
        %5749 = vmatprep.subr.mxu0 0.0
        %5750 = vmatpush1.xpose.msra.mxu0 0.0
        %5751 = vmatprep.subr.mxu0 0.0
        %5752 = vmatpush1.xpose.msra.mxu0 0.0
        %5753 = vmatprep.subr.mxu0 0.0
        %5754 = vmatpush1.xpose.msra.mxu0 0.0
        %5755 = vmatprep.subr.mxu0 0.0
        %5756 = vmatpush1.xpose.msra.mxu0 0.0
        %5757 = vmatprep.subr.mxu0 0.0
        %5758 = vmatpush1.xpose.msra.mxu0 0.0
        %5759 = vmatprep.subr.mxu0 0.0
        %5760 = vmatpush1.xpose.msra.mxu0 0.0
        %5761 = vmatprep.subr.mxu0 0.0
        %5762 = vmatpush1.xpose.msra.mxu0 0.0
        %5763 = vmatprep.subr.mxu0 0.0
        %5764 = vmatpush1.xpose.msra.mxu0 0.0
        %5765 = vmatprep.mubr.f32.mxu0 0.0
        %5766 = vmatmul.mubr.f32.gmra.mrb[0].mxu0 %v5697
        %v5767 = vpop.f32.mrb[0].mxu0
        %v5768 = vadd.f32 0.0, %v5767
        %v5769 = vpop.f32.mrb[0].mxu0
        %5770 = vdwg.mxu0
        %5771 = vrot.lane.b32.xlu0 %v607, 40
        %v5772 = vpop.permute.xlu0 %5771
        %5773 = vrot.lane.b32.xlu0 %v3498, 104
        %v5774 = vpop.permute.xlu0 %5773
        %v5775 = vsel %vm611, %v5772, 0
        %v5777 = vsel %vm611, %v5774, 0
        %5779 = vmatprep.subr.mxu0 0.0
        %5780 = vmatpush1.xpose.msra.mxu0 %v5777
        %5781 = vmatprep.subr.mxu0 0.0
        %5782 = vmatpush1.xpose.msra.mxu0 0.0
        %5783 = vmatprep.subr.mxu0 0.0
        %5784 = vmatpush1.xpose.msra.mxu0 0.0
        %5785 = vmatprep.subr.mxu0 0.0
        %5786 = vmatpush1.xpose.msra.mxu0 0.0
        %5787 = vmatprep.subr.mxu0 0.0
        %5788 = vmatpush1.xpose.msra.mxu0 0.0
        %5789 = vmatprep.subr.mxu0 0.0
        %5790 = vmatpush1.xpose.msra.mxu0 0.0
        %5791 = vmatprep.subr.mxu0 0.0
        %5792 = vmatpush1.xpose.msra.mxu0 0.0
        %5793 = vmatprep.subr.mxu0 0.0
        %5794 = vmatpush1.xpose.msra.mxu0 0.0
        %5795 = vmatprep.subr.mxu0 0.0
        %5796 = vmatpush1.xpose.msra.mxu0 0.0
        %5797 = vmatprep.subr.mxu0 0.0
        %5798 = vmatpush1.xpose.msra.mxu0 0.0
        %5799 = vmatprep.subr.mxu0 0.0
        %5800 = vmatpush1.xpose.msra.mxu0 0.0
        %5801 = vmatprep.subr.mxu0 0.0
        %5802 = vmatpush1.xpose.msra.mxu0 0.0
        %5803 = vmatprep.subr.mxu0 0.0
        %5804 = vmatpush1.xpose.msra.mxu0 0.0
        %5805 = vmatprep.subr.mxu0 0.0
        %5806 = vmatpush1.xpose.msra.mxu0 0.0
        %5807 = vmatprep.subr.mxu0 0.0
        %5808 = vmatpush1.xpose.msra.mxu0 0.0
        %5809 = vmatprep.subr.mxu0 0.0
        %5810 = vmatpush1.xpose.msra.mxu0 0.0
        %5811 = vmatprep.subr.mxu0 0.0
        %5812 = vmatpush1.xpose.msra.mxu0 0.0
        %5813 = vmatprep.subr.mxu0 0.0
        %5814 = vmatpush1.xpose.msra.mxu0 0.0
        %5815 = vmatprep.subr.mxu0 0.0
        %5816 = vmatpush1.xpose.msra.mxu0 0.0
        %5817 = vmatprep.subr.mxu0 0.0
        %5818 = vmatpush1.xpose.msra.mxu0 0.0
        %5819 = vmatprep.subr.mxu0 0.0
        %5820 = vmatpush1.xpose.msra.mxu0 0.0
        %5821 = vmatprep.subr.mxu0 0.0
        %5822 = vmatpush1.xpose.msra.mxu0 0.0
        %5823 = vmatprep.subr.mxu0 0.0
        %5824 = vmatpush1.xpose.msra.mxu0 0.0
        %5825 = vmatprep.subr.mxu0 0.0
        %5826 = vmatpush1.xpose.msra.mxu0 0.0
        %5827 = vmatprep.subr.mxu0 0.0
        %5828 = vmatpush1.xpose.msra.mxu0 0.0
        %5829 = vmatprep.subr.mxu0 0.0
        %5830 = vmatpush1.xpose.msra.mxu0 0.0
        %5831 = vmatprep.subr.mxu0 0.0
        %5832 = vmatpush1.xpose.msra.mxu0 0.0
        %5833 = vmatprep.subr.mxu0 0.0
        %5834 = vmatpush1.xpose.msra.mxu0 0.0
        %5835 = vmatprep.subr.mxu0 0.0
        %5836 = vmatpush1.xpose.msra.mxu0 0.0
        %5837 = vmatprep.subr.mxu0 0.0
        %5838 = vmatpush1.xpose.msra.mxu0 0.0
        %5839 = vmatprep.subr.mxu0 0.0
        %5840 = vmatpush1.xpose.msra.mxu0 0.0
        %5841 = vmatprep.subr.mxu0 0.0
        %5842 = vmatpush1.xpose.msra.mxu0 0.0
        %5843 = vmatprep.mubr.f32.mxu0 0.0
        %5844 = vmatmul.mubr.f32.gmra.mrb[0].mxu0 %v5775
        %v5845 = vpop.f32.mrb[0].mxu0
        %v5846 = vadd.f32 0.0, %v5845
        %v5847 = vpop.f32.mrb[0].mxu0
        %5848 = vdwg.mxu0
        %v5849 = vsel %vm611, %v5612, -inf
        %5850 = vmax.xlane.f32.xlu0 %v5849
        %v5851 = vpop.xlane.xlu0 %5850
        %v5852 = vsel %vm611, %v5690, -inf
        %5853 = vmax.xlane.f32.xlu0 %v5852
        %v5854 = vpop.xlane.xlu0 %5853
        %v5855 = vsel %vm611, %v5768, -inf
        %5856 = vmax.xlane.f32.xlu0 %v5855
        %v5857 = vpop.xlane.xlu0 %5856
        %v5858 = vsel %vm611, %v5846, -inf
        %5859 = vmax.xlane.f32.xlu0 %v5858
        %v5860 = vpop.xlane.xlu0 %5859
        %v5861 = vsub.f32 %v5612, %v5851
        %v5862 = vsub.f32 %v5690, %v5854
        %v5863 = vsub.f32 %v5768, %v5857
        %v5864 = vsub.f32 %v5846, %v5860
        %v5865 = vmul.f32 %v5861, 1.442695
        %v5866 = vpow.pop %v5865
        %v5867 = vmul.f32 %v5862, 1.442695
        %v5868 = vpow.pop %v5867
        %v5869 = vmul.f32 %v5863, 1.442695
        %v5870 = vpow.pop %v5869
        %v5871 = vmul.f32 %v5864, 1.442695
        %v5872 = vpow.pop %v5871
        %v5873 = vsel %vm611, %v5866, 0.0
        %5874 = vadd.xlane.f32.xlu0 %v5873
        %v5875 = vpop.xlane.xlu0 %5874
        %v5876 = vsel %vm611, %v5868, 0.0
        %5877 = vadd.xlane.f32.xlu0 %v5876
        %v5878 = vpop.xlane.xlu0 %5877
        %v5879 = vsel %vm611, %v5870, 0.0
        %5880 = vadd.xlane.f32.xlu0 %v5879
        %v5881 = vpop.xlane.xlu0 %5880
        %v5882 = vsel %vm611, %v5872, 0.0
        %5883 = vadd.xlane.f32.xlu0 %v5882
        %v5884 = vpop.xlane.xlu0 %5883
        %v5885 = vrcp.pop %v5875
        %v5886 = vrcp.pop %v5878
        %v5887 = vrcp.pop %v5881
        %v5888 = vrcp.pop %v5884
        %v5889 = vmul.f32 %v5866, %v5885
        %v5890 = vmul.f32 %v5868, %v5886
        %v5891 = vmul.f32 %v5870, %v5887
        %v5892 = vmul.f32 %v5872, %v5888
        %5893 = vrot.lane.b32.xlu0 %v3483, 72
        %v5894 = vpop.permute.xlu0 %5893
        %v5897 = vsel %vm611, %v5889, 0
        %5899 = vmatprep.subr.mxu0 0.0
        %5900 = vmatpush1.msra.mxu0 %v5894
        %5901 = vmatprep.subr.mxu0 0.0
        %5902 = vmatpush1.msra.mxu0 0.0
        %5903 = vmatprep.subr.mxu0 0.0
        %5904 = vmatpush1.msra.mxu0 0.0
        %5905 = vmatprep.subr.mxu0 0.0
        %5906 = vmatpush1.msra.mxu0 0.0
        %5907 = vmatprep.subr.mxu0 0.0
        %5908 = vmatpush1.msra.mxu0 0.0
        %5909 = vmatprep.subr.mxu0 0.0
        %5910 = vmatpush1.msra.mxu0 0.0
        %5911 = vmatprep.subr.mxu0 0.0
        %5912 = vmatpush1.msra.mxu0 0.0
        %5913 = vmatprep.subr.mxu0 0.0
        %5914 = vmatpush1.msra.mxu0 0.0
        %5915 = vmatprep.subr.mxu0 0.0
        %5916 = vmatpush1.msra.mxu0 0.0
        %5917 = vmatprep.subr.mxu0 0.0
        %5918 = vmatpush1.msra.mxu0 0.0
        %5919 = vmatprep.subr.mxu0 0.0
        %5920 = vmatpush1.msra.mxu0 0.0
        %5921 = vmatprep.subr.mxu0 0.0
        %5922 = vmatpush1.msra.mxu0 0.0
        %5923 = vmatprep.subr.mxu0 0.0
        %5924 = vmatpush1.msra.mxu0 0.0
        %5925 = vmatprep.subr.mxu0 0.0
        %5926 = vmatpush1.msra.mxu0 0.0
        %5927 = vmatprep.subr.mxu0 0.0
        %5928 = vmatpush1.msra.mxu0 0.0
        %5929 = vmatprep.subr.mxu0 0.0
        %5930 = vmatpush1.msra.mxu0 0.0
        %5931 = vmatprep.subr.mxu0 0.0
        %5932 = vmatpush1.msra.mxu0 0.0
        %5933 = vmatprep.subr.mxu0 0.0
        %5934 = vmatpush1.msra.mxu0 0.0
        %5935 = vmatprep.subr.mxu0 0.0
        %5936 = vmatpush1.msra.mxu0 0.0
        %5937 = vmatprep.subr.mxu0 0.0
        %5938 = vmatpush1.msra.mxu0 0.0
        %5939 = vmatprep.subr.mxu0 0.0
        %5940 = vmatpush1.msra.mxu0 0.0
        %5941 = vmatprep.subr.mxu0 0.0
        %5942 = vmatpush1.msra.mxu0 0.0
        %5943 = vmatprep.subr.mxu0 0.0
        %5944 = vmatpush1.msra.mxu0 0.0
        %5945 = vmatprep.subr.mxu0 0.0
        %5946 = vmatpush1.msra.mxu0 0.0
        %5947 = vmatprep.subr.mxu0 0.0
        %5948 = vmatpush1.msra.mxu0 0.0
        %5949 = vmatprep.subr.mxu0 0.0
        %5950 = vmatpush1.msra.mxu0 0.0
        %5951 = vmatprep.subr.mxu0 0.0
        %5952 = vmatpush1.msra.mxu0 0.0
        %5953 = vmatprep.subr.mxu0 0.0
        %5954 = vmatpush1.msra.mxu0 0.0
        %5955 = vmatprep.subr.mxu0 0.0
        %5956 = vmatpush1.msra.mxu0 0.0
        %5957 = vmatprep.subr.mxu0 0.0
        %5958 = vmatpush1.msra.mxu0 0.0
        %5959 = vmatprep.subr.mxu0 0.0
        %5960 = vmatpush1.msra.mxu0 0.0
        %5961 = vmatprep.subr.mxu0 0.0
        %5962 = vmatpush1.msra.mxu0 0.0
        %5963 = vmatprep.mubr.f32.mxu0 0.0
        %5964 = vmatmul.mubr.f32.gmra.mrb[0].mxu0 %v5897
        %v5965 = vpop.f32.mrb[0].mxu0
        %v5966 = vadd.f32 0.0, %v5965
        %v5967 = vpop.f32.mrb[0].mxu0
        %5968 = vdwg.mxu0
        %5969 = vrot.lane.b32.xlu0 %v3488, 72
        %v5970 = vpop.permute.xlu0 %5969
        %v5973 = vsel %vm611, %v5890, 0
        %5975 = vmatprep.subr.mxu0 0.0
        %5976 = vmatpush1.msra.mxu0 %v5970
        %5977 = vmatprep.subr.mxu0 0.0
        %5978 = vmatpush1.msra.mxu0 0.0
        %5979 = vmatprep.subr.mxu0 0.0
        %5980 = vmatpush1.msra.mxu0 0.0
        %5981 = vmatprep.subr.mxu0 0.0
        %5982 = vmatpush1.msra.mxu0 0.0
        %5983 = vmatprep.subr.mxu0 0.0
        %5984 = vmatpush1.msra.mxu0 0.0
        %5985 = vmatprep.subr.mxu0 0.0
        %5986 = vmatpush1.msra.mxu0 0.0
        %5987 = vmatprep.subr.mxu0 0.0
        %5988 = vmatpush1.msra.mxu0 0.0
        %5989 = vmatprep.subr.mxu0 0.0
        %5990 = vmatpush1.msra.mxu0 0.0
        %5991 = vmatprep.subr.mxu0 0.0
        %5992 = vmatpush1.msra.mxu0 0.0
        %5993 = vmatprep.subr.mxu0 0.0
        %5994 = vmatpush1.msra.mxu0 0.0
        %5995 = vmatprep.subr.mxu0 0.0
        %5996 = vmatpush1.msra.mxu0 0.0
        %5997 = vmatprep.subr.mxu0 0.0
        %5998 = vmatpush1.msra.mxu0 0.0
        %5999 = vmatprep.subr.mxu0 0.0
        %6000 = vmatpush1.msra.mxu0 0.0
        %6001 = vmatprep.subr.mxu0 0.0
        %6002 = vmatpush1.msra.mxu0 0.0
        %6003 = vmatprep.subr.mxu0 0.0
        %6004 = vmatpush1.msra.mxu0 0.0
        %6005 = vmatprep.subr.mxu0 0.0
        %6006 = vmatpush1.msra.mxu0 0.0
        %6007 = vmatprep.subr.mxu0 0.0
        %6008 = vmatpush1.msra.mxu0 0.0
        %6009 = vmatprep.subr.mxu0 0.0
        %6010 = vmatpush1.msra.mxu0 0.0
        %6011 = vmatprep.subr.mxu0 0.0
        %6012 = vmatpush1.msra.mxu0 0.0
        %6013 = vmatprep.subr.mxu0 0.0
        %6014 = vmatpush1.msra.mxu0 0.0
        %6015 = vmatprep.subr.mxu0 0.0
        %6016 = vmatpush1.msra.mxu0 0.0
        %6017 = vmatprep.subr.mxu0 0.0
        %6018 = vmatpush1.msra.mxu0 0.0
        %6019 = vmatprep.subr.mxu0 0.0
        %6020 = vmatpush1.msra.mxu0 0.0
        %6021 = vmatprep.subr.mxu0 0.0
        %6022 = vmatpush1.msra.mxu0 0.0
        %6023 = vmatprep.subr.mxu0 0.0
        %6024 = vmatpush1.msra.mxu0 0.0
        %6025 = vmatprep.subr.mxu0 0.0
        %6026 = vmatpush1.msra.mxu0 0.0
        %6027 = vmatprep.subr.mxu0 0.0
        %6028 = vmatpush1.msra.mxu0 0.0
        %6029 = vmatprep.subr.mxu0 0.0
        %6030 = vmatpush1.msra.mxu0 0.0
        %6031 = vmatprep.subr.mxu0 0.0
        %6032 = vmatpush1.msra.mxu0 0.0
        %6033 = vmatprep.subr.mxu0 0.0
        %6034 = vmatpush1.msra.mxu0 0.0
        %6035 = vmatprep.subr.mxu0 0.0
        %6036 = vmatpush1.msra.mxu0 0.0
        %6037 = vmatprep.subr.mxu0 0.0
        %6038 = vmatpush1.msra.mxu0 0.0
        %6039 = vmatprep.mubr.f32.mxu0 0.0
        %6040 = vmatmul.mubr.f32.gmra.mrb[0].mxu0 %v5973
        %v6041 = vpop.f32.mrb[0].mxu0
        %v6042 = vadd.f32 0.0, %v6041
        %v6043 = vpop.f32.mrb[0].mxu0
        %6044 = vdwg.mxu0
        %6045 = vrot.lane.b32.xlu0 %v3493, 72
        %v6046 = vpop.permute.xlu0 %6045
        %v6049 = vsel %vm611, %v5891, 0
        %6051 = vmatprep.subr.mxu0 0.0
        %6052 = vmatpush1.msra.mxu0 %v6046
        %6053 = vmatprep.subr.mxu0 0.0
        %6054 = vmatpush1.msra.mxu0 0.0
        %6055 = vmatprep.subr.mxu0 0.0
        %6056 = vmatpush1.msra.mxu0 0.0
        %6057 = vmatprep.subr.mxu0 0.0
        %6058 = vmatpush1.msra.mxu0 0.0
        %6059 = vmatprep.subr.mxu0 0.0
        %6060 = vmatpush1.msra.mxu0 0.0
        %6061 = vmatprep.subr.mxu0 0.0
        %6062 = vmatpush1.msra.mxu0 0.0
        %6063 = vmatprep.subr.mxu0 0.0
        %6064 = vmatpush1.msra.mxu0 0.0
        %6065 = vmatprep.subr.mxu0 0.0
        %6066 = vmatpush1.msra.mxu0 0.0
        %6067 = vmatprep.subr.mxu0 0.0
        %6068 = vmatpush1.msra.mxu0 0.0
        %6069 = vmatprep.subr.mxu0 0.0
        %6070 = vmatpush1.msra.mxu0 0.0
        %6071 = vmatprep.subr.mxu0 0.0
        %6072 = vmatpush1.msra.mxu0 0.0
        %6073 = vmatprep.subr.mxu0 0.0
        %6074 = vmatpush1.msra.mxu0 0.0
        %6075 = vmatprep.subr.mxu0 0.0
        %6076 = vmatpush1.msra.mxu0 0.0
        %6077 = vmatprep.subr.mxu0 0.0
        %6078 = vmatpush1.msra.mxu0 0.0
        %6079 = vmatprep.subr.mxu0 0.0
        %6080 = vmatpush1.msra.mxu0 0.0
        %6081 = vmatprep.subr.mxu0 0.0
        %6082 = vmatpush1.msra.mxu0 0.0
        %6083 = vmatprep.subr.mxu0 0.0
        %6084 = vmatpush1.msra.mxu0 0.0
        %6085 = vmatprep.subr.mxu0 0.0
        %6086 = vmatpush1.msra.mxu0 0.0
        %6087 = vmatprep.subr.mxu0 0.0
        %6088 = vmatpush1.msra.mxu0 0.0
        %6089 = vmatprep.subr.mxu0 0.0
        %6090 = vmatpush1.msra.mxu0 0.0
        %6091 = vmatprep.subr.mxu0 0.0
        %6092 = vmatpush1.msra.mxu0 0.0
        %6093 = vmatprep.subr.mxu0 0.0
        %6094 = vmatpush1.msra.mxu0 0.0
        %6095 = vmatprep.subr.mxu0 0.0
        %6096 = vmatpush1.msra.mxu0 0.0
        %6097 = vmatprep.subr.mxu0 0.0
        %6098 = vmatpush1.msra.mxu0 0.0
        %6099 = vmatprep.subr.mxu0 0.0
        %6100 = vmatpush1.msra.mxu0 0.0
        %6101 = vmatprep.subr.mxu0 0.0
        %6102 = vmatpush1.msra.mxu0 0.0
        %6103 = vmatprep.subr.mxu0 0.0
        %6104 = vmatpush1.msra.mxu0 0.0
        %6105 = vmatprep.subr.mxu0 0.0
        %6106 = vmatpush1.msra.mxu0 0.0
        %6107 = vmatprep.subr.mxu0 0.0
        %6108 = vmatpush1.msra.mxu0 0.0
        %6109 = vmatprep.subr.mxu0 0.0
        %6110 = vmatpush1.msra.mxu0 0.0
        %6111 = vmatprep.subr.mxu0 0.0
        %6112 = vmatpush1.msra.mxu0 0.0
        %6113 = vmatprep.subr.mxu0 0.0
        %6114 = vmatpush1.msra.mxu0 0.0
        %6115 = vmatprep.mubr.f32.mxu0 0.0
        %6116 = vmatmul.mubr.f32.gmra.mrb[0].mxu0 %v6049
        %v6117 = vpop.f32.mrb[0].mxu0
        %v6118 = vadd.f32 0.0, %v6117
        %v6119 = vpop.f32.mrb[0].mxu0
        %6120 = vdwg.mxu0
        %6121 = vrot.lane.b32.xlu0 %v3498, 72
        %v6122 = vpop.permute.xlu0 %6121
        %v6125 = vsel %vm611, %v5892, 0
        %6127 = vmatprep.subr.mxu0 0.0
        %6128 = vmatpush1.msra.mxu0 %v6122
        %6129 = vmatprep.subr.mxu0 0.0
        %6130 = vmatpush1.msra.mxu0 0.0
        %6131 = vmatprep.subr.mxu0 0.0
        %6132 = vmatpush1.msra.mxu0 0.0
        %6133 = vmatprep.subr.mxu0 0.0
        %6134 = vmatpush1.msra.mxu0 0.0
        %6135 = vmatprep.subr.mxu0 0.0
        %6136 = vmatpush1.msra.mxu0 0.0
        %6137 = vmatprep.subr.mxu0 0.0
        %6138 = vmatpush1.msra.mxu0 0.0
        %6139 = vmatprep.subr.mxu0 0.0
        %6140 = vmatpush1.msra.mxu0 0.0
        %6141 = vmatprep.subr.mxu0 0.0
        %6142 = vmatpush1.msra.mxu0 0.0
        %6143 = vmatprep.subr.mxu0 0.0
        %6144 = vmatpush1.msra.mxu0 0.0
        %6145 = vmatprep.subr.mxu0 0.0
        %6146 = vmatpush1.msra.mxu0 0.0
        %6147 = vmatprep.subr.mxu0 0.0
        %6148 = vmatpush1.msra.mxu0 0.0
        %6149 = vmatprep.subr.mxu0 0.0
        %6150 = vmatpush1.msra.mxu0 0.0
        %6151 = vmatprep.subr.mxu0 0.0
        %6152 = vmatpush1.msra.mxu0 0.0
        %6153 = vmatprep.subr.mxu0 0.0
        %6154 = vmatpush1.msra.mxu0 0.0
        %6155 = vmatprep.subr.mxu0 0.0
        %6156 = vmatpush1.msra.mxu0 0.0
        %6157 = vmatprep.subr.mxu0 0.0
        %6158 = vmatpush1.msra.mxu0 0.0
        %6159 = vmatprep.subr.mxu0 0.0
        %6160 = vmatpush1.msra.mxu0 0.0
        %6161 = vmatprep.subr.mxu0 0.0
        %6162 = vmatpush1.msra.mxu0 0.0
        %6163 = vmatprep.subr.mxu0 0.0
        %6164 = vmatpush1.msra.mxu0 0.0
        %6165 = vmatprep.subr.mxu0 0.0
        %6166 = vmatpush1.msra.mxu0 0.0
        %6167 = vmatprep.subr.mxu0 0.0
        %6168 = vmatpush1.msra.mxu0 0.0
        %6169 = vmatprep.subr.mxu0 0.0
        %6170 = vmatpush1.msra.mxu0 0.0
        %6171 = vmatprep.subr.mxu0 0.0
        %6172 = vmatpush1.msra.mxu0 0.0
        %6173 = vmatprep.subr.mxu0 0.0
        %6174 = vmatpush1.msra.mxu0 0.0
        %6175 = vmatprep.subr.mxu0 0.0
        %6176 = vmatpush1.msra.mxu0 0.0
        %6177 = vmatprep.subr.mxu0 0.0
        %6178 = vmatpush1.msra.mxu0 0.0
        %6179 = vmatprep.subr.mxu0 0.0
        %6180 = vmatpush1.msra.mxu0 0.0
        %6181 = vmatprep.subr.mxu0 0.0
        %6182 = vmatpush1.msra.mxu0 0.0
        %6183 = vmatprep.subr.mxu0 0.0
        %6184 = vmatpush1.msra.mxu0 0.0
        %6185 = vmatprep.subr.mxu0 0.0
        %6186 = vmatpush1.msra.mxu0 0.0
        %6187 = vmatprep.subr.mxu0 0.0
        %6188 = vmatpush1.msra.mxu0 0.0
        %6189 = vmatprep.subr.mxu0 0.0
        %6190 = vmatpush1.msra.mxu0 0.0
        %6191 = vmatprep.mubr.f32.mxu0 0.0
        %6192 = vmatmul.mubr.f32.gmra.mrb[0].mxu0 %v6125
        %v6193 = vpop.f32.mrb[0].mxu0
        %v6194 = vadd.f32 0.0, %v6193
        %v6195 = vpop.f32.mrb[0].mxu0
        %6196 = vdwg.mxu0
        %6201 = vrot.lane.b32.xlu0 %v5966, 88
        %v6202 = vpop.permute.xlu0 %6201
        %6203 = vrot.lane.b32.xlu0 %v6042, 88
        %v6204 = vpop.permute.xlu0 %6203
        %6205 = vrot.lane.b32.xlu0 %v6118, 88
        %v6206 = vpop.permute.xlu0 %6205
        %6207 = vrot.lane.b32.xlu0 %v6194, 88
        %v6208 = vpop.permute.xlu0 %6207
        %v6213 = vadd.f32 %v592, %v6202
        %v6214 = vadd.f32 %v597, %v6204
        %v6215 = vadd.f32 %v602, %v6206
        %v6216 = vadd.f32 %v607, %v6208
        %6221 = vrot.lane.b32.xlu0 %v4173, 64
        %v6222 = vpop.permute.xlu0 %6221
        %6223 = vrot.lane.b32.xlu0 %v4174, 64
        %v6224 = vpop.permute.xlu0 %6223
        %6225 = vrot.lane.b32.xlu0 %v4175, 64
        %v6226 = vpop.permute.xlu0 %6225
        %6227 = vrot.lane.b32.xlu0 %v4176, 64
        %v6228 = vpop.permute.xlu0 %6227
        %6237 = vrot.lane.b32.xlu0 %v4853, 64
        %v6238 = vpop.permute.xlu0 %6237
        %6239 = vrot.lane.b32.xlu0 %v4854, 64
        %v6240 = vpop.permute.xlu0 %6239
        %6241 = vrot.lane.b32.xlu0 %v4855, 64
        %v6242 = vpop.permute.xlu0 %6241
        %6243 = vrot.lane.b32.xlu0 %v4856, 64
        %v6244 = vpop.permute.xlu0 %6243
        %6253 = vrot.lane.b32.xlu0 %v5533, 64
        %v6254 = vpop.permute.xlu0 %6253
        %6255 = vrot.lane.b32.xlu0 %v5534, 64
        %v6256 = vpop.permute.xlu0 %6255
        %6257 = vrot.lane.b32.xlu0 %v5535, 64
        %v6258 = vpop.permute.xlu0 %6257
        %6259 = vrot.lane.b32.xlu0 %v5536, 64
        %v6260 = vpop.permute.xlu0 %6259
        %6269 = vrot.lane.b32.xlu0 %v6213, 64
        %v6270 = vpop.permute.xlu0 %6269
        %6271 = vrot.lane.b32.xlu0 %v6214, 64
        %v6272 = vpop.permute.xlu0 %6271
        %6273 = vrot.lane.b32.xlu0 %v6215, 64
        %v6274 = vpop.permute.xlu0 %6273
        %6275 = vrot.lane.b32.xlu0 %v6216, 64
        %v6276 = vpop.permute.xlu0 %6275
        %v6281 = vsel %vm611, %v6222, %v6238
        %v6282 = vsel %vm611, %v6224, %v6240
        %v6283 = vsel %vm611, %v6226, %v6242
        %v6284 = vsel %vm611, %v6228, %v6244
        %v6285 = vsel %vm512, %v6281, %v6254
        %v6286 = vsel %vm512, %v6282, %v6256
        %v6287 = vsel %vm512, %v6283, %v6258
        %v6288 = vsel %vm512, %v6284, %v6260
        %v6289 = vsel %vm3271, %v6285, %v6270
        %v6290 = vsel %vm3271, %v6286, %v6272
        %v6291 = vsel %vm3271, %v6287, %v6274
        %v6292 = vsel %vm3271, %v6288, %v6276
        %v6293 = vld [vmem:[#allocation16] sm:$0xff]
        %v6294 = vld [vmem:[#allocation16 + $0x8] sm:$0xff]
        %v6295 = vld [vmem:[#allocation16 + $0x10] sm:$0xff]
        %v6296 = vld [vmem:[#allocation16 + $0x18] sm:$0xff]
        %v6297 = vld [vmem:[#allocation17] sm:$0x1]
        %v6299 = vlaneseq
        %v6300 = vshrl.u32 %v6299, 7
        %v6301 = vsub.s32 0, %v6300
        %v6302 = vrot.slane %v6297, %v6301
        %v6305 = vsel %vm3287, %v6289, 0
        %v6308 = vsel %vm3287, %v6290, 0
        %v6311 = vsel %vm3287, %v6291, 0
        %v6314 = vsel %vm3287, %v6292, 0
        %6316 = vmatprep.subr.mxu0 0.0
        %6317 = vmatpush1.msra.mxu0 %v6293
        %6318 = vmatprep.subr.mxu0 0.0
        %6319 = vmatpush1.msra.mxu0 %v6294
        %6320 = vmatprep.subr.mxu0 0.0
        %6321 = vmatpush1.msra.mxu0 %v6295
        %6322 = vmatprep.subr.mxu0 0.0
        %6323 = vmatpush1.msra.mxu0 %v6296
        %6324 = vmatprep.subr.mxu0 0.0
        %6325 = vmatpush1.msra.mxu0 0.0
        %6326 = vmatprep.subr.mxu0 0.0
        %6327 = vmatpush1.msra.mxu0 0.0
        %6328 = vmatprep.subr.mxu0 0.0
        %6329 = vmatpush1.msra.mxu0 0.0
        %6330 = vmatprep.subr.mxu0 0.0
        %6331 = vmatpush1.msra.mxu0 0.0
        %6332 = vmatprep.subr.mxu0 0.0
        %6333 = vmatpush1.msra.mxu0 0.0
        %6334 = vmatprep.subr.mxu0 0.0
        %6335 = vmatpush1.msra.mxu0 0.0
        %6336 = vmatprep.subr.mxu0 0.0
        %6337 = vmatpush1.msra.mxu0 0.0
        %6338 = vmatprep.subr.mxu0 0.0
        %6339 = vmatpush1.msra.mxu0 0.0
        %6340 = vmatprep.subr.mxu0 0.0
        %6341 = vmatpush1.msra.mxu0 0.0
        %6342 = vmatprep.subr.mxu0 0.0
        %6343 = vmatpush1.msra.mxu0 0.0
        %6344 = vmatprep.subr.mxu0 0.0
        %6345 = vmatpush1.msra.mxu0 0.0
        %6346 = vmatprep.subr.mxu0 0.0
        %6347 = vmatpush1.msra.mxu0 0.0
        %6348 = vmatprep.subr.mxu0 0.0
        %6349 = vmatpush1.msra.mxu0 0.0
        %6350 = vmatprep.subr.mxu0 0.0
        %6351 = vmatpush1.msra.mxu0 0.0
        %6352 = vmatprep.subr.mxu0 0.0
        %6353 = vmatpush1.msra.mxu0 0.0
        %6354 = vmatprep.subr.mxu0 0.0
        %6355 = vmatpush1.msra.mxu0 0.0
        %6356 = vmatprep.subr.mxu0 0.0
        %6357 = vmatpush1.msra.mxu0 0.0
        %6358 = vmatprep.subr.mxu0 0.0
        %6359 = vmatpush1.msra.mxu0 0.0
        %6360 = vmatprep.subr.mxu0 0.0
        %6361 = vmatpush1.msra.mxu0 0.0
        %6362 = vmatprep.subr.mxu0 0.0
        %6363 = vmatpush1.msra.mxu0 0.0
        %6364 = vmatprep.subr.mxu0 0.0
        %6365 = vmatpush1.msra.mxu0 0.0
        %6366 = vmatprep.subr.mxu0 0.0
        %6367 = vmatpush1.msra.mxu0 0.0
        %6368 = vmatprep.subr.mxu0 0.0
        %6369 = vmatpush1.msra.mxu0 0.0
        %6370 = vmatprep.subr.mxu0 0.0
        %6371 = vmatpush1.msra.mxu0 0.0
        %6372 = vmatprep.subr.mxu0 0.0
        %6373 = vmatpush1.msra.mxu0 0.0
        %6374 = vmatprep.subr.mxu0 0.0
        %6375 = vmatpush1.msra.mxu0 0.0
        %6376 = vmatprep.subr.mxu0 0.0
        %6377 = vmatpush1.msra.mxu0 0.0
        %6378 = vmatprep.subr.mxu0 0.0
        %6379 = vmatpush1.msra.mxu0 0.0
        %6380 = vmatprep.mubr.f32.mxu0 0.0
        %6381 = vmatmul.mubr.f32.gmra.mrb[0].mxu0 %v6305
        %v6382 = vpop.f32.mrb[0].mxu0
        %v6383 = vadd.f32 %v6302, %v6382
        %v6384 = vpop.f32.mrb[0].mxu0
        %6385 = vmatprep.mubr.f32.mxu0 0.0
        %6386 = vmatmul.mubr.f32.gmra.mrb[0].mxu0 %v6308
        %v6387 = vpop.f32.mrb[0].mxu0
        %v6388 = vadd.f32 %v6302, %v6387
        %v6389 = vpop.f32.mrb[0].mxu0
        %6390 = vmatprep.mubr.f32.mxu0 0.0
        %6391 = vmatmul.mubr.f32.gmra.mrb[0].mxu0 %v6311
        %v6392 = vpop.f32.mrb[0].mxu0
        %v6393 = vadd.f32 %v6302, %v6392
        %v6394 = vpop.f32.mrb[0].mxu0
        %6395 = vmatprep.mubr.f32.mxu0 0.0
        %6396 = vmatmul.mubr.f32.gmra.mrb[0].mxu0 %v6314
        %v6397 = vpop.f32.mrb[0].mxu0
        %v6398 = vadd.f32 %v6302, %v6397
        %v6399 = vpop.f32.mrb[0].mxu0
        %6400 = vdwg.mxu0
        %v6401 = vmax.f32 %v6383, 0.0
        %v6402 = vmax.f32 %v6388, 0.0
        %v6403 = vmax.f32 %v6393, 0.0
        %v6404 = vmax.f32 %v6398, 0.0
        %v6405 = vadd.f32 %v6289, %v6401
        %v6406 = vadd.f32 %v6290, %v6402
        %v6407 = vadd.f32 %v6291, %v6403
        %v6408 = vadd.f32 %v6292, %v6404
        %v6413 = vrot.slane %v6406, 7
        %vm6414 = vcmask 1041409
        %v6415 = vsel %vm6414, %v6413, %v6405
        %v6416 = vrot.slane %v6407, 6
        %vm6417 = vcmask 1042434
        %v6418 = vsel %vm6417, %v6416, %v6415
        %v6419 = vrot.slane %v6408, 5
        %vm6420 = vcmask 1043459
        %v6421 = vsel %vm6420, %v6419, %v6418
        %v6423 = vrot.slane %v6405, 1
        %v6424 = vsel %vm6414, %v6406, %v6423
        %v6425 = vrot.slane %v6407, 7
        %v6426 = vsel %vm6417, %v6425, %v6424
        %v6427 = vrot.slane %v6408, 6
        %v6428 = vsel %vm6420, %v6427, %v6426
        %6429 = vrot.lane.b32.xlu0 %v6428, 32
        %v6430 = vpop.permute.xlu0 %6429
        %v6432 = vrot.slane %v6405, 2
        %v6433 = vrot.slane %v6406, 1
        %v6434 = vsel %vm6414, %v6433, %v6432
        %v6435 = vsel %vm6417, %v6407, %v6434
        %v6436 = vrot.slane %v6408, 7
        %v6437 = vsel %vm6420, %v6436, %v6435
        %6438 = vrot.lane.b32.xlu0 %v6437, 64
        %v6439 = vpop.permute.xlu0 %6438
        %v6441 = vrot.slane %v6405, 3
        %v6442 = vrot.slane %v6406, 2
        %v6443 = vsel %vm6414, %v6442, %v6441
        %v6444 = vrot.slane %v6407, 1
        %v6445 = vsel %vm6417, %v6444, %v6443
        %v6446 = vsel %vm6420, %v6408, %v6445
        %6447 = vrot.lane.b32.xlu0 %v6446, 96
        %v6448 = vpop.permute.xlu0 %6447
        %v6450 = vrot.slane %v6405, 4
        %v6451 = vrot.slane %v6406, 3
        %v6452 = vsel %vm6414, %v6451, %v6450
        %v6453 = vrot.slane %v6407, 2
        %v6454 = vsel %vm6417, %v6453, %v6452
        %v6455 = vrot.slane %v6408, 1
        %v6456 = vsel %vm6420, %v6455, %v6454
        %v6458 = vrot.slane %v6405, 5
        %v6459 = vrot.slane %v6406, 4
        %v6460 = vsel %vm6414, %v6459, %v6458
        %v6461 = vrot.slane %v6407, 3
        %v6462 = vsel %vm6417, %v6461, %v6460
        %v6463 = vrot.slane %v6408, 2
        %v6464 = vsel %vm6420, %v6463, %v6462
        %6465 = vrot.lane.b32.xlu0 %v6464, 32
        %v6466 = vpop.permute.xlu0 %6465
        %v6468 = vrot.slane %v6405, 6
        %v6469 = vrot.slane %v6406, 5
        %v6470 = vsel %vm6414, %v6469, %v6468
        %v6471 = vrot.slane %v6407, 4
        %v6472 = vsel %vm6417, %v6471, %v6470
        %v6473 = vrot.slane %v6408, 3
        %v6474 = vsel %vm6420, %v6473, %v6472
        %6475 = vrot.lane.b32.xlu0 %v6474, 64
        %v6476 = vpop.permute.xlu0 %6475
        %v6478 = vrot.slane %v6405, 7
        %v6479 = vrot.slane %v6406, 6
        %v6480 = vsel %vm6414, %v6479, %v6478
        %v6481 = vrot.slane %v6407, 5
        %v6482 = vsel %vm6417, %v6481, %v6480
        %v6483 = vrot.slane %v6408, 4
        %v6484 = vsel %vm6420, %v6483, %v6482
        %6485 = vrot.lane.b32.xlu0 %v6484, 96
        %v6486 = vpop.permute.xlu0 %6485
        %v6488 = vsel %vm3287, %v6421, %v6430
        %vm6489 = vcmask 523264
        %v6490 = vsel %vm6489, %v6488, %v6439
        %vm6491 = vcmask 785408
        %v6492 = vsel %vm6491, %v6490, %v6448
        %v6493 = vsel %vm3287, %v6456, %v6466
        %v6494 = vsel %vm6489, %v6493, %v6476
        %v6495 = vsel %vm6491, %v6494, %v6486
        %v6498 = vcombine.low %v6492, %v6495
        %6500 = vst [vmem:[%s498] sm:$0xff] %v6498
        %s6501 = sand.u32 %s255, 1
        %s6502 = scalar_lea.sflag [#allocation4], %s6501
        %s6503 = sand.u32 %s255, 1
        %s6504 = smul.addr %s6503, 8
        %s6505 = scalar_lea.vmem [#allocation19], %s6504
        // Predicated region
        $region101: #{tpu_custom_call.1} parent=59 // pred_check
          %p6506 = pneg %p265
        $region102: #{tpu_custom_call.1} parent=59 // pred_check_branch
          %6508 = sbr.rel (%p6506) target = $region104
        $region103: #{tpu_custom_call.1} parent=59 // pred_region
          %s6510 = ssub.s32 128, 128
          %6511 = vsyncadd %s6502, %s6510
          %s6512 = smul.addr %s32, 2
          %s6513 = smul.addr %s6512, 64
          %s6514 = scalar_lea.hbm %s10, %s6513
          %s6516 = sshll.u32 %s6505, 4
          %s6517 = int_to_ptr.vmem [resolvable:$true] %s6516
          %6519 = dma.vmem_to_hbm [thread:$0]  %s6517, 128, %s6514, %s6502
        $region104: #{tpu_custom_call.1} parent=59 // pred_fallthru
          _
      $region60: #{tpu_custom_call.1} parent=5 // pred_fallthru
        _
      %p6520 = scmp.le.s32.totalorder 2, %s27
      // Predicated region
      $region105: #{tpu_custom_call.1} parent=5 // pred_check
        %p6521 = pneg %p6520
      $region106: #{tpu_custom_call.1} parent=5 // pred_check_branch
        %6523 = sbr.rel (%p6521) target = $region108
      $region107: #{tpu_custom_call.1} parent=5 // pred_region
        %s6524 = ssub.s32 %s27, 2
        // Predicated region
        $region109: #{tpu_custom_call.1} parent=107 // pred_check
          %p6525 = pneg %p271
        $region110: #{tpu_custom_call.1} parent=107 // pred_check_branch
          %6527 = sbr.rel (%p6525) target = $region112
        $region111: #{tpu_custom_call.1} parent=107 // pred_region
          %s6528 = sand.u32 %s256, 1
          %s6529 = scalar_lea.sflag [#allocation4], %s6528
          %s6530 = sand.u32 %s256, 1
          %s6531 = smul.addr %s6530, 8
          %s6532 = scalar_lea.vmem [#allocation19], %s6531
          %6533 = dma.done %s6529, 128
        $region112: #{tpu_custom_call.1} parent=107 // pred_fallthru
          _
      $region108: #{tpu_custom_call.1} parent=5 // pred_fallthru
        _
    $region6: #{tpu_custom_call.1} parent=1 // loop_footer
      %s31 = sadd.s32 1, %s27
    $region7: #{tpu_custom_call.1} parent=1 // loop_footer_branch
      %26 = sbr.rel target = $region3
    $region8: #{tpu_custom_call.1} parent=1 // loop_exit
      _
    %6534 = vsyncpa [#allocation3], 1
    %s6535 = scalar_lea.sflag [#allocation3], 1
    %6536 = vsyncpa %s6535, 1
    %6537 = vsyncpa [#allocation6], 1
    %6538 = vsyncpa [#allocation9], 1
    %6539 = vsyncpa [#allocation12], 1
    %6540 = vsyncpa [#allocation15], 1
    %6541 = vsyncpa [#allocation18], 1
    %6542 = vsyncpa [#allocation4], 1
    %s6543 = scalar_lea.sflag [#allocation4], 1
    %6544 = vsyncpa %s6543, 1

</llo_original>
